<compile_context>
chip_gen: v5e
topology: v5e:2x2
jax: 0.10.0
libtpu: 0.0.40
codegen_flags: <defaults>
</compile_context>

<pallas_src>
import functools

import jax
import jax.numpy as jnp
from jax.experimental import pallas as pl
from jax.experimental.pallas import tpu as pltpu

SELU_ALPHA = 1.6732632423543772
SELU_SCALE = 1.0507009873554805


# ---------------------------------------------------------------------------
# Kernel
# ---------------------------------------------------------------------------
def _linear_kernel(x_ref, w_ref, b_ref, o_ref, acc_ref, *, apply_selu, tk):
    """One (N-tile, K-tile) grid step of y = act(x @ W + b).

    x_ref  : (M, Kp)  bf16, VMEM-resident (constant block index).
    w_ref  : (tk, tn) bf16, one fully contiguous tile of the 4-D weight layout.
    b_ref  : (1, tn)  f32.
    o_ref  : (M, tn)  output (bf16 for hidden layers, f32 for the last one);
             written only on the final K step.
    acc_ref: (M, tn)  f32 scratch accumulator, resident across the K axis.
    """
    k = pl.program_id(1)

    @pl.when(k == 0)
    def _():
        acc_ref[...] = jnp.zeros_like(acc_ref)

    kk = pl.multiple_of(k * tk, 128)
    acc_ref[...] += jnp.dot(
        x_ref[:, pl.ds(kk, tk)], w_ref[...],
        preferred_element_type=jnp.float32,
    )

    @pl.when(k == pl.num_programs(1) - 1)
    def _():
        y = acc_ref[...] + b_ref[...]
        if apply_selu:
            y = SELU_SCALE * jnp.where(y > 0.0, y, SELU_ALPHA * (jnp.exp(y) - 1.0))
        o_ref[...] = y.astype(o_ref.dtype)


# ---------------------------------------------------------------------------
# Per-generation config / tiling helpers / one-time parameter preparation
# ---------------------------------------------------------------------------
def _round_up(x, m):
    return (x + m - 1) // m * m


def _device_config():
    """Gate tile caps + VMEM limit on the TPU generation (VMEM capacity)."""
    vmem_bytes = None
    try:
        info = pltpu.get_tpu_info()
        vmem_bytes = getattr(info, "vmem_capacity_bytes", None)
    except Exception:
        vmem_bytes = None
    if vmem_bytes is None:
        vmem_bytes = 64 * 1024 * 1024  # conservative default (v7x per-core size)

    if vmem_bytes >= 100 * 1024 * 1024:
        # v5e / v6e: 128 MiB VMEM, single TensorCore per chip -> big tiles.
        return dict(max_tk=4096, max_tn=4096,
                    vmem_limit=96 * 1024 * 1024, prefer_even_n=False)
    # v7x: 64 MiB per TensorCore, 2 TCs -> keep 2x(W tile)+x+acc well under it
    # and prefer an even N-tile count so the parallel axis splits evenly.
    return dict(max_tk=2048, max_tn=4096,
                vmem_limit=min(int(vmem_bytes) - 6 * 1024 * 1024,
                               56 * 1024 * 1024),
                prefer_even_n=True)


def _pick_tile(dim, unit, max_tile, prefer_even_count=False):
    """Pick a tile size (multiple of `unit`, in [max_tile//2, max_tile], capped
    at the padded dim) minimizing padding; optionally prefer an even tile count
    (v7x megacore balance) when it costs little extra padding."""
    dim_p = _round_up(dim, unit)
    hi = min(_round_up(max_tile, unit), dim_p)
    lo = max(unit, min(hi, (max_tile // 2 // unit) * unit))
    cands = []
    t = hi
    while t >= lo:
        padded = _round_up(dim, t)
        cands.append((t, padded - dim, padded // t))
        t -= unit
    best_any = min(cands, key=lambda c: (c[1], c[2] % 2, -c[0]))
    if prefer_even_count:
        even = [c for c in cands if c[2] % 2 == 0]
        if even:
            best_even = min(even, key=lambda c: (c[1], -c[0]))
            # Accept the even-count tile unless it adds > ~5% extra padding.
            if best_even[1] <= best_any[1] + max(dim // 20, unit):
                return best_even[0]
    return best_any[0]


def init_params(key, d_in, d_h1, d_h2, d_out):
    """torch.nn.Linear-style init: U(-1/sqrt(fan_in), 1/sqrt(fan_in)).
    Weights stored as (in_features, out_features) == x @ W_torch.T layout."""
    dims = [(d_in, d_h1), (d_h1, d_h2), (d_h2, d_out)]
    params = []
    for i, (fi, fo) in enumerate(dims):
        kw, kb = jax.random.split(jax.random.fold_in(key, i))
        bound = 1.0 / float(jnp.sqrt(jnp.float32(fi)))
        w = jax.random.uniform(kw, (fi, fo), jnp.float32, -bound, bound)
        b = jax.random.uniform(kb, (fo,), jnp.float32, -bound, bound)
        params.append((w, b))
    return params


def prepare_params(params, config=None):
    """One-time: choose per-layer tiles, zero-pad W/b, cast W to bf16 and
    re-lay W out tile-contiguously as (Np//tn, Kp//tk, tk, tn) so every W-tile
    DMA is one contiguous block.  All per-forward work stays activation-sized."""
    if config is None:
        config = _device_config()
    prepped = []
    for w, b in params:
        K, N = w.shape
        tk = _pick_tile(K, 128, config["max_tk"])
        tn = _pick_tile(N, 128, config["max_tn"],
                        prefer_even_count=config["prefer_even_n"])
        Kp = _round_up(K, tk)
        Np = _round_up(N, tn)
        wp = jnp.pad(w, ((0, Kp - K), (0, Np - N))).astype(jnp.bfloat16)
        # Tile-contiguous layout: tile (j, k) == W[k*tk:(k+1)*tk, j*tn:(j+1)*tn].
        wt = wp.reshape(Kp // tk, tk, Np // tn, tn).transpose(2, 0, 1, 3)
        bp = jnp.pad(b, (0, Np - N)).astype(jnp.float32).reshape(1, Np)
        prepped.append(dict(w=wt, b=bp, K=K, N=N, Kp=Kp, Np=Np, tk=tk, tn=tn,
                            vmem_limit=config["vmem_limit"]))
    return prepped


# ---------------------------------------------------------------------------
# Layer wrapper + forward
# ---------------------------------------------------------------------------
def pallas_linear(x, layer, *, apply_selu, out_dtype):
    """y = selu(x @ W + b) (or no selu); x must already be (M, Kp) bf16."""
    M, Kp = x.shape
    assert Kp == layer["Kp"], (Kp, layer["Kp"])
    Np, tk, tn = layer["Np"], layer["tk"], layer["tn"]
    grid = (Np // tn, Kp // tk)  # reduction (K) axis last, "arbitrary"

    out_bytes = jnp.dtype(out_dtype).itemsize
    cost = pl.CostEstimate(
        flops=2 * M * Kp * Np,
        transcendentals=(M * Np) if apply_selu else 0,
        bytes_accessed=Kp * Np * 2 + M * Kp * 2 + Np * 4 + M * Np * out_bytes,
    )

    return pl.pallas_call(
        functools.partial(_linear_kernel, apply_selu=apply_selu, tk=tk),
        out_shape=jax.ShapeDtypeStruct((M, Np), out_dtype),
        grid_spec=pltpu.PrefetchScalarGridSpec(
            num_scalar_prefetch=0,
            grid=grid,
            in_specs=[
                # x stays VMEM-resident (constant block index -> single DMA).
                pl.BlockSpec((M, Kp), lambda j, k: (0, 0)),
                # Contiguous bf16 W tile; leading tile-index dims squeezed out.
                pl.BlockSpec((None, None, tk, tn), lambda j, k: (j, k, 0, 0)),
                # f32 bias tile.
                pl.BlockSpec((1, tn), lambda j, k: (0, j)),
            ],
            # Output block revisited across k; written only on the last K step.
            out_specs=pl.BlockSpec((M, tn), lambda j, k: (0, j)),
            scratch_shapes=[pltpu.VMEM((M, tn), jnp.float32)],
        ),
        compiler_params=pltpu.CompilerParams(
            dimension_semantics=("parallel", "arbitrary"),
            vmem_limit_bytes=layer["vmem_limit"],
        ),
        cost_estimate=cost,
    )(x, layer["w"], layer["b"])


def nn_model_forward(x, prepped):
    """Flatten -> Linear+SELU -> Linear+SELU -> Linear."""
    B = x.shape[0]
    h = x.reshape(B, -1)  # nn.Flatten()
    n = len(prepped)
    for i, layer in enumerate(prepped):
        K, Kp = layer["K"], layer["Kp"]
        if h.shape[1] == Kp:
            # Padded width of the previous layer chains directly into this
            # layer (padded cols are exact zeros AND hit zero weight rows):
            # no slice / pad / extra HBM round-trip.
            xp = h
        else:
            xp = h[:, :K] if h.shape[1] > K else h
            if Kp != K:
                xp = jnp.pad(xp, ((0, 0), (0, Kp - K)))
        xp = xp.astype(jnp.bfloat16)
        is_last = i == n - 1
        h = pallas_linear(xp, layer, apply_selu=not is_last,
                          out_dtype=jnp.float32 if is_last else jnp.bfloat16)
    N = prepped[-1]["N"]
    return h[:, :N] if h.shape[1] != N else h


# ---------------------------------------------------------------------------
# Reference (pure JAX, same bf16 weights / f32 accumulation / bf16 handoff)
# ---------------------------------------------------------------------------
def _reference_forward(x, params):
    B = x.shape[0]
    h = x.reshape(B, -1).astype(jnp.float32)
    n = len(params)
    for i, (w, b) in enumerate(params):
        y = jnp.dot(h.astype(jnp.bfloat16), w.astype(jnp.bfloat16),
                    preferred_element_type=jnp.float32) + b
        if i < n - 1:
            y = SELU_SCALE * jnp.where(y > 0.0, y, SELU_ALPHA * (jnp.exp(y) - 1.0))
            y = y.astype(jnp.bfloat16).astype(jnp.float32)  # match bf16 handoff
        h = y
    return h


if __name__ == "__main__":
    # True module sizes: D_IN=8190, D_H1=D_H2=25000, D_OUT=8000.
    # Self-test keeps the faithful 8190-feature flatten input (B, 2, 45, 91)
    # and uses scaled-down hidden/output widths for speed.
    B, C, H, W = 2, 2, 45, 91           # 2 * 45 * 91 = 8190 features after Flatten
    D_IN = C * H * W                    # 8190
    D_H1, D_H2, D_OUT = 1024, 1024, 512

    key = jax.random.PRNGKey(0)
    kx, kp = jax.random.split(key)
    x = jax.random.normal(kx, (B, C, H, W), jnp.float32)

    params = init_params(kp, D_IN, D_H1, D_H2, D_OUT)
    prepped = prepare_params(params)    # pad + bf16 cast + tile layout ONCE

    out = jax.block_until_ready(nn_model_forward(x, prepped))
    ref = jax.block_until_ready(_reference_forward(x, params))

    assert out.shape == (B, D_OUT), out.shape
    max_err = float(jnp.max(jnp.abs(out - ref)))
    assert jnp.allclose(out, ref, atol=5e-3, rtol=5e-3), max_err

    print("KERNEL_OK")
</pallas_src>

<mosaic_0001>
module attributes {stable_mosaic.version = 11 : i64} {
  func.func @_linear_kernel(%arg0: i32, %arg1: i32, %arg2: memref<2x8192xbf16, #tpu.memory_space<vmem>>, %arg3: memref<1x1x2048x1024xbf16, #tpu.memory_space<vmem>>, %arg4: memref<1x1024xf32, #tpu.memory_space<vmem>>, %arg5: memref<2x1024xbf16, #tpu.memory_space<vmem>>, %arg6: memref<2x1024xf32, #tpu.memory_space<vmem>>) attributes {dimension_semantics = [#tpu.dimension_semantics<parallel>, #tpu.dimension_semantics<arbitrary>], iteration_bounds = array<i64: 1, 4>, scalar_prefetch = 0 : i64, scratch_operands = 1 : i64, tpu.core_type = #tpu.core_type<tc>, window_params = [{pipeline_mode = #tpu.pipeline_mode<synchronous>, transform_indices = @transform_0, window_bounds = array<i64: 2, 8192>}, {transform_indices = @transform_1, window_bounds = array<i64: 1, 1, 2048, 1024>}, {transform_indices = @transform_2, window_bounds = array<i64: 1, 1024>}, {transform_indices = @transform_3, window_bounds = array<i64: 2, 1024>}]} {
    %c0_i32 = arith.constant 0 : i32
    %0 = arith.cmpi eq, %arg1, %c0_i32 : i32
    %1 = arith.extui %0 : i1 to i32
    %c0_i32_0 = arith.constant 0 : i32
    %2 = arith.cmpi ne, %1, %c0_i32_0 : i32
    scf.if %2 {
      %cst_10 = arith.constant 0.000000e+00 : f32
      %16 = vector.broadcast %cst_10 : f32 to vector<2x1024xf32>
      %c0_11 = arith.constant 0 : index
      %c0_12 = arith.constant 0 : index
      %17 = vector.load %arg6[%c0_11, %c0_12] : memref<2x1024xf32, #tpu.memory_space<vmem>>, vector<2x1024xf32>
      tpu.vector_store %arg6[%c0_11, %c0_12], %16 {strides = array<i32>} : memref<2x1024xf32, #tpu.memory_space<vmem>>, vector<2x1024xf32>,
    } else {
    }
    %c2048_i32 = arith.constant 2048 : i32
    %3 = arith.muli %arg1, %c2048_i32 : i32
    %4 = tpu.assume_multiple %3, 128 : i32
    %c0 = arith.constant 0 : index
    %c0_1 = arith.constant 0 : index
    %5 = vector.load %arg6[%c0, %c0_1] : memref<2x1024xf32, #tpu.memory_space<vmem>>, vector<2x1024xf32>
    %c0_2 = arith.constant 0 : index
    %6 = arith.index_cast %4 : i32 to index
    %7 = vector.load %arg2[%c0_2, %6] : memref<2x8192xbf16, #tpu.memory_space<vmem>>, vector<2x2048xbf16>
    %c0_3 = arith.constant 0 : index
    %c0_4 = arith.constant 0 : index
    %c0_5 = arith.constant 0 : index
    %c0_6 = arith.constant 0 : index
    %8 = vector.load %arg3[%c0_3, %c0_4, %c0_5, %c0_6] : memref<1x1x2048x1024xbf16, #tpu.memory_space<vmem>>, vector<1x1x2048x1024xbf16>
    %9 = vector.shape_cast %8 : vector<1x1x2048x1024xbf16> to vector<2048x1024xbf16>
    %cst = arith.constant dense<0.000000e+00> : vector<2x1024xf32>
    %10 = tpu.matmul %7, %9, %cst {dimension_numbers = #tpu.dot_dimension_numbers<[1], [0], [0], [1], [0, 0, 1, 1], [], []>} : vector<2x2048xbf16>, vector<2048x1024xbf16>, vector<2x1024xf32> -> vector<2x1024xf32>
    %11 = arith.addf %5, %10 : vector<2x1024xf32>
    %c0_7 = arith.constant 0 : index
    %c0_8 = arith.constant 0 : index
    %12 = vector.load %arg6[%c0_7, %c0_8] : memref<2x1024xf32, #tpu.memory_space<vmem>>, vector<2x1024xf32>
    tpu.vector_store %arg6[%c0_7, %c0_8], %11 {strides = array<i32>} : memref<2x1024xf32, #tpu.memory_space<vmem>>, vector<2x1024xf32>,
    %c3_i32 = arith.constant 3 : i32
    %13 = arith.cmpi eq, %arg1, %c3_i32 : i32
    %14 = arith.extui %13 : i1 to i32
    %c0_i32_9 = arith.constant 0 : i32
    %15 = arith.cmpi ne, %14, %c0_i32_9 : i32
    scf.if %15 {
      %c0_10 = arith.constant 0 : index
      %c0_11 = arith.constant 0 : index
      %16 = vector.load %arg6[%c0_10, %c0_11] : memref<2x1024xf32, #tpu.memory_space<vmem>>, vector<2x1024xf32>
      %c0_12 = arith.constant 0 : index
      %c0_13 = arith.constant 0 : index
      %17 = vector.load %arg4[%c0_12, %c0_13] : memref<1x1024xf32, #tpu.memory_space<vmem>>, vector<1x1024xf32>
      %18 = vector.broadcast %17 : vector<1x1024xf32> to vector<2x1024xf32>
      %19 = arith.addf %16, %18 : vector<2x1024xf32>
      %cst_14 = arith.constant 0.000000e+00 : f32
      %20 = vector.broadcast %cst_14 : f32 to vector<2x1024xf32>
      %21 = arith.cmpf ogt, %19, %20 : vector<2x1024xf32>
      %22 = math.exp %19 : vector<2x1024xf32>
      %cst_15 = arith.constant 1.000000e+00 : f32
      %23 = vector.broadcast %cst_15 : f32 to vector<2x1024xf32>
      %24 = arith.subf %22, %23 : vector<2x1024xf32>
      %cst_16 = arith.constant 1.67326319 : f32
      %25 = vector.broadcast %cst_16 : f32 to vector<2x1024xf32>
      %26 = arith.mulf %25, %24 : vector<2x1024xf32>
      %27 = arith.select %21, %19, %26 : vector<2x1024xi1>, vector<2x1024xf32>
      %cst_17 = arith.constant 1.05070102 : f32
      %28 = vector.broadcast %cst_17 : f32 to vector<2x1024xf32>
      %29 = arith.mulf %28, %27 : vector<2x1024xf32>
      %30 = arith.truncf %29 : vector<2x1024xf32> to vector<2x1024xbf16>
      %c0_18 = arith.constant 0 : index
      %c0_19 = arith.constant 0 : index
      %31 = vector.load %arg5[%c0_18, %c0_19] : memref<2x1024xbf16, #tpu.memory_space<vmem>>, vector<2x1024xbf16>
      tpu.vector_store %arg5[%c0_18, %c0_19], %30 {strides = array<i32>} : memref<2x1024xbf16, #tpu.memory_space<vmem>>, vector<2x1024xbf16>,
    } else {
    }
    return
  }
  func.func @transform_0(%arg0: i32, %arg1: i32) -> (i32, i32) {
    %c0_i32 = arith.constant 0 : i32
    %c0_i32_0 = arith.constant 0 : i32
    %c0_i32_1 = arith.constant 0 : i32
    return %c0_i32, %c0_i32_0 : i32, i32
  }
  func.func @transform_1(%arg0: i32, %arg1: i32) -> (i32, i32, i32, i32) {
    %c0_i32 = arith.constant 0 : i32
    %c0_i32_0 = arith.constant 0 : i32
    %c0_i32_1 = arith.constant 0 : i32
    return %arg0, %arg1, %c0_i32, %c0_i32_0 : i32, i32, i32, i32
  }
  func.func @transform_2(%arg0: i32, %arg1: i32) -> (i32, i32) {
    %c0_i32 = arith.constant 0 : i32
    %c0_i32_0 = arith.constant 0 : i32
    return %c0_i32, %arg0 : i32, i32
  }
  func.func @transform_3(%arg0: i32, %arg1: i32) -> (i32, i32) {
    %c0_i32 = arith.constant 0 : i32
    %c0_i32_0 = arith.constant 0 : i32
    return %c0_i32, %arg0 : i32, i32
  }
}

</mosaic_0001>

<llo_original>
// kernel: tpu_custom_call.1
$region0: #{tpu_custom_call.1}
  #allocation0 [shape = 'u32[]', space=smem, size = 0x4, offset = 0x4, fixed_abs, tag = 'smem constant byte address 0x4 - core index']
  #allocation1 [shape = 'u32[72,128]{1,0:T(1,128)}', space=vmem, size = 0x9000, scoped, tag = 'internal scratch']
  #allocation2 [shape = 'f32[2,1024]{1,0:T(2,128)}', space=vmem, size = 0x2000, scoped, tag = 'scratch operand']
  %s0 = inlined_call_operand.hbm [shape: bf16[2,8192], index: 0, kind: input, shape index: {}]
  %s1 = inlined_call_operand.hbm [shape: bf16[1,4,2048,1024], index: 1, kind: input, shape index: {}]
  %s2 = inlined_call_operand.hbm [shape: f32[1,1024], index: 2, kind: input, shape index: {}]
  %s3 = inlined_call_operand.hbm [shape: bf16[2,1024], index: 3, kind: output, shape index: {}]
  %s4 = sld [smem:[#allocation0]]
  $region65: #{tpu_custom_call.1} parent=0
    _
  %s6 = ssub.s32 1, %s4
  %s7 = scalar_select 0, %s6, %s4
  $region1: #{tpu_custom_call.1} parent=0
    #allocation3 [shape = 'u8[32768]{0}', space=vmem, size = 0x8000, scoped, tag = 'input window, operand 0, single buffered']
    #allocation4 [shape = 's32[2]{0}', space=sflag, size = 0x8, scoped, tag = 'scoped memory for tpu_custom_call.1']
    #allocation5 [shape = 's32[2]{0}', space=sflag, size = 0x8, scoped, tag = 'scoped memory for tpu_custom_call.1']
    #allocation6 [shape = 'u8[8388608]{0}', space=vmem, size = 0x800000, scoped, tag = 'input window, operand 1']
    #allocation7 [shape = 's32[2]{0}', space=sflag, size = 0x8, scoped, tag = 'scoped memory for tpu_custom_call.1']
    #allocation8 [shape = 'u8[4096]{0}', space=vmem, size = 0x1000, scoped, tag = 'input window, operand 2, single buffered']
    #allocation9 [shape = 'u8[4096]{0}', space=vmem, size = 0x1000, scoped, tag = 'output window, operand 0, single buffered']
    %8 = vsyncpa [#allocation4], 0
    %9 = vsyncpa [#allocation7], 0
    %s10 = scalar_lea.sflag [#allocation7], 1
    %11 = vsyncpa %s10, 0
    %12 = vsyncpa [#allocation5], 0
    loop: start=0, step=1, limit=6
    $region2: #{tpu_custom_call.1} parent=1 // loop_pre_header
      _
    $region3: #{tpu_custom_call.1} parent=1 // loop_header
      %s14 = sphi 0, %s18
      %p15 = scmp.ge.s32.totalorder %s14, 6
      %s21 = sphi 0, %s33
      %s22 = sphi 0, %s29
      %s23 = sphi 0, %s21
      %s24 = sphi 0, %s22
      %s25 = sphi 0, %s23
      %s26 = sphi 0, %s24
      %s34 = sphi 0, %s34
      %s36 = sphi 0, %s34
      %s37 = sphi 0, %s36
      %s51 = sphi 0, %s37
      %s59 = sphi 0, %s61
      %s62 = sphi 0, %s59
      %s63 = sphi 0, %s62
      %s79 = sphi 0, %s63
      %s85 = sphi 0, %s87
      %s88 = sphi 0, %s85
      %s89 = sphi 0, %s88
      %s105 = sphi 0, %s89
      %s111 = sphi 0, %s113
      %s114 = sphi 0, %s111
      %s115 = sphi 0, %s114
      %s131 = sphi 0, %s115
    $region4: #{tpu_custom_call.1} parent=1 // loop_header_branch
      %17 = sbr.rel (%p15) target = $region8
    $region5: #{tpu_custom_call.1} parent=1 // loop_body
      %s19 = ssub.s32 %s14, 1
      %s20 = ssub.s32 %s14, 2
      %s27 = sadd.s32 1, %s22
      %p28 = scmp.ge.s32.totalorder %s27, 4
      %s29 = scalar_select %p28, 0, %s27
      %s30 = sadd.s32 1, %s21
      %s31 = scalar_select %p28, %s30, %s21
      %p32 = scmp.ge.s32.totalorder %s31, 1
      %s33 = scalar_select %p32, 0, %s31
      %s35 = sadd.s32 %s34, 1
      %p38 = scmp.eq.s32.totalorder %s14, 3
      %p39 = scmp.ne.s32.totalorder %s34, %s36
      %p40 = scmp.eq.s32.totalorder %s14, 0
      %p41 = por %p39, %p40
      %p42 = scmp.ne.s32.totalorder %s34, %s36
      %p43 = scmp.eq.s32.totalorder %s19, 3
      %p44 = por %p42, %p43
      %p45 = scmp.ne.s32.totalorder %s36, %s37
      %p46 = scmp.eq.s32.totalorder %s19, 0
      %p47 = por %p45, %p46
      %p48 = scmp.ne.s32.totalorder %s36, %s37
      %p49 = scmp.eq.s32.totalorder %s20, 3
      %p50 = por %p48, %p49
      %p52 = scmp.ne.s32.totalorder %s37, %s51
      %p53 = scmp.eq.s32.totalorder %s20, 0
      %p54 = por %p52, %p53
      %s55 = ssub.s32 %s21, %s33
      %s56 = ssub.s32 %s22, %s29
      %s57 = sor.u32 %s55, %s56
      %p58 = scmp.eq.s32.totalorder %s57, 0
      %s60 = sadd.s32 %s59, 1
      %s61 = scalar_select %p58, %s59, %s60
      %p64 = pneg %p58
      %p65 = scmp.eq.s32.totalorder %s14, 3
      %p66 = por %p64, %p65
      %p67 = scmp.ne.s32.totalorder %s59, %s62
      %p68 = scmp.eq.s32.totalorder %s14, 0
      %p69 = por %p67, %p68
      %p70 = scmp.ne.s32.totalorder %s59, %s62
      %p71 = scmp.eq.s32.totalorder %s19, 3
      %p72 = por %p70, %p71
      %p73 = scmp.ne.s32.totalorder %s62, %s63
      %p74 = scmp.eq.s32.totalorder %s19, 0
      %p75 = por %p73, %p74
      %p76 = scmp.ne.s32.totalorder %s62, %s63
      %p77 = scmp.eq.s32.totalorder %s20, 3
      %p78 = por %p76, %p77
      %p80 = scmp.ne.s32.totalorder %s63, %s79
      %p81 = scmp.eq.s32.totalorder %s20, 0
      %p82 = por %p80, %p81
      %s83 = ssub.s32 %s21, %s33
      %p84 = scmp.eq.s32.totalorder %s83, 0
      %s86 = sadd.s32 %s85, 1
      %s87 = scalar_select %p84, %s85, %s86
      %p90 = pneg %p84
      %p91 = scmp.eq.s32.totalorder %s14, 3
      %p92 = por %p90, %p91
      %p93 = scmp.ne.s32.totalorder %s85, %s88
      %p94 = scmp.eq.s32.totalorder %s14, 0
      %p95 = por %p93, %p94
      %p96 = scmp.ne.s32.totalorder %s85, %s88
      %p97 = scmp.eq.s32.totalorder %s19, 3
      %p98 = por %p96, %p97
      %p99 = scmp.ne.s32.totalorder %s88, %s89
      %p100 = scmp.eq.s32.totalorder %s19, 0
      %p101 = por %p99, %p100
      %p102 = scmp.ne.s32.totalorder %s88, %s89
      %p103 = scmp.eq.s32.totalorder %s20, 3
      %p104 = por %p102, %p103
      %p106 = scmp.ne.s32.totalorder %s89, %s105
      %p107 = scmp.eq.s32.totalorder %s20, 0
      %p108 = por %p106, %p107
      %s109 = ssub.s32 %s21, %s33
      %p110 = scmp.eq.s32.totalorder %s109, 0
      %s112 = sadd.s32 %s111, 1
      %s113 = scalar_select %p110, %s111, %s112
      %p116 = pneg %p110
      %p117 = scmp.eq.s32.totalorder %s14, 3
      %p118 = por %p116, %p117
      %p119 = scmp.ne.s32.totalorder %s111, %s114
      %p120 = scmp.eq.s32.totalorder %s14, 0
      %p121 = por %p119, %p120
      %p122 = scmp.ne.s32.totalorder %s111, %s114
      %p123 = scmp.eq.s32.totalorder %s19, 3
      %p124 = por %p122, %p123
      %p125 = scmp.ne.s32.totalorder %s114, %s115
      %p126 = scmp.eq.s32.totalorder %s19, 0
      %p127 = por %p125, %p126
      %p128 = scmp.ne.s32.totalorder %s114, %s115
      %p129 = scmp.eq.s32.totalorder %s20, 3
      %p130 = por %p128, %p129
      %p132 = scmp.ne.s32.totalorder %s115, %s131
      %p133 = scmp.eq.s32.totalorder %s20, 0
      %p134 = por %p132, %p133
      %p135 = scmp.le.s32.totalorder 1, %s14
      %p136 = scmp.lt.s32.totalorder %s14, 5
      %p137 = pnand %p135, %p136
      %p138 = pneg %p137
      // Predicated region
      $region9: #{tpu_custom_call.1} parent=5 // pred_check
        _
      $region10: #{tpu_custom_call.1} parent=5 // pred_check_branch
        %140 = sbr.rel (%p137) target = $region12
      $region11: #{tpu_custom_call.1} parent=5 // pred_region
        %s141 = ssub.s32 %s14, 1
        // Predicated region
        $region13: #{tpu_custom_call.1} parent=11 // pred_check
          %p142 = pneg %p47
        $region14: #{tpu_custom_call.1} parent=11 // pred_check_branch
          %144 = sbr.rel (%p142) target = $region16
        $region15: #{tpu_custom_call.1} parent=11 // pred_region
          %146 = vsyncadd [#allocation4], 0
          %s148 = sshll.u32 %s0, 4
          %s149 = int_to_ptr.hbm [resolvable:$true] %s148
          %s150 = sshll.u32 [#allocation3], 4
          %s151 = int_to_ptr.vmem [resolvable:$true] %s150
          %153 = dma.hbm_to_vmem [thread:$0]  %s149, 1024, %s151, [#allocation4]
        $region16: #{tpu_custom_call.1} parent=11 // pred_fallthru
          _
        // Predicated region
        $region17: #{tpu_custom_call.1} parent=11 // pred_check
          %p154 = pneg %p101
        $region18: #{tpu_custom_call.1} parent=11 // pred_check_branch
          %156 = sbr.rel (%p154) target = $region20
        $region19: #{tpu_custom_call.1} parent=11 // pred_region
          %s157 = smul.u32 8, %s23
          %159 = vsyncadd [#allocation7], 0
          %s160 = scalar_lea.hbm %s2, %s157
          %s162 = sshll.u32 %s160, 4
          %s163 = int_to_ptr.hbm [resolvable:$true] %s162
          %s164 = sshll.u32 [#allocation8], 4
          %s165 = int_to_ptr.vmem [resolvable:$true] %s164
          %167 = dma.hbm_to_vmem [thread:$0]  %s163, 128, %s165, [#allocation7]
        $region20: #{tpu_custom_call.1} parent=11 // pred_fallthru
          _
      $region12: #{tpu_custom_call.1} parent=5 // pred_fallthru
        _
      %p168 = scmp.lt.s32.totalorder %s14, 4
      // Predicated region
      $region21: #{tpu_custom_call.1} parent=5 // pred_check
        %p169 = pneg %p168
      $region22: #{tpu_custom_call.1} parent=5 // pred_check_branch
        %171 = sbr.rel (%p169) target = $region24
      $region23: #{tpu_custom_call.1} parent=5 // pred_region
        // Predicated region
        $region25: #{tpu_custom_call.1} parent=23 // pred_check
          %p172 = pneg %p69
        $region26: #{tpu_custom_call.1} parent=23 // pred_check_branch
          %174 = sbr.rel (%p172) target = $region28
        $region27: #{tpu_custom_call.1} parent=23 // pred_region
          %s175 = sand.u32 %s14, 1
          %s176 = scalar_lea.sflag [#allocation7], %s175
          %s177 = sand.u32 %s59, 1
          %s178 = smul.addr %s177, 8192
          %s179 = scalar_lea.vmem [#allocation6], %s178
          %181 = vsyncadd %s176, 0
          %s182 = smul.addr %s22, 2048
          %s183 = smul.addr %s21, 8192
          %s184 = sadd.s32 %s182, %s183
          %s185 = smul.addr %s184, 4
          %s186 = scalar_lea.hbm %s1, %s185
          %s187 = sshll.u32 %s186, 4
          %s188 = int_to_ptr.hbm [resolvable:$true] %s187
          %s189 = sshll.u32 %s179, 4
          %s190 = int_to_ptr.vmem [resolvable:$true] %s189
          %195 = dma.hbm_to_vmem [thread:$0]  %s188, 131072, %s190, %s176, 512, 512, 32
        $region28: #{tpu_custom_call.1} parent=23 // pred_fallthru
          _
      $region24: #{tpu_custom_call.1} parent=5 // pred_fallthru
        _
      %p196 = scmp.le.s32.totalorder 1, %s14
      %p197 = scmp.lt.s32.totalorder %s14, 5
      %p198 = pnand %p196, %p197
      %p199 = pneg %p198
      // Predicated region
      $region29: #{tpu_custom_call.1} parent=5 // pred_check
        _
      $region30: #{tpu_custom_call.1} parent=5 // pred_check_branch
        %201 = sbr.rel (%p198) target = $region32
      $region31: #{tpu_custom_call.1} parent=5 // pred_region
        %s202 = ssub.s32 %s14, 1
        // Predicated region
        $region33: #{tpu_custom_call.1} parent=31 // pred_check
          %p203 = pneg %p47
        $region34: #{tpu_custom_call.1} parent=31 // pred_check_branch
          %205 = sbr.rel (%p203) target = $region36
        $region35: #{tpu_custom_call.1} parent=31 // pred_region
          %207 = dma.done [#allocation4], 1024
        $region36: #{tpu_custom_call.1} parent=31 // pred_fallthru
          _
        %s208 = sand.u32 %s19, 1
        %s209 = scalar_lea.sflag [#allocation7], %s208
        %s210 = sand.u32 %s62, 1
        %s211 = smul.addr %s210, 8192
        %s212 = scalar_lea.vmem [#allocation6], %s211
        // Predicated region
        $region37: #{tpu_custom_call.1} parent=31 // pred_check
          %p213 = pneg %p75
        $region38: #{tpu_custom_call.1} parent=31 // pred_check_branch
          %215 = sbr.rel (%p213) target = $region40
        $region39: #{tpu_custom_call.1} parent=31 // pred_region
          %217 = dma.done %s209, 131072
        $region40: #{tpu_custom_call.1} parent=31 // pred_fallthru
          _
        // Predicated region
        $region41: #{tpu_custom_call.1} parent=31 // pred_check
          %p218 = pneg %p101
        $region42: #{tpu_custom_call.1} parent=31 // pred_check_branch
          %220 = sbr.rel (%p218) target = $region44
        $region43: #{tpu_custom_call.1} parent=31 // pred_region
          %222 = dma.done [#allocation7], 128
        $region44: #{tpu_custom_call.1} parent=31 // pred_fallthru
          _
        %p223 = pneg %p47
        %p224 = pneg %p44
        %s225 = sand.u32 %s19, 1
        %s226 = scalar_lea.sflag [#allocation7], %s225
        %s227 = sand.u32 %s62, 1
        %s228 = smul.addr %s227, 8192
        %s229 = scalar_lea.vmem [#allocation6], %s228
        %p230 = pneg %p75
        %p231 = pneg %p72
        %p232 = pneg %p101
        %p233 = pneg %p98
        %p234 = pneg %p127
        %p235 = pneg %p124
        %s236 = smul.u32 8, %s23
        %s237 = smul.u32 8, %s23
        %p238 = scmp.eq.s32.totalorder %s24, 0
        // Predicated region
        $region45: #{tpu_custom_call.1} parent=31 // pred_check
          %p239 = pneg %p238
        $region46: #{tpu_custom_call.1} parent=31 // pred_check_branch
          %241 = sbr.rel (%p239) target = $region48
        $region47: #{tpu_custom_call.1} parent=31 // pred_region
          %242 = vst [vmem:[#allocation2] sm:$0xff] 0.0
          %243 = vst [vmem:[#allocation2 + $0x8] sm:$0xff] 0.0
        $region48: #{tpu_custom_call.1} parent=31 // pred_fallthru
          _
        %s244 = smul.u32 %s24, 2048
        %v245 = vld [vmem:[#allocation2] sm:$0xff]
        %v246 = vld [vmem:[#allocation2 + $0x8] sm:$0xff]
        %s247 = sshra.s32 %s244, 7
        %s248 = sand.u32 %s244, 127
        %s249 = scalar_lea.vmem [#allocation3], %s247
        %v250 = vld [vmem:[%s249] sm:$0xff]
        %v251 = vld [vmem:[%s249 + $0x8] sm:$0xff]
        %v252 = vld [vmem:[%s212] sm:$0xff]
        %v253 = vld [vmem:[%s212 + $0x8] sm:$0xff]
        %v254 = vld [vmem:[%s212 + $0x10] sm:$0xff]
        %v255 = vld [vmem:[%s212 + $0x18] sm:$0xff]
        %v256 = vld [vmem:[%s212 + $0x20] sm:$0xff]
        %v257 = vld [vmem:[%s212 + $0x28] sm:$0xff]
        %v258 = vld [vmem:[%s212 + $0x30] sm:$0xff]
        %v259 = vld [vmem:[%s212 + $0x38] sm:$0xff]
        %v260 = vld [vmem:[%s212 + $0x40] sm:$0xff]
        %v261 = vld [vmem:[%s212 + $0x48] sm:$0xff]
        %v262 = vld [vmem:[%s212 + $0x50] sm:$0xff]
        %v263 = vld [vmem:[%s212 + $0x58] sm:$0xff]
        %v264 = vld [vmem:[%s212 + $0x60] sm:$0xff]
        %v265 = vld [vmem:[%s212 + $0x68] sm:$0xff]
        %v266 = vld [vmem:[%s212 + $0x70] sm:$0xff]
        %v267 = vld [vmem:[%s212 + $0x78] sm:$0xff]
        %v268 = vld [vmem:[%s212 + $0x80] sm:$0xff]
        %v269 = vld [vmem:[%s212 + $0x88] sm:$0xff]
        %v270 = vld [vmem:[%s212 + $0x90] sm:$0xff]
        %v271 = vld [vmem:[%s212 + $0x98] sm:$0xff]
        %v272 = vld [vmem:[%s212 + $0xa0] sm:$0xff]
        %v273 = vld [vmem:[%s212 + $0xa8] sm:$0xff]
        %v274 = vld [vmem:[%s212 + $0xb0] sm:$0xff]
        %v275 = vld [vmem:[%s212 + $0xb8] sm:$0xff]
        %v276 = vld [vmem:[%s212 + $0xc0] sm:$0xff]
        %v277 = vld [vmem:[%s212 + $0xc8] sm:$0xff]
        %v278 = vld [vmem:[%s212 + $0xd0] sm:$0xff]
        %v279 = vld [vmem:[%s212 + $0xd8] sm:$0xff]
        %v280 = vld [vmem:[%s212 + $0xe0] sm:$0xff]
        %v281 = vld [vmem:[%s212 + $0xe8] sm:$0xff]
        %v282 = vld [vmem:[%s212 + $0xf0] sm:$0xff]
        %v283 = vld [vmem:[%s212 + $0xf8] sm:$0xff]
        %v284 = vld [vmem:[%s212 + $0x100] sm:$0xff]
        %v285 = vld [vmem:[%s212 + $0x108] sm:$0xff]
        %v286 = vld [vmem:[%s212 + $0x110] sm:$0xff]
        %v287 = vld [vmem:[%s212 + $0x118] sm:$0xff]
        %v288 = vld [vmem:[%s212 + $0x120] sm:$0xff]
        %v289 = vld [vmem:[%s212 + $0x128] sm:$0xff]
        %v290 = vld [vmem:[%s212 + $0x130] sm:$0xff]
        %v291 = vld [vmem:[%s212 + $0x138] sm:$0xff]
        %v292 = vld [vmem:[%s212 + $0x140] sm:$0xff]
        %v293 = vld [vmem:[%s212 + $0x148] sm:$0xff]
        %v294 = vld [vmem:[%s212 + $0x150] sm:$0xff]
        %v295 = vld [vmem:[%s212 + $0x158] sm:$0xff]
        %v296 = vld [vmem:[%s212 + $0x160] sm:$0xff]
        %v297 = vld [vmem:[%s212 + $0x168] sm:$0xff]
        %v298 = vld [vmem:[%s212 + $0x170] sm:$0xff]
        %v299 = vld [vmem:[%s212 + $0x178] sm:$0xff]
        %v300 = vld [vmem:[%s212 + $0x180] sm:$0xff]
        %v301 = vld [vmem:[%s212 + $0x188] sm:$0xff]
        %v302 = vld [vmem:[%s212 + $0x190] sm:$0xff]
        %v303 = vld [vmem:[%s212 + $0x198] sm:$0xff]
        %v304 = vld [vmem:[%s212 + $0x1a0] sm:$0xff]
        %v305 = vld [vmem:[%s212 + $0x1a8] sm:$0xff]
        %v306 = vld [vmem:[%s212 + $0x1b0] sm:$0xff]
        %v307 = vld [vmem:[%s212 + $0x1b8] sm:$0xff]
        %v308 = vld [vmem:[%s212 + $0x1c0] sm:$0xff]
        %v309 = vld [vmem:[%s212 + $0x1c8] sm:$0xff]
        %v310 = vld [vmem:[%s212 + $0x1d0] sm:$0xff]
        %v311 = vld [vmem:[%s212 + $0x1d8] sm:$0xff]
        %v312 = vld [vmem:[%s212 + $0x1e0] sm:$0xff]
        %v313 = vld [vmem:[%s212 + $0x1e8] sm:$0xff]
        %v314 = vld [vmem:[%s212 + $0x1f0] sm:$0xff]
        %v315 = vld [vmem:[%s212 + $0x1f8] sm:$0xff]
        %v316 = vld [vmem:[%s212 + $0x200] sm:$0xff]
        %v317 = vld [vmem:[%s212 + $0x208] sm:$0xff]
        %v318 = vld [vmem:[%s212 + $0x210] sm:$0xff]
        %v319 = vld [vmem:[%s212 + $0x218] sm:$0xff]
        %v320 = vld [vmem:[%s212 + $0x220] sm:$0xff]
        %v321 = vld [vmem:[%s212 + $0x228] sm:$0xff]
        %v322 = vld [vmem:[%s212 + $0x230] sm:$0xff]
        %v323 = vld [vmem:[%s212 + $0x238] sm:$0xff]
        %v324 = vld [vmem:[%s212 + $0x240] sm:$0xff]
        %v325 = vld [vmem:[%s212 + $0x248] sm:$0xff]
        %v326 = vld [vmem:[%s212 + $0x250] sm:$0xff]
        %v327 = vld [vmem:[%s212 + $0x258] sm:$0xff]
        %v328 = vld [vmem:[%s212 + $0x260] sm:$0xff]
        %v329 = vld [vmem:[%s212 + $0x268] sm:$0xff]
        %v330 = vld [vmem:[%s212 + $0x270] sm:$0xff]
        %v331 = vld [vmem:[%s212 + $0x278] sm:$0xff]
        %v332 = vld [vmem:[%s212 + $0x280] sm:$0xff]
        %v333 = vld [vmem:[%s212 + $0x288] sm:$0xff]
        %v334 = vld [vmem:[%s212 + $0x290] sm:$0xff]
        %v335 = vld [vmem:[%s212 + $0x298] sm:$0xff]
        %v336 = vld [vmem:[%s212 + $0x2a0] sm:$0xff]
        %v337 = vld [vmem:[%s212 + $0x2a8] sm:$0xff]
        %v338 = vld [vmem:[%s212 + $0x2b0] sm:$0xff]
        %v339 = vld [vmem:[%s212 + $0x2b8] sm:$0xff]
        %v340 = vld [vmem:[%s212 + $0x2c0] sm:$0xff]
        %v341 = vld [vmem:[%s212 + $0x2c8] sm:$0xff]
        %v342 = vld [vmem:[%s212 + $0x2d0] sm:$0xff]
        %v343 = vld [vmem:[%s212 + $0x2d8] sm:$0xff]
        %v344 = vld [vmem:[%s212 + $0x2e0] sm:$0xff]
        %v345 = vld [vmem:[%s212 + $0x2e8] sm:$0xff]
        %v346 = vld [vmem:[%s212 + $0x2f0] sm:$0xff]
        %v347 = vld [vmem:[%s212 + $0x2f8] sm:$0xff]
        %v348 = vld [vmem:[%s212 + $0x300] sm:$0xff]
        %v349 = vld [vmem:[%s212 + $0x308] sm:$0xff]
        %v350 = vld [vmem:[%s212 + $0x310] sm:$0xff]
        %v351 = vld [vmem:[%s212 + $0x318] sm:$0xff]
        %v352 = vld [vmem:[%s212 + $0x320] sm:$0xff]
        %v353 = vld [vmem:[%s212 + $0x328] sm:$0xff]
        %v354 = vld [vmem:[%s212 + $0x330] sm:$0xff]
        %v355 = vld [vmem:[%s212 + $0x338] sm:$0xff]
        %v356 = vld [vmem:[%s212 + $0x340] sm:$0xff]
        %v357 = vld [vmem:[%s212 + $0x348] sm:$0xff]
        %v358 = vld [vmem:[%s212 + $0x350] sm:$0xff]
        %v359 = vld [vmem:[%s212 + $0x358] sm:$0xff]
        %v360 = vld [vmem:[%s212 + $0x360] sm:$0xff]
        %v361 = vld [vmem:[%s212 + $0x368] sm:$0xff]
        %v362 = vld [vmem:[%s212 + $0x370] sm:$0xff]
        %v363 = vld [vmem:[%s212 + $0x378] sm:$0xff]
        %v364 = vld [vmem:[%s212 + $0x380] sm:$0xff]
        %v365 = vld [vmem:[%s212 + $0x388] sm:$0xff]
        %v366 = vld [vmem:[%s212 + $0x390] sm:$0xff]
        %v367 = vld [vmem:[%s212 + $0x398] sm:$0xff]
        %v368 = vld [vmem:[%s212 + $0x3a0] sm:$0xff]
        %v369 = vld [vmem:[%s212 + $0x3a8] sm:$0xff]
        %v370 = vld [vmem:[%s212 + $0x3b0] sm:$0xff]
        %v371 = vld [vmem:[%s212 + $0x3b8] sm:$0xff]
        %v372 = vld [vmem:[%s212 + $0x3c0] sm:$0xff]
        %v373 = vld [vmem:[%s212 + $0x3c8] sm:$0xff]
        %v374 = vld [vmem:[%s212 + $0x3d0] sm:$0xff]
        %v375 = vld [vmem:[%s212 + $0x3d8] sm:$0xff]
        %v376 = vld [vmem:[%s212 + $0x3e0] sm:$0xff]
        %v377 = vld [vmem:[%s212 + $0x3e8] sm:$0xff]
        %v378 = vld [vmem:[%s212 + $0x3f0] sm:$0xff]
        %v379 = vld [vmem:[%s212 + $0x3f8] sm:$0xff]
        %v380 = vld [vmem:[%s212 + $0x400] sm:$0xff]
        %v381 = vld [vmem:[%s212 + $0x408] sm:$0xff]
        %v382 = vld [vmem:[%s212 + $0x410] sm:$0xff]
        %v383 = vld [vmem:[%s212 + $0x418] sm:$0xff]
        %v384 = vld [vmem:[%s212 + $0x420] sm:$0xff]
        %v385 = vld [vmem:[%s212 + $0x428] sm:$0xff]
        %v386 = vld [vmem:[%s212 + $0x430] sm:$0xff]
        %v387 = vld [vmem:[%s212 + $0x438] sm:$0xff]
        %v388 = vld [vmem:[%s212 + $0x440] sm:$0xff]
        %v389 = vld [vmem:[%s212 + $0x448] sm:$0xff]
        %v390 = vld [vmem:[%s212 + $0x450] sm:$0xff]
        %v391 = vld [vmem:[%s212 + $0x458] sm:$0xff]
        %v392 = vld [vmem:[%s212 + $0x460] sm:$0xff]
        %v393 = vld [vmem:[%s212 + $0x468] sm:$0xff]
        %v394 = vld [vmem:[%s212 + $0x470] sm:$0xff]
        %v395 = vld [vmem:[%s212 + $0x478] sm:$0xff]
        %v396 = vld [vmem:[%s212 + $0x480] sm:$0xff]
        %v397 = vld [vmem:[%s212 + $0x488] sm:$0xff]
        %v398 = vld [vmem:[%s212 + $0x490] sm:$0xff]
        %v399 = vld [vmem:[%s212 + $0x498] sm:$0xff]
        %v400 = vld [vmem:[%s212 + $0x4a0] sm:$0xff]
        %v401 = vld [vmem:[%s212 + $0x4a8] sm:$0xff]
        %v402 = vld [vmem:[%s212 + $0x4b0] sm:$0xff]
        %v403 = vld [vmem:[%s212 + $0x4b8] sm:$0xff]
        %v404 = vld [vmem:[%s212 + $0x4c0] sm:$0xff]
        %v405 = vld [vmem:[%s212 + $0x4c8] sm:$0xff]
        %v406 = vld [vmem:[%s212 + $0x4d0] sm:$0xff]
        %v407 = vld [vmem:[%s212 + $0x4d8] sm:$0xff]
        %v408 = vld [vmem:[%s212 + $0x4e0] sm:$0xff]
        %v409 = vld [vmem:[%s212 + $0x4e8] sm:$0xff]
        %v410 = vld [vmem:[%s212 + $0x4f0] sm:$0xff]
        %v411 = vld [vmem:[%s212 + $0x4f8] sm:$0xff]
        %v412 = vld [vmem:[%s212 + $0x500] sm:$0xff]
        %v413 = vld [vmem:[%s212 + $0x508] sm:$0xff]
        %v414 = vld [vmem:[%s212 + $0x510] sm:$0xff]
        %v415 = vld [vmem:[%s212 + $0x518] sm:$0xff]
        %v416 = vld [vmem:[%s212 + $0x520] sm:$0xff]
        %v417 = vld [vmem:[%s212 + $0x528] sm:$0xff]
        %v418 = vld [vmem:[%s212 + $0x530] sm:$0xff]
        %v419 = vld [vmem:[%s212 + $0x538] sm:$0xff]
        %v420 = vld [vmem:[%s212 + $0x540] sm:$0xff]
        %v421 = vld [vmem:[%s212 + $0x548] sm:$0xff]
        %v422 = vld [vmem:[%s212 + $0x550] sm:$0xff]
        %v423 = vld [vmem:[%s212 + $0x558] sm:$0xff]
        %v424 = vld [vmem:[%s212 + $0x560] sm:$0xff]
        %v425 = vld [vmem:[%s212 + $0x568] sm:$0xff]
        %v426 = vld [vmem:[%s212 + $0x570] sm:$0xff]
        %v427 = vld [vmem:[%s212 + $0x578] sm:$0xff]
        %v428 = vld [vmem:[%s212 + $0x580] sm:$0xff]
        %v429 = vld [vmem:[%s212 + $0x588] sm:$0xff]
        %v430 = vld [vmem:[%s212 + $0x590] sm:$0xff]
        %v431 = vld [vmem:[%s212 + $0x598] sm:$0xff]
        %v432 = vld [vmem:[%s212 + $0x5a0] sm:$0xff]
        %v433 = vld [vmem:[%s212 + $0x5a8] sm:$0xff]
        %v434 = vld [vmem:[%s212 + $0x5b0] sm:$0xff]
        %v435 = vld [vmem:[%s212 + $0x5b8] sm:$0xff]
        %v436 = vld [vmem:[%s212 + $0x5c0] sm:$0xff]
        %v437 = vld [vmem:[%s212 + $0x5c8] sm:$0xff]
        %v438 = vld [vmem:[%s212 + $0x5d0] sm:$0xff]
        %v439 = vld [vmem:[%s212 + $0x5d8] sm:$0xff]
        %v440 = vld [vmem:[%s212 + $0x5e0] sm:$0xff]
        %v441 = vld [vmem:[%s212 + $0x5e8] sm:$0xff]
        %v442 = vld [vmem:[%s212 + $0x5f0] sm:$0xff]
        %v443 = vld [vmem:[%s212 + $0x5f8] sm:$0xff]
        %v444 = vld [vmem:[%s212 + $0x600] sm:$0xff]
        %v445 = vld [vmem:[%s212 + $0x608] sm:$0xff]
        %v446 = vld [vmem:[%s212 + $0x610] sm:$0xff]
        %v447 = vld [vmem:[%s212 + $0x618] sm:$0xff]
        %v448 = vld [vmem:[%s212 + $0x620] sm:$0xff]
        %v449 = vld [vmem:[%s212 + $0x628] sm:$0xff]
        %v450 = vld [vmem:[%s212 + $0x630] sm:$0xff]
        %v451 = vld [vmem:[%s212 + $0x638] sm:$0xff]
        %v452 = vld [vmem:[%s212 + $0x640] sm:$0xff]
        %v453 = vld [vmem:[%s212 + $0x648] sm:$0xff]
        %v454 = vld [vmem:[%s212 + $0x650] sm:$0xff]
        %v455 = vld [vmem:[%s212 + $0x658] sm:$0xff]
        %v456 = vld [vmem:[%s212 + $0x660] sm:$0xff]
        %v457 = vld [vmem:[%s212 + $0x668] sm:$0xff]
        %v458 = vld [vmem:[%s212 + $0x670] sm:$0xff]
        %v459 = vld [vmem:[%s212 + $0x678] sm:$0xff]
        %v460 = vld [vmem:[%s212 + $0x680] sm:$0xff]
        %v461 = vld [vmem:[%s212 + $0x688] sm:$0xff]
        %v462 = vld [vmem:[%s212 + $0x690] sm:$0xff]
        %v463 = vld [vmem:[%s212 + $0x698] sm:$0xff]
        %v464 = vld [vmem:[%s212 + $0x6a0] sm:$0xff]
        %v465 = vld [vmem:[%s212 + $0x6a8] sm:$0xff]
        %v466 = vld [vmem:[%s212 + $0x6b0] sm:$0xff]
        %v467 = vld [vmem:[%s212 + $0x6b8] sm:$0xff]
        %v468 = vld [vmem:[%s212 + $0x6c0] sm:$0xff]
        %v469 = vld [vmem:[%s212 + $0x6c8] sm:$0xff]
        %v470 = vld [vmem:[%s212 + $0x6d0] sm:$0xff]
        %v471 = vld [vmem:[%s212 + $0x6d8] sm:$0xff]
        %v472 = vld [vmem:[%s212 + $0x6e0] sm:$0xff]
        %v473 = vld [vmem:[%s212 + $0x6e8] sm:$0xff]
        %v474 = vld [vmem:[%s212 + $0x6f0] sm:$0xff]
        %v475 = vld [vmem:[%s212 + $0x6f8] sm:$0xff]
        %v476 = vld [vmem:[%s212 + $0x700] sm:$0xff]
        %v477 = vld [vmem:[%s212 + $0x708] sm:$0xff]
        %v478 = vld [vmem:[%s212 + $0x710] sm:$0xff]
        %v479 = vld [vmem:[%s212 + $0x718] sm:$0xff]
        %v480 = vld [vmem:[%s212 + $0x720] sm:$0xff]
        %v481 = vld [vmem:[%s212 + $0x728] sm:$0xff]
        %v482 = vld [vmem:[%s212 + $0x730] sm:$0xff]
        %v483 = vld [vmem:[%s212 + $0x738] sm:$0xff]
        %v484 = vld [vmem:[%s212 + $0x740] sm:$0xff]
        %v485 = vld [vmem:[%s212 + $0x748] sm:$0xff]
        %v486 = vld [vmem:[%s212 + $0x750] sm:$0xff]
        %v487 = vld [vmem:[%s212 + $0x758] sm:$0xff]
        %v488 = vld [vmem:[%s212 + $0x760] sm:$0xff]
        %v489 = vld [vmem:[%s212 + $0x768] sm:$0xff]
        %v490 = vld [vmem:[%s212 + $0x770] sm:$0xff]
        %v491 = vld [vmem:[%s212 + $0x778] sm:$0xff]
        %v492 = vld [vmem:[%s212 + $0x780] sm:$0xff]
        %v493 = vld [vmem:[%s212 + $0x788] sm:$0xff]
        %v494 = vld [vmem:[%s212 + $0x790] sm:$0xff]
        %v495 = vld [vmem:[%s212 + $0x798] sm:$0xff]
        %v496 = vld [vmem:[%s212 + $0x7a0] sm:$0xff]
        %v497 = vld [vmem:[%s212 + $0x7a8] sm:$0xff]
        %v498 = vld [vmem:[%s212 + $0x7b0] sm:$0xff]
        %v499 = vld [vmem:[%s212 + $0x7b8] sm:$0xff]
        %v500 = vld [vmem:[%s212 + $0x7c0] sm:$0xff]
        %v501 = vld [vmem:[%s212 + $0x7c8] sm:$0xff]
        %v502 = vld [vmem:[%s212 + $0x7d0] sm:$0xff]
        %v503 = vld [vmem:[%s212 + $0x7d8] sm:$0xff]
        %v504 = vld [vmem:[%s212 + $0x7e0] sm:$0xff]
        %v505 = vld [vmem:[%s212 + $0x7e8] sm:$0xff]
        %v506 = vld [vmem:[%s212 + $0x7f0] sm:$0xff]
        %v507 = vld [vmem:[%s212 + $0x7f8] sm:$0xff]
        %v508 = vld [vmem:[%s212 + $0x800] sm:$0xff]
        %v509 = vld [vmem:[%s212 + $0x808] sm:$0xff]
        %v510 = vld [vmem:[%s212 + $0x810] sm:$0xff]
        %v511 = vld [vmem:[%s212 + $0x818] sm:$0xff]
        %v512 = vld [vmem:[%s212 + $0x820] sm:$0xff]
        %v513 = vld [vmem:[%s212 + $0x828] sm:$0xff]
        %v514 = vld [vmem:[%s212 + $0x830] sm:$0xff]
        %v515 = vld [vmem:[%s212 + $0x838] sm:$0xff]
        %v516 = vld [vmem:[%s212 + $0x840] sm:$0xff]
        %v517 = vld [vmem:[%s212 + $0x848] sm:$0xff]
        %v518 = vld [vmem:[%s212 + $0x850] sm:$0xff]
        %v519 = vld [vmem:[%s212 + $0x858] sm:$0xff]
        %v520 = vld [vmem:[%s212 + $0x860] sm:$0xff]
        %v521 = vld [vmem:[%s212 + $0x868] sm:$0xff]
        %v522 = vld [vmem:[%s212 + $0x870] sm:$0xff]
        %v523 = vld [vmem:[%s212 + $0x878] sm:$0xff]
        %v524 = vld [vmem:[%s212 + $0x880] sm:$0xff]
        %v525 = vld [vmem:[%s212 + $0x888] sm:$0xff]
        %v526 = vld [vmem:[%s212 + $0x890] sm:$0xff]
        %v527 = vld [vmem:[%s212 + $0x898] sm:$0xff]
        %v528 = vld [vmem:[%s212 + $0x8a0] sm:$0xff]
        %v529 = vld [vmem:[%s212 + $0x8a8] sm:$0xff]
        %v530 = vld [vmem:[%s212 + $0x8b0] sm:$0xff]
        %v531 = vld [vmem:[%s212 + $0x8b8] sm:$0xff]
        %v532 = vld [vmem:[%s212 + $0x8c0] sm:$0xff]
        %v533 = vld [vmem:[%s212 + $0x8c8] sm:$0xff]
        %v534 = vld [vmem:[%s212 + $0x8d0] sm:$0xff]
        %v535 = vld [vmem:[%s212 + $0x8d8] sm:$0xff]
        %v536 = vld [vmem:[%s212 + $0x8e0] sm:$0xff]
        %v537 = vld [vmem:[%s212 + $0x8e8] sm:$0xff]
        %v538 = vld [vmem:[%s212 + $0x8f0] sm:$0xff]
        %v539 = vld [vmem:[%s212 + $0x8f8] sm:$0xff]
        %v540 = vld [vmem:[%s212 + $0x900] sm:$0xff]
        %v541 = vld [vmem:[%s212 + $0x908] sm:$0xff]
        %v542 = vld [vmem:[%s212 + $0x910] sm:$0xff]
        %v543 = vld [vmem:[%s212 + $0x918] sm:$0xff]
        %v544 = vld [vmem:[%s212 + $0x920] sm:$0xff]
        %v545 = vld [vmem:[%s212 + $0x928] sm:$0xff]
        %v546 = vld [vmem:[%s212 + $0x930] sm:$0xff]
        %v547 = vld [vmem:[%s212 + $0x938] sm:$0xff]
        %v548 = vld [vmem:[%s212 + $0x940] sm:$0xff]
        %v549 = vld [vmem:[%s212 + $0x948] sm:$0xff]
        %v550 = vld [vmem:[%s212 + $0x950] sm:$0xff]
        %v551 = vld [vmem:[%s212 + $0x958] sm:$0xff]
        %v552 = vld [vmem:[%s212 + $0x960] sm:$0xff]
        %v553 = vld [vmem:[%s212 + $0x968] sm:$0xff]
        %v554 = vld [vmem:[%s212 + $0x970] sm:$0xff]
        %v555 = vld [vmem:[%s212 + $0x978] sm:$0xff]
        %v556 = vld [vmem:[%s212 + $0x980] sm:$0xff]
        %v557 = vld [vmem:[%s212 + $0x988] sm:$0xff]
        %v558 = vld [vmem:[%s212 + $0x990] sm:$0xff]
        %v559 = vld [vmem:[%s212 + $0x998] sm:$0xff]
        %v560 = vld [vmem:[%s212 + $0x9a0] sm:$0xff]
        %v561 = vld [vmem:[%s212 + $0x9a8] sm:$0xff]
        %v562 = vld [vmem:[%s212 + $0x9b0] sm:$0xff]
        %v563 = vld [vmem:[%s212 + $0x9b8] sm:$0xff]
        %v564 = vld [vmem:[%s212 + $0x9c0] sm:$0xff]
        %v565 = vld [vmem:[%s212 + $0x9c8] sm:$0xff]
        %v566 = vld [vmem:[%s212 + $0x9d0] sm:$0xff]
        %v567 = vld [vmem:[%s212 + $0x9d8] sm:$0xff]
        %v568 = vld [vmem:[%s212 + $0x9e0] sm:$0xff]
        %v569 = vld [vmem:[%s212 + $0x9e8] sm:$0xff]
        %v570 = vld [vmem:[%s212 + $0x9f0] sm:$0xff]
        %v571 = vld [vmem:[%s212 + $0x9f8] sm:$0xff]
        %v572 = vld [vmem:[%s212 + $0xa00] sm:$0xff]
        %v573 = vld [vmem:[%s212 + $0xa08] sm:$0xff]
        %v574 = vld [vmem:[%s212 + $0xa10] sm:$0xff]
        %v575 = vld [vmem:[%s212 + $0xa18] sm:$0xff]
        %v576 = vld [vmem:[%s212 + $0xa20] sm:$0xff]
        %v577 = vld [vmem:[%s212 + $0xa28] sm:$0xff]
        %v578 = vld [vmem:[%s212 + $0xa30] sm:$0xff]
        %v579 = vld [vmem:[%s212 + $0xa38] sm:$0xff]
        %v580 = vld [vmem:[%s212 + $0xa40] sm:$0xff]
        %v581 = vld [vmem:[%s212 + $0xa48] sm:$0xff]
        %v582 = vld [vmem:[%s212 + $0xa50] sm:$0xff]
        %v583 = vld [vmem:[%s212 + $0xa58] sm:$0xff]
        %v584 = vld [vmem:[%s212 + $0xa60] sm:$0xff]
        %v585 = vld [vmem:[%s212 + $0xa68] sm:$0xff]
        %v586 = vld [vmem:[%s212 + $0xa70] sm:$0xff]
        %v587 = vld [vmem:[%s212 + $0xa78] sm:$0xff]
        %v588 = vld [vmem:[%s212 + $0xa80] sm:$0xff]
        %v589 = vld [vmem:[%s212 + $0xa88] sm:$0xff]
        %v590 = vld [vmem:[%s212 + $0xa90] sm:$0xff]
        %v591 = vld [vmem:[%s212 + $0xa98] sm:$0xff]
        %v592 = vld [vmem:[%s212 + $0xaa0] sm:$0xff]
        %v593 = vld [vmem:[%s212 + $0xaa8] sm:$0xff]
        %v594 = vld [vmem:[%s212 + $0xab0] sm:$0xff]
        %v595 = vld [vmem:[%s212 + $0xab8] sm:$0xff]
        %v596 = vld [vmem:[%s212 + $0xac0] sm:$0xff]
        %v597 = vld [vmem:[%s212 + $0xac8] sm:$0xff]
        %v598 = vld [vmem:[%s212 + $0xad0] sm:$0xff]
        %v599 = vld [vmem:[%s212 + $0xad8] sm:$0xff]
        %v600 = vld [vmem:[%s212 + $0xae0] sm:$0xff]
        %v601 = vld [vmem:[%s212 + $0xae8] sm:$0xff]
        %v602 = vld [vmem:[%s212 + $0xaf0] sm:$0xff]
        %v603 = vld [vmem:[%s212 + $0xaf8] sm:$0xff]
        %v604 = vld [vmem:[%s212 + $0xb00] sm:$0xff]
        %v605 = vld [vmem:[%s212 + $0xb08] sm:$0xff]
        %v606 = vld [vmem:[%s212 + $0xb10] sm:$0xff]
        %v607 = vld [vmem:[%s212 + $0xb18] sm:$0xff]
        %v608 = vld [vmem:[%s212 + $0xb20] sm:$0xff]
        %v609 = vld [vmem:[%s212 + $0xb28] sm:$0xff]
        %v610 = vld [vmem:[%s212 + $0xb30] sm:$0xff]
        %v611 = vld [vmem:[%s212 + $0xb38] sm:$0xff]
        %v612 = vld [vmem:[%s212 + $0xb40] sm:$0xff]
        %v613 = vld [vmem:[%s212 + $0xb48] sm:$0xff]
        %v614 = vld [vmem:[%s212 + $0xb50] sm:$0xff]
        %v615 = vld [vmem:[%s212 + $0xb58] sm:$0xff]
        %v616 = vld [vmem:[%s212 + $0xb60] sm:$0xff]
        %v617 = vld [vmem:[%s212 + $0xb68] sm:$0xff]
        %v618 = vld [vmem:[%s212 + $0xb70] sm:$0xff]
        %v619 = vld [vmem:[%s212 + $0xb78] sm:$0xff]
        %v620 = vld [vmem:[%s212 + $0xb80] sm:$0xff]
        %v621 = vld [vmem:[%s212 + $0xb88] sm:$0xff]
        %v622 = vld [vmem:[%s212 + $0xb90] sm:$0xff]
        %v623 = vld [vmem:[%s212 + $0xb98] sm:$0xff]
        %v624 = vld [vmem:[%s212 + $0xba0] sm:$0xff]
        %v625 = vld [vmem:[%s212 + $0xba8] sm:$0xff]
        %v626 = vld [vmem:[%s212 + $0xbb0] sm:$0xff]
        %v627 = vld [vmem:[%s212 + $0xbb8] sm:$0xff]
        %v628 = vld [vmem:[%s212 + $0xbc0] sm:$0xff]
        %v629 = vld [vmem:[%s212 + $0xbc8] sm:$0xff]
        %v630 = vld [vmem:[%s212 + $0xbd0] sm:$0xff]
        %v631 = vld [vmem:[%s212 + $0xbd8] sm:$0xff]
        %v632 = vld [vmem:[%s212 + $0xbe0] sm:$0xff]
        %v633 = vld [vmem:[%s212 + $0xbe8] sm:$0xff]
        %v634 = vld [vmem:[%s212 + $0xbf0] sm:$0xff]
        %v635 = vld [vmem:[%s212 + $0xbf8] sm:$0xff]
        %v636 = vld [vmem:[%s212 + $0xc00] sm:$0xff]
        %v637 = vld [vmem:[%s212 + $0xc08] sm:$0xff]
        %v638 = vld [vmem:[%s212 + $0xc10] sm:$0xff]
        %v639 = vld [vmem:[%s212 + $0xc18] sm:$0xff]
        %v640 = vld [vmem:[%s212 + $0xc20] sm:$0xff]
        %v641 = vld [vmem:[%s212 + $0xc28] sm:$0xff]
        %v642 = vld [vmem:[%s212 + $0xc30] sm:$0xff]
        %v643 = vld [vmem:[%s212 + $0xc38] sm:$0xff]
        %v644 = vld [vmem:[%s212 + $0xc40] sm:$0xff]
        %v645 = vld [vmem:[%s212 + $0xc48] sm:$0xff]
        %v646 = vld [vmem:[%s212 + $0xc50] sm:$0xff]
        %v647 = vld [vmem:[%s212 + $0xc58] sm:$0xff]
        %v648 = vld [vmem:[%s212 + $0xc60] sm:$0xff]
        %v649 = vld [vmem:[%s212 + $0xc68] sm:$0xff]
        %v650 = vld [vmem:[%s212 + $0xc70] sm:$0xff]
        %v651 = vld [vmem:[%s212 + $0xc78] sm:$0xff]
        %v652 = vld [vmem:[%s212 + $0xc80] sm:$0xff]
        %v653 = vld [vmem:[%s212 + $0xc88] sm:$0xff]
        %v654 = vld [vmem:[%s212 + $0xc90] sm:$0xff]
        %v655 = vld [vmem:[%s212 + $0xc98] sm:$0xff]
        %v656 = vld [vmem:[%s212 + $0xca0] sm:$0xff]
        %v657 = vld [vmem:[%s212 + $0xca8] sm:$0xff]
        %v658 = vld [vmem:[%s212 + $0xcb0] sm:$0xff]
        %v659 = vld [vmem:[%s212 + $0xcb8] sm:$0xff]
        %v660 = vld [vmem:[%s212 + $0xcc0] sm:$0xff]
        %v661 = vld [vmem:[%s212 + $0xcc8] sm:$0xff]
        %v662 = vld [vmem:[%s212 + $0xcd0] sm:$0xff]
        %v663 = vld [vmem:[%s212 + $0xcd8] sm:$0xff]
        %v664 = vld [vmem:[%s212 + $0xce0] sm:$0xff]
        %v665 = vld [vmem:[%s212 + $0xce8] sm:$0xff]
        %v666 = vld [vmem:[%s212 + $0xcf0] sm:$0xff]
        %v667 = vld [vmem:[%s212 + $0xcf8] sm:$0xff]
        %v668 = vld [vmem:[%s212 + $0xd00] sm:$0xff]
        %v669 = vld [vmem:[%s212 + $0xd08] sm:$0xff]
        %v670 = vld [vmem:[%s212 + $0xd10] sm:$0xff]
        %v671 = vld [vmem:[%s212 + $0xd18] sm:$0xff]
        %v672 = vld [vmem:[%s212 + $0xd20] sm:$0xff]
        %v673 = vld [vmem:[%s212 + $0xd28] sm:$0xff]
        %v674 = vld [vmem:[%s212 + $0xd30] sm:$0xff]
        %v675 = vld [vmem:[%s212 + $0xd38] sm:$0xff]
        %v676 = vld [vmem:[%s212 + $0xd40] sm:$0xff]
        %v677 = vld [vmem:[%s212 + $0xd48] sm:$0xff]
        %v678 = vld [vmem:[%s212 + $0xd50] sm:$0xff]
        %v679 = vld [vmem:[%s212 + $0xd58] sm:$0xff]
        %v680 = vld [vmem:[%s212 + $0xd60] sm:$0xff]
        %v681 = vld [vmem:[%s212 + $0xd68] sm:$0xff]
        %v682 = vld [vmem:[%s212 + $0xd70] sm:$0xff]
        %v683 = vld [vmem:[%s212 + $0xd78] sm:$0xff]
        %v684 = vld [vmem:[%s212 + $0xd80] sm:$0xff]
        %v685 = vld [vmem:[%s212 + $0xd88] sm:$0xff]
        %v686 = vld [vmem:[%s212 + $0xd90] sm:$0xff]
        %v687 = vld [vmem:[%s212 + $0xd98] sm:$0xff]
        %v688 = vld [vmem:[%s212 + $0xda0] sm:$0xff]
        %v689 = vld [vmem:[%s212 + $0xda8] sm:$0xff]
        %v690 = vld [vmem:[%s212 + $0xdb0] sm:$0xff]
        %v691 = vld [vmem:[%s212 + $0xdb8] sm:$0xff]
        %v692 = vld [vmem:[%s212 + $0xdc0] sm:$0xff]
        %v693 = vld [vmem:[%s212 + $0xdc8] sm:$0xff]
        %v694 = vld [vmem:[%s212 + $0xdd0] sm:$0xff]
        %v695 = vld [vmem:[%s212 + $0xdd8] sm:$0xff]
        %v696 = vld [vmem:[%s212 + $0xde0] sm:$0xff]
        %v697 = vld [vmem:[%s212 + $0xde8] sm:$0xff]
        %v698 = vld [vmem:[%s212 + $0xdf0] sm:$0xff]
        %v699 = vld [vmem:[%s212 + $0xdf8] sm:$0xff]
        %v700 = vld [vmem:[%s212 + $0xe00] sm:$0xff]
        %v701 = vld [vmem:[%s212 + $0xe08] sm:$0xff]
        %v702 = vld [vmem:[%s212 + $0xe10] sm:$0xff]
        %v703 = vld [vmem:[%s212 + $0xe18] sm:$0xff]
        %v704 = vld [vmem:[%s212 + $0xe20] sm:$0xff]
        %v705 = vld [vmem:[%s212 + $0xe28] sm:$0xff]
        %v706 = vld [vmem:[%s212 + $0xe30] sm:$0xff]
        %v707 = vld [vmem:[%s212 + $0xe38] sm:$0xff]
        %v708 = vld [vmem:[%s212 + $0xe40] sm:$0xff]
        %v709 = vld [vmem:[%s212 + $0xe48] sm:$0xff]
        %v710 = vld [vmem:[%s212 + $0xe50] sm:$0xff]
        %v711 = vld [vmem:[%s212 + $0xe58] sm:$0xff]
        %v712 = vld [vmem:[%s212 + $0xe60] sm:$0xff]
        %v713 = vld [vmem:[%s212 + $0xe68] sm:$0xff]
        %v714 = vld [vmem:[%s212 + $0xe70] sm:$0xff]
        %v715 = vld [vmem:[%s212 + $0xe78] sm:$0xff]
        %v716 = vld [vmem:[%s212 + $0xe80] sm:$0xff]
        %v717 = vld [vmem:[%s212 + $0xe88] sm:$0xff]
        %v718 = vld [vmem:[%s212 + $0xe90] sm:$0xff]
        %v719 = vld [vmem:[%s212 + $0xe98] sm:$0xff]
        %v720 = vld [vmem:[%s212 + $0xea0] sm:$0xff]
        %v721 = vld [vmem:[%s212 + $0xea8] sm:$0xff]
        %v722 = vld [vmem:[%s212 + $0xeb0] sm:$0xff]
        %v723 = vld [vmem:[%s212 + $0xeb8] sm:$0xff]
        %v724 = vld [vmem:[%s212 + $0xec0] sm:$0xff]
        %v725 = vld [vmem:[%s212 + $0xec8] sm:$0xff]
        %v726 = vld [vmem:[%s212 + $0xed0] sm:$0xff]
        %v727 = vld [vmem:[%s212 + $0xed8] sm:$0xff]
        %v728 = vld [vmem:[%s212 + $0xee0] sm:$0xff]
        %v729 = vld [vmem:[%s212 + $0xee8] sm:$0xff]
        %v730 = vld [vmem:[%s212 + $0xef0] sm:$0xff]
        %v731 = vld [vmem:[%s212 + $0xef8] sm:$0xff]
        %v732 = vld [vmem:[%s212 + $0xf00] sm:$0xff]
        %v733 = vld [vmem:[%s212 + $0xf08] sm:$0xff]
        %v734 = vld [vmem:[%s212 + $0xf10] sm:$0xff]
        %v735 = vld [vmem:[%s212 + $0xf18] sm:$0xff]
        %v736 = vld [vmem:[%s212 + $0xf20] sm:$0xff]
        %v737 = vld [vmem:[%s212 + $0xf28] sm:$0xff]
        %v738 = vld [vmem:[%s212 + $0xf30] sm:$0xff]
        %v739 = vld [vmem:[%s212 + $0xf38] sm:$0xff]
        %v740 = vld [vmem:[%s212 + $0xf40] sm:$0xff]
        %v741 = vld [vmem:[%s212 + $0xf48] sm:$0xff]
        %v742 = vld [vmem:[%s212 + $0xf50] sm:$0xff]
        %v743 = vld [vmem:[%s212 + $0xf58] sm:$0xff]
        %v744 = vld [vmem:[%s212 + $0xf60] sm:$0xff]
        %v745 = vld [vmem:[%s212 + $0xf68] sm:$0xff]
        %v746 = vld [vmem:[%s212 + $0xf70] sm:$0xff]
        %v747 = vld [vmem:[%s212 + $0xf78] sm:$0xff]
        %v748 = vld [vmem:[%s212 + $0xf80] sm:$0xff]
        %v749 = vld [vmem:[%s212 + $0xf88] sm:$0xff]
        %v750 = vld [vmem:[%s212 + $0xf90] sm:$0xff]
        %v751 = vld [vmem:[%s212 + $0xf98] sm:$0xff]
        %v752 = vld [vmem:[%s212 + $0xfa0] sm:$0xff]
        %v753 = vld [vmem:[%s212 + $0xfa8] sm:$0xff]
        %v754 = vld [vmem:[%s212 + $0xfb0] sm:$0xff]
        %v755 = vld [vmem:[%s212 + $0xfb8] sm:$0xff]
        %v756 = vld [vmem:[%s212 + $0xfc0] sm:$0xff]
        %v757 = vld [vmem:[%s212 + $0xfc8] sm:$0xff]
        %v758 = vld [vmem:[%s212 + $0xfd0] sm:$0xff]
        %v759 = vld [vmem:[%s212 + $0xfd8] sm:$0xff]
        %v760 = vld [vmem:[%s212 + $0xfe0] sm:$0xff]
        %v761 = vld [vmem:[%s212 + $0xfe8] sm:$0xff]
        %v762 = vld [vmem:[%s212 + $0xff0] sm:$0xff]
        %v763 = vld [vmem:[%s212 + $0xff8] sm:$0xff]
        %v764 = vld [vmem:[%s212 + $0x1000] sm:$0xff]
        %v765 = vld [vmem:[%s212 + $0x1008] sm:$0xff]
        %v766 = vld [vmem:[%s212 + $0x1010] sm:$0xff]
        %v767 = vld [vmem:[%s212 + $0x1018] sm:$0xff]
        %v768 = vld [vmem:[%s212 + $0x1020] sm:$0xff]
        %v769 = vld [vmem:[%s212 + $0x1028] sm:$0xff]
        %v770 = vld [vmem:[%s212 + $0x1030] sm:$0xff]
        %v771 = vld [vmem:[%s212 + $0x1038] sm:$0xff]
        %v772 = vld [vmem:[%s212 + $0x1040] sm:$0xff]
        %v773 = vld [vmem:[%s212 + $0x1048] sm:$0xff]
        %v774 = vld [vmem:[%s212 + $0x1050] sm:$0xff]
        %v775 = vld [vmem:[%s212 + $0x1058] sm:$0xff]
        %v776 = vld [vmem:[%s212 + $0x1060] sm:$0xff]
        %v777 = vld [vmem:[%s212 + $0x1068] sm:$0xff]
        %v778 = vld [vmem:[%s212 + $0x1070] sm:$0xff]
        %v779 = vld [vmem:[%s212 + $0x1078] sm:$0xff]
        %v780 = vld [vmem:[%s212 + $0x1080] sm:$0xff]
        %v781 = vld [vmem:[%s212 + $0x1088] sm:$0xff]
        %v782 = vld [vmem:[%s212 + $0x1090] sm:$0xff]
        %v783 = vld [vmem:[%s212 + $0x1098] sm:$0xff]
        %v784 = vld [vmem:[%s212 + $0x10a0] sm:$0xff]
        %v785 = vld [vmem:[%s212 + $0x10a8] sm:$0xff]
        %v786 = vld [vmem:[%s212 + $0x10b0] sm:$0xff]
        %v787 = vld [vmem:[%s212 + $0x10b8] sm:$0xff]
        %v788 = vld [vmem:[%s212 + $0x10c0] sm:$0xff]
        %v789 = vld [vmem:[%s212 + $0x10c8] sm:$0xff]
        %v790 = vld [vmem:[%s212 + $0x10d0] sm:$0xff]
        %v791 = vld [vmem:[%s212 + $0x10d8] sm:$0xff]
        %v792 = vld [vmem:[%s212 + $0x10e0] sm:$0xff]
        %v793 = vld [vmem:[%s212 + $0x10e8] sm:$0xff]
        %v794 = vld [vmem:[%s212 + $0x10f0] sm:$0xff]
        %v795 = vld [vmem:[%s212 + $0x10f8] sm:$0xff]
        %v796 = vld [vmem:[%s212 + $0x1100] sm:$0xff]
        %v797 = vld [vmem:[%s212 + $0x1108] sm:$0xff]
        %v798 = vld [vmem:[%s212 + $0x1110] sm:$0xff]
        %v799 = vld [vmem:[%s212 + $0x1118] sm:$0xff]
        %v800 = vld [vmem:[%s212 + $0x1120] sm:$0xff]
        %v801 = vld [vmem:[%s212 + $0x1128] sm:$0xff]
        %v802 = vld [vmem:[%s212 + $0x1130] sm:$0xff]
        %v803 = vld [vmem:[%s212 + $0x1138] sm:$0xff]
        %v804 = vld [vmem:[%s212 + $0x1140] sm:$0xff]
        %v805 = vld [vmem:[%s212 + $0x1148] sm:$0xff]
        %v806 = vld [vmem:[%s212 + $0x1150] sm:$0xff]
        %v807 = vld [vmem:[%s212 + $0x1158] sm:$0xff]
        %v808 = vld [vmem:[%s212 + $0x1160] sm:$0xff]
        %v809 = vld [vmem:[%s212 + $0x1168] sm:$0xff]
        %v810 = vld [vmem:[%s212 + $0x1170] sm:$0xff]
        %v811 = vld [vmem:[%s212 + $0x1178] sm:$0xff]
        %v812 = vld [vmem:[%s212 + $0x1180] sm:$0xff]
        %v813 = vld [vmem:[%s212 + $0x1188] sm:$0xff]
        %v814 = vld [vmem:[%s212 + $0x1190] sm:$0xff]
        %v815 = vld [vmem:[%s212 + $0x1198] sm:$0xff]
        %v816 = vld [vmem:[%s212 + $0x11a0] sm:$0xff]
        %v817 = vld [vmem:[%s212 + $0x11a8] sm:$0xff]
        %v818 = vld [vmem:[%s212 + $0x11b0] sm:$0xff]
        %v819 = vld [vmem:[%s212 + $0x11b8] sm:$0xff]
        %v820 = vld [vmem:[%s212 + $0x11c0] sm:$0xff]
        %v821 = vld [vmem:[%s212 + $0x11c8] sm:$0xff]
        %v822 = vld [vmem:[%s212 + $0x11d0] sm:$0xff]
        %v823 = vld [vmem:[%s212 + $0x11d8] sm:$0xff]
        %v824 = vld [vmem:[%s212 + $0x11e0] sm:$0xff]
        %v825 = vld [vmem:[%s212 + $0x11e8] sm:$0xff]
        %v826 = vld [vmem:[%s212 + $0x11f0] sm:$0xff]
        %v827 = vld [vmem:[%s212 + $0x11f8] sm:$0xff]
        %v828 = vld [vmem:[%s212 + $0x1200] sm:$0xff]
        %v829 = vld [vmem:[%s212 + $0x1208] sm:$0xff]
        %v830 = vld [vmem:[%s212 + $0x1210] sm:$0xff]
        %v831 = vld [vmem:[%s212 + $0x1218] sm:$0xff]
        %v832 = vld [vmem:[%s212 + $0x1220] sm:$0xff]
        %v833 = vld [vmem:[%s212 + $0x1228] sm:$0xff]
        %v834 = vld [vmem:[%s212 + $0x1230] sm:$0xff]
        %v835 = vld [vmem:[%s212 + $0x1238] sm:$0xff]
        %v836 = vld [vmem:[%s212 + $0x1240] sm:$0xff]
        %v837 = vld [vmem:[%s212 + $0x1248] sm:$0xff]
        %v838 = vld [vmem:[%s212 + $0x1250] sm:$0xff]
        %v839 = vld [vmem:[%s212 + $0x1258] sm:$0xff]
        %v840 = vld [vmem:[%s212 + $0x1260] sm:$0xff]
        %v841 = vld [vmem:[%s212 + $0x1268] sm:$0xff]
        %v842 = vld [vmem:[%s212 + $0x1270] sm:$0xff]
        %v843 = vld [vmem:[%s212 + $0x1278] sm:$0xff]
        %v844 = vld [vmem:[%s212 + $0x1280] sm:$0xff]
        %v845 = vld [vmem:[%s212 + $0x1288] sm:$0xff]
        %v846 = vld [vmem:[%s212 + $0x1290] sm:$0xff]
        %v847 = vld [vmem:[%s212 + $0x1298] sm:$0xff]
        %v848 = vld [vmem:[%s212 + $0x12a0] sm:$0xff]
        %v849 = vld [vmem:[%s212 + $0x12a8] sm:$0xff]
        %v850 = vld [vmem:[%s212 + $0x12b0] sm:$0xff]
        %v851 = vld [vmem:[%s212 + $0x12b8] sm:$0xff]
        %v852 = vld [vmem:[%s212 + $0x12c0] sm:$0xff]
        %v853 = vld [vmem:[%s212 + $0x12c8] sm:$0xff]
        %v854 = vld [vmem:[%s212 + $0x12d0] sm:$0xff]
        %v855 = vld [vmem:[%s212 + $0x12d8] sm:$0xff]
        %v856 = vld [vmem:[%s212 + $0x12e0] sm:$0xff]
        %v857 = vld [vmem:[%s212 + $0x12e8] sm:$0xff]
        %v858 = vld [vmem:[%s212 + $0x12f0] sm:$0xff]
        %v859 = vld [vmem:[%s212 + $0x12f8] sm:$0xff]
        %v860 = vld [vmem:[%s212 + $0x1300] sm:$0xff]
        %v861 = vld [vmem:[%s212 + $0x1308] sm:$0xff]
        %v862 = vld [vmem:[%s212 + $0x1310] sm:$0xff]
        %v863 = vld [vmem:[%s212 + $0x1318] sm:$0xff]
        %v864 = vld [vmem:[%s212 + $0x1320] sm:$0xff]
        %v865 = vld [vmem:[%s212 + $0x1328] sm:$0xff]
        %v866 = vld [vmem:[%s212 + $0x1330] sm:$0xff]
        %v867 = vld [vmem:[%s212 + $0x1338] sm:$0xff]
        %v868 = vld [vmem:[%s212 + $0x1340] sm:$0xff]
        %v869 = vld [vmem:[%s212 + $0x1348] sm:$0xff]
        %v870 = vld [vmem:[%s212 + $0x1350] sm:$0xff]
        %v871 = vld [vmem:[%s212 + $0x1358] sm:$0xff]
        %v872 = vld [vmem:[%s212 + $0x1360] sm:$0xff]
        %v873 = vld [vmem:[%s212 + $0x1368] sm:$0xff]
        %v874 = vld [vmem:[%s212 + $0x1370] sm:$0xff]
        %v875 = vld [vmem:[%s212 + $0x1378] sm:$0xff]
        %v876 = vld [vmem:[%s212 + $0x1380] sm:$0xff]
        %v877 = vld [vmem:[%s212 + $0x1388] sm:$0xff]
        %v878 = vld [vmem:[%s212 + $0x1390] sm:$0xff]
        %v879 = vld [vmem:[%s212 + $0x1398] sm:$0xff]
        %v880 = vld [vmem:[%s212 + $0x13a0] sm:$0xff]
        %v881 = vld [vmem:[%s212 + $0x13a8] sm:$0xff]
        %v882 = vld [vmem:[%s212 + $0x13b0] sm:$0xff]
        %v883 = vld [vmem:[%s212 + $0x13b8] sm:$0xff]
        %v884 = vld [vmem:[%s212 + $0x13c0] sm:$0xff]
        %v885 = vld [vmem:[%s212 + $0x13c8] sm:$0xff]
        %v886 = vld [vmem:[%s212 + $0x13d0] sm:$0xff]
        %v887 = vld [vmem:[%s212 + $0x13d8] sm:$0xff]
        %v888 = vld [vmem:[%s212 + $0x13e0] sm:$0xff]
        %v889 = vld [vmem:[%s212 + $0x13e8] sm:$0xff]
        %v890 = vld [vmem:[%s212 + $0x13f0] sm:$0xff]
        %v891 = vld [vmem:[%s212 + $0x13f8] sm:$0xff]
        %v892 = vld [vmem:[%s212 + $0x1400] sm:$0xff]
        %v893 = vld [vmem:[%s212 + $0x1408] sm:$0xff]
        %v894 = vld [vmem:[%s212 + $0x1410] sm:$0xff]
        %v895 = vld [vmem:[%s212 + $0x1418] sm:$0xff]
        %v896 = vld [vmem:[%s212 + $0x1420] sm:$0xff]
        %v897 = vld [vmem:[%s212 + $0x1428] sm:$0xff]
        %v898 = vld [vmem:[%s212 + $0x1430] sm:$0xff]
        %v899 = vld [vmem:[%s212 + $0x1438] sm:$0xff]
        %v900 = vld [vmem:[%s212 + $0x1440] sm:$0xff]
        %v901 = vld [vmem:[%s212 + $0x1448] sm:$0xff]
        %v902 = vld [vmem:[%s212 + $0x1450] sm:$0xff]
        %v903 = vld [vmem:[%s212 + $0x1458] sm:$0xff]
        %v904 = vld [vmem:[%s212 + $0x1460] sm:$0xff]
        %v905 = vld [vmem:[%s212 + $0x1468] sm:$0xff]
        %v906 = vld [vmem:[%s212 + $0x1470] sm:$0xff]
        %v907 = vld [vmem:[%s212 + $0x1478] sm:$0xff]
        %v908 = vld [vmem:[%s212 + $0x1480] sm:$0xff]
        %v909 = vld [vmem:[%s212 + $0x1488] sm:$0xff]
        %v910 = vld [vmem:[%s212 + $0x1490] sm:$0xff]
        %v911 = vld [vmem:[%s212 + $0x1498] sm:$0xff]
        %v912 = vld [vmem:[%s212 + $0x14a0] sm:$0xff]
        %v913 = vld [vmem:[%s212 + $0x14a8] sm:$0xff]
        %v914 = vld [vmem:[%s212 + $0x14b0] sm:$0xff]
        %v915 = vld [vmem:[%s212 + $0x14b8] sm:$0xff]
        %v916 = vld [vmem:[%s212 + $0x14c0] sm:$0xff]
        %v917 = vld [vmem:[%s212 + $0x14c8] sm:$0xff]
        %v918 = vld [vmem:[%s212 + $0x14d0] sm:$0xff]
        %v919 = vld [vmem:[%s212 + $0x14d8] sm:$0xff]
        %v920 = vld [vmem:[%s212 + $0x14e0] sm:$0xff]
        %v921 = vld [vmem:[%s212 + $0x14e8] sm:$0xff]
        %v922 = vld [vmem:[%s212 + $0x14f0] sm:$0xff]
        %v923 = vld [vmem:[%s212 + $0x14f8] sm:$0xff]
        %v924 = vld [vmem:[%s212 + $0x1500] sm:$0xff]
        %v925 = vld [vmem:[%s212 + $0x1508] sm:$0xff]
        %v926 = vld [vmem:[%s212 + $0x1510] sm:$0xff]
        %v927 = vld [vmem:[%s212 + $0x1518] sm:$0xff]
        %v928 = vld [vmem:[%s212 + $0x1520] sm:$0xff]
        %v929 = vld [vmem:[%s212 + $0x1528] sm:$0xff]
        %v930 = vld [vmem:[%s212 + $0x1530] sm:$0xff]
        %v931 = vld [vmem:[%s212 + $0x1538] sm:$0xff]
        %v932 = vld [vmem:[%s212 + $0x1540] sm:$0xff]
        %v933 = vld [vmem:[%s212 + $0x1548] sm:$0xff]
        %v934 = vld [vmem:[%s212 + $0x1550] sm:$0xff]
        %v935 = vld [vmem:[%s212 + $0x1558] sm:$0xff]
        %v936 = vld [vmem:[%s212 + $0x1560] sm:$0xff]
        %v937 = vld [vmem:[%s212 + $0x1568] sm:$0xff]
        %v938 = vld [vmem:[%s212 + $0x1570] sm:$0xff]
        %v939 = vld [vmem:[%s212 + $0x1578] sm:$0xff]
        %v940 = vld [vmem:[%s212 + $0x1580] sm:$0xff]
        %v941 = vld [vmem:[%s212 + $0x1588] sm:$0xff]
        %v942 = vld [vmem:[%s212 + $0x1590] sm:$0xff]
        %v943 = vld [vmem:[%s212 + $0x1598] sm:$0xff]
        %v944 = vld [vmem:[%s212 + $0x15a0] sm:$0xff]
        %v945 = vld [vmem:[%s212 + $0x15a8] sm:$0xff]
        %v946 = vld [vmem:[%s212 + $0x15b0] sm:$0xff]
        %v947 = vld [vmem:[%s212 + $0x15b8] sm:$0xff]
        %v948 = vld [vmem:[%s212 + $0x15c0] sm:$0xff]
        %v949 = vld [vmem:[%s212 + $0x15c8] sm:$0xff]
        %v950 = vld [vmem:[%s212 + $0x15d0] sm:$0xff]
        %v951 = vld [vmem:[%s212 + $0x15d8] sm:$0xff]
        %v952 = vld [vmem:[%s212 + $0x15e0] sm:$0xff]
        %v953 = vld [vmem:[%s212 + $0x15e8] sm:$0xff]
        %v954 = vld [vmem:[%s212 + $0x15f0] sm:$0xff]
        %v955 = vld [vmem:[%s212 + $0x15f8] sm:$0xff]
        %v956 = vld [vmem:[%s212 + $0x1600] sm:$0xff]
        %v957 = vld [vmem:[%s212 + $0x1608] sm:$0xff]
        %v958 = vld [vmem:[%s212 + $0x1610] sm:$0xff]
        %v959 = vld [vmem:[%s212 + $0x1618] sm:$0xff]
        %v960 = vld [vmem:[%s212 + $0x1620] sm:$0xff]
        %v961 = vld [vmem:[%s212 + $0x1628] sm:$0xff]
        %v962 = vld [vmem:[%s212 + $0x1630] sm:$0xff]
        %v963 = vld [vmem:[%s212 + $0x1638] sm:$0xff]
        %v964 = vld [vmem:[%s212 + $0x1640] sm:$0xff]
        %v965 = vld [vmem:[%s212 + $0x1648] sm:$0xff]
        %v966 = vld [vmem:[%s212 + $0x1650] sm:$0xff]
        %v967 = vld [vmem:[%s212 + $0x1658] sm:$0xff]
        %v968 = vld [vmem:[%s212 + $0x1660] sm:$0xff]
        %v969 = vld [vmem:[%s212 + $0x1668] sm:$0xff]
        %v970 = vld [vmem:[%s212 + $0x1670] sm:$0xff]
        %v971 = vld [vmem:[%s212 + $0x1678] sm:$0xff]
        %v972 = vld [vmem:[%s212 + $0x1680] sm:$0xff]
        %v973 = vld [vmem:[%s212 + $0x1688] sm:$0xff]
        %v974 = vld [vmem:[%s212 + $0x1690] sm:$0xff]
        %v975 = vld [vmem:[%s212 + $0x1698] sm:$0xff]
        %v976 = vld [vmem:[%s212 + $0x16a0] sm:$0xff]
        %v977 = vld [vmem:[%s212 + $0x16a8] sm:$0xff]
        %v978 = vld [vmem:[%s212 + $0x16b0] sm:$0xff]
        %v979 = vld [vmem:[%s212 + $0x16b8] sm:$0xff]
        %v980 = vld [vmem:[%s212 + $0x16c0] sm:$0xff]
        %v981 = vld [vmem:[%s212 + $0x16c8] sm:$0xff]
        %v982 = vld [vmem:[%s212 + $0x16d0] sm:$0xff]
        %v983 = vld [vmem:[%s212 + $0x16d8] sm:$0xff]
        %v984 = vld [vmem:[%s212 + $0x16e0] sm:$0xff]
        %v985 = vld [vmem:[%s212 + $0x16e8] sm:$0xff]
        %v986 = vld [vmem:[%s212 + $0x16f0] sm:$0xff]
        %v987 = vld [vmem:[%s212 + $0x16f8] sm:$0xff]
        %v988 = vld [vmem:[%s212 + $0x1700] sm:$0xff]
        %v989 = vld [vmem:[%s212 + $0x1708] sm:$0xff]
        %v990 = vld [vmem:[%s212 + $0x1710] sm:$0xff]
        %v991 = vld [vmem:[%s212 + $0x1718] sm:$0xff]
        %v992 = vld [vmem:[%s212 + $0x1720] sm:$0xff]
        %v993 = vld [vmem:[%s212 + $0x1728] sm:$0xff]
        %v994 = vld [vmem:[%s212 + $0x1730] sm:$0xff]
        %v995 = vld [vmem:[%s212 + $0x1738] sm:$0xff]
        %v996 = vld [vmem:[%s212 + $0x1740] sm:$0xff]
        %v997 = vld [vmem:[%s212 + $0x1748] sm:$0xff]
        %v998 = vld [vmem:[%s212 + $0x1750] sm:$0xff]
        %v999 = vld [vmem:[%s212 + $0x1758] sm:$0xff]
        %v1000 = vld [vmem:[%s212 + $0x1760] sm:$0xff]
        %v1001 = vld [vmem:[%s212 + $0x1768] sm:$0xff]
        %v1002 = vld [vmem:[%s212 + $0x1770] sm:$0xff]
        %v1003 = vld [vmem:[%s212 + $0x1778] sm:$0xff]
        %v1004 = vld [vmem:[%s212 + $0x1780] sm:$0xff]
        %v1005 = vld [vmem:[%s212 + $0x1788] sm:$0xff]
        %v1006 = vld [vmem:[%s212 + $0x1790] sm:$0xff]
        %v1007 = vld [vmem:[%s212 + $0x1798] sm:$0xff]
        %v1008 = vld [vmem:[%s212 + $0x17a0] sm:$0xff]
        %v1009 = vld [vmem:[%s212 + $0x17a8] sm:$0xff]
        %v1010 = vld [vmem:[%s212 + $0x17b0] sm:$0xff]
        %v1011 = vld [vmem:[%s212 + $0x17b8] sm:$0xff]
        %v1012 = vld [vmem:[%s212 + $0x17c0] sm:$0xff]
        %v1013 = vld [vmem:[%s212 + $0x17c8] sm:$0xff]
        %v1014 = vld [vmem:[%s212 + $0x17d0] sm:$0xff]
        %v1015 = vld [vmem:[%s212 + $0x17d8] sm:$0xff]
        %v1016 = vld [vmem:[%s212 + $0x17e0] sm:$0xff]
        %v1017 = vld [vmem:[%s212 + $0x17e8] sm:$0xff]
        %v1018 = vld [vmem:[%s212 + $0x17f0] sm:$0xff]
        %v1019 = vld [vmem:[%s212 + $0x17f8] sm:$0xff]
        %v1020 = vld [vmem:[%s212 + $0x1800] sm:$0xff]
        %v1021 = vld [vmem:[%s212 + $0x1808] sm:$0xff]
        %v1022 = vld [vmem:[%s212 + $0x1810] sm:$0xff]
        %v1023 = vld [vmem:[%s212 + $0x1818] sm:$0xff]
        %v1024 = vld [vmem:[%s212 + $0x1820] sm:$0xff]
        %v1025 = vld [vmem:[%s212 + $0x1828] sm:$0xff]
        %v1026 = vld [vmem:[%s212 + $0x1830] sm:$0xff]
        %v1027 = vld [vmem:[%s212 + $0x1838] sm:$0xff]
        %v1028 = vld [vmem:[%s212 + $0x1840] sm:$0xff]
        %v1029 = vld [vmem:[%s212 + $0x1848] sm:$0xff]
        %v1030 = vld [vmem:[%s212 + $0x1850] sm:$0xff]
        %v1031 = vld [vmem:[%s212 + $0x1858] sm:$0xff]
        %v1032 = vld [vmem:[%s212 + $0x1860] sm:$0xff]
        %v1033 = vld [vmem:[%s212 + $0x1868] sm:$0xff]
        %v1034 = vld [vmem:[%s212 + $0x1870] sm:$0xff]
        %v1035 = vld [vmem:[%s212 + $0x1878] sm:$0xff]
        %v1036 = vld [vmem:[%s212 + $0x1880] sm:$0xff]
        %v1037 = vld [vmem:[%s212 + $0x1888] sm:$0xff]
        %v1038 = vld [vmem:[%s212 + $0x1890] sm:$0xff]
        %v1039 = vld [vmem:[%s212 + $0x1898] sm:$0xff]
        %v1040 = vld [vmem:[%s212 + $0x18a0] sm:$0xff]
        %v1041 = vld [vmem:[%s212 + $0x18a8] sm:$0xff]
        %v1042 = vld [vmem:[%s212 + $0x18b0] sm:$0xff]
        %v1043 = vld [vmem:[%s212 + $0x18b8] sm:$0xff]
        %v1044 = vld [vmem:[%s212 + $0x18c0] sm:$0xff]
        %v1045 = vld [vmem:[%s212 + $0x18c8] sm:$0xff]
        %v1046 = vld [vmem:[%s212 + $0x18d0] sm:$0xff]
        %v1047 = vld [vmem:[%s212 + $0x18d8] sm:$0xff]
        %v1048 = vld [vmem:[%s212 + $0x18e0] sm:$0xff]
        %v1049 = vld [vmem:[%s212 + $0x18e8] sm:$0xff]
        %v1050 = vld [vmem:[%s212 + $0x18f0] sm:$0xff]
        %v1051 = vld [vmem:[%s212 + $0x18f8] sm:$0xff]
        %v1052 = vld [vmem:[%s212 + $0x1900] sm:$0xff]
        %v1053 = vld [vmem:[%s212 + $0x1908] sm:$0xff]
        %v1054 = vld [vmem:[%s212 + $0x1910] sm:$0xff]
        %v1055 = vld [vmem:[%s212 + $0x1918] sm:$0xff]
        %v1056 = vld [vmem:[%s212 + $0x1920] sm:$0xff]
        %v1057 = vld [vmem:[%s212 + $0x1928] sm:$0xff]
        %v1058 = vld [vmem:[%s212 + $0x1930] sm:$0xff]
        %v1059 = vld [vmem:[%s212 + $0x1938] sm:$0xff]
        %v1060 = vld [vmem:[%s212 + $0x1940] sm:$0xff]
        %v1061 = vld [vmem:[%s212 + $0x1948] sm:$0xff]
        %v1062 = vld [vmem:[%s212 + $0x1950] sm:$0xff]
        %v1063 = vld [vmem:[%s212 + $0x1958] sm:$0xff]
        %v1064 = vld [vmem:[%s212 + $0x1960] sm:$0xff]
        %v1065 = vld [vmem:[%s212 + $0x1968] sm:$0xff]
        %v1066 = vld [vmem:[%s212 + $0x1970] sm:$0xff]
        %v1067 = vld [vmem:[%s212 + $0x1978] sm:$0xff]
        %v1068 = vld [vmem:[%s212 + $0x1980] sm:$0xff]
        %v1069 = vld [vmem:[%s212 + $0x1988] sm:$0xff]
        %v1070 = vld [vmem:[%s212 + $0x1990] sm:$0xff]
        %v1071 = vld [vmem:[%s212 + $0x1998] sm:$0xff]
        %v1072 = vld [vmem:[%s212 + $0x19a0] sm:$0xff]
        %v1073 = vld [vmem:[%s212 + $0x19a8] sm:$0xff]
        %v1074 = vld [vmem:[%s212 + $0x19b0] sm:$0xff]
        %v1075 = vld [vmem:[%s212 + $0x19b8] sm:$0xff]
        %v1076 = vld [vmem:[%s212 + $0x19c0] sm:$0xff]
        %v1077 = vld [vmem:[%s212 + $0x19c8] sm:$0xff]
        %v1078 = vld [vmem:[%s212 + $0x19d0] sm:$0xff]
        %v1079 = vld [vmem:[%s212 + $0x19d8] sm:$0xff]
        %v1080 = vld [vmem:[%s212 + $0x19e0] sm:$0xff]
        %v1081 = vld [vmem:[%s212 + $0x19e8] sm:$0xff]
        %v1082 = vld [vmem:[%s212 + $0x19f0] sm:$0xff]
        %v1083 = vld [vmem:[%s212 + $0x19f8] sm:$0xff]
        %v1084 = vld [vmem:[%s212 + $0x1a00] sm:$0xff]
        %v1085 = vld [vmem:[%s212 + $0x1a08] sm:$0xff]
        %v1086 = vld [vmem:[%s212 + $0x1a10] sm:$0xff]
        %v1087 = vld [vmem:[%s212 + $0x1a18] sm:$0xff]
        %v1088 = vld [vmem:[%s212 + $0x1a20] sm:$0xff]
        %v1089 = vld [vmem:[%s212 + $0x1a28] sm:$0xff]
        %v1090 = vld [vmem:[%s212 + $0x1a30] sm:$0xff]
        %v1091 = vld [vmem:[%s212 + $0x1a38] sm:$0xff]
        %v1092 = vld [vmem:[%s212 + $0x1a40] sm:$0xff]
        %v1093 = vld [vmem:[%s212 + $0x1a48] sm:$0xff]
        %v1094 = vld [vmem:[%s212 + $0x1a50] sm:$0xff]
        %v1095 = vld [vmem:[%s212 + $0x1a58] sm:$0xff]
        %v1096 = vld [vmem:[%s212 + $0x1a60] sm:$0xff]
        %v1097 = vld [vmem:[%s212 + $0x1a68] sm:$0xff]
        %v1098 = vld [vmem:[%s212 + $0x1a70] sm:$0xff]
        %v1099 = vld [vmem:[%s212 + $0x1a78] sm:$0xff]
        %v1100 = vld [vmem:[%s212 + $0x1a80] sm:$0xff]
        %v1101 = vld [vmem:[%s212 + $0x1a88] sm:$0xff]
        %v1102 = vld [vmem:[%s212 + $0x1a90] sm:$0xff]
        %v1103 = vld [vmem:[%s212 + $0x1a98] sm:$0xff]
        %v1104 = vld [vmem:[%s212 + $0x1aa0] sm:$0xff]
        %v1105 = vld [vmem:[%s212 + $0x1aa8] sm:$0xff]
        %v1106 = vld [vmem:[%s212 + $0x1ab0] sm:$0xff]
        %v1107 = vld [vmem:[%s212 + $0x1ab8] sm:$0xff]
        %v1108 = vld [vmem:[%s212 + $0x1ac0] sm:$0xff]
        %v1109 = vld [vmem:[%s212 + $0x1ac8] sm:$0xff]
        %v1110 = vld [vmem:[%s212 + $0x1ad0] sm:$0xff]
        %v1111 = vld [vmem:[%s212 + $0x1ad8] sm:$0xff]
        %v1112 = vld [vmem:[%s212 + $0x1ae0] sm:$0xff]
        %v1113 = vld [vmem:[%s212 + $0x1ae8] sm:$0xff]
        %v1114 = vld [vmem:[%s212 + $0x1af0] sm:$0xff]
        %v1115 = vld [vmem:[%s212 + $0x1af8] sm:$0xff]
        %v1116 = vld [vmem:[%s212 + $0x1b00] sm:$0xff]
        %v1117 = vld [vmem:[%s212 + $0x1b08] sm:$0xff]
        %v1118 = vld [vmem:[%s212 + $0x1b10] sm:$0xff]
        %v1119 = vld [vmem:[%s212 + $0x1b18] sm:$0xff]
        %v1120 = vld [vmem:[%s212 + $0x1b20] sm:$0xff]
        %v1121 = vld [vmem:[%s212 + $0x1b28] sm:$0xff]
        %v1122 = vld [vmem:[%s212 + $0x1b30] sm:$0xff]
        %v1123 = vld [vmem:[%s212 + $0x1b38] sm:$0xff]
        %v1124 = vld [vmem:[%s212 + $0x1b40] sm:$0xff]
        %v1125 = vld [vmem:[%s212 + $0x1b48] sm:$0xff]
        %v1126 = vld [vmem:[%s212 + $0x1b50] sm:$0xff]
        %v1127 = vld [vmem:[%s212 + $0x1b58] sm:$0xff]
        %v1128 = vld [vmem:[%s212 + $0x1b60] sm:$0xff]
        %v1129 = vld [vmem:[%s212 + $0x1b68] sm:$0xff]
        %v1130 = vld [vmem:[%s212 + $0x1b70] sm:$0xff]
        %v1131 = vld [vmem:[%s212 + $0x1b78] sm:$0xff]
        %v1132 = vld [vmem:[%s212 + $0x1b80] sm:$0xff]
        %v1133 = vld [vmem:[%s212 + $0x1b88] sm:$0xff]
        %v1134 = vld [vmem:[%s212 + $0x1b90] sm:$0xff]
        %v1135 = vld [vmem:[%s212 + $0x1b98] sm:$0xff]
        %v1136 = vld [vmem:[%s212 + $0x1ba0] sm:$0xff]
        %v1137 = vld [vmem:[%s212 + $0x1ba8] sm:$0xff]
        %v1138 = vld [vmem:[%s212 + $0x1bb0] sm:$0xff]
        %v1139 = vld [vmem:[%s212 + $0x1bb8] sm:$0xff]
        %v1140 = vld [vmem:[%s212 + $0x1bc0] sm:$0xff]
        %v1141 = vld [vmem:[%s212 + $0x1bc8] sm:$0xff]
        %v1142 = vld [vmem:[%s212 + $0x1bd0] sm:$0xff]
        %v1143 = vld [vmem:[%s212 + $0x1bd8] sm:$0xff]
        %v1144 = vld [vmem:[%s212 + $0x1be0] sm:$0xff]
        %v1145 = vld [vmem:[%s212 + $0x1be8] sm:$0xff]
        %v1146 = vld [vmem:[%s212 + $0x1bf0] sm:$0xff]
        %v1147 = vld [vmem:[%s212 + $0x1bf8] sm:$0xff]
        %v1148 = vld [vmem:[%s212 + $0x1c00] sm:$0xff]
        %v1149 = vld [vmem:[%s212 + $0x1c08] sm:$0xff]
        %v1150 = vld [vmem:[%s212 + $0x1c10] sm:$0xff]
        %v1151 = vld [vmem:[%s212 + $0x1c18] sm:$0xff]
        %v1152 = vld [vmem:[%s212 + $0x1c20] sm:$0xff]
        %v1153 = vld [vmem:[%s212 + $0x1c28] sm:$0xff]
        %v1154 = vld [vmem:[%s212 + $0x1c30] sm:$0xff]
        %v1155 = vld [vmem:[%s212 + $0x1c38] sm:$0xff]
        %v1156 = vld [vmem:[%s212 + $0x1c40] sm:$0xff]
        %v1157 = vld [vmem:[%s212 + $0x1c48] sm:$0xff]
        %v1158 = vld [vmem:[%s212 + $0x1c50] sm:$0xff]
        %v1159 = vld [vmem:[%s212 + $0x1c58] sm:$0xff]
        %v1160 = vld [vmem:[%s212 + $0x1c60] sm:$0xff]
        %v1161 = vld [vmem:[%s212 + $0x1c68] sm:$0xff]
        %v1162 = vld [vmem:[%s212 + $0x1c70] sm:$0xff]
        %v1163 = vld [vmem:[%s212 + $0x1c78] sm:$0xff]
        %v1164 = vld [vmem:[%s212 + $0x1c80] sm:$0xff]
        %v1165 = vld [vmem:[%s212 + $0x1c88] sm:$0xff]
        %v1166 = vld [vmem:[%s212 + $0x1c90] sm:$0xff]
        %v1167 = vld [vmem:[%s212 + $0x1c98] sm:$0xff]
        %v1168 = vld [vmem:[%s212 + $0x1ca0] sm:$0xff]
        %v1169 = vld [vmem:[%s212 + $0x1ca8] sm:$0xff]
        %v1170 = vld [vmem:[%s212 + $0x1cb0] sm:$0xff]
        %v1171 = vld [vmem:[%s212 + $0x1cb8] sm:$0xff]
        %v1172 = vld [vmem:[%s212 + $0x1cc0] sm:$0xff]
        %v1173 = vld [vmem:[%s212 + $0x1cc8] sm:$0xff]
        %v1174 = vld [vmem:[%s212 + $0x1cd0] sm:$0xff]
        %v1175 = vld [vmem:[%s212 + $0x1cd8] sm:$0xff]
        %v1176 = vld [vmem:[%s212 + $0x1ce0] sm:$0xff]
        %v1177 = vld [vmem:[%s212 + $0x1ce8] sm:$0xff]
        %v1178 = vld [vmem:[%s212 + $0x1cf0] sm:$0xff]
        %v1179 = vld [vmem:[%s212 + $0x1cf8] sm:$0xff]
        %v1180 = vld [vmem:[%s212 + $0x1d00] sm:$0xff]
        %v1181 = vld [vmem:[%s212 + $0x1d08] sm:$0xff]
        %v1182 = vld [vmem:[%s212 + $0x1d10] sm:$0xff]
        %v1183 = vld [vmem:[%s212 + $0x1d18] sm:$0xff]
        %v1184 = vld [vmem:[%s212 + $0x1d20] sm:$0xff]
        %v1185 = vld [vmem:[%s212 + $0x1d28] sm:$0xff]
        %v1186 = vld [vmem:[%s212 + $0x1d30] sm:$0xff]
        %v1187 = vld [vmem:[%s212 + $0x1d38] sm:$0xff]
        %v1188 = vld [vmem:[%s212 + $0x1d40] sm:$0xff]
        %v1189 = vld [vmem:[%s212 + $0x1d48] sm:$0xff]
        %v1190 = vld [vmem:[%s212 + $0x1d50] sm:$0xff]
        %v1191 = vld [vmem:[%s212 + $0x1d58] sm:$0xff]
        %v1192 = vld [vmem:[%s212 + $0x1d60] sm:$0xff]
        %v1193 = vld [vmem:[%s212 + $0x1d68] sm:$0xff]
        %v1194 = vld [vmem:[%s212 + $0x1d70] sm:$0xff]
        %v1195 = vld [vmem:[%s212 + $0x1d78] sm:$0xff]
        %v1196 = vld [vmem:[%s212 + $0x1d80] sm:$0xff]
        %v1197 = vld [vmem:[%s212 + $0x1d88] sm:$0xff]
        %v1198 = vld [vmem:[%s212 + $0x1d90] sm:$0xff]
        %v1199 = vld [vmem:[%s212 + $0x1d98] sm:$0xff]
        %v1200 = vld [vmem:[%s212 + $0x1da0] sm:$0xff]
        %v1201 = vld [vmem:[%s212 + $0x1da8] sm:$0xff]
        %v1202 = vld [vmem:[%s212 + $0x1db0] sm:$0xff]
        %v1203 = vld [vmem:[%s212 + $0x1db8] sm:$0xff]
        %v1204 = vld [vmem:[%s212 + $0x1dc0] sm:$0xff]
        %v1205 = vld [vmem:[%s212 + $0x1dc8] sm:$0xff]
        %v1206 = vld [vmem:[%s212 + $0x1dd0] sm:$0xff]
        %v1207 = vld [vmem:[%s212 + $0x1dd8] sm:$0xff]
        %v1208 = vld [vmem:[%s212 + $0x1de0] sm:$0xff]
        %v1209 = vld [vmem:[%s212 + $0x1de8] sm:$0xff]
        %v1210 = vld [vmem:[%s212 + $0x1df0] sm:$0xff]
        %v1211 = vld [vmem:[%s212 + $0x1df8] sm:$0xff]
        %v1212 = vld [vmem:[%s212 + $0x1e00] sm:$0xff]
        %v1213 = vld [vmem:[%s212 + $0x1e08] sm:$0xff]
        %v1214 = vld [vmem:[%s212 + $0x1e10] sm:$0xff]
        %v1215 = vld [vmem:[%s212 + $0x1e18] sm:$0xff]
        %v1216 = vld [vmem:[%s212 + $0x1e20] sm:$0xff]
        %v1217 = vld [vmem:[%s212 + $0x1e28] sm:$0xff]
        %v1218 = vld [vmem:[%s212 + $0x1e30] sm:$0xff]
        %v1219 = vld [vmem:[%s212 + $0x1e38] sm:$0xff]
        %v1220 = vld [vmem:[%s212 + $0x1e40] sm:$0xff]
        %v1221 = vld [vmem:[%s212 + $0x1e48] sm:$0xff]
        %v1222 = vld [vmem:[%s212 + $0x1e50] sm:$0xff]
        %v1223 = vld [vmem:[%s212 + $0x1e58] sm:$0xff]
        %v1224 = vld [vmem:[%s212 + $0x1e60] sm:$0xff]
        %v1225 = vld [vmem:[%s212 + $0x1e68] sm:$0xff]
        %v1226 = vld [vmem:[%s212 + $0x1e70] sm:$0xff]
        %v1227 = vld [vmem:[%s212 + $0x1e78] sm:$0xff]
        %v1228 = vld [vmem:[%s212 + $0x1e80] sm:$0xff]
        %v1229 = vld [vmem:[%s212 + $0x1e88] sm:$0xff]
        %v1230 = vld [vmem:[%s212 + $0x1e90] sm:$0xff]
        %v1231 = vld [vmem:[%s212 + $0x1e98] sm:$0xff]
        %v1232 = vld [vmem:[%s212 + $0x1ea0] sm:$0xff]
        %v1233 = vld [vmem:[%s212 + $0x1ea8] sm:$0xff]
        %v1234 = vld [vmem:[%s212 + $0x1eb0] sm:$0xff]
        %v1235 = vld [vmem:[%s212 + $0x1eb8] sm:$0xff]
        %v1236 = vld [vmem:[%s212 + $0x1ec0] sm:$0xff]
        %v1237 = vld [vmem:[%s212 + $0x1ec8] sm:$0xff]
        %v1238 = vld [vmem:[%s212 + $0x1ed0] sm:$0xff]
        %v1239 = vld [vmem:[%s212 + $0x1ed8] sm:$0xff]
        %v1240 = vld [vmem:[%s212 + $0x1ee0] sm:$0xff]
        %v1241 = vld [vmem:[%s212 + $0x1ee8] sm:$0xff]
        %v1242 = vld [vmem:[%s212 + $0x1ef0] sm:$0xff]
        %v1243 = vld [vmem:[%s212 + $0x1ef8] sm:$0xff]
        %v1244 = vld [vmem:[%s212 + $0x1f00] sm:$0xff]
        %v1245 = vld [vmem:[%s212 + $0x1f08] sm:$0xff]
        %v1246 = vld [vmem:[%s212 + $0x1f10] sm:$0xff]
        %v1247 = vld [vmem:[%s212 + $0x1f18] sm:$0xff]
        %v1248 = vld [vmem:[%s212 + $0x1f20] sm:$0xff]
        %v1249 = vld [vmem:[%s212 + $0x1f28] sm:$0xff]
        %v1250 = vld [vmem:[%s212 + $0x1f30] sm:$0xff]
        %v1251 = vld [vmem:[%s212 + $0x1f38] sm:$0xff]
        %v1252 = vld [vmem:[%s212 + $0x1f40] sm:$0xff]
        %v1253 = vld [vmem:[%s212 + $0x1f48] sm:$0xff]
        %v1254 = vld [vmem:[%s212 + $0x1f50] sm:$0xff]
        %v1255 = vld [vmem:[%s212 + $0x1f58] sm:$0xff]
        %v1256 = vld [vmem:[%s212 + $0x1f60] sm:$0xff]
        %v1257 = vld [vmem:[%s212 + $0x1f68] sm:$0xff]
        %v1258 = vld [vmem:[%s212 + $0x1f70] sm:$0xff]
        %v1259 = vld [vmem:[%s212 + $0x1f78] sm:$0xff]
        %v1260 = vld [vmem:[%s212 + $0x1f80] sm:$0xff]
        %v1261 = vld [vmem:[%s212 + $0x1f88] sm:$0xff]
        %v1262 = vld [vmem:[%s212 + $0x1f90] sm:$0xff]
        %v1263 = vld [vmem:[%s212 + $0x1f98] sm:$0xff]
        %v1264 = vld [vmem:[%s212 + $0x1fa0] sm:$0xff]
        %v1265 = vld [vmem:[%s212 + $0x1fa8] sm:$0xff]
        %v1266 = vld [vmem:[%s212 + $0x1fb0] sm:$0xff]
        %v1267 = vld [vmem:[%s212 + $0x1fb8] sm:$0xff]
        %v1268 = vld [vmem:[%s212 + $0x1fc0] sm:$0xff]
        %v1269 = vld [vmem:[%s212 + $0x1fc8] sm:$0xff]
        %v1270 = vld [vmem:[%s212 + $0x1fd0] sm:$0xff]
        %v1271 = vld [vmem:[%s212 + $0x1fd8] sm:$0xff]
        %v1272 = vld [vmem:[%s212 + $0x1fe0] sm:$0xff]
        %v1273 = vld [vmem:[%s212 + $0x1fe8] sm:$0xff]
        %v1274 = vld [vmem:[%s212 + $0x1ff0] sm:$0xff]
        %v1275 = vld [vmem:[%s212 + $0x1ff8] sm:$0xff]
        %1277 = vst [vmem:[#allocation1] ss:$9 sm:$0xff] %v250
        %v1278 = vld [vmem:[#allocation1] sm:$0xff]
        %v1279 = vld [vmem:[#allocation1 + $0x9] sm:$0xff]
        %v1280 = vld [vmem:[#allocation1 + $0x12] sm:$0xff]
        %v1281 = vld [vmem:[#allocation1 + $0x1b] sm:$0xff]
        %v1282 = vld [vmem:[#allocation1 + $0x24] sm:$0xff]
        %v1283 = vld [vmem:[#allocation1 + $0x2d] sm:$0xff]
        %v1284 = vld [vmem:[#allocation1 + $0x36] sm:$0xff]
        %v1285 = vld [vmem:[#allocation1 + $0x3f] sm:$0xff]
        %1287 = vst [vmem:[#allocation1] ss:$9 sm:$0xff] %v251
        %v1288 = vld [vmem:[#allocation1] sm:$0xff]
        %v1289 = vld [vmem:[#allocation1 + $0x9] sm:$0xff]
        %v1290 = vld [vmem:[#allocation1 + $0x12] sm:$0xff]
        %v1291 = vld [vmem:[#allocation1 + $0x1b] sm:$0xff]
        %v1292 = vld [vmem:[#allocation1 + $0x24] sm:$0xff]
        %v1293 = vld [vmem:[#allocation1 + $0x2d] sm:$0xff]
        %v1294 = vld [vmem:[#allocation1 + $0x36] sm:$0xff]
        %v1295 = vld [vmem:[#allocation1 + $0x3f] sm:$0xff]
        %v2336 = vunpack.c.l.b16 %v252
        %v2337 = vunpack.c.h.b16 %v252
        %v2338 = vunpack.c.l.b16 %v253
        %v2339 = vunpack.c.h.b16 %v253
        %v2340 = vunpack.c.l.b16 %v254
        %v2341 = vunpack.c.h.b16 %v254
        %v2342 = vunpack.c.l.b16 %v255
        %v2343 = vunpack.c.h.b16 %v255
        %v2344 = vunpack.c.l.b16 %v256
        %v2345 = vunpack.c.h.b16 %v256
        %v2346 = vunpack.c.l.b16 %v257
        %v2347 = vunpack.c.h.b16 %v257
        %v2348 = vunpack.c.l.b16 %v258
        %v2349 = vunpack.c.h.b16 %v258
        %v2350 = vunpack.c.l.b16 %v259
        %v2351 = vunpack.c.h.b16 %v259
        %v2352 = vunpack.c.l.b16 %v260
        %v2353 = vunpack.c.h.b16 %v260
        %v2354 = vunpack.c.l.b16 %v261
        %v2355 = vunpack.c.h.b16 %v261
        %v2356 = vunpack.c.l.b16 %v262
        %v2357 = vunpack.c.h.b16 %v262
        %v2358 = vunpack.c.l.b16 %v263
        %v2359 = vunpack.c.h.b16 %v263
        %v2360 = vunpack.c.l.b16 %v264
        %v2361 = vunpack.c.h.b16 %v264
        %v2362 = vunpack.c.l.b16 %v265
        %v2363 = vunpack.c.h.b16 %v265
        %v2364 = vunpack.c.l.b16 %v266
        %v2365 = vunpack.c.h.b16 %v266
        %v2366 = vunpack.c.l.b16 %v267
        %v2367 = vunpack.c.h.b16 %v267
        %v2368 = vunpack.c.l.b16 %v268
        %v2369 = vunpack.c.h.b16 %v268
        %v2370 = vunpack.c.l.b16 %v269
        %v2371 = vunpack.c.h.b16 %v269
        %v2372 = vunpack.c.l.b16 %v270
        %v2373 = vunpack.c.h.b16 %v270
        %v2374 = vunpack.c.l.b16 %v271
        %v2375 = vunpack.c.h.b16 %v271
        %v2376 = vunpack.c.l.b16 %v272
        %v2377 = vunpack.c.h.b16 %v272
        %v2378 = vunpack.c.l.b16 %v273
        %v2379 = vunpack.c.h.b16 %v273
        %v2380 = vunpack.c.l.b16 %v274
        %v2381 = vunpack.c.h.b16 %v274
        %v2382 = vunpack.c.l.b16 %v275
        %v2383 = vunpack.c.h.b16 %v275
        %v2384 = vunpack.c.l.b16 %v276
        %v2385 = vunpack.c.h.b16 %v276
        %v2386 = vunpack.c.l.b16 %v277
        %v2387 = vunpack.c.h.b16 %v277
        %v2388 = vunpack.c.l.b16 %v278
        %v2389 = vunpack.c.h.b16 %v278
        %v2390 = vunpack.c.l.b16 %v279
        %v2391 = vunpack.c.h.b16 %v279
        %v2392 = vunpack.c.l.b16 %v280
        %v2393 = vunpack.c.h.b16 %v280
        %v2394 = vunpack.c.l.b16 %v281
        %v2395 = vunpack.c.h.b16 %v281
        %v2396 = vunpack.c.l.b16 %v282
        %v2397 = vunpack.c.h.b16 %v282
        %v2398 = vunpack.c.l.b16 %v283
        %v2399 = vunpack.c.h.b16 %v283
        %v2400 = vunpack.c.l.b16 %v284
        %v2401 = vunpack.c.h.b16 %v284
        %v2402 = vunpack.c.l.b16 %v285
        %v2403 = vunpack.c.h.b16 %v285
        %v2404 = vunpack.c.l.b16 %v286
        %v2405 = vunpack.c.h.b16 %v286
        %v2406 = vunpack.c.l.b16 %v287
        %v2407 = vunpack.c.h.b16 %v287
        %v2408 = vunpack.c.l.b16 %v288
        %v2409 = vunpack.c.h.b16 %v288
        %v2410 = vunpack.c.l.b16 %v289
        %v2411 = vunpack.c.h.b16 %v289
        %v2412 = vunpack.c.l.b16 %v290
        %v2413 = vunpack.c.h.b16 %v290
        %v2414 = vunpack.c.l.b16 %v291
        %v2415 = vunpack.c.h.b16 %v291
        %v2416 = vunpack.c.l.b16 %v292
        %v2417 = vunpack.c.h.b16 %v292
        %v2418 = vunpack.c.l.b16 %v293
        %v2419 = vunpack.c.h.b16 %v293
        %v2420 = vunpack.c.l.b16 %v294
        %v2421 = vunpack.c.h.b16 %v294
        %v2422 = vunpack.c.l.b16 %v295
        %v2423 = vunpack.c.h.b16 %v295
        %v2424 = vunpack.c.l.b16 %v296
        %v2425 = vunpack.c.h.b16 %v296
        %v2426 = vunpack.c.l.b16 %v297
        %v2427 = vunpack.c.h.b16 %v297
        %v2428 = vunpack.c.l.b16 %v298
        %v2429 = vunpack.c.h.b16 %v298
        %v2430 = vunpack.c.l.b16 %v299
        %v2431 = vunpack.c.h.b16 %v299
        %v2432 = vunpack.c.l.b16 %v300
        %v2433 = vunpack.c.h.b16 %v300
        %v2434 = vunpack.c.l.b16 %v301
        %v2435 = vunpack.c.h.b16 %v301
        %v2436 = vunpack.c.l.b16 %v302
        %v2437 = vunpack.c.h.b16 %v302
        %v2438 = vunpack.c.l.b16 %v303
        %v2439 = vunpack.c.h.b16 %v303
        %v2440 = vunpack.c.l.b16 %v304
        %v2441 = vunpack.c.h.b16 %v304
        %v2442 = vunpack.c.l.b16 %v305
        %v2443 = vunpack.c.h.b16 %v305
        %v2444 = vunpack.c.l.b16 %v306
        %v2445 = vunpack.c.h.b16 %v306
        %v2446 = vunpack.c.l.b16 %v307
        %v2447 = vunpack.c.h.b16 %v307
        %v2448 = vunpack.c.l.b16 %v308
        %v2449 = vunpack.c.h.b16 %v308
        %v2450 = vunpack.c.l.b16 %v309
        %v2451 = vunpack.c.h.b16 %v309
        %v2452 = vunpack.c.l.b16 %v310
        %v2453 = vunpack.c.h.b16 %v310
        %v2454 = vunpack.c.l.b16 %v311
        %v2455 = vunpack.c.h.b16 %v311
        %v2456 = vunpack.c.l.b16 %v312
        %v2457 = vunpack.c.h.b16 %v312
        %v2458 = vunpack.c.l.b16 %v313
        %v2459 = vunpack.c.h.b16 %v313
        %v2460 = vunpack.c.l.b16 %v314
        %v2461 = vunpack.c.h.b16 %v314
        %v2462 = vunpack.c.l.b16 %v315
        %v2463 = vunpack.c.h.b16 %v315
        %v2464 = vunpack.c.l.b16 %v316
        %v2465 = vunpack.c.h.b16 %v316
        %v2466 = vunpack.c.l.b16 %v317
        %v2467 = vunpack.c.h.b16 %v317
        %v2468 = vunpack.c.l.b16 %v318
        %v2469 = vunpack.c.h.b16 %v318
        %v2470 = vunpack.c.l.b16 %v319
        %v2471 = vunpack.c.h.b16 %v319
        %v2472 = vunpack.c.l.b16 %v320
        %v2473 = vunpack.c.h.b16 %v320
        %v2474 = vunpack.c.l.b16 %v321
        %v2475 = vunpack.c.h.b16 %v321
        %v2476 = vunpack.c.l.b16 %v322
        %v2477 = vunpack.c.h.b16 %v322
        %v2478 = vunpack.c.l.b16 %v323
        %v2479 = vunpack.c.h.b16 %v323
        %v2480 = vunpack.c.l.b16 %v324
        %v2481 = vunpack.c.h.b16 %v324
        %v2482 = vunpack.c.l.b16 %v325
        %v2483 = vunpack.c.h.b16 %v325
        %v2484 = vunpack.c.l.b16 %v326
        %v2485 = vunpack.c.h.b16 %v326
        %v2486 = vunpack.c.l.b16 %v327
        %v2487 = vunpack.c.h.b16 %v327
        %v2488 = vunpack.c.l.b16 %v328
        %v2489 = vunpack.c.h.b16 %v328
        %v2490 = vunpack.c.l.b16 %v329
        %v2491 = vunpack.c.h.b16 %v329
        %v2492 = vunpack.c.l.b16 %v330
        %v2493 = vunpack.c.h.b16 %v330
        %v2494 = vunpack.c.l.b16 %v331
        %v2495 = vunpack.c.h.b16 %v331
        %v2496 = vunpack.c.l.b16 %v332
        %v2497 = vunpack.c.h.b16 %v332
        %v2498 = vunpack.c.l.b16 %v333
        %v2499 = vunpack.c.h.b16 %v333
        %v2500 = vunpack.c.l.b16 %v334
        %v2501 = vunpack.c.h.b16 %v334
        %v2502 = vunpack.c.l.b16 %v335
        %v2503 = vunpack.c.h.b16 %v335
        %v2504 = vunpack.c.l.b16 %v336
        %v2505 = vunpack.c.h.b16 %v336
        %v2506 = vunpack.c.l.b16 %v337
        %v2507 = vunpack.c.h.b16 %v337
        %v2508 = vunpack.c.l.b16 %v338
        %v2509 = vunpack.c.h.b16 %v338
        %v2510 = vunpack.c.l.b16 %v339
        %v2511 = vunpack.c.h.b16 %v339
        %v2512 = vunpack.c.l.b16 %v340
        %v2513 = vunpack.c.h.b16 %v340
        %v2514 = vunpack.c.l.b16 %v341
        %v2515 = vunpack.c.h.b16 %v341
        %v2516 = vunpack.c.l.b16 %v342
        %v2517 = vunpack.c.h.b16 %v342
        %v2518 = vunpack.c.l.b16 %v343
        %v2519 = vunpack.c.h.b16 %v343
        %v2520 = vunpack.c.l.b16 %v344
        %v2521 = vunpack.c.h.b16 %v344
        %v2522 = vunpack.c.l.b16 %v345
        %v2523 = vunpack.c.h.b16 %v345
        %v2524 = vunpack.c.l.b16 %v346
        %v2525 = vunpack.c.h.b16 %v346
        %v2526 = vunpack.c.l.b16 %v347
        %v2527 = vunpack.c.h.b16 %v347
        %v2528 = vunpack.c.l.b16 %v348
        %v2529 = vunpack.c.h.b16 %v348
        %v2530 = vunpack.c.l.b16 %v349
        %v2531 = vunpack.c.h.b16 %v349
        %v2532 = vunpack.c.l.b16 %v350
        %v2533 = vunpack.c.h.b16 %v350
        %v2534 = vunpack.c.l.b16 %v351
        %v2535 = vunpack.c.h.b16 %v351
        %v2536 = vunpack.c.l.b16 %v352
        %v2537 = vunpack.c.h.b16 %v352
        %v2538 = vunpack.c.l.b16 %v353
        %v2539 = vunpack.c.h.b16 %v353
        %v2540 = vunpack.c.l.b16 %v354
        %v2541 = vunpack.c.h.b16 %v354
        %v2542 = vunpack.c.l.b16 %v355
        %v2543 = vunpack.c.h.b16 %v355
        %v2544 = vunpack.c.l.b16 %v356
        %v2545 = vunpack.c.h.b16 %v356
        %v2546 = vunpack.c.l.b16 %v357
        %v2547 = vunpack.c.h.b16 %v357
        %v2548 = vunpack.c.l.b16 %v358
        %v2549 = vunpack.c.h.b16 %v358
        %v2550 = vunpack.c.l.b16 %v359
        %v2551 = vunpack.c.h.b16 %v359
        %v2552 = vunpack.c.l.b16 %v360
        %v2553 = vunpack.c.h.b16 %v360
        %v2554 = vunpack.c.l.b16 %v361
        %v2555 = vunpack.c.h.b16 %v361
        %v2556 = vunpack.c.l.b16 %v362
        %v2557 = vunpack.c.h.b16 %v362
        %v2558 = vunpack.c.l.b16 %v363
        %v2559 = vunpack.c.h.b16 %v363
        %v2560 = vunpack.c.l.b16 %v364
        %v2561 = vunpack.c.h.b16 %v364
        %v2562 = vunpack.c.l.b16 %v365
        %v2563 = vunpack.c.h.b16 %v365
        %v2564 = vunpack.c.l.b16 %v366
        %v2565 = vunpack.c.h.b16 %v366
        %v2566 = vunpack.c.l.b16 %v367
        %v2567 = vunpack.c.h.b16 %v367
        %v2568 = vunpack.c.l.b16 %v368
        %v2569 = vunpack.c.h.b16 %v368
        %v2570 = vunpack.c.l.b16 %v369
        %v2571 = vunpack.c.h.b16 %v369
        %v2572 = vunpack.c.l.b16 %v370
        %v2573 = vunpack.c.h.b16 %v370
        %v2574 = vunpack.c.l.b16 %v371
        %v2575 = vunpack.c.h.b16 %v371
        %v2576 = vunpack.c.l.b16 %v372
        %v2577 = vunpack.c.h.b16 %v372
        %v2578 = vunpack.c.l.b16 %v373
        %v2579 = vunpack.c.h.b16 %v373
        %v2580 = vunpack.c.l.b16 %v374
        %v2581 = vunpack.c.h.b16 %v374
        %v2582 = vunpack.c.l.b16 %v375
        %v2583 = vunpack.c.h.b16 %v375
        %v2584 = vunpack.c.l.b16 %v376
        %v2585 = vunpack.c.h.b16 %v376
        %v2586 = vunpack.c.l.b16 %v377
        %v2587 = vunpack.c.h.b16 %v377
        %v2588 = vunpack.c.l.b16 %v378
        %v2589 = vunpack.c.h.b16 %v378
        %v2590 = vunpack.c.l.b16 %v379
        %v2591 = vunpack.c.h.b16 %v379
        %v2592 = vunpack.c.l.b16 %v380
        %v2593 = vunpack.c.h.b16 %v380
        %v2594 = vunpack.c.l.b16 %v381
        %v2595 = vunpack.c.h.b16 %v381
        %v2596 = vunpack.c.l.b16 %v382
        %v2597 = vunpack.c.h.b16 %v382
        %v2598 = vunpack.c.l.b16 %v383
        %v2599 = vunpack.c.h.b16 %v383
        %v2600 = vunpack.c.l.b16 %v384
        %v2601 = vunpack.c.h.b16 %v384
        %v2602 = vunpack.c.l.b16 %v385
        %v2603 = vunpack.c.h.b16 %v385
        %v2604 = vunpack.c.l.b16 %v386
        %v2605 = vunpack.c.h.b16 %v386
        %v2606 = vunpack.c.l.b16 %v387
        %v2607 = vunpack.c.h.b16 %v387
        %v2608 = vunpack.c.l.b16 %v388
        %v2609 = vunpack.c.h.b16 %v388
        %v2610 = vunpack.c.l.b16 %v389
        %v2611 = vunpack.c.h.b16 %v389
        %v2612 = vunpack.c.l.b16 %v390
        %v2613 = vunpack.c.h.b16 %v390
        %v2614 = vunpack.c.l.b16 %v391
        %v2615 = vunpack.c.h.b16 %v391
        %v2616 = vunpack.c.l.b16 %v392
        %v2617 = vunpack.c.h.b16 %v392
        %v2618 = vunpack.c.l.b16 %v393
        %v2619 = vunpack.c.h.b16 %v393
        %v2620 = vunpack.c.l.b16 %v394
        %v2621 = vunpack.c.h.b16 %v394
        %v2622 = vunpack.c.l.b16 %v395
        %v2623 = vunpack.c.h.b16 %v395
        %v2624 = vunpack.c.l.b16 %v396
        %v2625 = vunpack.c.h.b16 %v396
        %v2626 = vunpack.c.l.b16 %v397
        %v2627 = vunpack.c.h.b16 %v397
        %v2628 = vunpack.c.l.b16 %v398
        %v2629 = vunpack.c.h.b16 %v398
        %v2630 = vunpack.c.l.b16 %v399
        %v2631 = vunpack.c.h.b16 %v399
        %v2632 = vunpack.c.l.b16 %v400
        %v2633 = vunpack.c.h.b16 %v400
        %v2634 = vunpack.c.l.b16 %v401
        %v2635 = vunpack.c.h.b16 %v401
        %v2636 = vunpack.c.l.b16 %v402
        %v2637 = vunpack.c.h.b16 %v402
        %v2638 = vunpack.c.l.b16 %v403
        %v2639 = vunpack.c.h.b16 %v403
        %v2640 = vunpack.c.l.b16 %v404
        %v2641 = vunpack.c.h.b16 %v404
        %v2642 = vunpack.c.l.b16 %v405
        %v2643 = vunpack.c.h.b16 %v405
        %v2644 = vunpack.c.l.b16 %v406
        %v2645 = vunpack.c.h.b16 %v406
        %v2646 = vunpack.c.l.b16 %v407
        %v2647 = vunpack.c.h.b16 %v407
        %v2648 = vunpack.c.l.b16 %v408
        %v2649 = vunpack.c.h.b16 %v408
        %v2650 = vunpack.c.l.b16 %v409
        %v2651 = vunpack.c.h.b16 %v409
        %v2652 = vunpack.c.l.b16 %v410
        %v2653 = vunpack.c.h.b16 %v410
        %v2654 = vunpack.c.l.b16 %v411
        %v2655 = vunpack.c.h.b16 %v411
        %v2656 = vunpack.c.l.b16 %v412
        %v2657 = vunpack.c.h.b16 %v412
        %v2658 = vunpack.c.l.b16 %v413
        %v2659 = vunpack.c.h.b16 %v413
        %v2660 = vunpack.c.l.b16 %v414
        %v2661 = vunpack.c.h.b16 %v414
        %v2662 = vunpack.c.l.b16 %v415
        %v2663 = vunpack.c.h.b16 %v415
        %v2664 = vunpack.c.l.b16 %v416
        %v2665 = vunpack.c.h.b16 %v416
        %v2666 = vunpack.c.l.b16 %v417
        %v2667 = vunpack.c.h.b16 %v417
        %v2668 = vunpack.c.l.b16 %v418
        %v2669 = vunpack.c.h.b16 %v418
        %v2670 = vunpack.c.l.b16 %v419
        %v2671 = vunpack.c.h.b16 %v419
        %v2672 = vunpack.c.l.b16 %v420
        %v2673 = vunpack.c.h.b16 %v420
        %v2674 = vunpack.c.l.b16 %v421
        %v2675 = vunpack.c.h.b16 %v421
        %v2676 = vunpack.c.l.b16 %v422
        %v2677 = vunpack.c.h.b16 %v422
        %v2678 = vunpack.c.l.b16 %v423
        %v2679 = vunpack.c.h.b16 %v423
        %v2680 = vunpack.c.l.b16 %v424
        %v2681 = vunpack.c.h.b16 %v424
        %v2682 = vunpack.c.l.b16 %v425
        %v2683 = vunpack.c.h.b16 %v425
        %v2684 = vunpack.c.l.b16 %v426
        %v2685 = vunpack.c.h.b16 %v426
        %v2686 = vunpack.c.l.b16 %v427
        %v2687 = vunpack.c.h.b16 %v427
        %v2688 = vunpack.c.l.b16 %v428
        %v2689 = vunpack.c.h.b16 %v428
        %v2690 = vunpack.c.l.b16 %v429
        %v2691 = vunpack.c.h.b16 %v429
        %v2692 = vunpack.c.l.b16 %v430
        %v2693 = vunpack.c.h.b16 %v430
        %v2694 = vunpack.c.l.b16 %v431
        %v2695 = vunpack.c.h.b16 %v431
        %v2696 = vunpack.c.l.b16 %v432
        %v2697 = vunpack.c.h.b16 %v432
        %v2698 = vunpack.c.l.b16 %v433
        %v2699 = vunpack.c.h.b16 %v433
        %v2700 = vunpack.c.l.b16 %v434
        %v2701 = vunpack.c.h.b16 %v434
        %v2702 = vunpack.c.l.b16 %v435
        %v2703 = vunpack.c.h.b16 %v435
        %v2704 = vunpack.c.l.b16 %v436
        %v2705 = vunpack.c.h.b16 %v436
        %v2706 = vunpack.c.l.b16 %v437
        %v2707 = vunpack.c.h.b16 %v437
        %v2708 = vunpack.c.l.b16 %v438
        %v2709 = vunpack.c.h.b16 %v438
        %v2710 = vunpack.c.l.b16 %v439
        %v2711 = vunpack.c.h.b16 %v439
        %v2712 = vunpack.c.l.b16 %v440
        %v2713 = vunpack.c.h.b16 %v440
        %v2714 = vunpack.c.l.b16 %v441
        %v2715 = vunpack.c.h.b16 %v441
        %v2716 = vunpack.c.l.b16 %v442
        %v2717 = vunpack.c.h.b16 %v442
        %v2718 = vunpack.c.l.b16 %v443
        %v2719 = vunpack.c.h.b16 %v443
        %v2720 = vunpack.c.l.b16 %v444
        %v2721 = vunpack.c.h.b16 %v444
        %v2722 = vunpack.c.l.b16 %v445
        %v2723 = vunpack.c.h.b16 %v445
        %v2724 = vunpack.c.l.b16 %v446
        %v2725 = vunpack.c.h.b16 %v446
        %v2726 = vunpack.c.l.b16 %v447
        %v2727 = vunpack.c.h.b16 %v447
        %v2728 = vunpack.c.l.b16 %v448
        %v2729 = vunpack.c.h.b16 %v448
        %v2730 = vunpack.c.l.b16 %v449
        %v2731 = vunpack.c.h.b16 %v449
        %v2732 = vunpack.c.l.b16 %v450
        %v2733 = vunpack.c.h.b16 %v450
        %v2734 = vunpack.c.l.b16 %v451
        %v2735 = vunpack.c.h.b16 %v451
        %v2736 = vunpack.c.l.b16 %v452
        %v2737 = vunpack.c.h.b16 %v452
        %v2738 = vunpack.c.l.b16 %v453
        %v2739 = vunpack.c.h.b16 %v453
        %v2740 = vunpack.c.l.b16 %v454
        %v2741 = vunpack.c.h.b16 %v454
        %v2742 = vunpack.c.l.b16 %v455
        %v2743 = vunpack.c.h.b16 %v455
        %v2744 = vunpack.c.l.b16 %v456
        %v2745 = vunpack.c.h.b16 %v456
        %v2746 = vunpack.c.l.b16 %v457
        %v2747 = vunpack.c.h.b16 %v457
        %v2748 = vunpack.c.l.b16 %v458
        %v2749 = vunpack.c.h.b16 %v458
        %v2750 = vunpack.c.l.b16 %v459
        %v2751 = vunpack.c.h.b16 %v459
        %v2752 = vunpack.c.l.b16 %v460
        %v2753 = vunpack.c.h.b16 %v460
        %v2754 = vunpack.c.l.b16 %v461
        %v2755 = vunpack.c.h.b16 %v461
        %v2756 = vunpack.c.l.b16 %v462
        %v2757 = vunpack.c.h.b16 %v462
        %v2758 = vunpack.c.l.b16 %v463
        %v2759 = vunpack.c.h.b16 %v463
        %v2760 = vunpack.c.l.b16 %v464
        %v2761 = vunpack.c.h.b16 %v464
        %v2762 = vunpack.c.l.b16 %v465
        %v2763 = vunpack.c.h.b16 %v465
        %v2764 = vunpack.c.l.b16 %v466
        %v2765 = vunpack.c.h.b16 %v466
        %v2766 = vunpack.c.l.b16 %v467
        %v2767 = vunpack.c.h.b16 %v467
        %v2768 = vunpack.c.l.b16 %v468
        %v2769 = vunpack.c.h.b16 %v468
        %v2770 = vunpack.c.l.b16 %v469
        %v2771 = vunpack.c.h.b16 %v469
        %v2772 = vunpack.c.l.b16 %v470
        %v2773 = vunpack.c.h.b16 %v470
        %v2774 = vunpack.c.l.b16 %v471
        %v2775 = vunpack.c.h.b16 %v471
        %v2776 = vunpack.c.l.b16 %v472
        %v2777 = vunpack.c.h.b16 %v472
        %v2778 = vunpack.c.l.b16 %v473
        %v2779 = vunpack.c.h.b16 %v473
        %v2780 = vunpack.c.l.b16 %v474
        %v2781 = vunpack.c.h.b16 %v474
        %v2782 = vunpack.c.l.b16 %v475
        %v2783 = vunpack.c.h.b16 %v475
        %v2784 = vunpack.c.l.b16 %v476
        %v2785 = vunpack.c.h.b16 %v476
        %v2786 = vunpack.c.l.b16 %v477
        %v2787 = vunpack.c.h.b16 %v477
        %v2788 = vunpack.c.l.b16 %v478
        %v2789 = vunpack.c.h.b16 %v478
        %v2790 = vunpack.c.l.b16 %v479
        %v2791 = vunpack.c.h.b16 %v479
        %v2792 = vunpack.c.l.b16 %v480
        %v2793 = vunpack.c.h.b16 %v480
        %v2794 = vunpack.c.l.b16 %v481
        %v2795 = vunpack.c.h.b16 %v481
        %v2796 = vunpack.c.l.b16 %v482
        %v2797 = vunpack.c.h.b16 %v482
        %v2798 = vunpack.c.l.b16 %v483
        %v2799 = vunpack.c.h.b16 %v483
        %v2800 = vunpack.c.l.b16 %v484
        %v2801 = vunpack.c.h.b16 %v484
        %v2802 = vunpack.c.l.b16 %v485
        %v2803 = vunpack.c.h.b16 %v485
        %v2804 = vunpack.c.l.b16 %v486
        %v2805 = vunpack.c.h.b16 %v486
        %v2806 = vunpack.c.l.b16 %v487
        %v2807 = vunpack.c.h.b16 %v487
        %v2808 = vunpack.c.l.b16 %v488
        %v2809 = vunpack.c.h.b16 %v488
        %v2810 = vunpack.c.l.b16 %v489
        %v2811 = vunpack.c.h.b16 %v489
        %v2812 = vunpack.c.l.b16 %v490
        %v2813 = vunpack.c.h.b16 %v490
        %v2814 = vunpack.c.l.b16 %v491
        %v2815 = vunpack.c.h.b16 %v491
        %v2816 = vunpack.c.l.b16 %v492
        %v2817 = vunpack.c.h.b16 %v492
        %v2818 = vunpack.c.l.b16 %v493
        %v2819 = vunpack.c.h.b16 %v493
        %v2820 = vunpack.c.l.b16 %v494
        %v2821 = vunpack.c.h.b16 %v494
        %v2822 = vunpack.c.l.b16 %v495
        %v2823 = vunpack.c.h.b16 %v495
        %v2824 = vunpack.c.l.b16 %v496
        %v2825 = vunpack.c.h.b16 %v496
        %v2826 = vunpack.c.l.b16 %v497
        %v2827 = vunpack.c.h.b16 %v497
        %v2828 = vunpack.c.l.b16 %v498
        %v2829 = vunpack.c.h.b16 %v498
        %v2830 = vunpack.c.l.b16 %v499
        %v2831 = vunpack.c.h.b16 %v499
        %v2832 = vunpack.c.l.b16 %v500
        %v2833 = vunpack.c.h.b16 %v500
        %v2834 = vunpack.c.l.b16 %v501
        %v2835 = vunpack.c.h.b16 %v501
        %v2836 = vunpack.c.l.b16 %v502
        %v2837 = vunpack.c.h.b16 %v502
        %v2838 = vunpack.c.l.b16 %v503
        %v2839 = vunpack.c.h.b16 %v503
        %v2840 = vunpack.c.l.b16 %v504
        %v2841 = vunpack.c.h.b16 %v504
        %v2842 = vunpack.c.l.b16 %v505
        %v2843 = vunpack.c.h.b16 %v505
        %v2844 = vunpack.c.l.b16 %v506
        %v2845 = vunpack.c.h.b16 %v506
        %v2846 = vunpack.c.l.b16 %v507
        %v2847 = vunpack.c.h.b16 %v507
        %v2848 = vunpack.c.l.b16 %v508
        %v2849 = vunpack.c.h.b16 %v508
        %v2850 = vunpack.c.l.b16 %v509
        %v2851 = vunpack.c.h.b16 %v509
        %v2852 = vunpack.c.l.b16 %v510
        %v2853 = vunpack.c.h.b16 %v510
        %v2854 = vunpack.c.l.b16 %v511
        %v2855 = vunpack.c.h.b16 %v511
        %v2856 = vunpack.c.l.b16 %v512
        %v2857 = vunpack.c.h.b16 %v512
        %v2858 = vunpack.c.l.b16 %v513
        %v2859 = vunpack.c.h.b16 %v513
        %v2860 = vunpack.c.l.b16 %v514
        %v2861 = vunpack.c.h.b16 %v514
        %v2862 = vunpack.c.l.b16 %v515
        %v2863 = vunpack.c.h.b16 %v515
        %v2864 = vunpack.c.l.b16 %v516
        %v2865 = vunpack.c.h.b16 %v516
        %v2866 = vunpack.c.l.b16 %v517
        %v2867 = vunpack.c.h.b16 %v517
        %v2868 = vunpack.c.l.b16 %v518
        %v2869 = vunpack.c.h.b16 %v518
        %v2870 = vunpack.c.l.b16 %v519
        %v2871 = vunpack.c.h.b16 %v519
        %v2872 = vunpack.c.l.b16 %v520
        %v2873 = vunpack.c.h.b16 %v520
        %v2874 = vunpack.c.l.b16 %v521
        %v2875 = vunpack.c.h.b16 %v521
        %v2876 = vunpack.c.l.b16 %v522
        %v2877 = vunpack.c.h.b16 %v522
        %v2878 = vunpack.c.l.b16 %v523
        %v2879 = vunpack.c.h.b16 %v523
        %v2880 = vunpack.c.l.b16 %v524
        %v2881 = vunpack.c.h.b16 %v524
        %v2882 = vunpack.c.l.b16 %v525
        %v2883 = vunpack.c.h.b16 %v525
        %v2884 = vunpack.c.l.b16 %v526
        %v2885 = vunpack.c.h.b16 %v526
        %v2886 = vunpack.c.l.b16 %v527
        %v2887 = vunpack.c.h.b16 %v527
        %v2888 = vunpack.c.l.b16 %v528
        %v2889 = vunpack.c.h.b16 %v528
        %v2890 = vunpack.c.l.b16 %v529
        %v2891 = vunpack.c.h.b16 %v529
        %v2892 = vunpack.c.l.b16 %v530
        %v2893 = vunpack.c.h.b16 %v530
        %v2894 = vunpack.c.l.b16 %v531
        %v2895 = vunpack.c.h.b16 %v531
        %v2896 = vunpack.c.l.b16 %v532
        %v2897 = vunpack.c.h.b16 %v532
        %v2898 = vunpack.c.l.b16 %v533
        %v2899 = vunpack.c.h.b16 %v533
        %v2900 = vunpack.c.l.b16 %v534
        %v2901 = vunpack.c.h.b16 %v534
        %v2902 = vunpack.c.l.b16 %v535
        %v2903 = vunpack.c.h.b16 %v535
        %v2904 = vunpack.c.l.b16 %v536
        %v2905 = vunpack.c.h.b16 %v536
        %v2906 = vunpack.c.l.b16 %v537
        %v2907 = vunpack.c.h.b16 %v537
        %v2908 = vunpack.c.l.b16 %v538
        %v2909 = vunpack.c.h.b16 %v538
        %v2910 = vunpack.c.l.b16 %v539
        %v2911 = vunpack.c.h.b16 %v539
        %v2912 = vunpack.c.l.b16 %v540
        %v2913 = vunpack.c.h.b16 %v540
        %v2914 = vunpack.c.l.b16 %v541
        %v2915 = vunpack.c.h.b16 %v541
        %v2916 = vunpack.c.l.b16 %v542
        %v2917 = vunpack.c.h.b16 %v542
        %v2918 = vunpack.c.l.b16 %v543
        %v2919 = vunpack.c.h.b16 %v543
        %v2920 = vunpack.c.l.b16 %v544
        %v2921 = vunpack.c.h.b16 %v544
        %v2922 = vunpack.c.l.b16 %v545
        %v2923 = vunpack.c.h.b16 %v545
        %v2924 = vunpack.c.l.b16 %v546
        %v2925 = vunpack.c.h.b16 %v546
        %v2926 = vunpack.c.l.b16 %v547
        %v2927 = vunpack.c.h.b16 %v547
        %v2928 = vunpack.c.l.b16 %v548
        %v2929 = vunpack.c.h.b16 %v548
        %v2930 = vunpack.c.l.b16 %v549
        %v2931 = vunpack.c.h.b16 %v549
        %v2932 = vunpack.c.l.b16 %v550
        %v2933 = vunpack.c.h.b16 %v550
        %v2934 = vunpack.c.l.b16 %v551
        %v2935 = vunpack.c.h.b16 %v551
        %v2936 = vunpack.c.l.b16 %v552
        %v2937 = vunpack.c.h.b16 %v552
        %v2938 = vunpack.c.l.b16 %v553
        %v2939 = vunpack.c.h.b16 %v553
        %v2940 = vunpack.c.l.b16 %v554
        %v2941 = vunpack.c.h.b16 %v554
        %v2942 = vunpack.c.l.b16 %v555
        %v2943 = vunpack.c.h.b16 %v555
        %v2944 = vunpack.c.l.b16 %v556
        %v2945 = vunpack.c.h.b16 %v556
        %v2946 = vunpack.c.l.b16 %v557
        %v2947 = vunpack.c.h.b16 %v557
        %v2948 = vunpack.c.l.b16 %v558
        %v2949 = vunpack.c.h.b16 %v558
        %v2950 = vunpack.c.l.b16 %v559
        %v2951 = vunpack.c.h.b16 %v559
        %v2952 = vunpack.c.l.b16 %v560
        %v2953 = vunpack.c.h.b16 %v560
        %v2954 = vunpack.c.l.b16 %v561
        %v2955 = vunpack.c.h.b16 %v561
        %v2956 = vunpack.c.l.b16 %v562
        %v2957 = vunpack.c.h.b16 %v562
        %v2958 = vunpack.c.l.b16 %v563
        %v2959 = vunpack.c.h.b16 %v563
        %v2960 = vunpack.c.l.b16 %v564
        %v2961 = vunpack.c.h.b16 %v564
        %v2962 = vunpack.c.l.b16 %v565
        %v2963 = vunpack.c.h.b16 %v565
        %v2964 = vunpack.c.l.b16 %v566
        %v2965 = vunpack.c.h.b16 %v566
        %v2966 = vunpack.c.l.b16 %v567
        %v2967 = vunpack.c.h.b16 %v567
        %v2968 = vunpack.c.l.b16 %v568
        %v2969 = vunpack.c.h.b16 %v568
        %v2970 = vunpack.c.l.b16 %v569
        %v2971 = vunpack.c.h.b16 %v569
        %v2972 = vunpack.c.l.b16 %v570
        %v2973 = vunpack.c.h.b16 %v570
        %v2974 = vunpack.c.l.b16 %v571
        %v2975 = vunpack.c.h.b16 %v571
        %v2976 = vunpack.c.l.b16 %v572
        %v2977 = vunpack.c.h.b16 %v572
        %v2978 = vunpack.c.l.b16 %v573
        %v2979 = vunpack.c.h.b16 %v573
        %v2980 = vunpack.c.l.b16 %v574
        %v2981 = vunpack.c.h.b16 %v574
        %v2982 = vunpack.c.l.b16 %v575
        %v2983 = vunpack.c.h.b16 %v575
        %v2984 = vunpack.c.l.b16 %v576
        %v2985 = vunpack.c.h.b16 %v576
        %v2986 = vunpack.c.l.b16 %v577
        %v2987 = vunpack.c.h.b16 %v577
        %v2988 = vunpack.c.l.b16 %v578
        %v2989 = vunpack.c.h.b16 %v578
        %v2990 = vunpack.c.l.b16 %v579
        %v2991 = vunpack.c.h.b16 %v579
        %v2992 = vunpack.c.l.b16 %v580
        %v2993 = vunpack.c.h.b16 %v580
        %v2994 = vunpack.c.l.b16 %v581
        %v2995 = vunpack.c.h.b16 %v581
        %v2996 = vunpack.c.l.b16 %v582
        %v2997 = vunpack.c.h.b16 %v582
        %v2998 = vunpack.c.l.b16 %v583
        %v2999 = vunpack.c.h.b16 %v583
        %v3000 = vunpack.c.l.b16 %v584
        %v3001 = vunpack.c.h.b16 %v584
        %v3002 = vunpack.c.l.b16 %v585
        %v3003 = vunpack.c.h.b16 %v585
        %v3004 = vunpack.c.l.b16 %v586
        %v3005 = vunpack.c.h.b16 %v586
        %v3006 = vunpack.c.l.b16 %v587
        %v3007 = vunpack.c.h.b16 %v587
        %v3008 = vunpack.c.l.b16 %v588
        %v3009 = vunpack.c.h.b16 %v588
        %v3010 = vunpack.c.l.b16 %v589
        %v3011 = vunpack.c.h.b16 %v589
        %v3012 = vunpack.c.l.b16 %v590
        %v3013 = vunpack.c.h.b16 %v590
        %v3014 = vunpack.c.l.b16 %v591
        %v3015 = vunpack.c.h.b16 %v591
        %v3016 = vunpack.c.l.b16 %v592
        %v3017 = vunpack.c.h.b16 %v592
        %v3018 = vunpack.c.l.b16 %v593
        %v3019 = vunpack.c.h.b16 %v593
        %v3020 = vunpack.c.l.b16 %v594
        %v3021 = vunpack.c.h.b16 %v594
        %v3022 = vunpack.c.l.b16 %v595
        %v3023 = vunpack.c.h.b16 %v595
        %v3024 = vunpack.c.l.b16 %v596
        %v3025 = vunpack.c.h.b16 %v596
        %v3026 = vunpack.c.l.b16 %v597
        %v3027 = vunpack.c.h.b16 %v597
        %v3028 = vunpack.c.l.b16 %v598
        %v3029 = vunpack.c.h.b16 %v598
        %v3030 = vunpack.c.l.b16 %v599
        %v3031 = vunpack.c.h.b16 %v599
        %v3032 = vunpack.c.l.b16 %v600
        %v3033 = vunpack.c.h.b16 %v600
        %v3034 = vunpack.c.l.b16 %v601
        %v3035 = vunpack.c.h.b16 %v601
        %v3036 = vunpack.c.l.b16 %v602
        %v3037 = vunpack.c.h.b16 %v602
        %v3038 = vunpack.c.l.b16 %v603
        %v3039 = vunpack.c.h.b16 %v603
        %v3040 = vunpack.c.l.b16 %v604
        %v3041 = vunpack.c.h.b16 %v604
        %v3042 = vunpack.c.l.b16 %v605
        %v3043 = vunpack.c.h.b16 %v605
        %v3044 = vunpack.c.l.b16 %v606
        %v3045 = vunpack.c.h.b16 %v606
        %v3046 = vunpack.c.l.b16 %v607
        %v3047 = vunpack.c.h.b16 %v607
        %v3048 = vunpack.c.l.b16 %v608
        %v3049 = vunpack.c.h.b16 %v608
        %v3050 = vunpack.c.l.b16 %v609
        %v3051 = vunpack.c.h.b16 %v609
        %v3052 = vunpack.c.l.b16 %v610
        %v3053 = vunpack.c.h.b16 %v610
        %v3054 = vunpack.c.l.b16 %v611
        %v3055 = vunpack.c.h.b16 %v611
        %v3056 = vunpack.c.l.b16 %v612
        %v3057 = vunpack.c.h.b16 %v612
        %v3058 = vunpack.c.l.b16 %v613
        %v3059 = vunpack.c.h.b16 %v613
        %v3060 = vunpack.c.l.b16 %v614
        %v3061 = vunpack.c.h.b16 %v614
        %v3062 = vunpack.c.l.b16 %v615
        %v3063 = vunpack.c.h.b16 %v615
        %v3064 = vunpack.c.l.b16 %v616
        %v3065 = vunpack.c.h.b16 %v616
        %v3066 = vunpack.c.l.b16 %v617
        %v3067 = vunpack.c.h.b16 %v617
        %v3068 = vunpack.c.l.b16 %v618
        %v3069 = vunpack.c.h.b16 %v618
        %v3070 = vunpack.c.l.b16 %v619
        %v3071 = vunpack.c.h.b16 %v619
        %v3072 = vunpack.c.l.b16 %v620
        %v3073 = vunpack.c.h.b16 %v620
        %v3074 = vunpack.c.l.b16 %v621
        %v3075 = vunpack.c.h.b16 %v621
        %v3076 = vunpack.c.l.b16 %v622
        %v3077 = vunpack.c.h.b16 %v622
        %v3078 = vunpack.c.l.b16 %v623
        %v3079 = vunpack.c.h.b16 %v623
        %v3080 = vunpack.c.l.b16 %v624
        %v3081 = vunpack.c.h.b16 %v624
        %v3082 = vunpack.c.l.b16 %v625
        %v3083 = vunpack.c.h.b16 %v625
        %v3084 = vunpack.c.l.b16 %v626
        %v3085 = vunpack.c.h.b16 %v626
        %v3086 = vunpack.c.l.b16 %v627
        %v3087 = vunpack.c.h.b16 %v627
        %v3088 = vunpack.c.l.b16 %v628
        %v3089 = vunpack.c.h.b16 %v628
        %v3090 = vunpack.c.l.b16 %v629
        %v3091 = vunpack.c.h.b16 %v629
        %v3092 = vunpack.c.l.b16 %v630
        %v3093 = vunpack.c.h.b16 %v630
        %v3094 = vunpack.c.l.b16 %v631
        %v3095 = vunpack.c.h.b16 %v631
        %v3096 = vunpack.c.l.b16 %v632
        %v3097 = vunpack.c.h.b16 %v632
        %v3098 = vunpack.c.l.b16 %v633
        %v3099 = vunpack.c.h.b16 %v633
        %v3100 = vunpack.c.l.b16 %v634
        %v3101 = vunpack.c.h.b16 %v634
        %v3102 = vunpack.c.l.b16 %v635
        %v3103 = vunpack.c.h.b16 %v635
        %v3104 = vunpack.c.l.b16 %v636
        %v3105 = vunpack.c.h.b16 %v636
        %v3106 = vunpack.c.l.b16 %v637
        %v3107 = vunpack.c.h.b16 %v637
        %v3108 = vunpack.c.l.b16 %v638
        %v3109 = vunpack.c.h.b16 %v638
        %v3110 = vunpack.c.l.b16 %v639
        %v3111 = vunpack.c.h.b16 %v639
        %v3112 = vunpack.c.l.b16 %v640
        %v3113 = vunpack.c.h.b16 %v640
        %v3114 = vunpack.c.l.b16 %v641
        %v3115 = vunpack.c.h.b16 %v641
        %v3116 = vunpack.c.l.b16 %v642
        %v3117 = vunpack.c.h.b16 %v642
        %v3118 = vunpack.c.l.b16 %v643
        %v3119 = vunpack.c.h.b16 %v643
        %v3120 = vunpack.c.l.b16 %v644
        %v3121 = vunpack.c.h.b16 %v644
        %v3122 = vunpack.c.l.b16 %v645
        %v3123 = vunpack.c.h.b16 %v645
        %v3124 = vunpack.c.l.b16 %v646
        %v3125 = vunpack.c.h.b16 %v646
        %v3126 = vunpack.c.l.b16 %v647
        %v3127 = vunpack.c.h.b16 %v647
        %v3128 = vunpack.c.l.b16 %v648
        %v3129 = vunpack.c.h.b16 %v648
        %v3130 = vunpack.c.l.b16 %v649
        %v3131 = vunpack.c.h.b16 %v649
        %v3132 = vunpack.c.l.b16 %v650
        %v3133 = vunpack.c.h.b16 %v650
        %v3134 = vunpack.c.l.b16 %v651
        %v3135 = vunpack.c.h.b16 %v651
        %v3136 = vunpack.c.l.b16 %v652
        %v3137 = vunpack.c.h.b16 %v652
        %v3138 = vunpack.c.l.b16 %v653
        %v3139 = vunpack.c.h.b16 %v653
        %v3140 = vunpack.c.l.b16 %v654
        %v3141 = vunpack.c.h.b16 %v654
        %v3142 = vunpack.c.l.b16 %v655
        %v3143 = vunpack.c.h.b16 %v655
        %v3144 = vunpack.c.l.b16 %v656
        %v3145 = vunpack.c.h.b16 %v656
        %v3146 = vunpack.c.l.b16 %v657
        %v3147 = vunpack.c.h.b16 %v657
        %v3148 = vunpack.c.l.b16 %v658
        %v3149 = vunpack.c.h.b16 %v658
        %v3150 = vunpack.c.l.b16 %v659
        %v3151 = vunpack.c.h.b16 %v659
        %v3152 = vunpack.c.l.b16 %v660
        %v3153 = vunpack.c.h.b16 %v660
        %v3154 = vunpack.c.l.b16 %v661
        %v3155 = vunpack.c.h.b16 %v661
        %v3156 = vunpack.c.l.b16 %v662
        %v3157 = vunpack.c.h.b16 %v662
        %v3158 = vunpack.c.l.b16 %v663
        %v3159 = vunpack.c.h.b16 %v663
        %v3160 = vunpack.c.l.b16 %v664
        %v3161 = vunpack.c.h.b16 %v664
        %v3162 = vunpack.c.l.b16 %v665
        %v3163 = vunpack.c.h.b16 %v665
        %v3164 = vunpack.c.l.b16 %v666
        %v3165 = vunpack.c.h.b16 %v666
        %v3166 = vunpack.c.l.b16 %v667
        %v3167 = vunpack.c.h.b16 %v667
        %v3168 = vunpack.c.l.b16 %v668
        %v3169 = vunpack.c.h.b16 %v668
        %v3170 = vunpack.c.l.b16 %v669
        %v3171 = vunpack.c.h.b16 %v669
        %v3172 = vunpack.c.l.b16 %v670
        %v3173 = vunpack.c.h.b16 %v670
        %v3174 = vunpack.c.l.b16 %v671
        %v3175 = vunpack.c.h.b16 %v671
        %v3176 = vunpack.c.l.b16 %v672
        %v3177 = vunpack.c.h.b16 %v672
        %v3178 = vunpack.c.l.b16 %v673
        %v3179 = vunpack.c.h.b16 %v673
        %v3180 = vunpack.c.l.b16 %v674
        %v3181 = vunpack.c.h.b16 %v674
        %v3182 = vunpack.c.l.b16 %v675
        %v3183 = vunpack.c.h.b16 %v675
        %v3184 = vunpack.c.l.b16 %v676
        %v3185 = vunpack.c.h.b16 %v676
        %v3186 = vunpack.c.l.b16 %v677
        %v3187 = vunpack.c.h.b16 %v677
        %v3188 = vunpack.c.l.b16 %v678
        %v3189 = vunpack.c.h.b16 %v678
        %v3190 = vunpack.c.l.b16 %v679
        %v3191 = vunpack.c.h.b16 %v679
        %v3192 = vunpack.c.l.b16 %v680
        %v3193 = vunpack.c.h.b16 %v680
        %v3194 = vunpack.c.l.b16 %v681
        %v3195 = vunpack.c.h.b16 %v681
        %v3196 = vunpack.c.l.b16 %v682
        %v3197 = vunpack.c.h.b16 %v682
        %v3198 = vunpack.c.l.b16 %v683
        %v3199 = vunpack.c.h.b16 %v683
        %v3200 = vunpack.c.l.b16 %v684
        %v3201 = vunpack.c.h.b16 %v684
        %v3202 = vunpack.c.l.b16 %v685
        %v3203 = vunpack.c.h.b16 %v685
        %v3204 = vunpack.c.l.b16 %v686
        %v3205 = vunpack.c.h.b16 %v686
        %v3206 = vunpack.c.l.b16 %v687
        %v3207 = vunpack.c.h.b16 %v687
        %v3208 = vunpack.c.l.b16 %v688
        %v3209 = vunpack.c.h.b16 %v688
        %v3210 = vunpack.c.l.b16 %v689
        %v3211 = vunpack.c.h.b16 %v689
        %v3212 = vunpack.c.l.b16 %v690
        %v3213 = vunpack.c.h.b16 %v690
        %v3214 = vunpack.c.l.b16 %v691
        %v3215 = vunpack.c.h.b16 %v691
        %v3216 = vunpack.c.l.b16 %v692
        %v3217 = vunpack.c.h.b16 %v692
        %v3218 = vunpack.c.l.b16 %v693
        %v3219 = vunpack.c.h.b16 %v693
        %v3220 = vunpack.c.l.b16 %v694
        %v3221 = vunpack.c.h.b16 %v694
        %v3222 = vunpack.c.l.b16 %v695
        %v3223 = vunpack.c.h.b16 %v695
        %v3224 = vunpack.c.l.b16 %v696
        %v3225 = vunpack.c.h.b16 %v696
        %v3226 = vunpack.c.l.b16 %v697
        %v3227 = vunpack.c.h.b16 %v697
        %v3228 = vunpack.c.l.b16 %v698
        %v3229 = vunpack.c.h.b16 %v698
        %v3230 = vunpack.c.l.b16 %v699
        %v3231 = vunpack.c.h.b16 %v699
        %v3232 = vunpack.c.l.b16 %v700
        %v3233 = vunpack.c.h.b16 %v700
        %v3234 = vunpack.c.l.b16 %v701
        %v3235 = vunpack.c.h.b16 %v701
        %v3236 = vunpack.c.l.b16 %v702
        %v3237 = vunpack.c.h.b16 %v702
        %v3238 = vunpack.c.l.b16 %v703
        %v3239 = vunpack.c.h.b16 %v703
        %v3240 = vunpack.c.l.b16 %v704
        %v3241 = vunpack.c.h.b16 %v704
        %v3242 = vunpack.c.l.b16 %v705
        %v3243 = vunpack.c.h.b16 %v705
        %v3244 = vunpack.c.l.b16 %v706
        %v3245 = vunpack.c.h.b16 %v706
        %v3246 = vunpack.c.l.b16 %v707
        %v3247 = vunpack.c.h.b16 %v707
        %v3248 = vunpack.c.l.b16 %v708
        %v3249 = vunpack.c.h.b16 %v708
        %v3250 = vunpack.c.l.b16 %v709
        %v3251 = vunpack.c.h.b16 %v709
        %v3252 = vunpack.c.l.b16 %v710
        %v3253 = vunpack.c.h.b16 %v710
        %v3254 = vunpack.c.l.b16 %v711
        %v3255 = vunpack.c.h.b16 %v711
        %v3256 = vunpack.c.l.b16 %v712
        %v3257 = vunpack.c.h.b16 %v712
        %v3258 = vunpack.c.l.b16 %v713
        %v3259 = vunpack.c.h.b16 %v713
        %v3260 = vunpack.c.l.b16 %v714
        %v3261 = vunpack.c.h.b16 %v714
        %v3262 = vunpack.c.l.b16 %v715
        %v3263 = vunpack.c.h.b16 %v715
        %v3264 = vunpack.c.l.b16 %v716
        %v3265 = vunpack.c.h.b16 %v716
        %v3266 = vunpack.c.l.b16 %v717
        %v3267 = vunpack.c.h.b16 %v717
        %v3268 = vunpack.c.l.b16 %v718
        %v3269 = vunpack.c.h.b16 %v718
        %v3270 = vunpack.c.l.b16 %v719
        %v3271 = vunpack.c.h.b16 %v719
        %v3272 = vunpack.c.l.b16 %v720
        %v3273 = vunpack.c.h.b16 %v720
        %v3274 = vunpack.c.l.b16 %v721
        %v3275 = vunpack.c.h.b16 %v721
        %v3276 = vunpack.c.l.b16 %v722
        %v3277 = vunpack.c.h.b16 %v722
        %v3278 = vunpack.c.l.b16 %v723
        %v3279 = vunpack.c.h.b16 %v723
        %v3280 = vunpack.c.l.b16 %v724
        %v3281 = vunpack.c.h.b16 %v724
        %v3282 = vunpack.c.l.b16 %v725
        %v3283 = vunpack.c.h.b16 %v725
        %v3284 = vunpack.c.l.b16 %v726
        %v3285 = vunpack.c.h.b16 %v726
        %v3286 = vunpack.c.l.b16 %v727
        %v3287 = vunpack.c.h.b16 %v727
        %v3288 = vunpack.c.l.b16 %v728
        %v3289 = vunpack.c.h.b16 %v728
        %v3290 = vunpack.c.l.b16 %v729
        %v3291 = vunpack.c.h.b16 %v729
        %v3292 = vunpack.c.l.b16 %v730
        %v3293 = vunpack.c.h.b16 %v730
        %v3294 = vunpack.c.l.b16 %v731
        %v3295 = vunpack.c.h.b16 %v731
        %v3296 = vunpack.c.l.b16 %v732
        %v3297 = vunpack.c.h.b16 %v732
        %v3298 = vunpack.c.l.b16 %v733
        %v3299 = vunpack.c.h.b16 %v733
        %v3300 = vunpack.c.l.b16 %v734
        %v3301 = vunpack.c.h.b16 %v734
        %v3302 = vunpack.c.l.b16 %v735
        %v3303 = vunpack.c.h.b16 %v735
        %v3304 = vunpack.c.l.b16 %v736
        %v3305 = vunpack.c.h.b16 %v736
        %v3306 = vunpack.c.l.b16 %v737
        %v3307 = vunpack.c.h.b16 %v737
        %v3308 = vunpack.c.l.b16 %v738
        %v3309 = vunpack.c.h.b16 %v738
        %v3310 = vunpack.c.l.b16 %v739
        %v3311 = vunpack.c.h.b16 %v739
        %v3312 = vunpack.c.l.b16 %v740
        %v3313 = vunpack.c.h.b16 %v740
        %v3314 = vunpack.c.l.b16 %v741
        %v3315 = vunpack.c.h.b16 %v741
        %v3316 = vunpack.c.l.b16 %v742
        %v3317 = vunpack.c.h.b16 %v742
        %v3318 = vunpack.c.l.b16 %v743
        %v3319 = vunpack.c.h.b16 %v743
        %v3320 = vunpack.c.l.b16 %v744
        %v3321 = vunpack.c.h.b16 %v744
        %v3322 = vunpack.c.l.b16 %v745
        %v3323 = vunpack.c.h.b16 %v745
        %v3324 = vunpack.c.l.b16 %v746
        %v3325 = vunpack.c.h.b16 %v746
        %v3326 = vunpack.c.l.b16 %v747
        %v3327 = vunpack.c.h.b16 %v747
        %v3328 = vunpack.c.l.b16 %v748
        %v3329 = vunpack.c.h.b16 %v748
        %v3330 = vunpack.c.l.b16 %v749
        %v3331 = vunpack.c.h.b16 %v749
        %v3332 = vunpack.c.l.b16 %v750
        %v3333 = vunpack.c.h.b16 %v750
        %v3334 = vunpack.c.l.b16 %v751
        %v3335 = vunpack.c.h.b16 %v751
        %v3336 = vunpack.c.l.b16 %v752
        %v3337 = vunpack.c.h.b16 %v752
        %v3338 = vunpack.c.l.b16 %v753
        %v3339 = vunpack.c.h.b16 %v753
        %v3340 = vunpack.c.l.b16 %v754
        %v3341 = vunpack.c.h.b16 %v754
        %v3342 = vunpack.c.l.b16 %v755
        %v3343 = vunpack.c.h.b16 %v755
        %v3344 = vunpack.c.l.b16 %v756
        %v3345 = vunpack.c.h.b16 %v756
        %v3346 = vunpack.c.l.b16 %v757
        %v3347 = vunpack.c.h.b16 %v757
        %v3348 = vunpack.c.l.b16 %v758
        %v3349 = vunpack.c.h.b16 %v758
        %v3350 = vunpack.c.l.b16 %v759
        %v3351 = vunpack.c.h.b16 %v759
        %v3352 = vunpack.c.l.b16 %v760
        %v3353 = vunpack.c.h.b16 %v760
        %v3354 = vunpack.c.l.b16 %v761
        %v3355 = vunpack.c.h.b16 %v761
        %v3356 = vunpack.c.l.b16 %v762
        %v3357 = vunpack.c.h.b16 %v762
        %v3358 = vunpack.c.l.b16 %v763
        %v3359 = vunpack.c.h.b16 %v763
        %v3360 = vunpack.c.l.b16 %v764
        %v3361 = vunpack.c.h.b16 %v764
        %v3362 = vunpack.c.l.b16 %v765
        %v3363 = vunpack.c.h.b16 %v765
        %v3364 = vunpack.c.l.b16 %v766
        %v3365 = vunpack.c.h.b16 %v766
        %v3366 = vunpack.c.l.b16 %v767
        %v3367 = vunpack.c.h.b16 %v767
        %v3368 = vunpack.c.l.b16 %v768
        %v3369 = vunpack.c.h.b16 %v768
        %v3370 = vunpack.c.l.b16 %v769
        %v3371 = vunpack.c.h.b16 %v769
        %v3372 = vunpack.c.l.b16 %v770
        %v3373 = vunpack.c.h.b16 %v770
        %v3374 = vunpack.c.l.b16 %v771
        %v3375 = vunpack.c.h.b16 %v771
        %v3376 = vunpack.c.l.b16 %v772
        %v3377 = vunpack.c.h.b16 %v772
        %v3378 = vunpack.c.l.b16 %v773
        %v3379 = vunpack.c.h.b16 %v773
        %v3380 = vunpack.c.l.b16 %v774
        %v3381 = vunpack.c.h.b16 %v774
        %v3382 = vunpack.c.l.b16 %v775
        %v3383 = vunpack.c.h.b16 %v775
        %v3384 = vunpack.c.l.b16 %v776
        %v3385 = vunpack.c.h.b16 %v776
        %v3386 = vunpack.c.l.b16 %v777
        %v3387 = vunpack.c.h.b16 %v777
        %v3388 = vunpack.c.l.b16 %v778
        %v3389 = vunpack.c.h.b16 %v778
        %v3390 = vunpack.c.l.b16 %v779
        %v3391 = vunpack.c.h.b16 %v779
        %v3392 = vunpack.c.l.b16 %v780
        %v3393 = vunpack.c.h.b16 %v780
        %v3394 = vunpack.c.l.b16 %v781
        %v3395 = vunpack.c.h.b16 %v781
        %v3396 = vunpack.c.l.b16 %v782
        %v3397 = vunpack.c.h.b16 %v782
        %v3398 = vunpack.c.l.b16 %v783
        %v3399 = vunpack.c.h.b16 %v783
        %v3400 = vunpack.c.l.b16 %v784
        %v3401 = vunpack.c.h.b16 %v784
        %v3402 = vunpack.c.l.b16 %v785
        %v3403 = vunpack.c.h.b16 %v785
        %v3404 = vunpack.c.l.b16 %v786
        %v3405 = vunpack.c.h.b16 %v786
        %v3406 = vunpack.c.l.b16 %v787
        %v3407 = vunpack.c.h.b16 %v787
        %v3408 = vunpack.c.l.b16 %v788
        %v3409 = vunpack.c.h.b16 %v788
        %v3410 = vunpack.c.l.b16 %v789
        %v3411 = vunpack.c.h.b16 %v789
        %v3412 = vunpack.c.l.b16 %v790
        %v3413 = vunpack.c.h.b16 %v790
        %v3414 = vunpack.c.l.b16 %v791
        %v3415 = vunpack.c.h.b16 %v791
        %v3416 = vunpack.c.l.b16 %v792
        %v3417 = vunpack.c.h.b16 %v792
        %v3418 = vunpack.c.l.b16 %v793
        %v3419 = vunpack.c.h.b16 %v793
        %v3420 = vunpack.c.l.b16 %v794
        %v3421 = vunpack.c.h.b16 %v794
        %v3422 = vunpack.c.l.b16 %v795
        %v3423 = vunpack.c.h.b16 %v795
        %v3424 = vunpack.c.l.b16 %v796
        %v3425 = vunpack.c.h.b16 %v796
        %v3426 = vunpack.c.l.b16 %v797
        %v3427 = vunpack.c.h.b16 %v797
        %v3428 = vunpack.c.l.b16 %v798
        %v3429 = vunpack.c.h.b16 %v798
        %v3430 = vunpack.c.l.b16 %v799
        %v3431 = vunpack.c.h.b16 %v799
        %v3432 = vunpack.c.l.b16 %v800
        %v3433 = vunpack.c.h.b16 %v800
        %v3434 = vunpack.c.l.b16 %v801
        %v3435 = vunpack.c.h.b16 %v801
        %v3436 = vunpack.c.l.b16 %v802
        %v3437 = vunpack.c.h.b16 %v802
        %v3438 = vunpack.c.l.b16 %v803
        %v3439 = vunpack.c.h.b16 %v803
        %v3440 = vunpack.c.l.b16 %v804
        %v3441 = vunpack.c.h.b16 %v804
        %v3442 = vunpack.c.l.b16 %v805
        %v3443 = vunpack.c.h.b16 %v805
        %v3444 = vunpack.c.l.b16 %v806
        %v3445 = vunpack.c.h.b16 %v806
        %v3446 = vunpack.c.l.b16 %v807
        %v3447 = vunpack.c.h.b16 %v807
        %v3448 = vunpack.c.l.b16 %v808
        %v3449 = vunpack.c.h.b16 %v808
        %v3450 = vunpack.c.l.b16 %v809
        %v3451 = vunpack.c.h.b16 %v809
        %v3452 = vunpack.c.l.b16 %v810
        %v3453 = vunpack.c.h.b16 %v810
        %v3454 = vunpack.c.l.b16 %v811
        %v3455 = vunpack.c.h.b16 %v811
        %v3456 = vunpack.c.l.b16 %v812
        %v3457 = vunpack.c.h.b16 %v812
        %v3458 = vunpack.c.l.b16 %v813
        %v3459 = vunpack.c.h.b16 %v813
        %v3460 = vunpack.c.l.b16 %v814
        %v3461 = vunpack.c.h.b16 %v814
        %v3462 = vunpack.c.l.b16 %v815
        %v3463 = vunpack.c.h.b16 %v815
        %v3464 = vunpack.c.l.b16 %v816
        %v3465 = vunpack.c.h.b16 %v816
        %v3466 = vunpack.c.l.b16 %v817
        %v3467 = vunpack.c.h.b16 %v817
        %v3468 = vunpack.c.l.b16 %v818
        %v3469 = vunpack.c.h.b16 %v818
        %v3470 = vunpack.c.l.b16 %v819
        %v3471 = vunpack.c.h.b16 %v819
        %v3472 = vunpack.c.l.b16 %v820
        %v3473 = vunpack.c.h.b16 %v820
        %v3474 = vunpack.c.l.b16 %v821
        %v3475 = vunpack.c.h.b16 %v821
        %v3476 = vunpack.c.l.b16 %v822
        %v3477 = vunpack.c.h.b16 %v822
        %v3478 = vunpack.c.l.b16 %v823
        %v3479 = vunpack.c.h.b16 %v823
        %v3480 = vunpack.c.l.b16 %v824
        %v3481 = vunpack.c.h.b16 %v824
        %v3482 = vunpack.c.l.b16 %v825
        %v3483 = vunpack.c.h.b16 %v825
        %v3484 = vunpack.c.l.b16 %v826
        %v3485 = vunpack.c.h.b16 %v826
        %v3486 = vunpack.c.l.b16 %v827
        %v3487 = vunpack.c.h.b16 %v827
        %v3488 = vunpack.c.l.b16 %v828
        %v3489 = vunpack.c.h.b16 %v828
        %v3490 = vunpack.c.l.b16 %v829
        %v3491 = vunpack.c.h.b16 %v829
        %v3492 = vunpack.c.l.b16 %v830
        %v3493 = vunpack.c.h.b16 %v830
        %v3494 = vunpack.c.l.b16 %v831
        %v3495 = vunpack.c.h.b16 %v831
        %v3496 = vunpack.c.l.b16 %v832
        %v3497 = vunpack.c.h.b16 %v832
        %v3498 = vunpack.c.l.b16 %v833
        %v3499 = vunpack.c.h.b16 %v833
        %v3500 = vunpack.c.l.b16 %v834
        %v3501 = vunpack.c.h.b16 %v834
        %v3502 = vunpack.c.l.b16 %v835
        %v3503 = vunpack.c.h.b16 %v835
        %v3504 = vunpack.c.l.b16 %v836
        %v3505 = vunpack.c.h.b16 %v836
        %v3506 = vunpack.c.l.b16 %v837
        %v3507 = vunpack.c.h.b16 %v837
        %v3508 = vunpack.c.l.b16 %v838
        %v3509 = vunpack.c.h.b16 %v838
        %v3510 = vunpack.c.l.b16 %v839
        %v3511 = vunpack.c.h.b16 %v839
        %v3512 = vunpack.c.l.b16 %v840
        %v3513 = vunpack.c.h.b16 %v840
        %v3514 = vunpack.c.l.b16 %v841
        %v3515 = vunpack.c.h.b16 %v841
        %v3516 = vunpack.c.l.b16 %v842
        %v3517 = vunpack.c.h.b16 %v842
        %v3518 = vunpack.c.l.b16 %v843
        %v3519 = vunpack.c.h.b16 %v843
        %v3520 = vunpack.c.l.b16 %v844
        %v3521 = vunpack.c.h.b16 %v844
        %v3522 = vunpack.c.l.b16 %v845
        %v3523 = vunpack.c.h.b16 %v845
        %v3524 = vunpack.c.l.b16 %v846
        %v3525 = vunpack.c.h.b16 %v846
        %v3526 = vunpack.c.l.b16 %v847
        %v3527 = vunpack.c.h.b16 %v847
        %v3528 = vunpack.c.l.b16 %v848
        %v3529 = vunpack.c.h.b16 %v848
        %v3530 = vunpack.c.l.b16 %v849
        %v3531 = vunpack.c.h.b16 %v849
        %v3532 = vunpack.c.l.b16 %v850
        %v3533 = vunpack.c.h.b16 %v850
        %v3534 = vunpack.c.l.b16 %v851
        %v3535 = vunpack.c.h.b16 %v851
        %v3536 = vunpack.c.l.b16 %v852
        %v3537 = vunpack.c.h.b16 %v852
        %v3538 = vunpack.c.l.b16 %v853
        %v3539 = vunpack.c.h.b16 %v853
        %v3540 = vunpack.c.l.b16 %v854
        %v3541 = vunpack.c.h.b16 %v854
        %v3542 = vunpack.c.l.b16 %v855
        %v3543 = vunpack.c.h.b16 %v855
        %v3544 = vunpack.c.l.b16 %v856
        %v3545 = vunpack.c.h.b16 %v856
        %v3546 = vunpack.c.l.b16 %v857
        %v3547 = vunpack.c.h.b16 %v857
        %v3548 = vunpack.c.l.b16 %v858
        %v3549 = vunpack.c.h.b16 %v858
        %v3550 = vunpack.c.l.b16 %v859
        %v3551 = vunpack.c.h.b16 %v859
        %v3552 = vunpack.c.l.b16 %v860
        %v3553 = vunpack.c.h.b16 %v860
        %v3554 = vunpack.c.l.b16 %v861
        %v3555 = vunpack.c.h.b16 %v861
        %v3556 = vunpack.c.l.b16 %v862
        %v3557 = vunpack.c.h.b16 %v862
        %v3558 = vunpack.c.l.b16 %v863
        %v3559 = vunpack.c.h.b16 %v863
        %v3560 = vunpack.c.l.b16 %v864
        %v3561 = vunpack.c.h.b16 %v864
        %v3562 = vunpack.c.l.b16 %v865
        %v3563 = vunpack.c.h.b16 %v865
        %v3564 = vunpack.c.l.b16 %v866
        %v3565 = vunpack.c.h.b16 %v866
        %v3566 = vunpack.c.l.b16 %v867
        %v3567 = vunpack.c.h.b16 %v867
        %v3568 = vunpack.c.l.b16 %v868
        %v3569 = vunpack.c.h.b16 %v868
        %v3570 = vunpack.c.l.b16 %v869
        %v3571 = vunpack.c.h.b16 %v869
        %v3572 = vunpack.c.l.b16 %v870
        %v3573 = vunpack.c.h.b16 %v870
        %v3574 = vunpack.c.l.b16 %v871
        %v3575 = vunpack.c.h.b16 %v871
        %v3576 = vunpack.c.l.b16 %v872
        %v3577 = vunpack.c.h.b16 %v872
        %v3578 = vunpack.c.l.b16 %v873
        %v3579 = vunpack.c.h.b16 %v873
        %v3580 = vunpack.c.l.b16 %v874
        %v3581 = vunpack.c.h.b16 %v874
        %v3582 = vunpack.c.l.b16 %v875
        %v3583 = vunpack.c.h.b16 %v875
        %v3584 = vunpack.c.l.b16 %v876
        %v3585 = vunpack.c.h.b16 %v876
        %v3586 = vunpack.c.l.b16 %v877
        %v3587 = vunpack.c.h.b16 %v877
        %v3588 = vunpack.c.l.b16 %v878
        %v3589 = vunpack.c.h.b16 %v878
        %v3590 = vunpack.c.l.b16 %v879
        %v3591 = vunpack.c.h.b16 %v879
        %v3592 = vunpack.c.l.b16 %v880
        %v3593 = vunpack.c.h.b16 %v880
        %v3594 = vunpack.c.l.b16 %v881
        %v3595 = vunpack.c.h.b16 %v881
        %v3596 = vunpack.c.l.b16 %v882
        %v3597 = vunpack.c.h.b16 %v882
        %v3598 = vunpack.c.l.b16 %v883
        %v3599 = vunpack.c.h.b16 %v883
        %v3600 = vunpack.c.l.b16 %v884
        %v3601 = vunpack.c.h.b16 %v884
        %v3602 = vunpack.c.l.b16 %v885
        %v3603 = vunpack.c.h.b16 %v885
        %v3604 = vunpack.c.l.b16 %v886
        %v3605 = vunpack.c.h.b16 %v886
        %v3606 = vunpack.c.l.b16 %v887
        %v3607 = vunpack.c.h.b16 %v887
        %v3608 = vunpack.c.l.b16 %v888
        %v3609 = vunpack.c.h.b16 %v888
        %v3610 = vunpack.c.l.b16 %v889
        %v3611 = vunpack.c.h.b16 %v889
        %v3612 = vunpack.c.l.b16 %v890
        %v3613 = vunpack.c.h.b16 %v890
        %v3614 = vunpack.c.l.b16 %v891
        %v3615 = vunpack.c.h.b16 %v891
        %v3616 = vunpack.c.l.b16 %v892
        %v3617 = vunpack.c.h.b16 %v892
        %v3618 = vunpack.c.l.b16 %v893
        %v3619 = vunpack.c.h.b16 %v893
        %v3620 = vunpack.c.l.b16 %v894
        %v3621 = vunpack.c.h.b16 %v894
        %v3622 = vunpack.c.l.b16 %v895
        %v3623 = vunpack.c.h.b16 %v895
        %v3624 = vunpack.c.l.b16 %v896
        %v3625 = vunpack.c.h.b16 %v896
        %v3626 = vunpack.c.l.b16 %v897
        %v3627 = vunpack.c.h.b16 %v897
        %v3628 = vunpack.c.l.b16 %v898
        %v3629 = vunpack.c.h.b16 %v898
        %v3630 = vunpack.c.l.b16 %v899
        %v3631 = vunpack.c.h.b16 %v899
        %v3632 = vunpack.c.l.b16 %v900
        %v3633 = vunpack.c.h.b16 %v900
        %v3634 = vunpack.c.l.b16 %v901
        %v3635 = vunpack.c.h.b16 %v901
        %v3636 = vunpack.c.l.b16 %v902
        %v3637 = vunpack.c.h.b16 %v902
        %v3638 = vunpack.c.l.b16 %v903
        %v3639 = vunpack.c.h.b16 %v903
        %v3640 = vunpack.c.l.b16 %v904
        %v3641 = vunpack.c.h.b16 %v904
        %v3642 = vunpack.c.l.b16 %v905
        %v3643 = vunpack.c.h.b16 %v905
        %v3644 = vunpack.c.l.b16 %v906
        %v3645 = vunpack.c.h.b16 %v906
        %v3646 = vunpack.c.l.b16 %v907
        %v3647 = vunpack.c.h.b16 %v907
        %v3648 = vunpack.c.l.b16 %v908
        %v3649 = vunpack.c.h.b16 %v908
        %v3650 = vunpack.c.l.b16 %v909
        %v3651 = vunpack.c.h.b16 %v909
        %v3652 = vunpack.c.l.b16 %v910
        %v3653 = vunpack.c.h.b16 %v910
        %v3654 = vunpack.c.l.b16 %v911
        %v3655 = vunpack.c.h.b16 %v911
        %v3656 = vunpack.c.l.b16 %v912
        %v3657 = vunpack.c.h.b16 %v912
        %v3658 = vunpack.c.l.b16 %v913
        %v3659 = vunpack.c.h.b16 %v913
        %v3660 = vunpack.c.l.b16 %v914
        %v3661 = vunpack.c.h.b16 %v914
        %v3662 = vunpack.c.l.b16 %v915
        %v3663 = vunpack.c.h.b16 %v915
        %v3664 = vunpack.c.l.b16 %v916
        %v3665 = vunpack.c.h.b16 %v916
        %v3666 = vunpack.c.l.b16 %v917
        %v3667 = vunpack.c.h.b16 %v917
        %v3668 = vunpack.c.l.b16 %v918
        %v3669 = vunpack.c.h.b16 %v918
        %v3670 = vunpack.c.l.b16 %v919
        %v3671 = vunpack.c.h.b16 %v919
        %v3672 = vunpack.c.l.b16 %v920
        %v3673 = vunpack.c.h.b16 %v920
        %v3674 = vunpack.c.l.b16 %v921
        %v3675 = vunpack.c.h.b16 %v921
        %v3676 = vunpack.c.l.b16 %v922
        %v3677 = vunpack.c.h.b16 %v922
        %v3678 = vunpack.c.l.b16 %v923
        %v3679 = vunpack.c.h.b16 %v923
        %v3680 = vunpack.c.l.b16 %v924
        %v3681 = vunpack.c.h.b16 %v924
        %v3682 = vunpack.c.l.b16 %v925
        %v3683 = vunpack.c.h.b16 %v925
        %v3684 = vunpack.c.l.b16 %v926
        %v3685 = vunpack.c.h.b16 %v926
        %v3686 = vunpack.c.l.b16 %v927
        %v3687 = vunpack.c.h.b16 %v927
        %v3688 = vunpack.c.l.b16 %v928
        %v3689 = vunpack.c.h.b16 %v928
        %v3690 = vunpack.c.l.b16 %v929
        %v3691 = vunpack.c.h.b16 %v929
        %v3692 = vunpack.c.l.b16 %v930
        %v3693 = vunpack.c.h.b16 %v930
        %v3694 = vunpack.c.l.b16 %v931
        %v3695 = vunpack.c.h.b16 %v931
        %v3696 = vunpack.c.l.b16 %v932
        %v3697 = vunpack.c.h.b16 %v932
        %v3698 = vunpack.c.l.b16 %v933
        %v3699 = vunpack.c.h.b16 %v933
        %v3700 = vunpack.c.l.b16 %v934
        %v3701 = vunpack.c.h.b16 %v934
        %v3702 = vunpack.c.l.b16 %v935
        %v3703 = vunpack.c.h.b16 %v935
        %v3704 = vunpack.c.l.b16 %v936
        %v3705 = vunpack.c.h.b16 %v936
        %v3706 = vunpack.c.l.b16 %v937
        %v3707 = vunpack.c.h.b16 %v937
        %v3708 = vunpack.c.l.b16 %v938
        %v3709 = vunpack.c.h.b16 %v938
        %v3710 = vunpack.c.l.b16 %v939
        %v3711 = vunpack.c.h.b16 %v939
        %v3712 = vunpack.c.l.b16 %v940
        %v3713 = vunpack.c.h.b16 %v940
        %v3714 = vunpack.c.l.b16 %v941
        %v3715 = vunpack.c.h.b16 %v941
        %v3716 = vunpack.c.l.b16 %v942
        %v3717 = vunpack.c.h.b16 %v942
        %v3718 = vunpack.c.l.b16 %v943
        %v3719 = vunpack.c.h.b16 %v943
        %v3720 = vunpack.c.l.b16 %v944
        %v3721 = vunpack.c.h.b16 %v944
        %v3722 = vunpack.c.l.b16 %v945
        %v3723 = vunpack.c.h.b16 %v945
        %v3724 = vunpack.c.l.b16 %v946
        %v3725 = vunpack.c.h.b16 %v946
        %v3726 = vunpack.c.l.b16 %v947
        %v3727 = vunpack.c.h.b16 %v947
        %v3728 = vunpack.c.l.b16 %v948
        %v3729 = vunpack.c.h.b16 %v948
        %v3730 = vunpack.c.l.b16 %v949
        %v3731 = vunpack.c.h.b16 %v949
        %v3732 = vunpack.c.l.b16 %v950
        %v3733 = vunpack.c.h.b16 %v950
        %v3734 = vunpack.c.l.b16 %v951
        %v3735 = vunpack.c.h.b16 %v951
        %v3736 = vunpack.c.l.b16 %v952
        %v3737 = vunpack.c.h.b16 %v952
        %v3738 = vunpack.c.l.b16 %v953
        %v3739 = vunpack.c.h.b16 %v953
        %v3740 = vunpack.c.l.b16 %v954
        %v3741 = vunpack.c.h.b16 %v954
        %v3742 = vunpack.c.l.b16 %v955
        %v3743 = vunpack.c.h.b16 %v955
        %v3744 = vunpack.c.l.b16 %v956
        %v3745 = vunpack.c.h.b16 %v956
        %v3746 = vunpack.c.l.b16 %v957
        %v3747 = vunpack.c.h.b16 %v957
        %v3748 = vunpack.c.l.b16 %v958
        %v3749 = vunpack.c.h.b16 %v958
        %v3750 = vunpack.c.l.b16 %v959
        %v3751 = vunpack.c.h.b16 %v959
        %v3752 = vunpack.c.l.b16 %v960
        %v3753 = vunpack.c.h.b16 %v960
        %v3754 = vunpack.c.l.b16 %v961
        %v3755 = vunpack.c.h.b16 %v961
        %v3756 = vunpack.c.l.b16 %v962
        %v3757 = vunpack.c.h.b16 %v962
        %v3758 = vunpack.c.l.b16 %v963
        %v3759 = vunpack.c.h.b16 %v963
        %v3760 = vunpack.c.l.b16 %v964
        %v3761 = vunpack.c.h.b16 %v964
        %v3762 = vunpack.c.l.b16 %v965
        %v3763 = vunpack.c.h.b16 %v965
        %v3764 = vunpack.c.l.b16 %v966
        %v3765 = vunpack.c.h.b16 %v966
        %v3766 = vunpack.c.l.b16 %v967
        %v3767 = vunpack.c.h.b16 %v967
        %v3768 = vunpack.c.l.b16 %v968
        %v3769 = vunpack.c.h.b16 %v968
        %v3770 = vunpack.c.l.b16 %v969
        %v3771 = vunpack.c.h.b16 %v969
        %v3772 = vunpack.c.l.b16 %v970
        %v3773 = vunpack.c.h.b16 %v970
        %v3774 = vunpack.c.l.b16 %v971
        %v3775 = vunpack.c.h.b16 %v971
        %v3776 = vunpack.c.l.b16 %v972
        %v3777 = vunpack.c.h.b16 %v972
        %v3778 = vunpack.c.l.b16 %v973
        %v3779 = vunpack.c.h.b16 %v973
        %v3780 = vunpack.c.l.b16 %v974
        %v3781 = vunpack.c.h.b16 %v974
        %v3782 = vunpack.c.l.b16 %v975
        %v3783 = vunpack.c.h.b16 %v975
        %v3784 = vunpack.c.l.b16 %v976
        %v3785 = vunpack.c.h.b16 %v976
        %v3786 = vunpack.c.l.b16 %v977
        %v3787 = vunpack.c.h.b16 %v977
        %v3788 = vunpack.c.l.b16 %v978
        %v3789 = vunpack.c.h.b16 %v978
        %v3790 = vunpack.c.l.b16 %v979
        %v3791 = vunpack.c.h.b16 %v979
        %v3792 = vunpack.c.l.b16 %v980
        %v3793 = vunpack.c.h.b16 %v980
        %v3794 = vunpack.c.l.b16 %v981
        %v3795 = vunpack.c.h.b16 %v981
        %v3796 = vunpack.c.l.b16 %v982
        %v3797 = vunpack.c.h.b16 %v982
        %v3798 = vunpack.c.l.b16 %v983
        %v3799 = vunpack.c.h.b16 %v983
        %v3800 = vunpack.c.l.b16 %v984
        %v3801 = vunpack.c.h.b16 %v984
        %v3802 = vunpack.c.l.b16 %v985
        %v3803 = vunpack.c.h.b16 %v985
        %v3804 = vunpack.c.l.b16 %v986
        %v3805 = vunpack.c.h.b16 %v986
        %v3806 = vunpack.c.l.b16 %v987
        %v3807 = vunpack.c.h.b16 %v987
        %v3808 = vunpack.c.l.b16 %v988
        %v3809 = vunpack.c.h.b16 %v988
        %v3810 = vunpack.c.l.b16 %v989
        %v3811 = vunpack.c.h.b16 %v989
        %v3812 = vunpack.c.l.b16 %v990
        %v3813 = vunpack.c.h.b16 %v990
        %v3814 = vunpack.c.l.b16 %v991
        %v3815 = vunpack.c.h.b16 %v991
        %v3816 = vunpack.c.l.b16 %v992
        %v3817 = vunpack.c.h.b16 %v992
        %v3818 = vunpack.c.l.b16 %v993
        %v3819 = vunpack.c.h.b16 %v993
        %v3820 = vunpack.c.l.b16 %v994
        %v3821 = vunpack.c.h.b16 %v994
        %v3822 = vunpack.c.l.b16 %v995
        %v3823 = vunpack.c.h.b16 %v995
        %v3824 = vunpack.c.l.b16 %v996
        %v3825 = vunpack.c.h.b16 %v996
        %v3826 = vunpack.c.l.b16 %v997
        %v3827 = vunpack.c.h.b16 %v997
        %v3828 = vunpack.c.l.b16 %v998
        %v3829 = vunpack.c.h.b16 %v998
        %v3830 = vunpack.c.l.b16 %v999
        %v3831 = vunpack.c.h.b16 %v999
        %v3832 = vunpack.c.l.b16 %v1000
        %v3833 = vunpack.c.h.b16 %v1000
        %v3834 = vunpack.c.l.b16 %v1001
        %v3835 = vunpack.c.h.b16 %v1001
        %v3836 = vunpack.c.l.b16 %v1002
        %v3837 = vunpack.c.h.b16 %v1002
        %v3838 = vunpack.c.l.b16 %v1003
        %v3839 = vunpack.c.h.b16 %v1003
        %v3840 = vunpack.c.l.b16 %v1004
        %v3841 = vunpack.c.h.b16 %v1004
        %v3842 = vunpack.c.l.b16 %v1005
        %v3843 = vunpack.c.h.b16 %v1005
        %v3844 = vunpack.c.l.b16 %v1006
        %v3845 = vunpack.c.h.b16 %v1006
        %v3846 = vunpack.c.l.b16 %v1007
        %v3847 = vunpack.c.h.b16 %v1007
        %v3848 = vunpack.c.l.b16 %v1008
        %v3849 = vunpack.c.h.b16 %v1008
        %v3850 = vunpack.c.l.b16 %v1009
        %v3851 = vunpack.c.h.b16 %v1009
        %v3852 = vunpack.c.l.b16 %v1010
        %v3853 = vunpack.c.h.b16 %v1010
        %v3854 = vunpack.c.l.b16 %v1011
        %v3855 = vunpack.c.h.b16 %v1011
        %v3856 = vunpack.c.l.b16 %v1012
        %v3857 = vunpack.c.h.b16 %v1012
        %v3858 = vunpack.c.l.b16 %v1013
        %v3859 = vunpack.c.h.b16 %v1013
        %v3860 = vunpack.c.l.b16 %v1014
        %v3861 = vunpack.c.h.b16 %v1014
        %v3862 = vunpack.c.l.b16 %v1015
        %v3863 = vunpack.c.h.b16 %v1015
        %v3864 = vunpack.c.l.b16 %v1016
        %v3865 = vunpack.c.h.b16 %v1016
        %v3866 = vunpack.c.l.b16 %v1017
        %v3867 = vunpack.c.h.b16 %v1017
        %v3868 = vunpack.c.l.b16 %v1018
        %v3869 = vunpack.c.h.b16 %v1018
        %v3870 = vunpack.c.l.b16 %v1019
        %v3871 = vunpack.c.h.b16 %v1019
        %v3872 = vunpack.c.l.b16 %v1020
        %v3873 = vunpack.c.h.b16 %v1020
        %v3874 = vunpack.c.l.b16 %v1021
        %v3875 = vunpack.c.h.b16 %v1021
        %v3876 = vunpack.c.l.b16 %v1022
        %v3877 = vunpack.c.h.b16 %v1022
        %v3878 = vunpack.c.l.b16 %v1023
        %v3879 = vunpack.c.h.b16 %v1023
        %v3880 = vunpack.c.l.b16 %v1024
        %v3881 = vunpack.c.h.b16 %v1024
        %v3882 = vunpack.c.l.b16 %v1025
        %v3883 = vunpack.c.h.b16 %v1025
        %v3884 = vunpack.c.l.b16 %v1026
        %v3885 = vunpack.c.h.b16 %v1026
        %v3886 = vunpack.c.l.b16 %v1027
        %v3887 = vunpack.c.h.b16 %v1027
        %v3888 = vunpack.c.l.b16 %v1028
        %v3889 = vunpack.c.h.b16 %v1028
        %v3890 = vunpack.c.l.b16 %v1029
        %v3891 = vunpack.c.h.b16 %v1029
        %v3892 = vunpack.c.l.b16 %v1030
        %v3893 = vunpack.c.h.b16 %v1030
        %v3894 = vunpack.c.l.b16 %v1031
        %v3895 = vunpack.c.h.b16 %v1031
        %v3896 = vunpack.c.l.b16 %v1032
        %v3897 = vunpack.c.h.b16 %v1032
        %v3898 = vunpack.c.l.b16 %v1033
        %v3899 = vunpack.c.h.b16 %v1033
        %v3900 = vunpack.c.l.b16 %v1034
        %v3901 = vunpack.c.h.b16 %v1034
        %v3902 = vunpack.c.l.b16 %v1035
        %v3903 = vunpack.c.h.b16 %v1035
        %v3904 = vunpack.c.l.b16 %v1036
        %v3905 = vunpack.c.h.b16 %v1036
        %v3906 = vunpack.c.l.b16 %v1037
        %v3907 = vunpack.c.h.b16 %v1037
        %v3908 = vunpack.c.l.b16 %v1038
        %v3909 = vunpack.c.h.b16 %v1038
        %v3910 = vunpack.c.l.b16 %v1039
        %v3911 = vunpack.c.h.b16 %v1039
        %v3912 = vunpack.c.l.b16 %v1040
        %v3913 = vunpack.c.h.b16 %v1040
        %v3914 = vunpack.c.l.b16 %v1041
        %v3915 = vunpack.c.h.b16 %v1041
        %v3916 = vunpack.c.l.b16 %v1042
        %v3917 = vunpack.c.h.b16 %v1042
        %v3918 = vunpack.c.l.b16 %v1043
        %v3919 = vunpack.c.h.b16 %v1043
        %v3920 = vunpack.c.l.b16 %v1044
        %v3921 = vunpack.c.h.b16 %v1044
        %v3922 = vunpack.c.l.b16 %v1045
        %v3923 = vunpack.c.h.b16 %v1045
        %v3924 = vunpack.c.l.b16 %v1046
        %v3925 = vunpack.c.h.b16 %v1046
        %v3926 = vunpack.c.l.b16 %v1047
        %v3927 = vunpack.c.h.b16 %v1047
        %v3928 = vunpack.c.l.b16 %v1048
        %v3929 = vunpack.c.h.b16 %v1048
        %v3930 = vunpack.c.l.b16 %v1049
        %v3931 = vunpack.c.h.b16 %v1049
        %v3932 = vunpack.c.l.b16 %v1050
        %v3933 = vunpack.c.h.b16 %v1050
        %v3934 = vunpack.c.l.b16 %v1051
        %v3935 = vunpack.c.h.b16 %v1051
        %v3936 = vunpack.c.l.b16 %v1052
        %v3937 = vunpack.c.h.b16 %v1052
        %v3938 = vunpack.c.l.b16 %v1053
        %v3939 = vunpack.c.h.b16 %v1053
        %v3940 = vunpack.c.l.b16 %v1054
        %v3941 = vunpack.c.h.b16 %v1054
        %v3942 = vunpack.c.l.b16 %v1055
        %v3943 = vunpack.c.h.b16 %v1055
        %v3944 = vunpack.c.l.b16 %v1056
        %v3945 = vunpack.c.h.b16 %v1056
        %v3946 = vunpack.c.l.b16 %v1057
        %v3947 = vunpack.c.h.b16 %v1057
        %v3948 = vunpack.c.l.b16 %v1058
        %v3949 = vunpack.c.h.b16 %v1058
        %v3950 = vunpack.c.l.b16 %v1059
        %v3951 = vunpack.c.h.b16 %v1059
        %v3952 = vunpack.c.l.b16 %v1060
        %v3953 = vunpack.c.h.b16 %v1060
        %v3954 = vunpack.c.l.b16 %v1061
        %v3955 = vunpack.c.h.b16 %v1061
        %v3956 = vunpack.c.l.b16 %v1062
        %v3957 = vunpack.c.h.b16 %v1062
        %v3958 = vunpack.c.l.b16 %v1063
        %v3959 = vunpack.c.h.b16 %v1063
        %v3960 = vunpack.c.l.b16 %v1064
        %v3961 = vunpack.c.h.b16 %v1064
        %v3962 = vunpack.c.l.b16 %v1065
        %v3963 = vunpack.c.h.b16 %v1065
        %v3964 = vunpack.c.l.b16 %v1066
        %v3965 = vunpack.c.h.b16 %v1066
        %v3966 = vunpack.c.l.b16 %v1067
        %v3967 = vunpack.c.h.b16 %v1067
        %v3968 = vunpack.c.l.b16 %v1068
        %v3969 = vunpack.c.h.b16 %v1068
        %v3970 = vunpack.c.l.b16 %v1069
        %v3971 = vunpack.c.h.b16 %v1069
        %v3972 = vunpack.c.l.b16 %v1070
        %v3973 = vunpack.c.h.b16 %v1070
        %v3974 = vunpack.c.l.b16 %v1071
        %v3975 = vunpack.c.h.b16 %v1071
        %v3976 = vunpack.c.l.b16 %v1072
        %v3977 = vunpack.c.h.b16 %v1072
        %v3978 = vunpack.c.l.b16 %v1073
        %v3979 = vunpack.c.h.b16 %v1073
        %v3980 = vunpack.c.l.b16 %v1074
        %v3981 = vunpack.c.h.b16 %v1074
        %v3982 = vunpack.c.l.b16 %v1075
        %v3983 = vunpack.c.h.b16 %v1075
        %v3984 = vunpack.c.l.b16 %v1076
        %v3985 = vunpack.c.h.b16 %v1076
        %v3986 = vunpack.c.l.b16 %v1077
        %v3987 = vunpack.c.h.b16 %v1077
        %v3988 = vunpack.c.l.b16 %v1078
        %v3989 = vunpack.c.h.b16 %v1078
        %v3990 = vunpack.c.l.b16 %v1079
        %v3991 = vunpack.c.h.b16 %v1079
        %v3992 = vunpack.c.l.b16 %v1080
        %v3993 = vunpack.c.h.b16 %v1080
        %v3994 = vunpack.c.l.b16 %v1081
        %v3995 = vunpack.c.h.b16 %v1081
        %v3996 = vunpack.c.l.b16 %v1082
        %v3997 = vunpack.c.h.b16 %v1082
        %v3998 = vunpack.c.l.b16 %v1083
        %v3999 = vunpack.c.h.b16 %v1083
        %v4000 = vunpack.c.l.b16 %v1084
        %v4001 = vunpack.c.h.b16 %v1084
        %v4002 = vunpack.c.l.b16 %v1085
        %v4003 = vunpack.c.h.b16 %v1085
        %v4004 = vunpack.c.l.b16 %v1086
        %v4005 = vunpack.c.h.b16 %v1086
        %v4006 = vunpack.c.l.b16 %v1087
        %v4007 = vunpack.c.h.b16 %v1087
        %v4008 = vunpack.c.l.b16 %v1088
        %v4009 = vunpack.c.h.b16 %v1088
        %v4010 = vunpack.c.l.b16 %v1089
        %v4011 = vunpack.c.h.b16 %v1089
        %v4012 = vunpack.c.l.b16 %v1090
        %v4013 = vunpack.c.h.b16 %v1090
        %v4014 = vunpack.c.l.b16 %v1091
        %v4015 = vunpack.c.h.b16 %v1091
        %v4016 = vunpack.c.l.b16 %v1092
        %v4017 = vunpack.c.h.b16 %v1092
        %v4018 = vunpack.c.l.b16 %v1093
        %v4019 = vunpack.c.h.b16 %v1093
        %v4020 = vunpack.c.l.b16 %v1094
        %v4021 = vunpack.c.h.b16 %v1094
        %v4022 = vunpack.c.l.b16 %v1095
        %v4023 = vunpack.c.h.b16 %v1095
        %v4024 = vunpack.c.l.b16 %v1096
        %v4025 = vunpack.c.h.b16 %v1096
        %v4026 = vunpack.c.l.b16 %v1097
        %v4027 = vunpack.c.h.b16 %v1097
        %v4028 = vunpack.c.l.b16 %v1098
        %v4029 = vunpack.c.h.b16 %v1098
        %v4030 = vunpack.c.l.b16 %v1099
        %v4031 = vunpack.c.h.b16 %v1099
        %v4032 = vunpack.c.l.b16 %v1100
        %v4033 = vunpack.c.h.b16 %v1100
        %v4034 = vunpack.c.l.b16 %v1101
        %v4035 = vunpack.c.h.b16 %v1101
        %v4036 = vunpack.c.l.b16 %v1102
        %v4037 = vunpack.c.h.b16 %v1102
        %v4038 = vunpack.c.l.b16 %v1103
        %v4039 = vunpack.c.h.b16 %v1103
        %v4040 = vunpack.c.l.b16 %v1104
        %v4041 = vunpack.c.h.b16 %v1104
        %v4042 = vunpack.c.l.b16 %v1105
        %v4043 = vunpack.c.h.b16 %v1105
        %v4044 = vunpack.c.l.b16 %v1106
        %v4045 = vunpack.c.h.b16 %v1106
        %v4046 = vunpack.c.l.b16 %v1107
        %v4047 = vunpack.c.h.b16 %v1107
        %v4048 = vunpack.c.l.b16 %v1108
        %v4049 = vunpack.c.h.b16 %v1108
        %v4050 = vunpack.c.l.b16 %v1109
        %v4051 = vunpack.c.h.b16 %v1109
        %v4052 = vunpack.c.l.b16 %v1110
        %v4053 = vunpack.c.h.b16 %v1110
        %v4054 = vunpack.c.l.b16 %v1111
        %v4055 = vunpack.c.h.b16 %v1111
        %v4056 = vunpack.c.l.b16 %v1112
        %v4057 = vunpack.c.h.b16 %v1112
        %v4058 = vunpack.c.l.b16 %v1113
        %v4059 = vunpack.c.h.b16 %v1113
        %v4060 = vunpack.c.l.b16 %v1114
        %v4061 = vunpack.c.h.b16 %v1114
        %v4062 = vunpack.c.l.b16 %v1115
        %v4063 = vunpack.c.h.b16 %v1115
        %v4064 = vunpack.c.l.b16 %v1116
        %v4065 = vunpack.c.h.b16 %v1116
        %v4066 = vunpack.c.l.b16 %v1117
        %v4067 = vunpack.c.h.b16 %v1117
        %v4068 = vunpack.c.l.b16 %v1118
        %v4069 = vunpack.c.h.b16 %v1118
        %v4070 = vunpack.c.l.b16 %v1119
        %v4071 = vunpack.c.h.b16 %v1119
        %v4072 = vunpack.c.l.b16 %v1120
        %v4073 = vunpack.c.h.b16 %v1120
        %v4074 = vunpack.c.l.b16 %v1121
        %v4075 = vunpack.c.h.b16 %v1121
        %v4076 = vunpack.c.l.b16 %v1122
        %v4077 = vunpack.c.h.b16 %v1122
        %v4078 = vunpack.c.l.b16 %v1123
        %v4079 = vunpack.c.h.b16 %v1123
        %v4080 = vunpack.c.l.b16 %v1124
        %v4081 = vunpack.c.h.b16 %v1124
        %v4082 = vunpack.c.l.b16 %v1125
        %v4083 = vunpack.c.h.b16 %v1125
        %v4084 = vunpack.c.l.b16 %v1126
        %v4085 = vunpack.c.h.b16 %v1126
        %v4086 = vunpack.c.l.b16 %v1127
        %v4087 = vunpack.c.h.b16 %v1127
        %v4088 = vunpack.c.l.b16 %v1128
        %v4089 = vunpack.c.h.b16 %v1128
        %v4090 = vunpack.c.l.b16 %v1129
        %v4091 = vunpack.c.h.b16 %v1129
        %v4092 = vunpack.c.l.b16 %v1130
        %v4093 = vunpack.c.h.b16 %v1130
        %v4094 = vunpack.c.l.b16 %v1131
        %v4095 = vunpack.c.h.b16 %v1131
        %v4096 = vunpack.c.l.b16 %v1132
        %v4097 = vunpack.c.h.b16 %v1132
        %v4098 = vunpack.c.l.b16 %v1133
        %v4099 = vunpack.c.h.b16 %v1133
        %v4100 = vunpack.c.l.b16 %v1134
        %v4101 = vunpack.c.h.b16 %v1134
        %v4102 = vunpack.c.l.b16 %v1135
        %v4103 = vunpack.c.h.b16 %v1135
        %v4104 = vunpack.c.l.b16 %v1136
        %v4105 = vunpack.c.h.b16 %v1136
        %v4106 = vunpack.c.l.b16 %v1137
        %v4107 = vunpack.c.h.b16 %v1137
        %v4108 = vunpack.c.l.b16 %v1138
        %v4109 = vunpack.c.h.b16 %v1138
        %v4110 = vunpack.c.l.b16 %v1139
        %v4111 = vunpack.c.h.b16 %v1139
        %v4112 = vunpack.c.l.b16 %v1140
        %v4113 = vunpack.c.h.b16 %v1140
        %v4114 = vunpack.c.l.b16 %v1141
        %v4115 = vunpack.c.h.b16 %v1141
        %v4116 = vunpack.c.l.b16 %v1142
        %v4117 = vunpack.c.h.b16 %v1142
        %v4118 = vunpack.c.l.b16 %v1143
        %v4119 = vunpack.c.h.b16 %v1143
        %v4120 = vunpack.c.l.b16 %v1144
        %v4121 = vunpack.c.h.b16 %v1144
        %v4122 = vunpack.c.l.b16 %v1145
        %v4123 = vunpack.c.h.b16 %v1145
        %v4124 = vunpack.c.l.b16 %v1146
        %v4125 = vunpack.c.h.b16 %v1146
        %v4126 = vunpack.c.l.b16 %v1147
        %v4127 = vunpack.c.h.b16 %v1147
        %v4128 = vunpack.c.l.b16 %v1148
        %v4129 = vunpack.c.h.b16 %v1148
        %v4130 = vunpack.c.l.b16 %v1149
        %v4131 = vunpack.c.h.b16 %v1149
        %v4132 = vunpack.c.l.b16 %v1150
        %v4133 = vunpack.c.h.b16 %v1150
        %v4134 = vunpack.c.l.b16 %v1151
        %v4135 = vunpack.c.h.b16 %v1151
        %v4136 = vunpack.c.l.b16 %v1152
        %v4137 = vunpack.c.h.b16 %v1152
        %v4138 = vunpack.c.l.b16 %v1153
        %v4139 = vunpack.c.h.b16 %v1153
        %v4140 = vunpack.c.l.b16 %v1154
        %v4141 = vunpack.c.h.b16 %v1154
        %v4142 = vunpack.c.l.b16 %v1155
        %v4143 = vunpack.c.h.b16 %v1155
        %v4144 = vunpack.c.l.b16 %v1156
        %v4145 = vunpack.c.h.b16 %v1156
        %v4146 = vunpack.c.l.b16 %v1157
        %v4147 = vunpack.c.h.b16 %v1157
        %v4148 = vunpack.c.l.b16 %v1158
        %v4149 = vunpack.c.h.b16 %v1158
        %v4150 = vunpack.c.l.b16 %v1159
        %v4151 = vunpack.c.h.b16 %v1159
        %v4152 = vunpack.c.l.b16 %v1160
        %v4153 = vunpack.c.h.b16 %v1160
        %v4154 = vunpack.c.l.b16 %v1161
        %v4155 = vunpack.c.h.b16 %v1161
        %v4156 = vunpack.c.l.b16 %v1162
        %v4157 = vunpack.c.h.b16 %v1162
        %v4158 = vunpack.c.l.b16 %v1163
        %v4159 = vunpack.c.h.b16 %v1163
        %v4160 = vunpack.c.l.b16 %v1164
        %v4161 = vunpack.c.h.b16 %v1164
        %v4162 = vunpack.c.l.b16 %v1165
        %v4163 = vunpack.c.h.b16 %v1165
        %v4164 = vunpack.c.l.b16 %v1166
        %v4165 = vunpack.c.h.b16 %v1166
        %v4166 = vunpack.c.l.b16 %v1167
        %v4167 = vunpack.c.h.b16 %v1167
        %v4168 = vunpack.c.l.b16 %v1168
        %v4169 = vunpack.c.h.b16 %v1168
        %v4170 = vunpack.c.l.b16 %v1169
        %v4171 = vunpack.c.h.b16 %v1169
        %v4172 = vunpack.c.l.b16 %v1170
        %v4173 = vunpack.c.h.b16 %v1170
        %v4174 = vunpack.c.l.b16 %v1171
        %v4175 = vunpack.c.h.b16 %v1171
        %v4176 = vunpack.c.l.b16 %v1172
        %v4177 = vunpack.c.h.b16 %v1172
        %v4178 = vunpack.c.l.b16 %v1173
        %v4179 = vunpack.c.h.b16 %v1173
        %v4180 = vunpack.c.l.b16 %v1174
        %v4181 = vunpack.c.h.b16 %v1174
        %v4182 = vunpack.c.l.b16 %v1175
        %v4183 = vunpack.c.h.b16 %v1175
        %v4184 = vunpack.c.l.b16 %v1176
        %v4185 = vunpack.c.h.b16 %v1176
        %v4186 = vunpack.c.l.b16 %v1177
        %v4187 = vunpack.c.h.b16 %v1177
        %v4188 = vunpack.c.l.b16 %v1178
        %v4189 = vunpack.c.h.b16 %v1178
        %v4190 = vunpack.c.l.b16 %v1179
        %v4191 = vunpack.c.h.b16 %v1179
        %v4192 = vunpack.c.l.b16 %v1180
        %v4193 = vunpack.c.h.b16 %v1180
        %v4194 = vunpack.c.l.b16 %v1181
        %v4195 = vunpack.c.h.b16 %v1181
        %v4196 = vunpack.c.l.b16 %v1182
        %v4197 = vunpack.c.h.b16 %v1182
        %v4198 = vunpack.c.l.b16 %v1183
        %v4199 = vunpack.c.h.b16 %v1183
        %v4200 = vunpack.c.l.b16 %v1184
        %v4201 = vunpack.c.h.b16 %v1184
        %v4202 = vunpack.c.l.b16 %v1185
        %v4203 = vunpack.c.h.b16 %v1185
        %v4204 = vunpack.c.l.b16 %v1186
        %v4205 = vunpack.c.h.b16 %v1186
        %v4206 = vunpack.c.l.b16 %v1187
        %v4207 = vunpack.c.h.b16 %v1187
        %v4208 = vunpack.c.l.b16 %v1188
        %v4209 = vunpack.c.h.b16 %v1188
        %v4210 = vunpack.c.l.b16 %v1189
        %v4211 = vunpack.c.h.b16 %v1189
        %v4212 = vunpack.c.l.b16 %v1190
        %v4213 = vunpack.c.h.b16 %v1190
        %v4214 = vunpack.c.l.b16 %v1191
        %v4215 = vunpack.c.h.b16 %v1191
        %v4216 = vunpack.c.l.b16 %v1192
        %v4217 = vunpack.c.h.b16 %v1192
        %v4218 = vunpack.c.l.b16 %v1193
        %v4219 = vunpack.c.h.b16 %v1193
        %v4220 = vunpack.c.l.b16 %v1194
        %v4221 = vunpack.c.h.b16 %v1194
        %v4222 = vunpack.c.l.b16 %v1195
        %v4223 = vunpack.c.h.b16 %v1195
        %v4224 = vunpack.c.l.b16 %v1196
        %v4225 = vunpack.c.h.b16 %v1196
        %v4226 = vunpack.c.l.b16 %v1197
        %v4227 = vunpack.c.h.b16 %v1197
        %v4228 = vunpack.c.l.b16 %v1198
        %v4229 = vunpack.c.h.b16 %v1198
        %v4230 = vunpack.c.l.b16 %v1199
        %v4231 = vunpack.c.h.b16 %v1199
        %v4232 = vunpack.c.l.b16 %v1200
        %v4233 = vunpack.c.h.b16 %v1200
        %v4234 = vunpack.c.l.b16 %v1201
        %v4235 = vunpack.c.h.b16 %v1201
        %v4236 = vunpack.c.l.b16 %v1202
        %v4237 = vunpack.c.h.b16 %v1202
        %v4238 = vunpack.c.l.b16 %v1203
        %v4239 = vunpack.c.h.b16 %v1203
        %v4240 = vunpack.c.l.b16 %v1204
        %v4241 = vunpack.c.h.b16 %v1204
        %v4242 = vunpack.c.l.b16 %v1205
        %v4243 = vunpack.c.h.b16 %v1205
        %v4244 = vunpack.c.l.b16 %v1206
        %v4245 = vunpack.c.h.b16 %v1206
        %v4246 = vunpack.c.l.b16 %v1207
        %v4247 = vunpack.c.h.b16 %v1207
        %v4248 = vunpack.c.l.b16 %v1208
        %v4249 = vunpack.c.h.b16 %v1208
        %v4250 = vunpack.c.l.b16 %v1209
        %v4251 = vunpack.c.h.b16 %v1209
        %v4252 = vunpack.c.l.b16 %v1210
        %v4253 = vunpack.c.h.b16 %v1210
        %v4254 = vunpack.c.l.b16 %v1211
        %v4255 = vunpack.c.h.b16 %v1211
        %v4256 = vunpack.c.l.b16 %v1212
        %v4257 = vunpack.c.h.b16 %v1212
        %v4258 = vunpack.c.l.b16 %v1213
        %v4259 = vunpack.c.h.b16 %v1213
        %v4260 = vunpack.c.l.b16 %v1214
        %v4261 = vunpack.c.h.b16 %v1214
        %v4262 = vunpack.c.l.b16 %v1215
        %v4263 = vunpack.c.h.b16 %v1215
        %v4264 = vunpack.c.l.b16 %v1216
        %v4265 = vunpack.c.h.b16 %v1216
        %v4266 = vunpack.c.l.b16 %v1217
        %v4267 = vunpack.c.h.b16 %v1217
        %v4268 = vunpack.c.l.b16 %v1218
        %v4269 = vunpack.c.h.b16 %v1218
        %v4270 = vunpack.c.l.b16 %v1219
        %v4271 = vunpack.c.h.b16 %v1219
        %v4272 = vunpack.c.l.b16 %v1220
        %v4273 = vunpack.c.h.b16 %v1220
        %v4274 = vunpack.c.l.b16 %v1221
        %v4275 = vunpack.c.h.b16 %v1221
        %v4276 = vunpack.c.l.b16 %v1222
        %v4277 = vunpack.c.h.b16 %v1222
        %v4278 = vunpack.c.l.b16 %v1223
        %v4279 = vunpack.c.h.b16 %v1223
        %v4280 = vunpack.c.l.b16 %v1224
        %v4281 = vunpack.c.h.b16 %v1224
        %v4282 = vunpack.c.l.b16 %v1225
        %v4283 = vunpack.c.h.b16 %v1225
        %v4284 = vunpack.c.l.b16 %v1226
        %v4285 = vunpack.c.h.b16 %v1226
        %v4286 = vunpack.c.l.b16 %v1227
        %v4287 = vunpack.c.h.b16 %v1227
        %v4288 = vunpack.c.l.b16 %v1228
        %v4289 = vunpack.c.h.b16 %v1228
        %v4290 = vunpack.c.l.b16 %v1229
        %v4291 = vunpack.c.h.b16 %v1229
        %v4292 = vunpack.c.l.b16 %v1230
        %v4293 = vunpack.c.h.b16 %v1230
        %v4294 = vunpack.c.l.b16 %v1231
        %v4295 = vunpack.c.h.b16 %v1231
        %v4296 = vunpack.c.l.b16 %v1232
        %v4297 = vunpack.c.h.b16 %v1232
        %v4298 = vunpack.c.l.b16 %v1233
        %v4299 = vunpack.c.h.b16 %v1233
        %v4300 = vunpack.c.l.b16 %v1234
        %v4301 = vunpack.c.h.b16 %v1234
        %v4302 = vunpack.c.l.b16 %v1235
        %v4303 = vunpack.c.h.b16 %v1235
        %v4304 = vunpack.c.l.b16 %v1236
        %v4305 = vunpack.c.h.b16 %v1236
        %v4306 = vunpack.c.l.b16 %v1237
        %v4307 = vunpack.c.h.b16 %v1237
        %v4308 = vunpack.c.l.b16 %v1238
        %v4309 = vunpack.c.h.b16 %v1238
        %v4310 = vunpack.c.l.b16 %v1239
        %v4311 = vunpack.c.h.b16 %v1239
        %v4312 = vunpack.c.l.b16 %v1240
        %v4313 = vunpack.c.h.b16 %v1240
        %v4314 = vunpack.c.l.b16 %v1241
        %v4315 = vunpack.c.h.b16 %v1241
        %v4316 = vunpack.c.l.b16 %v1242
        %v4317 = vunpack.c.h.b16 %v1242
        %v4318 = vunpack.c.l.b16 %v1243
        %v4319 = vunpack.c.h.b16 %v1243
        %v4320 = vunpack.c.l.b16 %v1244
        %v4321 = vunpack.c.h.b16 %v1244
        %v4322 = vunpack.c.l.b16 %v1245
        %v4323 = vunpack.c.h.b16 %v1245
        %v4324 = vunpack.c.l.b16 %v1246
        %v4325 = vunpack.c.h.b16 %v1246
        %v4326 = vunpack.c.l.b16 %v1247
        %v4327 = vunpack.c.h.b16 %v1247
        %v4328 = vunpack.c.l.b16 %v1248
        %v4329 = vunpack.c.h.b16 %v1248
        %v4330 = vunpack.c.l.b16 %v1249
        %v4331 = vunpack.c.h.b16 %v1249
        %v4332 = vunpack.c.l.b16 %v1250
        %v4333 = vunpack.c.h.b16 %v1250
        %v4334 = vunpack.c.l.b16 %v1251
        %v4335 = vunpack.c.h.b16 %v1251
        %v4336 = vunpack.c.l.b16 %v1252
        %v4337 = vunpack.c.h.b16 %v1252
        %v4338 = vunpack.c.l.b16 %v1253
        %v4339 = vunpack.c.h.b16 %v1253
        %v4340 = vunpack.c.l.b16 %v1254
        %v4341 = vunpack.c.h.b16 %v1254
        %v4342 = vunpack.c.l.b16 %v1255
        %v4343 = vunpack.c.h.b16 %v1255
        %v4344 = vunpack.c.l.b16 %v1256
        %v4345 = vunpack.c.h.b16 %v1256
        %v4346 = vunpack.c.l.b16 %v1257
        %v4347 = vunpack.c.h.b16 %v1257
        %v4348 = vunpack.c.l.b16 %v1258
        %v4349 = vunpack.c.h.b16 %v1258
        %v4350 = vunpack.c.l.b16 %v1259
        %v4351 = vunpack.c.h.b16 %v1259
        %v4352 = vunpack.c.l.b16 %v1260
        %v4353 = vunpack.c.h.b16 %v1260
        %v4354 = vunpack.c.l.b16 %v1261
        %v4355 = vunpack.c.h.b16 %v1261
        %v4356 = vunpack.c.l.b16 %v1262
        %v4357 = vunpack.c.h.b16 %v1262
        %v4358 = vunpack.c.l.b16 %v1263
        %v4359 = vunpack.c.h.b16 %v1263
        %v4360 = vunpack.c.l.b16 %v1264
        %v4361 = vunpack.c.h.b16 %v1264
        %v4362 = vunpack.c.l.b16 %v1265
        %v4363 = vunpack.c.h.b16 %v1265
        %v4364 = vunpack.c.l.b16 %v1266
        %v4365 = vunpack.c.h.b16 %v1266
        %v4366 = vunpack.c.l.b16 %v1267
        %v4367 = vunpack.c.h.b16 %v1267
        %v4368 = vunpack.c.l.b16 %v1268
        %v4369 = vunpack.c.h.b16 %v1268
        %v4370 = vunpack.c.l.b16 %v1269
        %v4371 = vunpack.c.h.b16 %v1269
        %v4372 = vunpack.c.l.b16 %v1270
        %v4373 = vunpack.c.h.b16 %v1270
        %v4374 = vunpack.c.l.b16 %v1271
        %v4375 = vunpack.c.h.b16 %v1271
        %v4376 = vunpack.c.l.b16 %v1272
        %v4377 = vunpack.c.h.b16 %v1272
        %v4378 = vunpack.c.l.b16 %v1273
        %v4379 = vunpack.c.h.b16 %v1273
        %v4380 = vunpack.c.l.b16 %v1274
        %v4381 = vunpack.c.h.b16 %v1274
        %v4382 = vunpack.c.l.b16 %v1275
        %v4383 = vunpack.c.h.b16 %v1275
        %v4384 = vpack.c.b16 %v2344, %v2336
        %v4385 = vpack.c.b16 %v2345, %v2337
        %v4386 = vpack.c.b16 %v2346, %v2338
        %v4387 = vpack.c.b16 %v2347, %v2339
        %v4388 = vpack.c.b16 %v2348, %v2340
        %v4389 = vpack.c.b16 %v2349, %v2341
        %v4390 = vpack.c.b16 %v2350, %v2342
        %v4391 = vpack.c.b16 %v2351, %v2343
        %v4392 = vpack.c.b16 %v2360, %v2352
        %v4393 = vpack.c.b16 %v2361, %v2353
        %v4394 = vpack.c.b16 %v2362, %v2354
        %v4395 = vpack.c.b16 %v2363, %v2355
        %v4396 = vpack.c.b16 %v2364, %v2356
        %v4397 = vpack.c.b16 %v2365, %v2357
        %v4398 = vpack.c.b16 %v2366, %v2358
        %v4399 = vpack.c.b16 %v2367, %v2359
        %v4400 = vpack.c.b16 %v2376, %v2368
        %v4401 = vpack.c.b16 %v2377, %v2369
        %v4402 = vpack.c.b16 %v2378, %v2370
        %v4403 = vpack.c.b16 %v2379, %v2371
        %v4404 = vpack.c.b16 %v2380, %v2372
        %v4405 = vpack.c.b16 %v2381, %v2373
        %v4406 = vpack.c.b16 %v2382, %v2374
        %v4407 = vpack.c.b16 %v2383, %v2375
        %v4408 = vpack.c.b16 %v2392, %v2384
        %v4409 = vpack.c.b16 %v2393, %v2385
        %v4410 = vpack.c.b16 %v2394, %v2386
        %v4411 = vpack.c.b16 %v2395, %v2387
        %v4412 = vpack.c.b16 %v2396, %v2388
        %v4413 = vpack.c.b16 %v2397, %v2389
        %v4414 = vpack.c.b16 %v2398, %v2390
        %v4415 = vpack.c.b16 %v2399, %v2391
        %v4416 = vpack.c.b16 %v2408, %v2400
        %v4417 = vpack.c.b16 %v2409, %v2401
        %v4418 = vpack.c.b16 %v2410, %v2402
        %v4419 = vpack.c.b16 %v2411, %v2403
        %v4420 = vpack.c.b16 %v2412, %v2404
        %v4421 = vpack.c.b16 %v2413, %v2405
        %v4422 = vpack.c.b16 %v2414, %v2406
        %v4423 = vpack.c.b16 %v2415, %v2407
        %v4424 = vpack.c.b16 %v2424, %v2416
        %v4425 = vpack.c.b16 %v2425, %v2417
        %v4426 = vpack.c.b16 %v2426, %v2418
        %v4427 = vpack.c.b16 %v2427, %v2419
        %v4428 = vpack.c.b16 %v2428, %v2420
        %v4429 = vpack.c.b16 %v2429, %v2421
        %v4430 = vpack.c.b16 %v2430, %v2422
        %v4431 = vpack.c.b16 %v2431, %v2423
        %v4432 = vpack.c.b16 %v2440, %v2432
        %v4433 = vpack.c.b16 %v2441, %v2433
        %v4434 = vpack.c.b16 %v2442, %v2434
        %v4435 = vpack.c.b16 %v2443, %v2435
        %v4436 = vpack.c.b16 %v2444, %v2436
        %v4437 = vpack.c.b16 %v2445, %v2437
        %v4438 = vpack.c.b16 %v2446, %v2438
        %v4439 = vpack.c.b16 %v2447, %v2439
        %v4440 = vpack.c.b16 %v2456, %v2448
        %v4441 = vpack.c.b16 %v2457, %v2449
        %v4442 = vpack.c.b16 %v2458, %v2450
        %v4443 = vpack.c.b16 %v2459, %v2451
        %v4444 = vpack.c.b16 %v2460, %v2452
        %v4445 = vpack.c.b16 %v2461, %v2453
        %v4446 = vpack.c.b16 %v2462, %v2454
        %v4447 = vpack.c.b16 %v2463, %v2455
        %v4448 = vpack.c.b16 %v2472, %v2464
        %v4449 = vpack.c.b16 %v2473, %v2465
        %v4450 = vpack.c.b16 %v2474, %v2466
        %v4451 = vpack.c.b16 %v2475, %v2467
        %v4452 = vpack.c.b16 %v2476, %v2468
        %v4453 = vpack.c.b16 %v2477, %v2469
        %v4454 = vpack.c.b16 %v2478, %v2470
        %v4455 = vpack.c.b16 %v2479, %v2471
        %v4456 = vpack.c.b16 %v2488, %v2480
        %v4457 = vpack.c.b16 %v2489, %v2481
        %v4458 = vpack.c.b16 %v2490, %v2482
        %v4459 = vpack.c.b16 %v2491, %v2483
        %v4460 = vpack.c.b16 %v2492, %v2484
        %v4461 = vpack.c.b16 %v2493, %v2485
        %v4462 = vpack.c.b16 %v2494, %v2486
        %v4463 = vpack.c.b16 %v2495, %v2487
        %v4464 = vpack.c.b16 %v2504, %v2496
        %v4465 = vpack.c.b16 %v2505, %v2497
        %v4466 = vpack.c.b16 %v2506, %v2498
        %v4467 = vpack.c.b16 %v2507, %v2499
        %v4468 = vpack.c.b16 %v2508, %v2500
        %v4469 = vpack.c.b16 %v2509, %v2501
        %v4470 = vpack.c.b16 %v2510, %v2502
        %v4471 = vpack.c.b16 %v2511, %v2503
        %v4472 = vpack.c.b16 %v2520, %v2512
        %v4473 = vpack.c.b16 %v2521, %v2513
        %v4474 = vpack.c.b16 %v2522, %v2514
        %v4475 = vpack.c.b16 %v2523, %v2515
        %v4476 = vpack.c.b16 %v2524, %v2516
        %v4477 = vpack.c.b16 %v2525, %v2517
        %v4478 = vpack.c.b16 %v2526, %v2518
        %v4479 = vpack.c.b16 %v2527, %v2519
        %v4480 = vpack.c.b16 %v2536, %v2528
        %v4481 = vpack.c.b16 %v2537, %v2529
        %v4482 = vpack.c.b16 %v2538, %v2530
        %v4483 = vpack.c.b16 %v2539, %v2531
        %v4484 = vpack.c.b16 %v2540, %v2532
        %v4485 = vpack.c.b16 %v2541, %v2533
        %v4486 = vpack.c.b16 %v2542, %v2534
        %v4487 = vpack.c.b16 %v2543, %v2535
        %v4488 = vpack.c.b16 %v2552, %v2544
        %v4489 = vpack.c.b16 %v2553, %v2545
        %v4490 = vpack.c.b16 %v2554, %v2546
        %v4491 = vpack.c.b16 %v2555, %v2547
        %v4492 = vpack.c.b16 %v2556, %v2548
        %v4493 = vpack.c.b16 %v2557, %v2549
        %v4494 = vpack.c.b16 %v2558, %v2550
        %v4495 = vpack.c.b16 %v2559, %v2551
        %v4496 = vpack.c.b16 %v2568, %v2560
        %v4497 = vpack.c.b16 %v2569, %v2561
        %v4498 = vpack.c.b16 %v2570, %v2562
        %v4499 = vpack.c.b16 %v2571, %v2563
        %v4500 = vpack.c.b16 %v2572, %v2564
        %v4501 = vpack.c.b16 %v2573, %v2565
        %v4502 = vpack.c.b16 %v2574, %v2566
        %v4503 = vpack.c.b16 %v2575, %v2567
        %v4504 = vpack.c.b16 %v2584, %v2576
        %v4505 = vpack.c.b16 %v2585, %v2577
        %v4506 = vpack.c.b16 %v2586, %v2578
        %v4507 = vpack.c.b16 %v2587, %v2579
        %v4508 = vpack.c.b16 %v2588, %v2580
        %v4509 = vpack.c.b16 %v2589, %v2581
        %v4510 = vpack.c.b16 %v2590, %v2582
        %v4511 = vpack.c.b16 %v2591, %v2583
        %v4512 = vpack.c.b16 %v2600, %v2592
        %v4513 = vpack.c.b16 %v2601, %v2593
        %v4514 = vpack.c.b16 %v2602, %v2594
        %v4515 = vpack.c.b16 %v2603, %v2595
        %v4516 = vpack.c.b16 %v2604, %v2596
        %v4517 = vpack.c.b16 %v2605, %v2597
        %v4518 = vpack.c.b16 %v2606, %v2598
        %v4519 = vpack.c.b16 %v2607, %v2599
        %v4520 = vpack.c.b16 %v2616, %v2608
        %v4521 = vpack.c.b16 %v2617, %v2609
        %v4522 = vpack.c.b16 %v2618, %v2610
        %v4523 = vpack.c.b16 %v2619, %v2611
        %v4524 = vpack.c.b16 %v2620, %v2612
        %v4525 = vpack.c.b16 %v2621, %v2613
        %v4526 = vpack.c.b16 %v2622, %v2614
        %v4527 = vpack.c.b16 %v2623, %v2615
        %v4528 = vpack.c.b16 %v2632, %v2624
        %v4529 = vpack.c.b16 %v2633, %v2625
        %v4530 = vpack.c.b16 %v2634, %v2626
        %v4531 = vpack.c.b16 %v2635, %v2627
        %v4532 = vpack.c.b16 %v2636, %v2628
        %v4533 = vpack.c.b16 %v2637, %v2629
        %v4534 = vpack.c.b16 %v2638, %v2630
        %v4535 = vpack.c.b16 %v2639, %v2631
        %v4536 = vpack.c.b16 %v2648, %v2640
        %v4537 = vpack.c.b16 %v2649, %v2641
        %v4538 = vpack.c.b16 %v2650, %v2642
        %v4539 = vpack.c.b16 %v2651, %v2643
        %v4540 = vpack.c.b16 %v2652, %v2644
        %v4541 = vpack.c.b16 %v2653, %v2645
        %v4542 = vpack.c.b16 %v2654, %v2646
        %v4543 = vpack.c.b16 %v2655, %v2647
        %v4544 = vpack.c.b16 %v2664, %v2656
        %v4545 = vpack.c.b16 %v2665, %v2657
        %v4546 = vpack.c.b16 %v2666, %v2658
        %v4547 = vpack.c.b16 %v2667, %v2659
        %v4548 = vpack.c.b16 %v2668, %v2660
        %v4549 = vpack.c.b16 %v2669, %v2661
        %v4550 = vpack.c.b16 %v2670, %v2662
        %v4551 = vpack.c.b16 %v2671, %v2663
        %v4552 = vpack.c.b16 %v2680, %v2672
        %v4553 = vpack.c.b16 %v2681, %v2673
        %v4554 = vpack.c.b16 %v2682, %v2674
        %v4555 = vpack.c.b16 %v2683, %v2675
        %v4556 = vpack.c.b16 %v2684, %v2676
        %v4557 = vpack.c.b16 %v2685, %v2677
        %v4558 = vpack.c.b16 %v2686, %v2678
        %v4559 = vpack.c.b16 %v2687, %v2679
        %v4560 = vpack.c.b16 %v2696, %v2688
        %v4561 = vpack.c.b16 %v2697, %v2689
        %v4562 = vpack.c.b16 %v2698, %v2690
        %v4563 = vpack.c.b16 %v2699, %v2691
        %v4564 = vpack.c.b16 %v2700, %v2692
        %v4565 = vpack.c.b16 %v2701, %v2693
        %v4566 = vpack.c.b16 %v2702, %v2694
        %v4567 = vpack.c.b16 %v2703, %v2695
        %v4568 = vpack.c.b16 %v2712, %v2704
        %v4569 = vpack.c.b16 %v2713, %v2705
        %v4570 = vpack.c.b16 %v2714, %v2706
        %v4571 = vpack.c.b16 %v2715, %v2707
        %v4572 = vpack.c.b16 %v2716, %v2708
        %v4573 = vpack.c.b16 %v2717, %v2709
        %v4574 = vpack.c.b16 %v2718, %v2710
        %v4575 = vpack.c.b16 %v2719, %v2711
        %v4576 = vpack.c.b16 %v2728, %v2720
        %v4577 = vpack.c.b16 %v2729, %v2721
        %v4578 = vpack.c.b16 %v2730, %v2722
        %v4579 = vpack.c.b16 %v2731, %v2723
        %v4580 = vpack.c.b16 %v2732, %v2724
        %v4581 = vpack.c.b16 %v2733, %v2725
        %v4582 = vpack.c.b16 %v2734, %v2726
        %v4583 = vpack.c.b16 %v2735, %v2727
        %v4584 = vpack.c.b16 %v2744, %v2736
        %v4585 = vpack.c.b16 %v2745, %v2737
        %v4586 = vpack.c.b16 %v2746, %v2738
        %v4587 = vpack.c.b16 %v2747, %v2739
        %v4588 = vpack.c.b16 %v2748, %v2740
        %v4589 = vpack.c.b16 %v2749, %v2741
        %v4590 = vpack.c.b16 %v2750, %v2742
        %v4591 = vpack.c.b16 %v2751, %v2743
        %v4592 = vpack.c.b16 %v2760, %v2752
        %v4593 = vpack.c.b16 %v2761, %v2753
        %v4594 = vpack.c.b16 %v2762, %v2754
        %v4595 = vpack.c.b16 %v2763, %v2755
        %v4596 = vpack.c.b16 %v2764, %v2756
        %v4597 = vpack.c.b16 %v2765, %v2757
        %v4598 = vpack.c.b16 %v2766, %v2758
        %v4599 = vpack.c.b16 %v2767, %v2759
        %v4600 = vpack.c.b16 %v2776, %v2768
        %v4601 = vpack.c.b16 %v2777, %v2769
        %v4602 = vpack.c.b16 %v2778, %v2770
        %v4603 = vpack.c.b16 %v2779, %v2771
        %v4604 = vpack.c.b16 %v2780, %v2772
        %v4605 = vpack.c.b16 %v2781, %v2773
        %v4606 = vpack.c.b16 %v2782, %v2774
        %v4607 = vpack.c.b16 %v2783, %v2775
        %v4608 = vpack.c.b16 %v2792, %v2784
        %v4609 = vpack.c.b16 %v2793, %v2785
        %v4610 = vpack.c.b16 %v2794, %v2786
        %v4611 = vpack.c.b16 %v2795, %v2787
        %v4612 = vpack.c.b16 %v2796, %v2788
        %v4613 = vpack.c.b16 %v2797, %v2789
        %v4614 = vpack.c.b16 %v2798, %v2790
        %v4615 = vpack.c.b16 %v2799, %v2791
        %v4616 = vpack.c.b16 %v2808, %v2800
        %v4617 = vpack.c.b16 %v2809, %v2801
        %v4618 = vpack.c.b16 %v2810, %v2802
        %v4619 = vpack.c.b16 %v2811, %v2803
        %v4620 = vpack.c.b16 %v2812, %v2804
        %v4621 = vpack.c.b16 %v2813, %v2805
        %v4622 = vpack.c.b16 %v2814, %v2806
        %v4623 = vpack.c.b16 %v2815, %v2807
        %v4624 = vpack.c.b16 %v2824, %v2816
        %v4625 = vpack.c.b16 %v2825, %v2817
        %v4626 = vpack.c.b16 %v2826, %v2818
        %v4627 = vpack.c.b16 %v2827, %v2819
        %v4628 = vpack.c.b16 %v2828, %v2820
        %v4629 = vpack.c.b16 %v2829, %v2821
        %v4630 = vpack.c.b16 %v2830, %v2822
        %v4631 = vpack.c.b16 %v2831, %v2823
        %v4632 = vpack.c.b16 %v2840, %v2832
        %v4633 = vpack.c.b16 %v2841, %v2833
        %v4634 = vpack.c.b16 %v2842, %v2834
        %v4635 = vpack.c.b16 %v2843, %v2835
        %v4636 = vpack.c.b16 %v2844, %v2836
        %v4637 = vpack.c.b16 %v2845, %v2837
        %v4638 = vpack.c.b16 %v2846, %v2838
        %v4639 = vpack.c.b16 %v2847, %v2839
        %v4640 = vpack.c.b16 %v2856, %v2848
        %v4641 = vpack.c.b16 %v2857, %v2849
        %v4642 = vpack.c.b16 %v2858, %v2850
        %v4643 = vpack.c.b16 %v2859, %v2851
        %v4644 = vpack.c.b16 %v2860, %v2852
        %v4645 = vpack.c.b16 %v2861, %v2853
        %v4646 = vpack.c.b16 %v2862, %v2854
        %v4647 = vpack.c.b16 %v2863, %v2855
        %v4648 = vpack.c.b16 %v2872, %v2864
        %v4649 = vpack.c.b16 %v2873, %v2865
        %v4650 = vpack.c.b16 %v2874, %v2866
        %v4651 = vpack.c.b16 %v2875, %v2867
        %v4652 = vpack.c.b16 %v2876, %v2868
        %v4653 = vpack.c.b16 %v2877, %v2869
        %v4654 = vpack.c.b16 %v2878, %v2870
        %v4655 = vpack.c.b16 %v2879, %v2871
        %v4656 = vpack.c.b16 %v2888, %v2880
        %v4657 = vpack.c.b16 %v2889, %v2881
        %v4658 = vpack.c.b16 %v2890, %v2882
        %v4659 = vpack.c.b16 %v2891, %v2883
        %v4660 = vpack.c.b16 %v2892, %v2884
        %v4661 = vpack.c.b16 %v2893, %v2885
        %v4662 = vpack.c.b16 %v2894, %v2886
        %v4663 = vpack.c.b16 %v2895, %v2887
        %v4664 = vpack.c.b16 %v2904, %v2896
        %v4665 = vpack.c.b16 %v2905, %v2897
        %v4666 = vpack.c.b16 %v2906, %v2898
        %v4667 = vpack.c.b16 %v2907, %v2899
        %v4668 = vpack.c.b16 %v2908, %v2900
        %v4669 = vpack.c.b16 %v2909, %v2901
        %v4670 = vpack.c.b16 %v2910, %v2902
        %v4671 = vpack.c.b16 %v2911, %v2903
        %v4672 = vpack.c.b16 %v2920, %v2912
        %v4673 = vpack.c.b16 %v2921, %v2913
        %v4674 = vpack.c.b16 %v2922, %v2914
        %v4675 = vpack.c.b16 %v2923, %v2915
        %v4676 = vpack.c.b16 %v2924, %v2916
        %v4677 = vpack.c.b16 %v2925, %v2917
        %v4678 = vpack.c.b16 %v2926, %v2918
        %v4679 = vpack.c.b16 %v2927, %v2919
        %v4680 = vpack.c.b16 %v2936, %v2928
        %v4681 = vpack.c.b16 %v2937, %v2929
        %v4682 = vpack.c.b16 %v2938, %v2930
        %v4683 = vpack.c.b16 %v2939, %v2931
        %v4684 = vpack.c.b16 %v2940, %v2932
        %v4685 = vpack.c.b16 %v2941, %v2933
        %v4686 = vpack.c.b16 %v2942, %v2934
        %v4687 = vpack.c.b16 %v2943, %v2935
        %v4688 = vpack.c.b16 %v2952, %v2944
        %v4689 = vpack.c.b16 %v2953, %v2945
        %v4690 = vpack.c.b16 %v2954, %v2946
        %v4691 = vpack.c.b16 %v2955, %v2947
        %v4692 = vpack.c.b16 %v2956, %v2948
        %v4693 = vpack.c.b16 %v2957, %v2949
        %v4694 = vpack.c.b16 %v2958, %v2950
        %v4695 = vpack.c.b16 %v2959, %v2951
        %v4696 = vpack.c.b16 %v2968, %v2960
        %v4697 = vpack.c.b16 %v2969, %v2961
        %v4698 = vpack.c.b16 %v2970, %v2962
        %v4699 = vpack.c.b16 %v2971, %v2963
        %v4700 = vpack.c.b16 %v2972, %v2964
        %v4701 = vpack.c.b16 %v2973, %v2965
        %v4702 = vpack.c.b16 %v2974, %v2966
        %v4703 = vpack.c.b16 %v2975, %v2967
        %v4704 = vpack.c.b16 %v2984, %v2976
        %v4705 = vpack.c.b16 %v2985, %v2977
        %v4706 = vpack.c.b16 %v2986, %v2978
        %v4707 = vpack.c.b16 %v2987, %v2979
        %v4708 = vpack.c.b16 %v2988, %v2980
        %v4709 = vpack.c.b16 %v2989, %v2981
        %v4710 = vpack.c.b16 %v2990, %v2982
        %v4711 = vpack.c.b16 %v2991, %v2983
        %v4712 = vpack.c.b16 %v3000, %v2992
        %v4713 = vpack.c.b16 %v3001, %v2993
        %v4714 = vpack.c.b16 %v3002, %v2994
        %v4715 = vpack.c.b16 %v3003, %v2995
        %v4716 = vpack.c.b16 %v3004, %v2996
        %v4717 = vpack.c.b16 %v3005, %v2997
        %v4718 = vpack.c.b16 %v3006, %v2998
        %v4719 = vpack.c.b16 %v3007, %v2999
        %v4720 = vpack.c.b16 %v3016, %v3008
        %v4721 = vpack.c.b16 %v3017, %v3009
        %v4722 = vpack.c.b16 %v3018, %v3010
        %v4723 = vpack.c.b16 %v3019, %v3011
        %v4724 = vpack.c.b16 %v3020, %v3012
        %v4725 = vpack.c.b16 %v3021, %v3013
        %v4726 = vpack.c.b16 %v3022, %v3014
        %v4727 = vpack.c.b16 %v3023, %v3015
        %v4728 = vpack.c.b16 %v3032, %v3024
        %v4729 = vpack.c.b16 %v3033, %v3025
        %v4730 = vpack.c.b16 %v3034, %v3026
        %v4731 = vpack.c.b16 %v3035, %v3027
        %v4732 = vpack.c.b16 %v3036, %v3028
        %v4733 = vpack.c.b16 %v3037, %v3029
        %v4734 = vpack.c.b16 %v3038, %v3030
        %v4735 = vpack.c.b16 %v3039, %v3031
        %v4736 = vpack.c.b16 %v3048, %v3040
        %v4737 = vpack.c.b16 %v3049, %v3041
        %v4738 = vpack.c.b16 %v3050, %v3042
        %v4739 = vpack.c.b16 %v3051, %v3043
        %v4740 = vpack.c.b16 %v3052, %v3044
        %v4741 = vpack.c.b16 %v3053, %v3045
        %v4742 = vpack.c.b16 %v3054, %v3046
        %v4743 = vpack.c.b16 %v3055, %v3047
        %v4744 = vpack.c.b16 %v3064, %v3056
        %v4745 = vpack.c.b16 %v3065, %v3057
        %v4746 = vpack.c.b16 %v3066, %v3058
        %v4747 = vpack.c.b16 %v3067, %v3059
        %v4748 = vpack.c.b16 %v3068, %v3060
        %v4749 = vpack.c.b16 %v3069, %v3061
        %v4750 = vpack.c.b16 %v3070, %v3062
        %v4751 = vpack.c.b16 %v3071, %v3063
        %v4752 = vpack.c.b16 %v3080, %v3072
        %v4753 = vpack.c.b16 %v3081, %v3073
        %v4754 = vpack.c.b16 %v3082, %v3074
        %v4755 = vpack.c.b16 %v3083, %v3075
        %v4756 = vpack.c.b16 %v3084, %v3076
        %v4757 = vpack.c.b16 %v3085, %v3077
        %v4758 = vpack.c.b16 %v3086, %v3078
        %v4759 = vpack.c.b16 %v3087, %v3079
        %v4760 = vpack.c.b16 %v3096, %v3088
        %v4761 = vpack.c.b16 %v3097, %v3089
        %v4762 = vpack.c.b16 %v3098, %v3090
        %v4763 = vpack.c.b16 %v3099, %v3091
        %v4764 = vpack.c.b16 %v3100, %v3092
        %v4765 = vpack.c.b16 %v3101, %v3093
        %v4766 = vpack.c.b16 %v3102, %v3094
        %v4767 = vpack.c.b16 %v3103, %v3095
        %v4768 = vpack.c.b16 %v3112, %v3104
        %v4769 = vpack.c.b16 %v3113, %v3105
        %v4770 = vpack.c.b16 %v3114, %v3106
        %v4771 = vpack.c.b16 %v3115, %v3107
        %v4772 = vpack.c.b16 %v3116, %v3108
        %v4773 = vpack.c.b16 %v3117, %v3109
        %v4774 = vpack.c.b16 %v3118, %v3110
        %v4775 = vpack.c.b16 %v3119, %v3111
        %v4776 = vpack.c.b16 %v3128, %v3120
        %v4777 = vpack.c.b16 %v3129, %v3121
        %v4778 = vpack.c.b16 %v3130, %v3122
        %v4779 = vpack.c.b16 %v3131, %v3123
        %v4780 = vpack.c.b16 %v3132, %v3124
        %v4781 = vpack.c.b16 %v3133, %v3125
        %v4782 = vpack.c.b16 %v3134, %v3126
        %v4783 = vpack.c.b16 %v3135, %v3127
        %v4784 = vpack.c.b16 %v3144, %v3136
        %v4785 = vpack.c.b16 %v3145, %v3137
        %v4786 = vpack.c.b16 %v3146, %v3138
        %v4787 = vpack.c.b16 %v3147, %v3139
        %v4788 = vpack.c.b16 %v3148, %v3140
        %v4789 = vpack.c.b16 %v3149, %v3141
        %v4790 = vpack.c.b16 %v3150, %v3142
        %v4791 = vpack.c.b16 %v3151, %v3143
        %v4792 = vpack.c.b16 %v3160, %v3152
        %v4793 = vpack.c.b16 %v3161, %v3153
        %v4794 = vpack.c.b16 %v3162, %v3154
        %v4795 = vpack.c.b16 %v3163, %v3155
        %v4796 = vpack.c.b16 %v3164, %v3156
        %v4797 = vpack.c.b16 %v3165, %v3157
        %v4798 = vpack.c.b16 %v3166, %v3158
        %v4799 = vpack.c.b16 %v3167, %v3159
        %v4800 = vpack.c.b16 %v3176, %v3168
        %v4801 = vpack.c.b16 %v3177, %v3169
        %v4802 = vpack.c.b16 %v3178, %v3170
        %v4803 = vpack.c.b16 %v3179, %v3171
        %v4804 = vpack.c.b16 %v3180, %v3172
        %v4805 = vpack.c.b16 %v3181, %v3173
        %v4806 = vpack.c.b16 %v3182, %v3174
        %v4807 = vpack.c.b16 %v3183, %v3175
        %v4808 = vpack.c.b16 %v3192, %v3184
        %v4809 = vpack.c.b16 %v3193, %v3185
        %v4810 = vpack.c.b16 %v3194, %v3186
        %v4811 = vpack.c.b16 %v3195, %v3187
        %v4812 = vpack.c.b16 %v3196, %v3188
        %v4813 = vpack.c.b16 %v3197, %v3189
        %v4814 = vpack.c.b16 %v3198, %v3190
        %v4815 = vpack.c.b16 %v3199, %v3191
        %v4816 = vpack.c.b16 %v3208, %v3200
        %v4817 = vpack.c.b16 %v3209, %v3201
        %v4818 = vpack.c.b16 %v3210, %v3202
        %v4819 = vpack.c.b16 %v3211, %v3203
        %v4820 = vpack.c.b16 %v3212, %v3204
        %v4821 = vpack.c.b16 %v3213, %v3205
        %v4822 = vpack.c.b16 %v3214, %v3206
        %v4823 = vpack.c.b16 %v3215, %v3207
        %v4824 = vpack.c.b16 %v3224, %v3216
        %v4825 = vpack.c.b16 %v3225, %v3217
        %v4826 = vpack.c.b16 %v3226, %v3218
        %v4827 = vpack.c.b16 %v3227, %v3219
        %v4828 = vpack.c.b16 %v3228, %v3220
        %v4829 = vpack.c.b16 %v3229, %v3221
        %v4830 = vpack.c.b16 %v3230, %v3222
        %v4831 = vpack.c.b16 %v3231, %v3223
        %v4832 = vpack.c.b16 %v3240, %v3232
        %v4833 = vpack.c.b16 %v3241, %v3233
        %v4834 = vpack.c.b16 %v3242, %v3234
        %v4835 = vpack.c.b16 %v3243, %v3235
        %v4836 = vpack.c.b16 %v3244, %v3236
        %v4837 = vpack.c.b16 %v3245, %v3237
        %v4838 = vpack.c.b16 %v3246, %v3238
        %v4839 = vpack.c.b16 %v3247, %v3239
        %v4840 = vpack.c.b16 %v3256, %v3248
        %v4841 = vpack.c.b16 %v3257, %v3249
        %v4842 = vpack.c.b16 %v3258, %v3250
        %v4843 = vpack.c.b16 %v3259, %v3251
        %v4844 = vpack.c.b16 %v3260, %v3252
        %v4845 = vpack.c.b16 %v3261, %v3253
        %v4846 = vpack.c.b16 %v3262, %v3254
        %v4847 = vpack.c.b16 %v3263, %v3255
        %v4848 = vpack.c.b16 %v3272, %v3264
        %v4849 = vpack.c.b16 %v3273, %v3265
        %v4850 = vpack.c.b16 %v3274, %v3266
        %v4851 = vpack.c.b16 %v3275, %v3267
        %v4852 = vpack.c.b16 %v3276, %v3268
        %v4853 = vpack.c.b16 %v3277, %v3269
        %v4854 = vpack.c.b16 %v3278, %v3270
        %v4855 = vpack.c.b16 %v3279, %v3271
        %v4856 = vpack.c.b16 %v3288, %v3280
        %v4857 = vpack.c.b16 %v3289, %v3281
        %v4858 = vpack.c.b16 %v3290, %v3282
        %v4859 = vpack.c.b16 %v3291, %v3283
        %v4860 = vpack.c.b16 %v3292, %v3284
        %v4861 = vpack.c.b16 %v3293, %v3285
        %v4862 = vpack.c.b16 %v3294, %v3286
        %v4863 = vpack.c.b16 %v3295, %v3287
        %v4864 = vpack.c.b16 %v3304, %v3296
        %v4865 = vpack.c.b16 %v3305, %v3297
        %v4866 = vpack.c.b16 %v3306, %v3298
        %v4867 = vpack.c.b16 %v3307, %v3299
        %v4868 = vpack.c.b16 %v3308, %v3300
        %v4869 = vpack.c.b16 %v3309, %v3301
        %v4870 = vpack.c.b16 %v3310, %v3302
        %v4871 = vpack.c.b16 %v3311, %v3303
        %v4872 = vpack.c.b16 %v3320, %v3312
        %v4873 = vpack.c.b16 %v3321, %v3313
        %v4874 = vpack.c.b16 %v3322, %v3314
        %v4875 = vpack.c.b16 %v3323, %v3315
        %v4876 = vpack.c.b16 %v3324, %v3316
        %v4877 = vpack.c.b16 %v3325, %v3317
        %v4878 = vpack.c.b16 %v3326, %v3318
        %v4879 = vpack.c.b16 %v3327, %v3319
        %v4880 = vpack.c.b16 %v3336, %v3328
        %v4881 = vpack.c.b16 %v3337, %v3329
        %v4882 = vpack.c.b16 %v3338, %v3330
        %v4883 = vpack.c.b16 %v3339, %v3331
        %v4884 = vpack.c.b16 %v3340, %v3332
        %v4885 = vpack.c.b16 %v3341, %v3333
        %v4886 = vpack.c.b16 %v3342, %v3334
        %v4887 = vpack.c.b16 %v3343, %v3335
        %v4888 = vpack.c.b16 %v3352, %v3344
        %v4889 = vpack.c.b16 %v3353, %v3345
        %v4890 = vpack.c.b16 %v3354, %v3346
        %v4891 = vpack.c.b16 %v3355, %v3347
        %v4892 = vpack.c.b16 %v3356, %v3348
        %v4893 = vpack.c.b16 %v3357, %v3349
        %v4894 = vpack.c.b16 %v3358, %v3350
        %v4895 = vpack.c.b16 %v3359, %v3351
        %v4896 = vpack.c.b16 %v3368, %v3360
        %v4897 = vpack.c.b16 %v3369, %v3361
        %v4898 = vpack.c.b16 %v3370, %v3362
        %v4899 = vpack.c.b16 %v3371, %v3363
        %v4900 = vpack.c.b16 %v3372, %v3364
        %v4901 = vpack.c.b16 %v3373, %v3365
        %v4902 = vpack.c.b16 %v3374, %v3366
        %v4903 = vpack.c.b16 %v3375, %v3367
        %v4904 = vpack.c.b16 %v3384, %v3376
        %v4905 = vpack.c.b16 %v3385, %v3377
        %v4906 = vpack.c.b16 %v3386, %v3378
        %v4907 = vpack.c.b16 %v3387, %v3379
        %v4908 = vpack.c.b16 %v3388, %v3380
        %v4909 = vpack.c.b16 %v3389, %v3381
        %v4910 = vpack.c.b16 %v3390, %v3382
        %v4911 = vpack.c.b16 %v3391, %v3383
        %v4912 = vpack.c.b16 %v3400, %v3392
        %v4913 = vpack.c.b16 %v3401, %v3393
        %v4914 = vpack.c.b16 %v3402, %v3394
        %v4915 = vpack.c.b16 %v3403, %v3395
        %v4916 = vpack.c.b16 %v3404, %v3396
        %v4917 = vpack.c.b16 %v3405, %v3397
        %v4918 = vpack.c.b16 %v3406, %v3398
        %v4919 = vpack.c.b16 %v3407, %v3399
        %v4920 = vpack.c.b16 %v3416, %v3408
        %v4921 = vpack.c.b16 %v3417, %v3409
        %v4922 = vpack.c.b16 %v3418, %v3410
        %v4923 = vpack.c.b16 %v3419, %v3411
        %v4924 = vpack.c.b16 %v3420, %v3412
        %v4925 = vpack.c.b16 %v3421, %v3413
        %v4926 = vpack.c.b16 %v3422, %v3414
        %v4927 = vpack.c.b16 %v3423, %v3415
        %v4928 = vpack.c.b16 %v3432, %v3424
        %v4929 = vpack.c.b16 %v3433, %v3425
        %v4930 = vpack.c.b16 %v3434, %v3426
        %v4931 = vpack.c.b16 %v3435, %v3427
        %v4932 = vpack.c.b16 %v3436, %v3428
        %v4933 = vpack.c.b16 %v3437, %v3429
        %v4934 = vpack.c.b16 %v3438, %v3430
        %v4935 = vpack.c.b16 %v3439, %v3431
        %v4936 = vpack.c.b16 %v3448, %v3440
        %v4937 = vpack.c.b16 %v3449, %v3441
        %v4938 = vpack.c.b16 %v3450, %v3442
        %v4939 = vpack.c.b16 %v3451, %v3443
        %v4940 = vpack.c.b16 %v3452, %v3444
        %v4941 = vpack.c.b16 %v3453, %v3445
        %v4942 = vpack.c.b16 %v3454, %v3446
        %v4943 = vpack.c.b16 %v3455, %v3447
        %v4944 = vpack.c.b16 %v3464, %v3456
        %v4945 = vpack.c.b16 %v3465, %v3457
        %v4946 = vpack.c.b16 %v3466, %v3458
        %v4947 = vpack.c.b16 %v3467, %v3459
        %v4948 = vpack.c.b16 %v3468, %v3460
        %v4949 = vpack.c.b16 %v3469, %v3461
        %v4950 = vpack.c.b16 %v3470, %v3462
        %v4951 = vpack.c.b16 %v3471, %v3463
        %v4952 = vpack.c.b16 %v3480, %v3472
        %v4953 = vpack.c.b16 %v3481, %v3473
        %v4954 = vpack.c.b16 %v3482, %v3474
        %v4955 = vpack.c.b16 %v3483, %v3475
        %v4956 = vpack.c.b16 %v3484, %v3476
        %v4957 = vpack.c.b16 %v3485, %v3477
        %v4958 = vpack.c.b16 %v3486, %v3478
        %v4959 = vpack.c.b16 %v3487, %v3479
        %v4960 = vpack.c.b16 %v3496, %v3488
        %v4961 = vpack.c.b16 %v3497, %v3489
        %v4962 = vpack.c.b16 %v3498, %v3490
        %v4963 = vpack.c.b16 %v3499, %v3491
        %v4964 = vpack.c.b16 %v3500, %v3492
        %v4965 = vpack.c.b16 %v3501, %v3493
        %v4966 = vpack.c.b16 %v3502, %v3494
        %v4967 = vpack.c.b16 %v3503, %v3495
        %v4968 = vpack.c.b16 %v3512, %v3504
        %v4969 = vpack.c.b16 %v3513, %v3505
        %v4970 = vpack.c.b16 %v3514, %v3506
        %v4971 = vpack.c.b16 %v3515, %v3507
        %v4972 = vpack.c.b16 %v3516, %v3508
        %v4973 = vpack.c.b16 %v3517, %v3509
        %v4974 = vpack.c.b16 %v3518, %v3510
        %v4975 = vpack.c.b16 %v3519, %v3511
        %v4976 = vpack.c.b16 %v3528, %v3520
        %v4977 = vpack.c.b16 %v3529, %v3521
        %v4978 = vpack.c.b16 %v3530, %v3522
        %v4979 = vpack.c.b16 %v3531, %v3523
        %v4980 = vpack.c.b16 %v3532, %v3524
        %v4981 = vpack.c.b16 %v3533, %v3525
        %v4982 = vpack.c.b16 %v3534, %v3526
        %v4983 = vpack.c.b16 %v3535, %v3527
        %v4984 = vpack.c.b16 %v3544, %v3536
        %v4985 = vpack.c.b16 %v3545, %v3537
        %v4986 = vpack.c.b16 %v3546, %v3538
        %v4987 = vpack.c.b16 %v3547, %v3539
        %v4988 = vpack.c.b16 %v3548, %v3540
        %v4989 = vpack.c.b16 %v3549, %v3541
        %v4990 = vpack.c.b16 %v3550, %v3542
        %v4991 = vpack.c.b16 %v3551, %v3543
        %v4992 = vpack.c.b16 %v3560, %v3552
        %v4993 = vpack.c.b16 %v3561, %v3553
        %v4994 = vpack.c.b16 %v3562, %v3554
        %v4995 = vpack.c.b16 %v3563, %v3555
        %v4996 = vpack.c.b16 %v3564, %v3556
        %v4997 = vpack.c.b16 %v3565, %v3557
        %v4998 = vpack.c.b16 %v3566, %v3558
        %v4999 = vpack.c.b16 %v3567, %v3559
        %v5000 = vpack.c.b16 %v3576, %v3568
        %v5001 = vpack.c.b16 %v3577, %v3569
        %v5002 = vpack.c.b16 %v3578, %v3570
        %v5003 = vpack.c.b16 %v3579, %v3571
        %v5004 = vpack.c.b16 %v3580, %v3572
        %v5005 = vpack.c.b16 %v3581, %v3573
        %v5006 = vpack.c.b16 %v3582, %v3574
        %v5007 = vpack.c.b16 %v3583, %v3575
        %v5008 = vpack.c.b16 %v3592, %v3584
        %v5009 = vpack.c.b16 %v3593, %v3585
        %v5010 = vpack.c.b16 %v3594, %v3586
        %v5011 = vpack.c.b16 %v3595, %v3587
        %v5012 = vpack.c.b16 %v3596, %v3588
        %v5013 = vpack.c.b16 %v3597, %v3589
        %v5014 = vpack.c.b16 %v3598, %v3590
        %v5015 = vpack.c.b16 %v3599, %v3591
        %v5016 = vpack.c.b16 %v3608, %v3600
        %v5017 = vpack.c.b16 %v3609, %v3601
        %v5018 = vpack.c.b16 %v3610, %v3602
        %v5019 = vpack.c.b16 %v3611, %v3603
        %v5020 = vpack.c.b16 %v3612, %v3604
        %v5021 = vpack.c.b16 %v3613, %v3605
        %v5022 = vpack.c.b16 %v3614, %v3606
        %v5023 = vpack.c.b16 %v3615, %v3607
        %v5024 = vpack.c.b16 %v3624, %v3616
        %v5025 = vpack.c.b16 %v3625, %v3617
        %v5026 = vpack.c.b16 %v3626, %v3618
        %v5027 = vpack.c.b16 %v3627, %v3619
        %v5028 = vpack.c.b16 %v3628, %v3620
        %v5029 = vpack.c.b16 %v3629, %v3621
        %v5030 = vpack.c.b16 %v3630, %v3622
        %v5031 = vpack.c.b16 %v3631, %v3623
        %v5032 = vpack.c.b16 %v3640, %v3632
        %v5033 = vpack.c.b16 %v3641, %v3633
        %v5034 = vpack.c.b16 %v3642, %v3634
        %v5035 = vpack.c.b16 %v3643, %v3635
        %v5036 = vpack.c.b16 %v3644, %v3636
        %v5037 = vpack.c.b16 %v3645, %v3637
        %v5038 = vpack.c.b16 %v3646, %v3638
        %v5039 = vpack.c.b16 %v3647, %v3639
        %v5040 = vpack.c.b16 %v3656, %v3648
        %v5041 = vpack.c.b16 %v3657, %v3649
        %v5042 = vpack.c.b16 %v3658, %v3650
        %v5043 = vpack.c.b16 %v3659, %v3651
        %v5044 = vpack.c.b16 %v3660, %v3652
        %v5045 = vpack.c.b16 %v3661, %v3653
        %v5046 = vpack.c.b16 %v3662, %v3654
        %v5047 = vpack.c.b16 %v3663, %v3655
        %v5048 = vpack.c.b16 %v3672, %v3664
        %v5049 = vpack.c.b16 %v3673, %v3665
        %v5050 = vpack.c.b16 %v3674, %v3666
        %v5051 = vpack.c.b16 %v3675, %v3667
        %v5052 = vpack.c.b16 %v3676, %v3668
        %v5053 = vpack.c.b16 %v3677, %v3669
        %v5054 = vpack.c.b16 %v3678, %v3670
        %v5055 = vpack.c.b16 %v3679, %v3671
        %v5056 = vpack.c.b16 %v3688, %v3680
        %v5057 = vpack.c.b16 %v3689, %v3681
        %v5058 = vpack.c.b16 %v3690, %v3682
        %v5059 = vpack.c.b16 %v3691, %v3683
        %v5060 = vpack.c.b16 %v3692, %v3684
        %v5061 = vpack.c.b16 %v3693, %v3685
        %v5062 = vpack.c.b16 %v3694, %v3686
        %v5063 = vpack.c.b16 %v3695, %v3687
        %v5064 = vpack.c.b16 %v3704, %v3696
        %v5065 = vpack.c.b16 %v3705, %v3697
        %v5066 = vpack.c.b16 %v3706, %v3698
        %v5067 = vpack.c.b16 %v3707, %v3699
        %v5068 = vpack.c.b16 %v3708, %v3700
        %v5069 = vpack.c.b16 %v3709, %v3701
        %v5070 = vpack.c.b16 %v3710, %v3702
        %v5071 = vpack.c.b16 %v3711, %v3703
        %v5072 = vpack.c.b16 %v3720, %v3712
        %v5073 = vpack.c.b16 %v3721, %v3713
        %v5074 = vpack.c.b16 %v3722, %v3714
        %v5075 = vpack.c.b16 %v3723, %v3715
        %v5076 = vpack.c.b16 %v3724, %v3716
        %v5077 = vpack.c.b16 %v3725, %v3717
        %v5078 = vpack.c.b16 %v3726, %v3718
        %v5079 = vpack.c.b16 %v3727, %v3719
        %v5080 = vpack.c.b16 %v3736, %v3728
        %v5081 = vpack.c.b16 %v3737, %v3729
        %v5082 = vpack.c.b16 %v3738, %v3730
        %v5083 = vpack.c.b16 %v3739, %v3731
        %v5084 = vpack.c.b16 %v3740, %v3732
        %v5085 = vpack.c.b16 %v3741, %v3733
        %v5086 = vpack.c.b16 %v3742, %v3734
        %v5087 = vpack.c.b16 %v3743, %v3735
        %v5088 = vpack.c.b16 %v3752, %v3744
        %v5089 = vpack.c.b16 %v3753, %v3745
        %v5090 = vpack.c.b16 %v3754, %v3746
        %v5091 = vpack.c.b16 %v3755, %v3747
        %v5092 = vpack.c.b16 %v3756, %v3748
        %v5093 = vpack.c.b16 %v3757, %v3749
        %v5094 = vpack.c.b16 %v3758, %v3750
        %v5095 = vpack.c.b16 %v3759, %v3751
        %v5096 = vpack.c.b16 %v3768, %v3760
        %v5097 = vpack.c.b16 %v3769, %v3761
        %v5098 = vpack.c.b16 %v3770, %v3762
        %v5099 = vpack.c.b16 %v3771, %v3763
        %v5100 = vpack.c.b16 %v3772, %v3764
        %v5101 = vpack.c.b16 %v3773, %v3765
        %v5102 = vpack.c.b16 %v3774, %v3766
        %v5103 = vpack.c.b16 %v3775, %v3767
        %v5104 = vpack.c.b16 %v3784, %v3776
        %v5105 = vpack.c.b16 %v3785, %v3777
        %v5106 = vpack.c.b16 %v3786, %v3778
        %v5107 = vpack.c.b16 %v3787, %v3779
        %v5108 = vpack.c.b16 %v3788, %v3780
        %v5109 = vpack.c.b16 %v3789, %v3781
        %v5110 = vpack.c.b16 %v3790, %v3782
        %v5111 = vpack.c.b16 %v3791, %v3783
        %v5112 = vpack.c.b16 %v3800, %v3792
        %v5113 = vpack.c.b16 %v3801, %v3793
        %v5114 = vpack.c.b16 %v3802, %v3794
        %v5115 = vpack.c.b16 %v3803, %v3795
        %v5116 = vpack.c.b16 %v3804, %v3796
        %v5117 = vpack.c.b16 %v3805, %v3797
        %v5118 = vpack.c.b16 %v3806, %v3798
        %v5119 = vpack.c.b16 %v3807, %v3799
        %v5120 = vpack.c.b16 %v3816, %v3808
        %v5121 = vpack.c.b16 %v3817, %v3809
        %v5122 = vpack.c.b16 %v3818, %v3810
        %v5123 = vpack.c.b16 %v3819, %v3811
        %v5124 = vpack.c.b16 %v3820, %v3812
        %v5125 = vpack.c.b16 %v3821, %v3813
        %v5126 = vpack.c.b16 %v3822, %v3814
        %v5127 = vpack.c.b16 %v3823, %v3815
        %v5128 = vpack.c.b16 %v3832, %v3824
        %v5129 = vpack.c.b16 %v3833, %v3825
        %v5130 = vpack.c.b16 %v3834, %v3826
        %v5131 = vpack.c.b16 %v3835, %v3827
        %v5132 = vpack.c.b16 %v3836, %v3828
        %v5133 = vpack.c.b16 %v3837, %v3829
        %v5134 = vpack.c.b16 %v3838, %v3830
        %v5135 = vpack.c.b16 %v3839, %v3831
        %v5136 = vpack.c.b16 %v3848, %v3840
        %v5137 = vpack.c.b16 %v3849, %v3841
        %v5138 = vpack.c.b16 %v3850, %v3842
        %v5139 = vpack.c.b16 %v3851, %v3843
        %v5140 = vpack.c.b16 %v3852, %v3844
        %v5141 = vpack.c.b16 %v3853, %v3845
        %v5142 = vpack.c.b16 %v3854, %v3846
        %v5143 = vpack.c.b16 %v3855, %v3847
        %v5144 = vpack.c.b16 %v3864, %v3856
        %v5145 = vpack.c.b16 %v3865, %v3857
        %v5146 = vpack.c.b16 %v3866, %v3858
        %v5147 = vpack.c.b16 %v3867, %v3859
        %v5148 = vpack.c.b16 %v3868, %v3860
        %v5149 = vpack.c.b16 %v3869, %v3861
        %v5150 = vpack.c.b16 %v3870, %v3862
        %v5151 = vpack.c.b16 %v3871, %v3863
        %v5152 = vpack.c.b16 %v3880, %v3872
        %v5153 = vpack.c.b16 %v3881, %v3873
        %v5154 = vpack.c.b16 %v3882, %v3874
        %v5155 = vpack.c.b16 %v3883, %v3875
        %v5156 = vpack.c.b16 %v3884, %v3876
        %v5157 = vpack.c.b16 %v3885, %v3877
        %v5158 = vpack.c.b16 %v3886, %v3878
        %v5159 = vpack.c.b16 %v3887, %v3879
        %v5160 = vpack.c.b16 %v3896, %v3888
        %v5161 = vpack.c.b16 %v3897, %v3889
        %v5162 = vpack.c.b16 %v3898, %v3890
        %v5163 = vpack.c.b16 %v3899, %v3891
        %v5164 = vpack.c.b16 %v3900, %v3892
        %v5165 = vpack.c.b16 %v3901, %v3893
        %v5166 = vpack.c.b16 %v3902, %v3894
        %v5167 = vpack.c.b16 %v3903, %v3895
        %v5168 = vpack.c.b16 %v3912, %v3904
        %v5169 = vpack.c.b16 %v3913, %v3905
        %v5170 = vpack.c.b16 %v3914, %v3906
        %v5171 = vpack.c.b16 %v3915, %v3907
        %v5172 = vpack.c.b16 %v3916, %v3908
        %v5173 = vpack.c.b16 %v3917, %v3909
        %v5174 = vpack.c.b16 %v3918, %v3910
        %v5175 = vpack.c.b16 %v3919, %v3911
        %v5176 = vpack.c.b16 %v3928, %v3920
        %v5177 = vpack.c.b16 %v3929, %v3921
        %v5178 = vpack.c.b16 %v3930, %v3922
        %v5179 = vpack.c.b16 %v3931, %v3923
        %v5180 = vpack.c.b16 %v3932, %v3924
        %v5181 = vpack.c.b16 %v3933, %v3925
        %v5182 = vpack.c.b16 %v3934, %v3926
        %v5183 = vpack.c.b16 %v3935, %v3927
        %v5184 = vpack.c.b16 %v3944, %v3936
        %v5185 = vpack.c.b16 %v3945, %v3937
        %v5186 = vpack.c.b16 %v3946, %v3938
        %v5187 = vpack.c.b16 %v3947, %v3939
        %v5188 = vpack.c.b16 %v3948, %v3940
        %v5189 = vpack.c.b16 %v3949, %v3941
        %v5190 = vpack.c.b16 %v3950, %v3942
        %v5191 = vpack.c.b16 %v3951, %v3943
        %v5192 = vpack.c.b16 %v3960, %v3952
        %v5193 = vpack.c.b16 %v3961, %v3953
        %v5194 = vpack.c.b16 %v3962, %v3954
        %v5195 = vpack.c.b16 %v3963, %v3955
        %v5196 = vpack.c.b16 %v3964, %v3956
        %v5197 = vpack.c.b16 %v3965, %v3957
        %v5198 = vpack.c.b16 %v3966, %v3958
        %v5199 = vpack.c.b16 %v3967, %v3959
        %v5200 = vpack.c.b16 %v3976, %v3968
        %v5201 = vpack.c.b16 %v3977, %v3969
        %v5202 = vpack.c.b16 %v3978, %v3970
        %v5203 = vpack.c.b16 %v3979, %v3971
        %v5204 = vpack.c.b16 %v3980, %v3972
        %v5205 = vpack.c.b16 %v3981, %v3973
        %v5206 = vpack.c.b16 %v3982, %v3974
        %v5207 = vpack.c.b16 %v3983, %v3975
        %v5208 = vpack.c.b16 %v3992, %v3984
        %v5209 = vpack.c.b16 %v3993, %v3985
        %v5210 = vpack.c.b16 %v3994, %v3986
        %v5211 = vpack.c.b16 %v3995, %v3987
        %v5212 = vpack.c.b16 %v3996, %v3988
        %v5213 = vpack.c.b16 %v3997, %v3989
        %v5214 = vpack.c.b16 %v3998, %v3990
        %v5215 = vpack.c.b16 %v3999, %v3991
        %v5216 = vpack.c.b16 %v4008, %v4000
        %v5217 = vpack.c.b16 %v4009, %v4001
        %v5218 = vpack.c.b16 %v4010, %v4002
        %v5219 = vpack.c.b16 %v4011, %v4003
        %v5220 = vpack.c.b16 %v4012, %v4004
        %v5221 = vpack.c.b16 %v4013, %v4005
        %v5222 = vpack.c.b16 %v4014, %v4006
        %v5223 = vpack.c.b16 %v4015, %v4007
        %v5224 = vpack.c.b16 %v4024, %v4016
        %v5225 = vpack.c.b16 %v4025, %v4017
        %v5226 = vpack.c.b16 %v4026, %v4018
        %v5227 = vpack.c.b16 %v4027, %v4019
        %v5228 = vpack.c.b16 %v4028, %v4020
        %v5229 = vpack.c.b16 %v4029, %v4021
        %v5230 = vpack.c.b16 %v4030, %v4022
        %v5231 = vpack.c.b16 %v4031, %v4023
        %v5232 = vpack.c.b16 %v4040, %v4032
        %v5233 = vpack.c.b16 %v4041, %v4033
        %v5234 = vpack.c.b16 %v4042, %v4034
        %v5235 = vpack.c.b16 %v4043, %v4035
        %v5236 = vpack.c.b16 %v4044, %v4036
        %v5237 = vpack.c.b16 %v4045, %v4037
        %v5238 = vpack.c.b16 %v4046, %v4038
        %v5239 = vpack.c.b16 %v4047, %v4039
        %v5240 = vpack.c.b16 %v4056, %v4048
        %v5241 = vpack.c.b16 %v4057, %v4049
        %v5242 = vpack.c.b16 %v4058, %v4050
        %v5243 = vpack.c.b16 %v4059, %v4051
        %v5244 = vpack.c.b16 %v4060, %v4052
        %v5245 = vpack.c.b16 %v4061, %v4053
        %v5246 = vpack.c.b16 %v4062, %v4054
        %v5247 = vpack.c.b16 %v4063, %v4055
        %v5248 = vpack.c.b16 %v4072, %v4064
        %v5249 = vpack.c.b16 %v4073, %v4065
        %v5250 = vpack.c.b16 %v4074, %v4066
        %v5251 = vpack.c.b16 %v4075, %v4067
        %v5252 = vpack.c.b16 %v4076, %v4068
        %v5253 = vpack.c.b16 %v4077, %v4069
        %v5254 = vpack.c.b16 %v4078, %v4070
        %v5255 = vpack.c.b16 %v4079, %v4071
        %v5256 = vpack.c.b16 %v4088, %v4080
        %v5257 = vpack.c.b16 %v4089, %v4081
        %v5258 = vpack.c.b16 %v4090, %v4082
        %v5259 = vpack.c.b16 %v4091, %v4083
        %v5260 = vpack.c.b16 %v4092, %v4084
        %v5261 = vpack.c.b16 %v4093, %v4085
        %v5262 = vpack.c.b16 %v4094, %v4086
        %v5263 = vpack.c.b16 %v4095, %v4087
        %v5264 = vpack.c.b16 %v4104, %v4096
        %v5265 = vpack.c.b16 %v4105, %v4097
        %v5266 = vpack.c.b16 %v4106, %v4098
        %v5267 = vpack.c.b16 %v4107, %v4099
        %v5268 = vpack.c.b16 %v4108, %v4100
        %v5269 = vpack.c.b16 %v4109, %v4101
        %v5270 = vpack.c.b16 %v4110, %v4102
        %v5271 = vpack.c.b16 %v4111, %v4103
        %v5272 = vpack.c.b16 %v4120, %v4112
        %v5273 = vpack.c.b16 %v4121, %v4113
        %v5274 = vpack.c.b16 %v4122, %v4114
        %v5275 = vpack.c.b16 %v4123, %v4115
        %v5276 = vpack.c.b16 %v4124, %v4116
        %v5277 = vpack.c.b16 %v4125, %v4117
        %v5278 = vpack.c.b16 %v4126, %v4118
        %v5279 = vpack.c.b16 %v4127, %v4119
        %v5280 = vpack.c.b16 %v4136, %v4128
        %v5281 = vpack.c.b16 %v4137, %v4129
        %v5282 = vpack.c.b16 %v4138, %v4130
        %v5283 = vpack.c.b16 %v4139, %v4131
        %v5284 = vpack.c.b16 %v4140, %v4132
        %v5285 = vpack.c.b16 %v4141, %v4133
        %v5286 = vpack.c.b16 %v4142, %v4134
        %v5287 = vpack.c.b16 %v4143, %v4135
        %v5288 = vpack.c.b16 %v4152, %v4144
        %v5289 = vpack.c.b16 %v4153, %v4145
        %v5290 = vpack.c.b16 %v4154, %v4146
        %v5291 = vpack.c.b16 %v4155, %v4147
        %v5292 = vpack.c.b16 %v4156, %v4148
        %v5293 = vpack.c.b16 %v4157, %v4149
        %v5294 = vpack.c.b16 %v4158, %v4150
        %v5295 = vpack.c.b16 %v4159, %v4151
        %v5296 = vpack.c.b16 %v4168, %v4160
        %v5297 = vpack.c.b16 %v4169, %v4161
        %v5298 = vpack.c.b16 %v4170, %v4162
        %v5299 = vpack.c.b16 %v4171, %v4163
        %v5300 = vpack.c.b16 %v4172, %v4164
        %v5301 = vpack.c.b16 %v4173, %v4165
        %v5302 = vpack.c.b16 %v4174, %v4166
        %v5303 = vpack.c.b16 %v4175, %v4167
        %v5304 = vpack.c.b16 %v4184, %v4176
        %v5305 = vpack.c.b16 %v4185, %v4177
        %v5306 = vpack.c.b16 %v4186, %v4178
        %v5307 = vpack.c.b16 %v4187, %v4179
        %v5308 = vpack.c.b16 %v4188, %v4180
        %v5309 = vpack.c.b16 %v4189, %v4181
        %v5310 = vpack.c.b16 %v4190, %v4182
        %v5311 = vpack.c.b16 %v4191, %v4183
        %v5312 = vpack.c.b16 %v4200, %v4192
        %v5313 = vpack.c.b16 %v4201, %v4193
        %v5314 = vpack.c.b16 %v4202, %v4194
        %v5315 = vpack.c.b16 %v4203, %v4195
        %v5316 = vpack.c.b16 %v4204, %v4196
        %v5317 = vpack.c.b16 %v4205, %v4197
        %v5318 = vpack.c.b16 %v4206, %v4198
        %v5319 = vpack.c.b16 %v4207, %v4199
        %v5320 = vpack.c.b16 %v4216, %v4208
        %v5321 = vpack.c.b16 %v4217, %v4209
        %v5322 = vpack.c.b16 %v4218, %v4210
        %v5323 = vpack.c.b16 %v4219, %v4211
        %v5324 = vpack.c.b16 %v4220, %v4212
        %v5325 = vpack.c.b16 %v4221, %v4213
        %v5326 = vpack.c.b16 %v4222, %v4214
        %v5327 = vpack.c.b16 %v4223, %v4215
        %v5328 = vpack.c.b16 %v4232, %v4224
        %v5329 = vpack.c.b16 %v4233, %v4225
        %v5330 = vpack.c.b16 %v4234, %v4226
        %v5331 = vpack.c.b16 %v4235, %v4227
        %v5332 = vpack.c.b16 %v4236, %v4228
        %v5333 = vpack.c.b16 %v4237, %v4229
        %v5334 = vpack.c.b16 %v4238, %v4230
        %v5335 = vpack.c.b16 %v4239, %v4231
        %v5336 = vpack.c.b16 %v4248, %v4240
        %v5337 = vpack.c.b16 %v4249, %v4241
        %v5338 = vpack.c.b16 %v4250, %v4242
        %v5339 = vpack.c.b16 %v4251, %v4243
        %v5340 = vpack.c.b16 %v4252, %v4244
        %v5341 = vpack.c.b16 %v4253, %v4245
        %v5342 = vpack.c.b16 %v4254, %v4246
        %v5343 = vpack.c.b16 %v4255, %v4247
        %v5344 = vpack.c.b16 %v4264, %v4256
        %v5345 = vpack.c.b16 %v4265, %v4257
        %v5346 = vpack.c.b16 %v4266, %v4258
        %v5347 = vpack.c.b16 %v4267, %v4259
        %v5348 = vpack.c.b16 %v4268, %v4260
        %v5349 = vpack.c.b16 %v4269, %v4261
        %v5350 = vpack.c.b16 %v4270, %v4262
        %v5351 = vpack.c.b16 %v4271, %v4263
        %v5352 = vpack.c.b16 %v4280, %v4272
        %v5353 = vpack.c.b16 %v4281, %v4273
        %v5354 = vpack.c.b16 %v4282, %v4274
        %v5355 = vpack.c.b16 %v4283, %v4275
        %v5356 = vpack.c.b16 %v4284, %v4276
        %v5357 = vpack.c.b16 %v4285, %v4277
        %v5358 = vpack.c.b16 %v4286, %v4278
        %v5359 = vpack.c.b16 %v4287, %v4279
        %v5360 = vpack.c.b16 %v4296, %v4288
        %v5361 = vpack.c.b16 %v4297, %v4289
        %v5362 = vpack.c.b16 %v4298, %v4290
        %v5363 = vpack.c.b16 %v4299, %v4291
        %v5364 = vpack.c.b16 %v4300, %v4292
        %v5365 = vpack.c.b16 %v4301, %v4293
        %v5366 = vpack.c.b16 %v4302, %v4294
        %v5367 = vpack.c.b16 %v4303, %v4295
        %v5368 = vpack.c.b16 %v4312, %v4304
        %v5369 = vpack.c.b16 %v4313, %v4305
        %v5370 = vpack.c.b16 %v4314, %v4306
        %v5371 = vpack.c.b16 %v4315, %v4307
        %v5372 = vpack.c.b16 %v4316, %v4308
        %v5373 = vpack.c.b16 %v4317, %v4309
        %v5374 = vpack.c.b16 %v4318, %v4310
        %v5375 = vpack.c.b16 %v4319, %v4311
        %v5376 = vpack.c.b16 %v4328, %v4320
        %v5377 = vpack.c.b16 %v4329, %v4321
        %v5378 = vpack.c.b16 %v4330, %v4322
        %v5379 = vpack.c.b16 %v4331, %v4323
        %v5380 = vpack.c.b16 %v4332, %v4324
        %v5381 = vpack.c.b16 %v4333, %v4325
        %v5382 = vpack.c.b16 %v4334, %v4326
        %v5383 = vpack.c.b16 %v4335, %v4327
        %v5384 = vpack.c.b16 %v4344, %v4336
        %v5385 = vpack.c.b16 %v4345, %v4337
        %v5386 = vpack.c.b16 %v4346, %v4338
        %v5387 = vpack.c.b16 %v4347, %v4339
        %v5388 = vpack.c.b16 %v4348, %v4340
        %v5389 = vpack.c.b16 %v4349, %v4341
        %v5390 = vpack.c.b16 %v4350, %v4342
        %v5391 = vpack.c.b16 %v4351, %v4343
        %v5392 = vpack.c.b16 %v4360, %v4352
        %v5393 = vpack.c.b16 %v4361, %v4353
        %v5394 = vpack.c.b16 %v4362, %v4354
        %v5395 = vpack.c.b16 %v4363, %v4355
        %v5396 = vpack.c.b16 %v4364, %v4356
        %v5397 = vpack.c.b16 %v4365, %v4357
        %v5398 = vpack.c.b16 %v4366, %v4358
        %v5399 = vpack.c.b16 %v4367, %v4359
        %v5400 = vpack.c.b16 %v4376, %v4368
        %v5401 = vpack.c.b16 %v4377, %v4369
        %v5402 = vpack.c.b16 %v4378, %v4370
        %v5403 = vpack.c.b16 %v4379, %v4371
        %v5404 = vpack.c.b16 %v4380, %v4372
        %v5405 = vpack.c.b16 %v4381, %v4373
        %v5406 = vpack.c.b16 %v4382, %v4374
        %v5407 = vpack.c.b16 %v4383, %v4375
        %6432 = vmatpush.bf16.msra.mxu0 %v4440
        %6433 = vmatpush.bf16.msra.mxu0 %v4432
        %6434 = vmatpush.bf16.msra.mxu0 %v4424
        %6435 = vmatpush.bf16.msra.mxu0 %v4416
        %6436 = vmatpush.bf16.msra.mxu0 %v4408
        %6437 = vmatpush.bf16.msra.mxu0 %v4400
        %6438 = vmatpush.bf16.msra.mxu0 %v4392
        %6439 = vmatpush.bf16.msra.mxu0 %v4384
        %6440 = vmatmul.bf16.gmra.mxu0 %v1278
        %v6441 = vpop.f32.mrf.mxu0
        %v6442 = vadd.f32 0.0, %v6441
        %v6443 = vpop.f32.mrf.mxu0
        %6444 = vdwg.mxu0
        %6445 = vmatpush.bf16.msra.mxu0 %v4504
        %6446 = vmatpush.bf16.msra.mxu0 %v4496
        %6447 = vmatpush.bf16.msra.mxu0 %v4488
        %6448 = vmatpush.bf16.msra.mxu0 %v4480
        %6449 = vmatpush.bf16.msra.mxu0 %v4472
        %6450 = vmatpush.bf16.msra.mxu0 %v4464
        %6451 = vmatpush.bf16.msra.mxu0 %v4456
        %6452 = vmatpush.bf16.msra.mxu0 %v4448
        %6453 = vmatmul.bf16.gmra.mxu0 %v1279
        %v6454 = vpop.f32.mrf.mxu0
        %v6455 = vadd.f32 %v6442, %v6454
        %v6456 = vpop.f32.mrf.mxu0
        %6457 = vdwg.mxu0
        %6458 = vmatpush.bf16.msra.mxu0 %v4568
        %6459 = vmatpush.bf16.msra.mxu0 %v4560
        %6460 = vmatpush.bf16.msra.mxu0 %v4552
        %6461 = vmatpush.bf16.msra.mxu0 %v4544
        %6462 = vmatpush.bf16.msra.mxu0 %v4536
        %6463 = vmatpush.bf16.msra.mxu0 %v4528
        %6464 = vmatpush.bf16.msra.mxu0 %v4520
        %6465 = vmatpush.bf16.msra.mxu0 %v4512
        %6466 = vmatmul.bf16.gmra.mxu0 %v1280
        %v6467 = vpop.f32.mrf.mxu0
        %v6468 = vadd.f32 %v6455, %v6467
        %v6469 = vpop.f32.mrf.mxu0
        %6470 = vdwg.mxu0
        %6471 = vmatpush.bf16.msra.mxu0 %v4632
        %6472 = vmatpush.bf16.msra.mxu0 %v4624
        %6473 = vmatpush.bf16.msra.mxu0 %v4616
        %6474 = vmatpush.bf16.msra.mxu0 %v4608
        %6475 = vmatpush.bf16.msra.mxu0 %v4600
        %6476 = vmatpush.bf16.msra.mxu0 %v4592
        %6477 = vmatpush.bf16.msra.mxu0 %v4584
        %6478 = vmatpush.bf16.msra.mxu0 %v4576
        %6479 = vmatmul.bf16.gmra.mxu0 %v1281
        %v6480 = vpop.f32.mrf.mxu0
        %v6481 = vadd.f32 %v6468, %v6480
        %v6482 = vpop.f32.mrf.mxu0
        %6483 = vdwg.mxu0
        %6484 = vmatpush.bf16.msra.mxu0 %v4696
        %6485 = vmatpush.bf16.msra.mxu0 %v4688
        %6486 = vmatpush.bf16.msra.mxu0 %v4680
        %6487 = vmatpush.bf16.msra.mxu0 %v4672
        %6488 = vmatpush.bf16.msra.mxu0 %v4664
        %6489 = vmatpush.bf16.msra.mxu0 %v4656
        %6490 = vmatpush.bf16.msra.mxu0 %v4648
        %6491 = vmatpush.bf16.msra.mxu0 %v4640
        %6492 = vmatmul.bf16.gmra.mxu0 %v1282
        %v6493 = vpop.f32.mrf.mxu0
        %v6494 = vadd.f32 %v6481, %v6493
        %v6495 = vpop.f32.mrf.mxu0
        %6496 = vdwg.mxu0
        %6497 = vmatpush.bf16.msra.mxu0 %v4760
        %6498 = vmatpush.bf16.msra.mxu0 %v4752
        %6499 = vmatpush.bf16.msra.mxu0 %v4744
        %6500 = vmatpush.bf16.msra.mxu0 %v4736
        %6501 = vmatpush.bf16.msra.mxu0 %v4728
        %6502 = vmatpush.bf16.msra.mxu0 %v4720
        %6503 = vmatpush.bf16.msra.mxu0 %v4712
        %6504 = vmatpush.bf16.msra.mxu0 %v4704
        %6505 = vmatmul.bf16.gmra.mxu0 %v1283
        %v6506 = vpop.f32.mrf.mxu0
        %v6507 = vadd.f32 %v6494, %v6506
        %v6508 = vpop.f32.mrf.mxu0
        %6509 = vdwg.mxu0
        %6510 = vmatpush.bf16.msra.mxu0 %v4824
        %6511 = vmatpush.bf16.msra.mxu0 %v4816
        %6512 = vmatpush.bf16.msra.mxu0 %v4808
        %6513 = vmatpush.bf16.msra.mxu0 %v4800
        %6514 = vmatpush.bf16.msra.mxu0 %v4792
        %6515 = vmatpush.bf16.msra.mxu0 %v4784
        %6516 = vmatpush.bf16.msra.mxu0 %v4776
        %6517 = vmatpush.bf16.msra.mxu0 %v4768
        %6518 = vmatmul.bf16.gmra.mxu0 %v1284
        %v6519 = vpop.f32.mrf.mxu0
        %v6520 = vadd.f32 %v6507, %v6519
        %v6521 = vpop.f32.mrf.mxu0
        %6522 = vdwg.mxu0
        %6523 = vmatpush.bf16.msra.mxu0 %v4888
        %6524 = vmatpush.bf16.msra.mxu0 %v4880
        %6525 = vmatpush.bf16.msra.mxu0 %v4872
        %6526 = vmatpush.bf16.msra.mxu0 %v4864
        %6527 = vmatpush.bf16.msra.mxu0 %v4856
        %6528 = vmatpush.bf16.msra.mxu0 %v4848
        %6529 = vmatpush.bf16.msra.mxu0 %v4840
        %6530 = vmatpush.bf16.msra.mxu0 %v4832
        %6531 = vmatmul.bf16.gmra.mxu0 %v1285
        %v6532 = vpop.f32.mrf.mxu0
        %v6533 = vadd.f32 %v6520, %v6532
        %v6534 = vpop.f32.mrf.mxu0
        %6535 = vdwg.mxu0
        %6536 = vmatpush.bf16.msra.mxu0 %v4952
        %6537 = vmatpush.bf16.msra.mxu0 %v4944
        %6538 = vmatpush.bf16.msra.mxu0 %v4936
        %6539 = vmatpush.bf16.msra.mxu0 %v4928
        %6540 = vmatpush.bf16.msra.mxu0 %v4920
        %6541 = vmatpush.bf16.msra.mxu0 %v4912
        %6542 = vmatpush.bf16.msra.mxu0 %v4904
        %6543 = vmatpush.bf16.msra.mxu0 %v4896
        %6544 = vmatmul.bf16.gmra.mxu0 %v1288
        %v6545 = vpop.f32.mrf.mxu0
        %v6546 = vadd.f32 %v6533, %v6545
        %v6547 = vpop.f32.mrf.mxu0
        %6548 = vdwg.mxu0
        %6549 = vmatpush.bf16.msra.mxu0 %v5016
        %6550 = vmatpush.bf16.msra.mxu0 %v5008
        %6551 = vmatpush.bf16.msra.mxu0 %v5000
        %6552 = vmatpush.bf16.msra.mxu0 %v4992
        %6553 = vmatpush.bf16.msra.mxu0 %v4984
        %6554 = vmatpush.bf16.msra.mxu0 %v4976
        %6555 = vmatpush.bf16.msra.mxu0 %v4968
        %6556 = vmatpush.bf16.msra.mxu0 %v4960
        %6557 = vmatmul.bf16.gmra.mxu0 %v1289
        %v6558 = vpop.f32.mrf.mxu0
        %v6559 = vadd.f32 %v6546, %v6558
        %v6560 = vpop.f32.mrf.mxu0
        %6561 = vdwg.mxu0
        %6562 = vmatpush.bf16.msra.mxu0 %v5080
        %6563 = vmatpush.bf16.msra.mxu0 %v5072
        %6564 = vmatpush.bf16.msra.mxu0 %v5064
        %6565 = vmatpush.bf16.msra.mxu0 %v5056
        %6566 = vmatpush.bf16.msra.mxu0 %v5048
        %6567 = vmatpush.bf16.msra.mxu0 %v5040
        %6568 = vmatpush.bf16.msra.mxu0 %v5032
        %6569 = vmatpush.bf16.msra.mxu0 %v5024
        %6570 = vmatmul.bf16.gmra.mxu0 %v1290
        %v6571 = vpop.f32.mrf.mxu0
        %v6572 = vadd.f32 %v6559, %v6571
        %v6573 = vpop.f32.mrf.mxu0
        %6574 = vdwg.mxu0
        %6575 = vmatpush.bf16.msra.mxu0 %v5144
        %6576 = vmatpush.bf16.msra.mxu0 %v5136
        %6577 = vmatpush.bf16.msra.mxu0 %v5128
        %6578 = vmatpush.bf16.msra.mxu0 %v5120
        %6579 = vmatpush.bf16.msra.mxu0 %v5112
        %6580 = vmatpush.bf16.msra.mxu0 %v5104
        %6581 = vmatpush.bf16.msra.mxu0 %v5096
        %6582 = vmatpush.bf16.msra.mxu0 %v5088
        %6583 = vmatmul.bf16.gmra.mxu0 %v1291
        %v6584 = vpop.f32.mrf.mxu0
        %v6585 = vadd.f32 %v6572, %v6584
        %v6586 = vpop.f32.mrf.mxu0
        %6587 = vdwg.mxu0
        %6588 = vmatpush.bf16.msra.mxu0 %v5208
        %6589 = vmatpush.bf16.msra.mxu0 %v5200
        %6590 = vmatpush.bf16.msra.mxu0 %v5192
        %6591 = vmatpush.bf16.msra.mxu0 %v5184
        %6592 = vmatpush.bf16.msra.mxu0 %v5176
        %6593 = vmatpush.bf16.msra.mxu0 %v5168
        %6594 = vmatpush.bf16.msra.mxu0 %v5160
        %6595 = vmatpush.bf16.msra.mxu0 %v5152
        %6596 = vmatmul.bf16.gmra.mxu0 %v1292
        %v6597 = vpop.f32.mrf.mxu0
        %v6598 = vadd.f32 %v6585, %v6597
        %v6599 = vpop.f32.mrf.mxu0
        %6600 = vdwg.mxu0
        %6601 = vmatpush.bf16.msra.mxu0 %v5272
        %6602 = vmatpush.bf16.msra.mxu0 %v5264
        %6603 = vmatpush.bf16.msra.mxu0 %v5256
        %6604 = vmatpush.bf16.msra.mxu0 %v5248
        %6605 = vmatpush.bf16.msra.mxu0 %v5240
        %6606 = vmatpush.bf16.msra.mxu0 %v5232
        %6607 = vmatpush.bf16.msra.mxu0 %v5224
        %6608 = vmatpush.bf16.msra.mxu0 %v5216
        %6609 = vmatmul.bf16.gmra.mxu0 %v1293
        %v6610 = vpop.f32.mrf.mxu0
        %v6611 = vadd.f32 %v6598, %v6610
        %v6612 = vpop.f32.mrf.mxu0
        %6613 = vdwg.mxu0
        %6614 = vmatpush.bf16.msra.mxu0 %v5336
        %6615 = vmatpush.bf16.msra.mxu0 %v5328
        %6616 = vmatpush.bf16.msra.mxu0 %v5320
        %6617 = vmatpush.bf16.msra.mxu0 %v5312
        %6618 = vmatpush.bf16.msra.mxu0 %v5304
        %6619 = vmatpush.bf16.msra.mxu0 %v5296
        %6620 = vmatpush.bf16.msra.mxu0 %v5288
        %6621 = vmatpush.bf16.msra.mxu0 %v5280
        %6622 = vmatmul.bf16.gmra.mxu0 %v1294
        %v6623 = vpop.f32.mrf.mxu0
        %v6624 = vadd.f32 %v6611, %v6623
        %v6625 = vpop.f32.mrf.mxu0
        %6626 = vdwg.mxu0
        %6627 = vmatpush.bf16.msra.mxu0 %v5400
        %6628 = vmatpush.bf16.msra.mxu0 %v5392
        %6629 = vmatpush.bf16.msra.mxu0 %v5384
        %6630 = vmatpush.bf16.msra.mxu0 %v5376
        %6631 = vmatpush.bf16.msra.mxu0 %v5368
        %6632 = vmatpush.bf16.msra.mxu0 %v5360
        %6633 = vmatpush.bf16.msra.mxu0 %v5352
        %6634 = vmatpush.bf16.msra.mxu0 %v5344
        %6635 = vmatmul.bf16.gmra.mxu0 %v1295
        %v6636 = vpop.f32.mrf.mxu0
        %v6637 = vadd.f32 %v6624, %v6636
        %v6638 = vpop.f32.mrf.mxu0
        %6639 = vdwg.mxu0
        %6640 = vmatpush.bf16.msra.mxu0 %v4441
        %6641 = vmatpush.bf16.msra.mxu0 %v4433
        %6642 = vmatpush.bf16.msra.mxu0 %v4425
        %6643 = vmatpush.bf16.msra.mxu0 %v4417
        %6644 = vmatpush.bf16.msra.mxu0 %v4409
        %6645 = vmatpush.bf16.msra.mxu0 %v4401
        %6646 = vmatpush.bf16.msra.mxu0 %v4393
        %6647 = vmatpush.bf16.msra.mxu0 %v4385
        %6648 = vmatmul.bf16.gmra.mxu0 %v1278
        %v6649 = vpop.f32.mrf.mxu0
        %v6650 = vadd.f32 0.0, %v6649
        %v6651 = vpop.f32.mrf.mxu0
        %6652 = vdwg.mxu0
        %6653 = vmatpush.bf16.msra.mxu0 %v4505
        %6654 = vmatpush.bf16.msra.mxu0 %v4497
        %6655 = vmatpush.bf16.msra.mxu0 %v4489
        %6656 = vmatpush.bf16.msra.mxu0 %v4481
        %6657 = vmatpush.bf16.msra.mxu0 %v4473
        %6658 = vmatpush.bf16.msra.mxu0 %v4465
        %6659 = vmatpush.bf16.msra.mxu0 %v4457
        %6660 = vmatpush.bf16.msra.mxu0 %v4449
        %6661 = vmatmul.bf16.gmra.mxu0 %v1279
        %v6662 = vpop.f32.mrf.mxu0
        %v6663 = vadd.f32 %v6650, %v6662
        %v6664 = vpop.f32.mrf.mxu0
        %6665 = vdwg.mxu0
        %6666 = vmatpush.bf16.msra.mxu0 %v4569
        %6667 = vmatpush.bf16.msra.mxu0 %v4561
        %6668 = vmatpush.bf16.msra.mxu0 %v4553
        %6669 = vmatpush.bf16.msra.mxu0 %v4545
        %6670 = vmatpush.bf16.msra.mxu0 %v4537
        %6671 = vmatpush.bf16.msra.mxu0 %v4529
        %6672 = vmatpush.bf16.msra.mxu0 %v4521
        %6673 = vmatpush.bf16.msra.mxu0 %v4513
        %6674 = vmatmul.bf16.gmra.mxu0 %v1280
        %v6675 = vpop.f32.mrf.mxu0
        %v6676 = vadd.f32 %v6663, %v6675
        %v6677 = vpop.f32.mrf.mxu0
        %6678 = vdwg.mxu0
        %6679 = vmatpush.bf16.msra.mxu0 %v4633
        %6680 = vmatpush.bf16.msra.mxu0 %v4625
        %6681 = vmatpush.bf16.msra.mxu0 %v4617
        %6682 = vmatpush.bf16.msra.mxu0 %v4609
        %6683 = vmatpush.bf16.msra.mxu0 %v4601
        %6684 = vmatpush.bf16.msra.mxu0 %v4593
        %6685 = vmatpush.bf16.msra.mxu0 %v4585
        %6686 = vmatpush.bf16.msra.mxu0 %v4577
        %6687 = vmatmul.bf16.gmra.mxu0 %v1281
        %v6688 = vpop.f32.mrf.mxu0
        %v6689 = vadd.f32 %v6676, %v6688
        %v6690 = vpop.f32.mrf.mxu0
        %6691 = vdwg.mxu0
        %6692 = vmatpush.bf16.msra.mxu0 %v4697
        %6693 = vmatpush.bf16.msra.mxu0 %v4689
        %6694 = vmatpush.bf16.msra.mxu0 %v4681
        %6695 = vmatpush.bf16.msra.mxu0 %v4673
        %6696 = vmatpush.bf16.msra.mxu0 %v4665
        %6697 = vmatpush.bf16.msra.mxu0 %v4657
        %6698 = vmatpush.bf16.msra.mxu0 %v4649
        %6699 = vmatpush.bf16.msra.mxu0 %v4641
        %6700 = vmatmul.bf16.gmra.mxu0 %v1282
        %v6701 = vpop.f32.mrf.mxu0
        %v6702 = vadd.f32 %v6689, %v6701
        %v6703 = vpop.f32.mrf.mxu0
        %6704 = vdwg.mxu0
        %6705 = vmatpush.bf16.msra.mxu0 %v4761
        %6706 = vmatpush.bf16.msra.mxu0 %v4753
        %6707 = vmatpush.bf16.msra.mxu0 %v4745
        %6708 = vmatpush.bf16.msra.mxu0 %v4737
        %6709 = vmatpush.bf16.msra.mxu0 %v4729
        %6710 = vmatpush.bf16.msra.mxu0 %v4721
        %6711 = vmatpush.bf16.msra.mxu0 %v4713
        %6712 = vmatpush.bf16.msra.mxu0 %v4705
        %6713 = vmatmul.bf16.gmra.mxu0 %v1283
        %v6714 = vpop.f32.mrf.mxu0
        %v6715 = vadd.f32 %v6702, %v6714
        %v6716 = vpop.f32.mrf.mxu0
        %6717 = vdwg.mxu0
        %6718 = vmatpush.bf16.msra.mxu0 %v4825
        %6719 = vmatpush.bf16.msra.mxu0 %v4817
        %6720 = vmatpush.bf16.msra.mxu0 %v4809
        %6721 = vmatpush.bf16.msra.mxu0 %v4801
        %6722 = vmatpush.bf16.msra.mxu0 %v4793
        %6723 = vmatpush.bf16.msra.mxu0 %v4785
        %6724 = vmatpush.bf16.msra.mxu0 %v4777
        %6725 = vmatpush.bf16.msra.mxu0 %v4769
        %6726 = vmatmul.bf16.gmra.mxu0 %v1284
        %v6727 = vpop.f32.mrf.mxu0
        %v6728 = vadd.f32 %v6715, %v6727
        %v6729 = vpop.f32.mrf.mxu0
        %6730 = vdwg.mxu0
        %6731 = vmatpush.bf16.msra.mxu0 %v4889
        %6732 = vmatpush.bf16.msra.mxu0 %v4881
        %6733 = vmatpush.bf16.msra.mxu0 %v4873
        %6734 = vmatpush.bf16.msra.mxu0 %v4865
        %6735 = vmatpush.bf16.msra.mxu0 %v4857
        %6736 = vmatpush.bf16.msra.mxu0 %v4849
        %6737 = vmatpush.bf16.msra.mxu0 %v4841
        %6738 = vmatpush.bf16.msra.mxu0 %v4833
        %6739 = vmatmul.bf16.gmra.mxu0 %v1285
        %v6740 = vpop.f32.mrf.mxu0
        %v6741 = vadd.f32 %v6728, %v6740
        %v6742 = vpop.f32.mrf.mxu0
        %6743 = vdwg.mxu0
        %6744 = vmatpush.bf16.msra.mxu0 %v4953
        %6745 = vmatpush.bf16.msra.mxu0 %v4945
        %6746 = vmatpush.bf16.msra.mxu0 %v4937
        %6747 = vmatpush.bf16.msra.mxu0 %v4929
        %6748 = vmatpush.bf16.msra.mxu0 %v4921
        %6749 = vmatpush.bf16.msra.mxu0 %v4913
        %6750 = vmatpush.bf16.msra.mxu0 %v4905
        %6751 = vmatpush.bf16.msra.mxu0 %v4897
        %6752 = vmatmul.bf16.gmra.mxu0 %v1288
        %v6753 = vpop.f32.mrf.mxu0
        %v6754 = vadd.f32 %v6741, %v6753
        %v6755 = vpop.f32.mrf.mxu0
        %6756 = vdwg.mxu0
        %6757 = vmatpush.bf16.msra.mxu0 %v5017
        %6758 = vmatpush.bf16.msra.mxu0 %v5009
        %6759 = vmatpush.bf16.msra.mxu0 %v5001
        %6760 = vmatpush.bf16.msra.mxu0 %v4993
        %6761 = vmatpush.bf16.msra.mxu0 %v4985
        %6762 = vmatpush.bf16.msra.mxu0 %v4977
        %6763 = vmatpush.bf16.msra.mxu0 %v4969
        %6764 = vmatpush.bf16.msra.mxu0 %v4961
        %6765 = vmatmul.bf16.gmra.mxu0 %v1289
        %v6766 = vpop.f32.mrf.mxu0
        %v6767 = vadd.f32 %v6754, %v6766
        %v6768 = vpop.f32.mrf.mxu0
        %6769 = vdwg.mxu0
        %6770 = vmatpush.bf16.msra.mxu0 %v5081
        %6771 = vmatpush.bf16.msra.mxu0 %v5073
        %6772 = vmatpush.bf16.msra.mxu0 %v5065
        %6773 = vmatpush.bf16.msra.mxu0 %v5057
        %6774 = vmatpush.bf16.msra.mxu0 %v5049
        %6775 = vmatpush.bf16.msra.mxu0 %v5041
        %6776 = vmatpush.bf16.msra.mxu0 %v5033
        %6777 = vmatpush.bf16.msra.mxu0 %v5025
        %6778 = vmatmul.bf16.gmra.mxu0 %v1290
        %v6779 = vpop.f32.mrf.mxu0
        %v6780 = vadd.f32 %v6767, %v6779
        %v6781 = vpop.f32.mrf.mxu0
        %6782 = vdwg.mxu0
        %6783 = vmatpush.bf16.msra.mxu0 %v5145
        %6784 = vmatpush.bf16.msra.mxu0 %v5137
        %6785 = vmatpush.bf16.msra.mxu0 %v5129
        %6786 = vmatpush.bf16.msra.mxu0 %v5121
        %6787 = vmatpush.bf16.msra.mxu0 %v5113
        %6788 = vmatpush.bf16.msra.mxu0 %v5105
        %6789 = vmatpush.bf16.msra.mxu0 %v5097
        %6790 = vmatpush.bf16.msra.mxu0 %v5089
        %6791 = vmatmul.bf16.gmra.mxu0 %v1291
        %v6792 = vpop.f32.mrf.mxu0
        %v6793 = vadd.f32 %v6780, %v6792
        %v6794 = vpop.f32.mrf.mxu0
        %6795 = vdwg.mxu0
        %6796 = vmatpush.bf16.msra.mxu0 %v5209
        %6797 = vmatpush.bf16.msra.mxu0 %v5201
        %6798 = vmatpush.bf16.msra.mxu0 %v5193
        %6799 = vmatpush.bf16.msra.mxu0 %v5185
        %6800 = vmatpush.bf16.msra.mxu0 %v5177
        %6801 = vmatpush.bf16.msra.mxu0 %v5169
        %6802 = vmatpush.bf16.msra.mxu0 %v5161
        %6803 = vmatpush.bf16.msra.mxu0 %v5153
        %6804 = vmatmul.bf16.gmra.mxu0 %v1292
        %v6805 = vpop.f32.mrf.mxu0
        %v6806 = vadd.f32 %v6793, %v6805
        %v6807 = vpop.f32.mrf.mxu0
        %6808 = vdwg.mxu0
        %6809 = vmatpush.bf16.msra.mxu0 %v5273
        %6810 = vmatpush.bf16.msra.mxu0 %v5265
        %6811 = vmatpush.bf16.msra.mxu0 %v5257
        %6812 = vmatpush.bf16.msra.mxu0 %v5249
        %6813 = vmatpush.bf16.msra.mxu0 %v5241
        %6814 = vmatpush.bf16.msra.mxu0 %v5233
        %6815 = vmatpush.bf16.msra.mxu0 %v5225
        %6816 = vmatpush.bf16.msra.mxu0 %v5217
        %6817 = vmatmul.bf16.gmra.mxu0 %v1293
        %v6818 = vpop.f32.mrf.mxu0
        %v6819 = vadd.f32 %v6806, %v6818
        %v6820 = vpop.f32.mrf.mxu0
        %6821 = vdwg.mxu0
        %6822 = vmatpush.bf16.msra.mxu0 %v5337
        %6823 = vmatpush.bf16.msra.mxu0 %v5329
        %6824 = vmatpush.bf16.msra.mxu0 %v5321
        %6825 = vmatpush.bf16.msra.mxu0 %v5313
        %6826 = vmatpush.bf16.msra.mxu0 %v5305
        %6827 = vmatpush.bf16.msra.mxu0 %v5297
        %6828 = vmatpush.bf16.msra.mxu0 %v5289
        %6829 = vmatpush.bf16.msra.mxu0 %v5281
        %6830 = vmatmul.bf16.gmra.mxu0 %v1294
        %v6831 = vpop.f32.mrf.mxu0
        %v6832 = vadd.f32 %v6819, %v6831
        %v6833 = vpop.f32.mrf.mxu0
        %6834 = vdwg.mxu0
        %6835 = vmatpush.bf16.msra.mxu0 %v5401
        %6836 = vmatpush.bf16.msra.mxu0 %v5393
        %6837 = vmatpush.bf16.msra.mxu0 %v5385
        %6838 = vmatpush.bf16.msra.mxu0 %v5377
        %6839 = vmatpush.bf16.msra.mxu0 %v5369
        %6840 = vmatpush.bf16.msra.mxu0 %v5361
        %6841 = vmatpush.bf16.msra.mxu0 %v5353
        %6842 = vmatpush.bf16.msra.mxu0 %v5345
        %6843 = vmatmul.bf16.gmra.mxu0 %v1295
        %v6844 = vpop.f32.mrf.mxu0
        %v6845 = vadd.f32 %v6832, %v6844
        %v6846 = vpop.f32.mrf.mxu0
        %6847 = vdwg.mxu0
        %6848 = vmatpush.bf16.msra.mxu0 %v4442
        %6849 = vmatpush.bf16.msra.mxu0 %v4434
        %6850 = vmatpush.bf16.msra.mxu0 %v4426
        %6851 = vmatpush.bf16.msra.mxu0 %v4418
        %6852 = vmatpush.bf16.msra.mxu0 %v4410
        %6853 = vmatpush.bf16.msra.mxu0 %v4402
        %6854 = vmatpush.bf16.msra.mxu0 %v4394
        %6855 = vmatpush.bf16.msra.mxu0 %v4386
        %6856 = vmatmul.bf16.gmra.mxu0 %v1278
        %v6857 = vpop.f32.mrf.mxu0
        %v6858 = vadd.f32 0.0, %v6857
        %v6859 = vpop.f32.mrf.mxu0
        %6860 = vdwg.mxu0
        %6861 = vmatpush.bf16.msra.mxu0 %v4506
        %6862 = vmatpush.bf16.msra.mxu0 %v4498
        %6863 = vmatpush.bf16.msra.mxu0 %v4490
        %6864 = vmatpush.bf16.msra.mxu0 %v4482
        %6865 = vmatpush.bf16.msra.mxu0 %v4474
        %6866 = vmatpush.bf16.msra.mxu0 %v4466
        %6867 = vmatpush.bf16.msra.mxu0 %v4458
        %6868 = vmatpush.bf16.msra.mxu0 %v4450
        %6869 = vmatmul.bf16.gmra.mxu0 %v1279
        %v6870 = vpop.f32.mrf.mxu0
        %v6871 = vadd.f32 %v6858, %v6870
        %v6872 = vpop.f32.mrf.mxu0
        %6873 = vdwg.mxu0
        %6874 = vmatpush.bf16.msra.mxu0 %v4570
        %6875 = vmatpush.bf16.msra.mxu0 %v4562
        %6876 = vmatpush.bf16.msra.mxu0 %v4554
        %6877 = vmatpush.bf16.msra.mxu0 %v4546
        %6878 = vmatpush.bf16.msra.mxu0 %v4538
        %6879 = vmatpush.bf16.msra.mxu0 %v4530
        %6880 = vmatpush.bf16.msra.mxu0 %v4522
        %6881 = vmatpush.bf16.msra.mxu0 %v4514
        %6882 = vmatmul.bf16.gmra.mxu0 %v1280
        %v6883 = vpop.f32.mrf.mxu0
        %v6884 = vadd.f32 %v6871, %v6883
        %v6885 = vpop.f32.mrf.mxu0
        %6886 = vdwg.mxu0
        %6887 = vmatpush.bf16.msra.mxu0 %v4634
        %6888 = vmatpush.bf16.msra.mxu0 %v4626
        %6889 = vmatpush.bf16.msra.mxu0 %v4618
        %6890 = vmatpush.bf16.msra.mxu0 %v4610
        %6891 = vmatpush.bf16.msra.mxu0 %v4602
        %6892 = vmatpush.bf16.msra.mxu0 %v4594
        %6893 = vmatpush.bf16.msra.mxu0 %v4586
        %6894 = vmatpush.bf16.msra.mxu0 %v4578
        %6895 = vmatmul.bf16.gmra.mxu0 %v1281
        %v6896 = vpop.f32.mrf.mxu0
        %v6897 = vadd.f32 %v6884, %v6896
        %v6898 = vpop.f32.mrf.mxu0
        %6899 = vdwg.mxu0
        %6900 = vmatpush.bf16.msra.mxu0 %v4698
        %6901 = vmatpush.bf16.msra.mxu0 %v4690
        %6902 = vmatpush.bf16.msra.mxu0 %v4682
        %6903 = vmatpush.bf16.msra.mxu0 %v4674
        %6904 = vmatpush.bf16.msra.mxu0 %v4666
        %6905 = vmatpush.bf16.msra.mxu0 %v4658
        %6906 = vmatpush.bf16.msra.mxu0 %v4650
        %6907 = vmatpush.bf16.msra.mxu0 %v4642
        %6908 = vmatmul.bf16.gmra.mxu0 %v1282
        %v6909 = vpop.f32.mrf.mxu0
        %v6910 = vadd.f32 %v6897, %v6909
        %v6911 = vpop.f32.mrf.mxu0
        %6912 = vdwg.mxu0
        %6913 = vmatpush.bf16.msra.mxu0 %v4762
        %6914 = vmatpush.bf16.msra.mxu0 %v4754
        %6915 = vmatpush.bf16.msra.mxu0 %v4746
        %6916 = vmatpush.bf16.msra.mxu0 %v4738
        %6917 = vmatpush.bf16.msra.mxu0 %v4730
        %6918 = vmatpush.bf16.msra.mxu0 %v4722
        %6919 = vmatpush.bf16.msra.mxu0 %v4714
        %6920 = vmatpush.bf16.msra.mxu0 %v4706
        %6921 = vmatmul.bf16.gmra.mxu0 %v1283
        %v6922 = vpop.f32.mrf.mxu0
        %v6923 = vadd.f32 %v6910, %v6922
        %v6924 = vpop.f32.mrf.mxu0
        %6925 = vdwg.mxu0
        %6926 = vmatpush.bf16.msra.mxu0 %v4826
        %6927 = vmatpush.bf16.msra.mxu0 %v4818
        %6928 = vmatpush.bf16.msra.mxu0 %v4810
        %6929 = vmatpush.bf16.msra.mxu0 %v4802
        %6930 = vmatpush.bf16.msra.mxu0 %v4794
        %6931 = vmatpush.bf16.msra.mxu0 %v4786
        %6932 = vmatpush.bf16.msra.mxu0 %v4778
        %6933 = vmatpush.bf16.msra.mxu0 %v4770
        %6934 = vmatmul.bf16.gmra.mxu0 %v1284
        %v6935 = vpop.f32.mrf.mxu0
        %v6936 = vadd.f32 %v6923, %v6935
        %v6937 = vpop.f32.mrf.mxu0
        %6938 = vdwg.mxu0
        %6939 = vmatpush.bf16.msra.mxu0 %v4890
        %6940 = vmatpush.bf16.msra.mxu0 %v4882
        %6941 = vmatpush.bf16.msra.mxu0 %v4874
        %6942 = vmatpush.bf16.msra.mxu0 %v4866
        %6943 = vmatpush.bf16.msra.mxu0 %v4858
        %6944 = vmatpush.bf16.msra.mxu0 %v4850
        %6945 = vmatpush.bf16.msra.mxu0 %v4842
        %6946 = vmatpush.bf16.msra.mxu0 %v4834
        %6947 = vmatmul.bf16.gmra.mxu0 %v1285
        %v6948 = vpop.f32.mrf.mxu0
        %v6949 = vadd.f32 %v6936, %v6948
        %v6950 = vpop.f32.mrf.mxu0
        %6951 = vdwg.mxu0
        %6952 = vmatpush.bf16.msra.mxu0 %v4954
        %6953 = vmatpush.bf16.msra.mxu0 %v4946
        %6954 = vmatpush.bf16.msra.mxu0 %v4938
        %6955 = vmatpush.bf16.msra.mxu0 %v4930
        %6956 = vmatpush.bf16.msra.mxu0 %v4922
        %6957 = vmatpush.bf16.msra.mxu0 %v4914
        %6958 = vmatpush.bf16.msra.mxu0 %v4906
        %6959 = vmatpush.bf16.msra.mxu0 %v4898
        %6960 = vmatmul.bf16.gmra.mxu0 %v1288
        %v6961 = vpop.f32.mrf.mxu0
        %v6962 = vadd.f32 %v6949, %v6961
        %v6963 = vpop.f32.mrf.mxu0
        %6964 = vdwg.mxu0
        %6965 = vmatpush.bf16.msra.mxu0 %v5018
        %6966 = vmatpush.bf16.msra.mxu0 %v5010
        %6967 = vmatpush.bf16.msra.mxu0 %v5002
        %6968 = vmatpush.bf16.msra.mxu0 %v4994
        %6969 = vmatpush.bf16.msra.mxu0 %v4986
        %6970 = vmatpush.bf16.msra.mxu0 %v4978
        %6971 = vmatpush.bf16.msra.mxu0 %v4970
        %6972 = vmatpush.bf16.msra.mxu0 %v4962
        %6973 = vmatmul.bf16.gmra.mxu0 %v1289
        %v6974 = vpop.f32.mrf.mxu0
        %v6975 = vadd.f32 %v6962, %v6974
        %v6976 = vpop.f32.mrf.mxu0
        %6977 = vdwg.mxu0
        %6978 = vmatpush.bf16.msra.mxu0 %v5082
        %6979 = vmatpush.bf16.msra.mxu0 %v5074
        %6980 = vmatpush.bf16.msra.mxu0 %v5066
        %6981 = vmatpush.bf16.msra.mxu0 %v5058
        %6982 = vmatpush.bf16.msra.mxu0 %v5050
        %6983 = vmatpush.bf16.msra.mxu0 %v5042
        %6984 = vmatpush.bf16.msra.mxu0 %v5034
        %6985 = vmatpush.bf16.msra.mxu0 %v5026
        %6986 = vmatmul.bf16.gmra.mxu0 %v1290
        %v6987 = vpop.f32.mrf.mxu0
        %v6988 = vadd.f32 %v6975, %v6987
        %v6989 = vpop.f32.mrf.mxu0
        %6990 = vdwg.mxu0
        %6991 = vmatpush.bf16.msra.mxu0 %v5146
        %6992 = vmatpush.bf16.msra.mxu0 %v5138
        %6993 = vmatpush.bf16.msra.mxu0 %v5130
        %6994 = vmatpush.bf16.msra.mxu0 %v5122
        %6995 = vmatpush.bf16.msra.mxu0 %v5114
        %6996 = vmatpush.bf16.msra.mxu0 %v5106
        %6997 = vmatpush.bf16.msra.mxu0 %v5098
        %6998 = vmatpush.bf16.msra.mxu0 %v5090
        %6999 = vmatmul.bf16.gmra.mxu0 %v1291
        %v7000 = vpop.f32.mrf.mxu0
        %v7001 = vadd.f32 %v6988, %v7000
        %v7002 = vpop.f32.mrf.mxu0
        %7003 = vdwg.mxu0
        %7004 = vmatpush.bf16.msra.mxu0 %v5210
        %7005 = vmatpush.bf16.msra.mxu0 %v5202
        %7006 = vmatpush.bf16.msra.mxu0 %v5194
        %7007 = vmatpush.bf16.msra.mxu0 %v5186
        %7008 = vmatpush.bf16.msra.mxu0 %v5178
        %7009 = vmatpush.bf16.msra.mxu0 %v5170
        %7010 = vmatpush.bf16.msra.mxu0 %v5162
        %7011 = vmatpush.bf16.msra.mxu0 %v5154
        %7012 = vmatmul.bf16.gmra.mxu0 %v1292
        %v7013 = vpop.f32.mrf.mxu0
        %v7014 = vadd.f32 %v7001, %v7013
        %v7015 = vpop.f32.mrf.mxu0
        %7016 = vdwg.mxu0
        %7017 = vmatpush.bf16.msra.mxu0 %v5274
        %7018 = vmatpush.bf16.msra.mxu0 %v5266
        %7019 = vmatpush.bf16.msra.mxu0 %v5258
        %7020 = vmatpush.bf16.msra.mxu0 %v5250
        %7021 = vmatpush.bf16.msra.mxu0 %v5242
        %7022 = vmatpush.bf16.msra.mxu0 %v5234
        %7023 = vmatpush.bf16.msra.mxu0 %v5226
        %7024 = vmatpush.bf16.msra.mxu0 %v5218
        %7025 = vmatmul.bf16.gmra.mxu0 %v1293
        %v7026 = vpop.f32.mrf.mxu0
        %v7027 = vadd.f32 %v7014, %v7026
        %v7028 = vpop.f32.mrf.mxu0
        %7029 = vdwg.mxu0
        %7030 = vmatpush.bf16.msra.mxu0 %v5338
        %7031 = vmatpush.bf16.msra.mxu0 %v5330
        %7032 = vmatpush.bf16.msra.mxu0 %v5322
        %7033 = vmatpush.bf16.msra.mxu0 %v5314
        %7034 = vmatpush.bf16.msra.mxu0 %v5306
        %7035 = vmatpush.bf16.msra.mxu0 %v5298
        %7036 = vmatpush.bf16.msra.mxu0 %v5290
        %7037 = vmatpush.bf16.msra.mxu0 %v5282
        %7038 = vmatmul.bf16.gmra.mxu0 %v1294
        %v7039 = vpop.f32.mrf.mxu0
        %v7040 = vadd.f32 %v7027, %v7039
        %v7041 = vpop.f32.mrf.mxu0
        %7042 = vdwg.mxu0
        %7043 = vmatpush.bf16.msra.mxu0 %v5402
        %7044 = vmatpush.bf16.msra.mxu0 %v5394
        %7045 = vmatpush.bf16.msra.mxu0 %v5386
        %7046 = vmatpush.bf16.msra.mxu0 %v5378
        %7047 = vmatpush.bf16.msra.mxu0 %v5370
        %7048 = vmatpush.bf16.msra.mxu0 %v5362
        %7049 = vmatpush.bf16.msra.mxu0 %v5354
        %7050 = vmatpush.bf16.msra.mxu0 %v5346
        %7051 = vmatmul.bf16.gmra.mxu0 %v1295
        %v7052 = vpop.f32.mrf.mxu0
        %v7053 = vadd.f32 %v7040, %v7052
        %v7054 = vpop.f32.mrf.mxu0
        %7055 = vdwg.mxu0
        %7056 = vmatpush.bf16.msra.mxu0 %v4443
        %7057 = vmatpush.bf16.msra.mxu0 %v4435
        %7058 = vmatpush.bf16.msra.mxu0 %v4427
        %7059 = vmatpush.bf16.msra.mxu0 %v4419
        %7060 = vmatpush.bf16.msra.mxu0 %v4411
        %7061 = vmatpush.bf16.msra.mxu0 %v4403
        %7062 = vmatpush.bf16.msra.mxu0 %v4395
        %7063 = vmatpush.bf16.msra.mxu0 %v4387
        %7064 = vmatmul.bf16.gmra.mxu0 %v1278
        %v7065 = vpop.f32.mrf.mxu0
        %v7066 = vadd.f32 0.0, %v7065
        %v7067 = vpop.f32.mrf.mxu0
        %7068 = vdwg.mxu0
        %7069 = vmatpush.bf16.msra.mxu0 %v4507
        %7070 = vmatpush.bf16.msra.mxu0 %v4499
        %7071 = vmatpush.bf16.msra.mxu0 %v4491
        %7072 = vmatpush.bf16.msra.mxu0 %v4483
        %7073 = vmatpush.bf16.msra.mxu0 %v4475
        %7074 = vmatpush.bf16.msra.mxu0 %v4467
        %7075 = vmatpush.bf16.msra.mxu0 %v4459
        %7076 = vmatpush.bf16.msra.mxu0 %v4451
        %7077 = vmatmul.bf16.gmra.mxu0 %v1279
        %v7078 = vpop.f32.mrf.mxu0
        %v7079 = vadd.f32 %v7066, %v7078
        %v7080 = vpop.f32.mrf.mxu0
        %7081 = vdwg.mxu0
        %7082 = vmatpush.bf16.msra.mxu0 %v4571
        %7083 = vmatpush.bf16.msra.mxu0 %v4563
        %7084 = vmatpush.bf16.msra.mxu0 %v4555
        %7085 = vmatpush.bf16.msra.mxu0 %v4547
        %7086 = vmatpush.bf16.msra.mxu0 %v4539
        %7087 = vmatpush.bf16.msra.mxu0 %v4531
        %7088 = vmatpush.bf16.msra.mxu0 %v4523
        %7089 = vmatpush.bf16.msra.mxu0 %v4515
        %7090 = vmatmul.bf16.gmra.mxu0 %v1280
        %v7091 = vpop.f32.mrf.mxu0
        %v7092 = vadd.f32 %v7079, %v7091
        %v7093 = vpop.f32.mrf.mxu0
        %7094 = vdwg.mxu0
        %7095 = vmatpush.bf16.msra.mxu0 %v4635
        %7096 = vmatpush.bf16.msra.mxu0 %v4627
        %7097 = vmatpush.bf16.msra.mxu0 %v4619
        %7098 = vmatpush.bf16.msra.mxu0 %v4611
        %7099 = vmatpush.bf16.msra.mxu0 %v4603
        %7100 = vmatpush.bf16.msra.mxu0 %v4595
        %7101 = vmatpush.bf16.msra.mxu0 %v4587
        %7102 = vmatpush.bf16.msra.mxu0 %v4579
        %7103 = vmatmul.bf16.gmra.mxu0 %v1281
        %v7104 = vpop.f32.mrf.mxu0
        %v7105 = vadd.f32 %v7092, %v7104
        %v7106 = vpop.f32.mrf.mxu0
        %7107 = vdwg.mxu0
        %7108 = vmatpush.bf16.msra.mxu0 %v4699
        %7109 = vmatpush.bf16.msra.mxu0 %v4691
        %7110 = vmatpush.bf16.msra.mxu0 %v4683
        %7111 = vmatpush.bf16.msra.mxu0 %v4675
        %7112 = vmatpush.bf16.msra.mxu0 %v4667
        %7113 = vmatpush.bf16.msra.mxu0 %v4659
        %7114 = vmatpush.bf16.msra.mxu0 %v4651
        %7115 = vmatpush.bf16.msra.mxu0 %v4643
        %7116 = vmatmul.bf16.gmra.mxu0 %v1282
        %v7117 = vpop.f32.mrf.mxu0
        %v7118 = vadd.f32 %v7105, %v7117
        %v7119 = vpop.f32.mrf.mxu0
        %7120 = vdwg.mxu0
        %7121 = vmatpush.bf16.msra.mxu0 %v4763
        %7122 = vmatpush.bf16.msra.mxu0 %v4755
        %7123 = vmatpush.bf16.msra.mxu0 %v4747
        %7124 = vmatpush.bf16.msra.mxu0 %v4739
        %7125 = vmatpush.bf16.msra.mxu0 %v4731
        %7126 = vmatpush.bf16.msra.mxu0 %v4723
        %7127 = vmatpush.bf16.msra.mxu0 %v4715
        %7128 = vmatpush.bf16.msra.mxu0 %v4707
        %7129 = vmatmul.bf16.gmra.mxu0 %v1283
        %v7130 = vpop.f32.mrf.mxu0
        %v7131 = vadd.f32 %v7118, %v7130
        %v7132 = vpop.f32.mrf.mxu0
        %7133 = vdwg.mxu0
        %7134 = vmatpush.bf16.msra.mxu0 %v4827
        %7135 = vmatpush.bf16.msra.mxu0 %v4819
        %7136 = vmatpush.bf16.msra.mxu0 %v4811
        %7137 = vmatpush.bf16.msra.mxu0 %v4803
        %7138 = vmatpush.bf16.msra.mxu0 %v4795
        %7139 = vmatpush.bf16.msra.mxu0 %v4787
        %7140 = vmatpush.bf16.msra.mxu0 %v4779
        %7141 = vmatpush.bf16.msra.mxu0 %v4771
        %7142 = vmatmul.bf16.gmra.mxu0 %v1284
        %v7143 = vpop.f32.mrf.mxu0
        %v7144 = vadd.f32 %v7131, %v7143
        %v7145 = vpop.f32.mrf.mxu0
        %7146 = vdwg.mxu0
        %7147 = vmatpush.bf16.msra.mxu0 %v4891
        %7148 = vmatpush.bf16.msra.mxu0 %v4883
        %7149 = vmatpush.bf16.msra.mxu0 %v4875
        %7150 = vmatpush.bf16.msra.mxu0 %v4867
        %7151 = vmatpush.bf16.msra.mxu0 %v4859
        %7152 = vmatpush.bf16.msra.mxu0 %v4851
        %7153 = vmatpush.bf16.msra.mxu0 %v4843
        %7154 = vmatpush.bf16.msra.mxu0 %v4835
        %7155 = vmatmul.bf16.gmra.mxu0 %v1285
        %v7156 = vpop.f32.mrf.mxu0
        %v7157 = vadd.f32 %v7144, %v7156
        %v7158 = vpop.f32.mrf.mxu0
        %7159 = vdwg.mxu0
        %7160 = vmatpush.bf16.msra.mxu0 %v4955
        %7161 = vmatpush.bf16.msra.mxu0 %v4947
        %7162 = vmatpush.bf16.msra.mxu0 %v4939
        %7163 = vmatpush.bf16.msra.mxu0 %v4931
        %7164 = vmatpush.bf16.msra.mxu0 %v4923
        %7165 = vmatpush.bf16.msra.mxu0 %v4915
        %7166 = vmatpush.bf16.msra.mxu0 %v4907
        %7167 = vmatpush.bf16.msra.mxu0 %v4899
        %7168 = vmatmul.bf16.gmra.mxu0 %v1288
        %v7169 = vpop.f32.mrf.mxu0
        %v7170 = vadd.f32 %v7157, %v7169
        %v7171 = vpop.f32.mrf.mxu0
        %7172 = vdwg.mxu0
        %7173 = vmatpush.bf16.msra.mxu0 %v5019
        %7174 = vmatpush.bf16.msra.mxu0 %v5011
        %7175 = vmatpush.bf16.msra.mxu0 %v5003
        %7176 = vmatpush.bf16.msra.mxu0 %v4995
        %7177 = vmatpush.bf16.msra.mxu0 %v4987
        %7178 = vmatpush.bf16.msra.mxu0 %v4979
        %7179 = vmatpush.bf16.msra.mxu0 %v4971
        %7180 = vmatpush.bf16.msra.mxu0 %v4963
        %7181 = vmatmul.bf16.gmra.mxu0 %v1289
        %v7182 = vpop.f32.mrf.mxu0
        %v7183 = vadd.f32 %v7170, %v7182
        %v7184 = vpop.f32.mrf.mxu0
        %7185 = vdwg.mxu0
        %7186 = vmatpush.bf16.msra.mxu0 %v5083
        %7187 = vmatpush.bf16.msra.mxu0 %v5075
        %7188 = vmatpush.bf16.msra.mxu0 %v5067
        %7189 = vmatpush.bf16.msra.mxu0 %v5059
        %7190 = vmatpush.bf16.msra.mxu0 %v5051
        %7191 = vmatpush.bf16.msra.mxu0 %v5043
        %7192 = vmatpush.bf16.msra.mxu0 %v5035
        %7193 = vmatpush.bf16.msra.mxu0 %v5027
        %7194 = vmatmul.bf16.gmra.mxu0 %v1290
        %v7195 = vpop.f32.mrf.mxu0
        %v7196 = vadd.f32 %v7183, %v7195
        %v7197 = vpop.f32.mrf.mxu0
        %7198 = vdwg.mxu0
        %7199 = vmatpush.bf16.msra.mxu0 %v5147
        %7200 = vmatpush.bf16.msra.mxu0 %v5139
        %7201 = vmatpush.bf16.msra.mxu0 %v5131
        %7202 = vmatpush.bf16.msra.mxu0 %v5123
        %7203 = vmatpush.bf16.msra.mxu0 %v5115
        %7204 = vmatpush.bf16.msra.mxu0 %v5107
        %7205 = vmatpush.bf16.msra.mxu0 %v5099
        %7206 = vmatpush.bf16.msra.mxu0 %v5091
        %7207 = vmatmul.bf16.gmra.mxu0 %v1291
        %v7208 = vpop.f32.mrf.mxu0
        %v7209 = vadd.f32 %v7196, %v7208
        %v7210 = vpop.f32.mrf.mxu0
        %7211 = vdwg.mxu0
        %7212 = vmatpush.bf16.msra.mxu0 %v5211
        %7213 = vmatpush.bf16.msra.mxu0 %v5203
        %7214 = vmatpush.bf16.msra.mxu0 %v5195
        %7215 = vmatpush.bf16.msra.mxu0 %v5187
        %7216 = vmatpush.bf16.msra.mxu0 %v5179
        %7217 = vmatpush.bf16.msra.mxu0 %v5171
        %7218 = vmatpush.bf16.msra.mxu0 %v5163
        %7219 = vmatpush.bf16.msra.mxu0 %v5155
        %7220 = vmatmul.bf16.gmra.mxu0 %v1292
        %v7221 = vpop.f32.mrf.mxu0
        %v7222 = vadd.f32 %v7209, %v7221
        %v7223 = vpop.f32.mrf.mxu0
        %7224 = vdwg.mxu0
        %7225 = vmatpush.bf16.msra.mxu0 %v5275
        %7226 = vmatpush.bf16.msra.mxu0 %v5267
        %7227 = vmatpush.bf16.msra.mxu0 %v5259
        %7228 = vmatpush.bf16.msra.mxu0 %v5251
        %7229 = vmatpush.bf16.msra.mxu0 %v5243
        %7230 = vmatpush.bf16.msra.mxu0 %v5235
        %7231 = vmatpush.bf16.msra.mxu0 %v5227
        %7232 = vmatpush.bf16.msra.mxu0 %v5219
        %7233 = vmatmul.bf16.gmra.mxu0 %v1293
        %v7234 = vpop.f32.mrf.mxu0
        %v7235 = vadd.f32 %v7222, %v7234
        %v7236 = vpop.f32.mrf.mxu0
        %7237 = vdwg.mxu0
        %7238 = vmatpush.bf16.msra.mxu0 %v5339
        %7239 = vmatpush.bf16.msra.mxu0 %v5331
        %7240 = vmatpush.bf16.msra.mxu0 %v5323
        %7241 = vmatpush.bf16.msra.mxu0 %v5315
        %7242 = vmatpush.bf16.msra.mxu0 %v5307
        %7243 = vmatpush.bf16.msra.mxu0 %v5299
        %7244 = vmatpush.bf16.msra.mxu0 %v5291
        %7245 = vmatpush.bf16.msra.mxu0 %v5283
        %7246 = vmatmul.bf16.gmra.mxu0 %v1294
        %v7247 = vpop.f32.mrf.mxu0
        %v7248 = vadd.f32 %v7235, %v7247
        %v7249 = vpop.f32.mrf.mxu0
        %7250 = vdwg.mxu0
        %7251 = vmatpush.bf16.msra.mxu0 %v5403
        %7252 = vmatpush.bf16.msra.mxu0 %v5395
        %7253 = vmatpush.bf16.msra.mxu0 %v5387
        %7254 = vmatpush.bf16.msra.mxu0 %v5379
        %7255 = vmatpush.bf16.msra.mxu0 %v5371
        %7256 = vmatpush.bf16.msra.mxu0 %v5363
        %7257 = vmatpush.bf16.msra.mxu0 %v5355
        %7258 = vmatpush.bf16.msra.mxu0 %v5347
        %7259 = vmatmul.bf16.gmra.mxu0 %v1295
        %v7260 = vpop.f32.mrf.mxu0
        %v7261 = vadd.f32 %v7248, %v7260
        %v7262 = vpop.f32.mrf.mxu0
        %7263 = vdwg.mxu0
        %7264 = vmatpush.bf16.msra.mxu0 %v4444
        %7265 = vmatpush.bf16.msra.mxu0 %v4436
        %7266 = vmatpush.bf16.msra.mxu0 %v4428
        %7267 = vmatpush.bf16.msra.mxu0 %v4420
        %7268 = vmatpush.bf16.msra.mxu0 %v4412
        %7269 = vmatpush.bf16.msra.mxu0 %v4404
        %7270 = vmatpush.bf16.msra.mxu0 %v4396
        %7271 = vmatpush.bf16.msra.mxu0 %v4388
        %7272 = vmatmul.bf16.gmra.mxu0 %v1278
        %v7273 = vpop.f32.mrf.mxu0
        %v7274 = vadd.f32 0.0, %v7273
        %v7275 = vpop.f32.mrf.mxu0
        %7276 = vdwg.mxu0
        %7277 = vmatpush.bf16.msra.mxu0 %v4508
        %7278 = vmatpush.bf16.msra.mxu0 %v4500
        %7279 = vmatpush.bf16.msra.mxu0 %v4492
        %7280 = vmatpush.bf16.msra.mxu0 %v4484
        %7281 = vmatpush.bf16.msra.mxu0 %v4476
        %7282 = vmatpush.bf16.msra.mxu0 %v4468
        %7283 = vmatpush.bf16.msra.mxu0 %v4460
        %7284 = vmatpush.bf16.msra.mxu0 %v4452
        %7285 = vmatmul.bf16.gmra.mxu0 %v1279
        %v7286 = vpop.f32.mrf.mxu0
        %v7287 = vadd.f32 %v7274, %v7286
        %v7288 = vpop.f32.mrf.mxu0
        %7289 = vdwg.mxu0
        %7290 = vmatpush.bf16.msra.mxu0 %v4572
        %7291 = vmatpush.bf16.msra.mxu0 %v4564
        %7292 = vmatpush.bf16.msra.mxu0 %v4556
        %7293 = vmatpush.bf16.msra.mxu0 %v4548
        %7294 = vmatpush.bf16.msra.mxu0 %v4540
        %7295 = vmatpush.bf16.msra.mxu0 %v4532
        %7296 = vmatpush.bf16.msra.mxu0 %v4524
        %7297 = vmatpush.bf16.msra.mxu0 %v4516
        %7298 = vmatmul.bf16.gmra.mxu0 %v1280
        %v7299 = vpop.f32.mrf.mxu0
        %v7300 = vadd.f32 %v7287, %v7299
        %v7301 = vpop.f32.mrf.mxu0
        %7302 = vdwg.mxu0
        %7303 = vmatpush.bf16.msra.mxu0 %v4636
        %7304 = vmatpush.bf16.msra.mxu0 %v4628
        %7305 = vmatpush.bf16.msra.mxu0 %v4620
        %7306 = vmatpush.bf16.msra.mxu0 %v4612
        %7307 = vmatpush.bf16.msra.mxu0 %v4604
        %7308 = vmatpush.bf16.msra.mxu0 %v4596
        %7309 = vmatpush.bf16.msra.mxu0 %v4588
        %7310 = vmatpush.bf16.msra.mxu0 %v4580
        %7311 = vmatmul.bf16.gmra.mxu0 %v1281
        %v7312 = vpop.f32.mrf.mxu0
        %v7313 = vadd.f32 %v7300, %v7312
        %v7314 = vpop.f32.mrf.mxu0
        %7315 = vdwg.mxu0
        %7316 = vmatpush.bf16.msra.mxu0 %v4700
        %7317 = vmatpush.bf16.msra.mxu0 %v4692
        %7318 = vmatpush.bf16.msra.mxu0 %v4684
        %7319 = vmatpush.bf16.msra.mxu0 %v4676
        %7320 = vmatpush.bf16.msra.mxu0 %v4668
        %7321 = vmatpush.bf16.msra.mxu0 %v4660
        %7322 = vmatpush.bf16.msra.mxu0 %v4652
        %7323 = vmatpush.bf16.msra.mxu0 %v4644
        %7324 = vmatmul.bf16.gmra.mxu0 %v1282
        %v7325 = vpop.f32.mrf.mxu0
        %v7326 = vadd.f32 %v7313, %v7325
        %v7327 = vpop.f32.mrf.mxu0
        %7328 = vdwg.mxu0
        %7329 = vmatpush.bf16.msra.mxu0 %v4764
        %7330 = vmatpush.bf16.msra.mxu0 %v4756
        %7331 = vmatpush.bf16.msra.mxu0 %v4748
        %7332 = vmatpush.bf16.msra.mxu0 %v4740
        %7333 = vmatpush.bf16.msra.mxu0 %v4732
        %7334 = vmatpush.bf16.msra.mxu0 %v4724
        %7335 = vmatpush.bf16.msra.mxu0 %v4716
        %7336 = vmatpush.bf16.msra.mxu0 %v4708
        %7337 = vmatmul.bf16.gmra.mxu0 %v1283
        %v7338 = vpop.f32.mrf.mxu0
        %v7339 = vadd.f32 %v7326, %v7338
        %v7340 = vpop.f32.mrf.mxu0
        %7341 = vdwg.mxu0
        %7342 = vmatpush.bf16.msra.mxu0 %v4828
        %7343 = vmatpush.bf16.msra.mxu0 %v4820
        %7344 = vmatpush.bf16.msra.mxu0 %v4812
        %7345 = vmatpush.bf16.msra.mxu0 %v4804
        %7346 = vmatpush.bf16.msra.mxu0 %v4796
        %7347 = vmatpush.bf16.msra.mxu0 %v4788
        %7348 = vmatpush.bf16.msra.mxu0 %v4780
        %7349 = vmatpush.bf16.msra.mxu0 %v4772
        %7350 = vmatmul.bf16.gmra.mxu0 %v1284
        %v7351 = vpop.f32.mrf.mxu0
        %v7352 = vadd.f32 %v7339, %v7351
        %v7353 = vpop.f32.mrf.mxu0
        %7354 = vdwg.mxu0
        %7355 = vmatpush.bf16.msra.mxu0 %v4892
        %7356 = vmatpush.bf16.msra.mxu0 %v4884
        %7357 = vmatpush.bf16.msra.mxu0 %v4876
        %7358 = vmatpush.bf16.msra.mxu0 %v4868
        %7359 = vmatpush.bf16.msra.mxu0 %v4860
        %7360 = vmatpush.bf16.msra.mxu0 %v4852
        %7361 = vmatpush.bf16.msra.mxu0 %v4844
        %7362 = vmatpush.bf16.msra.mxu0 %v4836
        %7363 = vmatmul.bf16.gmra.mxu0 %v1285
        %v7364 = vpop.f32.mrf.mxu0
        %v7365 = vadd.f32 %v7352, %v7364
        %v7366 = vpop.f32.mrf.mxu0
        %7367 = vdwg.mxu0
        %7368 = vmatpush.bf16.msra.mxu0 %v4956
        %7369 = vmatpush.bf16.msra.mxu0 %v4948
        %7370 = vmatpush.bf16.msra.mxu0 %v4940
        %7371 = vmatpush.bf16.msra.mxu0 %v4932
        %7372 = vmatpush.bf16.msra.mxu0 %v4924
        %7373 = vmatpush.bf16.msra.mxu0 %v4916
        %7374 = vmatpush.bf16.msra.mxu0 %v4908
        %7375 = vmatpush.bf16.msra.mxu0 %v4900
        %7376 = vmatmul.bf16.gmra.mxu0 %v1288
        %v7377 = vpop.f32.mrf.mxu0
        %v7378 = vadd.f32 %v7365, %v7377
        %v7379 = vpop.f32.mrf.mxu0
        %7380 = vdwg.mxu0
        %7381 = vmatpush.bf16.msra.mxu0 %v5020
        %7382 = vmatpush.bf16.msra.mxu0 %v5012
        %7383 = vmatpush.bf16.msra.mxu0 %v5004
        %7384 = vmatpush.bf16.msra.mxu0 %v4996
        %7385 = vmatpush.bf16.msra.mxu0 %v4988
        %7386 = vmatpush.bf16.msra.mxu0 %v4980
        %7387 = vmatpush.bf16.msra.mxu0 %v4972
        %7388 = vmatpush.bf16.msra.mxu0 %v4964
        %7389 = vmatmul.bf16.gmra.mxu0 %v1289
        %v7390 = vpop.f32.mrf.mxu0
        %v7391 = vadd.f32 %v7378, %v7390
        %v7392 = vpop.f32.mrf.mxu0
        %7393 = vdwg.mxu0
        %7394 = vmatpush.bf16.msra.mxu0 %v5084
        %7395 = vmatpush.bf16.msra.mxu0 %v5076
        %7396 = vmatpush.bf16.msra.mxu0 %v5068
        %7397 = vmatpush.bf16.msra.mxu0 %v5060
        %7398 = vmatpush.bf16.msra.mxu0 %v5052
        %7399 = vmatpush.bf16.msra.mxu0 %v5044
        %7400 = vmatpush.bf16.msra.mxu0 %v5036
        %7401 = vmatpush.bf16.msra.mxu0 %v5028
        %7402 = vmatmul.bf16.gmra.mxu0 %v1290
        %v7403 = vpop.f32.mrf.mxu0
        %v7404 = vadd.f32 %v7391, %v7403
        %v7405 = vpop.f32.mrf.mxu0
        %7406 = vdwg.mxu0
        %7407 = vmatpush.bf16.msra.mxu0 %v5148
        %7408 = vmatpush.bf16.msra.mxu0 %v5140
        %7409 = vmatpush.bf16.msra.mxu0 %v5132
        %7410 = vmatpush.bf16.msra.mxu0 %v5124
        %7411 = vmatpush.bf16.msra.mxu0 %v5116
        %7412 = vmatpush.bf16.msra.mxu0 %v5108
        %7413 = vmatpush.bf16.msra.mxu0 %v5100
        %7414 = vmatpush.bf16.msra.mxu0 %v5092
        %7415 = vmatmul.bf16.gmra.mxu0 %v1291
        %v7416 = vpop.f32.mrf.mxu0
        %v7417 = vadd.f32 %v7404, %v7416
        %v7418 = vpop.f32.mrf.mxu0
        %7419 = vdwg.mxu0
        %7420 = vmatpush.bf16.msra.mxu0 %v5212
        %7421 = vmatpush.bf16.msra.mxu0 %v5204
        %7422 = vmatpush.bf16.msra.mxu0 %v5196
        %7423 = vmatpush.bf16.msra.mxu0 %v5188
        %7424 = vmatpush.bf16.msra.mxu0 %v5180
        %7425 = vmatpush.bf16.msra.mxu0 %v5172
        %7426 = vmatpush.bf16.msra.mxu0 %v5164
        %7427 = vmatpush.bf16.msra.mxu0 %v5156
        %7428 = vmatmul.bf16.gmra.mxu0 %v1292
        %v7429 = vpop.f32.mrf.mxu0
        %v7430 = vadd.f32 %v7417, %v7429
        %v7431 = vpop.f32.mrf.mxu0
        %7432 = vdwg.mxu0
        %7433 = vmatpush.bf16.msra.mxu0 %v5276
        %7434 = vmatpush.bf16.msra.mxu0 %v5268
        %7435 = vmatpush.bf16.msra.mxu0 %v5260
        %7436 = vmatpush.bf16.msra.mxu0 %v5252
        %7437 = vmatpush.bf16.msra.mxu0 %v5244
        %7438 = vmatpush.bf16.msra.mxu0 %v5236
        %7439 = vmatpush.bf16.msra.mxu0 %v5228
        %7440 = vmatpush.bf16.msra.mxu0 %v5220
        %7441 = vmatmul.bf16.gmra.mxu0 %v1293
        %v7442 = vpop.f32.mrf.mxu0
        %v7443 = vadd.f32 %v7430, %v7442
        %v7444 = vpop.f32.mrf.mxu0
        %7445 = vdwg.mxu0
        %7446 = vmatpush.bf16.msra.mxu0 %v5340
        %7447 = vmatpush.bf16.msra.mxu0 %v5332
        %7448 = vmatpush.bf16.msra.mxu0 %v5324
        %7449 = vmatpush.bf16.msra.mxu0 %v5316
        %7450 = vmatpush.bf16.msra.mxu0 %v5308
        %7451 = vmatpush.bf16.msra.mxu0 %v5300
        %7452 = vmatpush.bf16.msra.mxu0 %v5292
        %7453 = vmatpush.bf16.msra.mxu0 %v5284
        %7454 = vmatmul.bf16.gmra.mxu0 %v1294
        %v7455 = vpop.f32.mrf.mxu0
        %v7456 = vadd.f32 %v7443, %v7455
        %v7457 = vpop.f32.mrf.mxu0
        %7458 = vdwg.mxu0
        %7459 = vmatpush.bf16.msra.mxu0 %v5404
        %7460 = vmatpush.bf16.msra.mxu0 %v5396
        %7461 = vmatpush.bf16.msra.mxu0 %v5388
        %7462 = vmatpush.bf16.msra.mxu0 %v5380
        %7463 = vmatpush.bf16.msra.mxu0 %v5372
        %7464 = vmatpush.bf16.msra.mxu0 %v5364
        %7465 = vmatpush.bf16.msra.mxu0 %v5356
        %7466 = vmatpush.bf16.msra.mxu0 %v5348
        %7467 = vmatmul.bf16.gmra.mxu0 %v1295
        %v7468 = vpop.f32.mrf.mxu0
        %v7469 = vadd.f32 %v7456, %v7468
        %v7470 = vpop.f32.mrf.mxu0
        %7471 = vdwg.mxu0
        %7472 = vmatpush.bf16.msra.mxu0 %v4445
        %7473 = vmatpush.bf16.msra.mxu0 %v4437
        %7474 = vmatpush.bf16.msra.mxu0 %v4429
        %7475 = vmatpush.bf16.msra.mxu0 %v4421
        %7476 = vmatpush.bf16.msra.mxu0 %v4413
        %7477 = vmatpush.bf16.msra.mxu0 %v4405
        %7478 = vmatpush.bf16.msra.mxu0 %v4397
        %7479 = vmatpush.bf16.msra.mxu0 %v4389
        %7480 = vmatmul.bf16.gmra.mxu0 %v1278
        %v7481 = vpop.f32.mrf.mxu0
        %v7482 = vadd.f32 0.0, %v7481
        %v7483 = vpop.f32.mrf.mxu0
        %7484 = vdwg.mxu0
        %7485 = vmatpush.bf16.msra.mxu0 %v4509
        %7486 = vmatpush.bf16.msra.mxu0 %v4501
        %7487 = vmatpush.bf16.msra.mxu0 %v4493
        %7488 = vmatpush.bf16.msra.mxu0 %v4485
        %7489 = vmatpush.bf16.msra.mxu0 %v4477
        %7490 = vmatpush.bf16.msra.mxu0 %v4469
        %7491 = vmatpush.bf16.msra.mxu0 %v4461
        %7492 = vmatpush.bf16.msra.mxu0 %v4453
        %7493 = vmatmul.bf16.gmra.mxu0 %v1279
        %v7494 = vpop.f32.mrf.mxu0
        %v7495 = vadd.f32 %v7482, %v7494
        %v7496 = vpop.f32.mrf.mxu0
        %7497 = vdwg.mxu0
        %7498 = vmatpush.bf16.msra.mxu0 %v4573
        %7499 = vmatpush.bf16.msra.mxu0 %v4565
        %7500 = vmatpush.bf16.msra.mxu0 %v4557
        %7501 = vmatpush.bf16.msra.mxu0 %v4549
        %7502 = vmatpush.bf16.msra.mxu0 %v4541
        %7503 = vmatpush.bf16.msra.mxu0 %v4533
        %7504 = vmatpush.bf16.msra.mxu0 %v4525
        %7505 = vmatpush.bf16.msra.mxu0 %v4517
        %7506 = vmatmul.bf16.gmra.mxu0 %v1280
        %v7507 = vpop.f32.mrf.mxu0
        %v7508 = vadd.f32 %v7495, %v7507
        %v7509 = vpop.f32.mrf.mxu0
        %7510 = vdwg.mxu0
        %7511 = vmatpush.bf16.msra.mxu0 %v4637
        %7512 = vmatpush.bf16.msra.mxu0 %v4629
        %7513 = vmatpush.bf16.msra.mxu0 %v4621
        %7514 = vmatpush.bf16.msra.mxu0 %v4613
        %7515 = vmatpush.bf16.msra.mxu0 %v4605
        %7516 = vmatpush.bf16.msra.mxu0 %v4597
        %7517 = vmatpush.bf16.msra.mxu0 %v4589
        %7518 = vmatpush.bf16.msra.mxu0 %v4581
        %7519 = vmatmul.bf16.gmra.mxu0 %v1281
        %v7520 = vpop.f32.mrf.mxu0
        %v7521 = vadd.f32 %v7508, %v7520
        %v7522 = vpop.f32.mrf.mxu0
        %7523 = vdwg.mxu0
        %7524 = vmatpush.bf16.msra.mxu0 %v4701
        %7525 = vmatpush.bf16.msra.mxu0 %v4693
        %7526 = vmatpush.bf16.msra.mxu0 %v4685
        %7527 = vmatpush.bf16.msra.mxu0 %v4677
        %7528 = vmatpush.bf16.msra.mxu0 %v4669
        %7529 = vmatpush.bf16.msra.mxu0 %v4661
        %7530 = vmatpush.bf16.msra.mxu0 %v4653
        %7531 = vmatpush.bf16.msra.mxu0 %v4645
        %7532 = vmatmul.bf16.gmra.mxu0 %v1282
        %v7533 = vpop.f32.mrf.mxu0
        %v7534 = vadd.f32 %v7521, %v7533
        %v7535 = vpop.f32.mrf.mxu0
        %7536 = vdwg.mxu0
        %7537 = vmatpush.bf16.msra.mxu0 %v4765
        %7538 = vmatpush.bf16.msra.mxu0 %v4757
        %7539 = vmatpush.bf16.msra.mxu0 %v4749
        %7540 = vmatpush.bf16.msra.mxu0 %v4741
        %7541 = vmatpush.bf16.msra.mxu0 %v4733
        %7542 = vmatpush.bf16.msra.mxu0 %v4725
        %7543 = vmatpush.bf16.msra.mxu0 %v4717
        %7544 = vmatpush.bf16.msra.mxu0 %v4709
        %7545 = vmatmul.bf16.gmra.mxu0 %v1283
        %v7546 = vpop.f32.mrf.mxu0
        %v7547 = vadd.f32 %v7534, %v7546
        %v7548 = vpop.f32.mrf.mxu0
        %7549 = vdwg.mxu0
        %7550 = vmatpush.bf16.msra.mxu0 %v4829
        %7551 = vmatpush.bf16.msra.mxu0 %v4821
        %7552 = vmatpush.bf16.msra.mxu0 %v4813
        %7553 = vmatpush.bf16.msra.mxu0 %v4805
        %7554 = vmatpush.bf16.msra.mxu0 %v4797
        %7555 = vmatpush.bf16.msra.mxu0 %v4789
        %7556 = vmatpush.bf16.msra.mxu0 %v4781
        %7557 = vmatpush.bf16.msra.mxu0 %v4773
        %7558 = vmatmul.bf16.gmra.mxu0 %v1284
        %v7559 = vpop.f32.mrf.mxu0
        %v7560 = vadd.f32 %v7547, %v7559
        %v7561 = vpop.f32.mrf.mxu0
        %7562 = vdwg.mxu0
        %7563 = vmatpush.bf16.msra.mxu0 %v4893
        %7564 = vmatpush.bf16.msra.mxu0 %v4885
        %7565 = vmatpush.bf16.msra.mxu0 %v4877
        %7566 = vmatpush.bf16.msra.mxu0 %v4869
        %7567 = vmatpush.bf16.msra.mxu0 %v4861
        %7568 = vmatpush.bf16.msra.mxu0 %v4853
        %7569 = vmatpush.bf16.msra.mxu0 %v4845
        %7570 = vmatpush.bf16.msra.mxu0 %v4837
        %7571 = vmatmul.bf16.gmra.mxu0 %v1285
        %v7572 = vpop.f32.mrf.mxu0
        %v7573 = vadd.f32 %v7560, %v7572
        %v7574 = vpop.f32.mrf.mxu0
        %7575 = vdwg.mxu0
        %7576 = vmatpush.bf16.msra.mxu0 %v4957
        %7577 = vmatpush.bf16.msra.mxu0 %v4949
        %7578 = vmatpush.bf16.msra.mxu0 %v4941
        %7579 = vmatpush.bf16.msra.mxu0 %v4933
        %7580 = vmatpush.bf16.msra.mxu0 %v4925
        %7581 = vmatpush.bf16.msra.mxu0 %v4917
        %7582 = vmatpush.bf16.msra.mxu0 %v4909
        %7583 = vmatpush.bf16.msra.mxu0 %v4901
        %7584 = vmatmul.bf16.gmra.mxu0 %v1288
        %v7585 = vpop.f32.mrf.mxu0
        %v7586 = vadd.f32 %v7573, %v7585
        %v7587 = vpop.f32.mrf.mxu0
        %7588 = vdwg.mxu0
        %7589 = vmatpush.bf16.msra.mxu0 %v5021
        %7590 = vmatpush.bf16.msra.mxu0 %v5013
        %7591 = vmatpush.bf16.msra.mxu0 %v5005
        %7592 = vmatpush.bf16.msra.mxu0 %v4997
        %7593 = vmatpush.bf16.msra.mxu0 %v4989
        %7594 = vmatpush.bf16.msra.mxu0 %v4981
        %7595 = vmatpush.bf16.msra.mxu0 %v4973
        %7596 = vmatpush.bf16.msra.mxu0 %v4965
        %7597 = vmatmul.bf16.gmra.mxu0 %v1289
        %v7598 = vpop.f32.mrf.mxu0
        %v7599 = vadd.f32 %v7586, %v7598
        %v7600 = vpop.f32.mrf.mxu0
        %7601 = vdwg.mxu0
        %7602 = vmatpush.bf16.msra.mxu0 %v5085
        %7603 = vmatpush.bf16.msra.mxu0 %v5077
        %7604 = vmatpush.bf16.msra.mxu0 %v5069
        %7605 = vmatpush.bf16.msra.mxu0 %v5061
        %7606 = vmatpush.bf16.msra.mxu0 %v5053
        %7607 = vmatpush.bf16.msra.mxu0 %v5045
        %7608 = vmatpush.bf16.msra.mxu0 %v5037
        %7609 = vmatpush.bf16.msra.mxu0 %v5029
        %7610 = vmatmul.bf16.gmra.mxu0 %v1290
        %v7611 = vpop.f32.mrf.mxu0
        %v7612 = vadd.f32 %v7599, %v7611
        %v7613 = vpop.f32.mrf.mxu0
        %7614 = vdwg.mxu0
        %7615 = vmatpush.bf16.msra.mxu0 %v5149
        %7616 = vmatpush.bf16.msra.mxu0 %v5141
        %7617 = vmatpush.bf16.msra.mxu0 %v5133
        %7618 = vmatpush.bf16.msra.mxu0 %v5125
        %7619 = vmatpush.bf16.msra.mxu0 %v5117
        %7620 = vmatpush.bf16.msra.mxu0 %v5109
        %7621 = vmatpush.bf16.msra.mxu0 %v5101
        %7622 = vmatpush.bf16.msra.mxu0 %v5093
        %7623 = vmatmul.bf16.gmra.mxu0 %v1291
        %v7624 = vpop.f32.mrf.mxu0
        %v7625 = vadd.f32 %v7612, %v7624
        %v7626 = vpop.f32.mrf.mxu0
        %7627 = vdwg.mxu0
        %7628 = vmatpush.bf16.msra.mxu0 %v5213
        %7629 = vmatpush.bf16.msra.mxu0 %v5205
        %7630 = vmatpush.bf16.msra.mxu0 %v5197
        %7631 = vmatpush.bf16.msra.mxu0 %v5189
        %7632 = vmatpush.bf16.msra.mxu0 %v5181
        %7633 = vmatpush.bf16.msra.mxu0 %v5173
        %7634 = vmatpush.bf16.msra.mxu0 %v5165
        %7635 = vmatpush.bf16.msra.mxu0 %v5157
        %7636 = vmatmul.bf16.gmra.mxu0 %v1292
        %v7637 = vpop.f32.mrf.mxu0
        %v7638 = vadd.f32 %v7625, %v7637
        %v7639 = vpop.f32.mrf.mxu0
        %7640 = vdwg.mxu0
        %7641 = vmatpush.bf16.msra.mxu0 %v5277
        %7642 = vmatpush.bf16.msra.mxu0 %v5269
        %7643 = vmatpush.bf16.msra.mxu0 %v5261
        %7644 = vmatpush.bf16.msra.mxu0 %v5253
        %7645 = vmatpush.bf16.msra.mxu0 %v5245
        %7646 = vmatpush.bf16.msra.mxu0 %v5237
        %7647 = vmatpush.bf16.msra.mxu0 %v5229
        %7648 = vmatpush.bf16.msra.mxu0 %v5221
        %7649 = vmatmul.bf16.gmra.mxu0 %v1293
        %v7650 = vpop.f32.mrf.mxu0
        %v7651 = vadd.f32 %v7638, %v7650
        %v7652 = vpop.f32.mrf.mxu0
        %7653 = vdwg.mxu0
        %7654 = vmatpush.bf16.msra.mxu0 %v5341
        %7655 = vmatpush.bf16.msra.mxu0 %v5333
        %7656 = vmatpush.bf16.msra.mxu0 %v5325
        %7657 = vmatpush.bf16.msra.mxu0 %v5317
        %7658 = vmatpush.bf16.msra.mxu0 %v5309
        %7659 = vmatpush.bf16.msra.mxu0 %v5301
        %7660 = vmatpush.bf16.msra.mxu0 %v5293
        %7661 = vmatpush.bf16.msra.mxu0 %v5285
        %7662 = vmatmul.bf16.gmra.mxu0 %v1294
        %v7663 = vpop.f32.mrf.mxu0
        %v7664 = vadd.f32 %v7651, %v7663
        %v7665 = vpop.f32.mrf.mxu0
        %7666 = vdwg.mxu0
        %7667 = vmatpush.bf16.msra.mxu0 %v5405
        %7668 = vmatpush.bf16.msra.mxu0 %v5397
        %7669 = vmatpush.bf16.msra.mxu0 %v5389
        %7670 = vmatpush.bf16.msra.mxu0 %v5381
        %7671 = vmatpush.bf16.msra.mxu0 %v5373
        %7672 = vmatpush.bf16.msra.mxu0 %v5365
        %7673 = vmatpush.bf16.msra.mxu0 %v5357
        %7674 = vmatpush.bf16.msra.mxu0 %v5349
        %7675 = vmatmul.bf16.gmra.mxu0 %v1295
        %v7676 = vpop.f32.mrf.mxu0
        %v7677 = vadd.f32 %v7664, %v7676
        %v7678 = vpop.f32.mrf.mxu0
        %7679 = vdwg.mxu0
        %7680 = vmatpush.bf16.msra.mxu0 %v4446
        %7681 = vmatpush.bf16.msra.mxu0 %v4438
        %7682 = vmatpush.bf16.msra.mxu0 %v4430
        %7683 = vmatpush.bf16.msra.mxu0 %v4422
        %7684 = vmatpush.bf16.msra.mxu0 %v4414
        %7685 = vmatpush.bf16.msra.mxu0 %v4406
        %7686 = vmatpush.bf16.msra.mxu0 %v4398
        %7687 = vmatpush.bf16.msra.mxu0 %v4390
        %7688 = vmatmul.bf16.gmra.mxu0 %v1278
        %v7689 = vpop.f32.mrf.mxu0
        %v7690 = vadd.f32 0.0, %v7689
        %v7691 = vpop.f32.mrf.mxu0
        %7692 = vdwg.mxu0
        %7693 = vmatpush.bf16.msra.mxu0 %v4510
        %7694 = vmatpush.bf16.msra.mxu0 %v4502
        %7695 = vmatpush.bf16.msra.mxu0 %v4494
        %7696 = vmatpush.bf16.msra.mxu0 %v4486
        %7697 = vmatpush.bf16.msra.mxu0 %v4478
        %7698 = vmatpush.bf16.msra.mxu0 %v4470
        %7699 = vmatpush.bf16.msra.mxu0 %v4462
        %7700 = vmatpush.bf16.msra.mxu0 %v4454
        %7701 = vmatmul.bf16.gmra.mxu0 %v1279
        %v7702 = vpop.f32.mrf.mxu0
        %v7703 = vadd.f32 %v7690, %v7702
        %v7704 = vpop.f32.mrf.mxu0
        %7705 = vdwg.mxu0
        %7706 = vmatpush.bf16.msra.mxu0 %v4574
        %7707 = vmatpush.bf16.msra.mxu0 %v4566
        %7708 = vmatpush.bf16.msra.mxu0 %v4558
        %7709 = vmatpush.bf16.msra.mxu0 %v4550
        %7710 = vmatpush.bf16.msra.mxu0 %v4542
        %7711 = vmatpush.bf16.msra.mxu0 %v4534
        %7712 = vmatpush.bf16.msra.mxu0 %v4526
        %7713 = vmatpush.bf16.msra.mxu0 %v4518
        %7714 = vmatmul.bf16.gmra.mxu0 %v1280
        %v7715 = vpop.f32.mrf.mxu0
        %v7716 = vadd.f32 %v7703, %v7715
        %v7717 = vpop.f32.mrf.mxu0
        %7718 = vdwg.mxu0
        %7719 = vmatpush.bf16.msra.mxu0 %v4638
        %7720 = vmatpush.bf16.msra.mxu0 %v4630
        %7721 = vmatpush.bf16.msra.mxu0 %v4622
        %7722 = vmatpush.bf16.msra.mxu0 %v4614
        %7723 = vmatpush.bf16.msra.mxu0 %v4606
        %7724 = vmatpush.bf16.msra.mxu0 %v4598
        %7725 = vmatpush.bf16.msra.mxu0 %v4590
        %7726 = vmatpush.bf16.msra.mxu0 %v4582
        %7727 = vmatmul.bf16.gmra.mxu0 %v1281
        %v7728 = vpop.f32.mrf.mxu0
        %v7729 = vadd.f32 %v7716, %v7728
        %v7730 = vpop.f32.mrf.mxu0
        %7731 = vdwg.mxu0
        %7732 = vmatpush.bf16.msra.mxu0 %v4702
        %7733 = vmatpush.bf16.msra.mxu0 %v4694
        %7734 = vmatpush.bf16.msra.mxu0 %v4686
        %7735 = vmatpush.bf16.msra.mxu0 %v4678
        %7736 = vmatpush.bf16.msra.mxu0 %v4670
        %7737 = vmatpush.bf16.msra.mxu0 %v4662
        %7738 = vmatpush.bf16.msra.mxu0 %v4654
        %7739 = vmatpush.bf16.msra.mxu0 %v4646
        %7740 = vmatmul.bf16.gmra.mxu0 %v1282
        %v7741 = vpop.f32.mrf.mxu0
        %v7742 = vadd.f32 %v7729, %v7741
        %v7743 = vpop.f32.mrf.mxu0
        %7744 = vdwg.mxu0
        %7745 = vmatpush.bf16.msra.mxu0 %v4766
        %7746 = vmatpush.bf16.msra.mxu0 %v4758
        %7747 = vmatpush.bf16.msra.mxu0 %v4750
        %7748 = vmatpush.bf16.msra.mxu0 %v4742
        %7749 = vmatpush.bf16.msra.mxu0 %v4734
        %7750 = vmatpush.bf16.msra.mxu0 %v4726
        %7751 = vmatpush.bf16.msra.mxu0 %v4718
        %7752 = vmatpush.bf16.msra.mxu0 %v4710
        %7753 = vmatmul.bf16.gmra.mxu0 %v1283
        %v7754 = vpop.f32.mrf.mxu0
        %v7755 = vadd.f32 %v7742, %v7754
        %v7756 = vpop.f32.mrf.mxu0
        %7757 = vdwg.mxu0
        %7758 = vmatpush.bf16.msra.mxu0 %v4830
        %7759 = vmatpush.bf16.msra.mxu0 %v4822
        %7760 = vmatpush.bf16.msra.mxu0 %v4814
        %7761 = vmatpush.bf16.msra.mxu0 %v4806
        %7762 = vmatpush.bf16.msra.mxu0 %v4798
        %7763 = vmatpush.bf16.msra.mxu0 %v4790
        %7764 = vmatpush.bf16.msra.mxu0 %v4782
        %7765 = vmatpush.bf16.msra.mxu0 %v4774
        %7766 = vmatmul.bf16.gmra.mxu0 %v1284
        %v7767 = vpop.f32.mrf.mxu0
        %v7768 = vadd.f32 %v7755, %v7767
        %v7769 = vpop.f32.mrf.mxu0
        %7770 = vdwg.mxu0
        %7771 = vmatpush.bf16.msra.mxu0 %v4894
        %7772 = vmatpush.bf16.msra.mxu0 %v4886
        %7773 = vmatpush.bf16.msra.mxu0 %v4878
        %7774 = vmatpush.bf16.msra.mxu0 %v4870
        %7775 = vmatpush.bf16.msra.mxu0 %v4862
        %7776 = vmatpush.bf16.msra.mxu0 %v4854
        %7777 = vmatpush.bf16.msra.mxu0 %v4846
        %7778 = vmatpush.bf16.msra.mxu0 %v4838
        %7779 = vmatmul.bf16.gmra.mxu0 %v1285
        %v7780 = vpop.f32.mrf.mxu0
        %v7781 = vadd.f32 %v7768, %v7780
        %v7782 = vpop.f32.mrf.mxu0
        %7783 = vdwg.mxu0
        %7784 = vmatpush.bf16.msra.mxu0 %v4958
        %7785 = vmatpush.bf16.msra.mxu0 %v4950
        %7786 = vmatpush.bf16.msra.mxu0 %v4942
        %7787 = vmatpush.bf16.msra.mxu0 %v4934
        %7788 = vmatpush.bf16.msra.mxu0 %v4926
        %7789 = vmatpush.bf16.msra.mxu0 %v4918
        %7790 = vmatpush.bf16.msra.mxu0 %v4910
        %7791 = vmatpush.bf16.msra.mxu0 %v4902
        %7792 = vmatmul.bf16.gmra.mxu0 %v1288
        %v7793 = vpop.f32.mrf.mxu0
        %v7794 = vadd.f32 %v7781, %v7793
        %v7795 = vpop.f32.mrf.mxu0
        %7796 = vdwg.mxu0
        %7797 = vmatpush.bf16.msra.mxu0 %v5022
        %7798 = vmatpush.bf16.msra.mxu0 %v5014
        %7799 = vmatpush.bf16.msra.mxu0 %v5006
        %7800 = vmatpush.bf16.msra.mxu0 %v4998
        %7801 = vmatpush.bf16.msra.mxu0 %v4990
        %7802 = vmatpush.bf16.msra.mxu0 %v4982
        %7803 = vmatpush.bf16.msra.mxu0 %v4974
        %7804 = vmatpush.bf16.msra.mxu0 %v4966
        %7805 = vmatmul.bf16.gmra.mxu0 %v1289
        %v7806 = vpop.f32.mrf.mxu0
        %v7807 = vadd.f32 %v7794, %v7806
        %v7808 = vpop.f32.mrf.mxu0
        %7809 = vdwg.mxu0
        %7810 = vmatpush.bf16.msra.mxu0 %v5086
        %7811 = vmatpush.bf16.msra.mxu0 %v5078
        %7812 = vmatpush.bf16.msra.mxu0 %v5070
        %7813 = vmatpush.bf16.msra.mxu0 %v5062
        %7814 = vmatpush.bf16.msra.mxu0 %v5054
        %7815 = vmatpush.bf16.msra.mxu0 %v5046
        %7816 = vmatpush.bf16.msra.mxu0 %v5038
        %7817 = vmatpush.bf16.msra.mxu0 %v5030
        %7818 = vmatmul.bf16.gmra.mxu0 %v1290
        %v7819 = vpop.f32.mrf.mxu0
        %v7820 = vadd.f32 %v7807, %v7819
        %v7821 = vpop.f32.mrf.mxu0
        %7822 = vdwg.mxu0
        %7823 = vmatpush.bf16.msra.mxu0 %v5150
        %7824 = vmatpush.bf16.msra.mxu0 %v5142
        %7825 = vmatpush.bf16.msra.mxu0 %v5134
        %7826 = vmatpush.bf16.msra.mxu0 %v5126
        %7827 = vmatpush.bf16.msra.mxu0 %v5118
        %7828 = vmatpush.bf16.msra.mxu0 %v5110
        %7829 = vmatpush.bf16.msra.mxu0 %v5102
        %7830 = vmatpush.bf16.msra.mxu0 %v5094
        %7831 = vmatmul.bf16.gmra.mxu0 %v1291
        %v7832 = vpop.f32.mrf.mxu0
        %v7833 = vadd.f32 %v7820, %v7832
        %v7834 = vpop.f32.mrf.mxu0
        %7835 = vdwg.mxu0
        %7836 = vmatpush.bf16.msra.mxu0 %v5214
        %7837 = vmatpush.bf16.msra.mxu0 %v5206
        %7838 = vmatpush.bf16.msra.mxu0 %v5198
        %7839 = vmatpush.bf16.msra.mxu0 %v5190
        %7840 = vmatpush.bf16.msra.mxu0 %v5182
        %7841 = vmatpush.bf16.msra.mxu0 %v5174
        %7842 = vmatpush.bf16.msra.mxu0 %v5166
        %7843 = vmatpush.bf16.msra.mxu0 %v5158
        %7844 = vmatmul.bf16.gmra.mxu0 %v1292
        %v7845 = vpop.f32.mrf.mxu0
        %v7846 = vadd.f32 %v7833, %v7845
        %v7847 = vpop.f32.mrf.mxu0
        %7848 = vdwg.mxu0
        %7849 = vmatpush.bf16.msra.mxu0 %v5278
        %7850 = vmatpush.bf16.msra.mxu0 %v5270
        %7851 = vmatpush.bf16.msra.mxu0 %v5262
        %7852 = vmatpush.bf16.msra.mxu0 %v5254
        %7853 = vmatpush.bf16.msra.mxu0 %v5246
        %7854 = vmatpush.bf16.msra.mxu0 %v5238
        %7855 = vmatpush.bf16.msra.mxu0 %v5230
        %7856 = vmatpush.bf16.msra.mxu0 %v5222
        %7857 = vmatmul.bf16.gmra.mxu0 %v1293
        %v7858 = vpop.f32.mrf.mxu0
        %v7859 = vadd.f32 %v7846, %v7858
        %v7860 = vpop.f32.mrf.mxu0
        %7861 = vdwg.mxu0
        %7862 = vmatpush.bf16.msra.mxu0 %v5342
        %7863 = vmatpush.bf16.msra.mxu0 %v5334
        %7864 = vmatpush.bf16.msra.mxu0 %v5326
        %7865 = vmatpush.bf16.msra.mxu0 %v5318
        %7866 = vmatpush.bf16.msra.mxu0 %v5310
        %7867 = vmatpush.bf16.msra.mxu0 %v5302
        %7868 = vmatpush.bf16.msra.mxu0 %v5294
        %7869 = vmatpush.bf16.msra.mxu0 %v5286
        %7870 = vmatmul.bf16.gmra.mxu0 %v1294
        %v7871 = vpop.f32.mrf.mxu0
        %v7872 = vadd.f32 %v7859, %v7871
        %v7873 = vpop.f32.mrf.mxu0
        %7874 = vdwg.mxu0
        %7875 = vmatpush.bf16.msra.mxu0 %v5406
        %7876 = vmatpush.bf16.msra.mxu0 %v5398
        %7877 = vmatpush.bf16.msra.mxu0 %v5390
        %7878 = vmatpush.bf16.msra.mxu0 %v5382
        %7879 = vmatpush.bf16.msra.mxu0 %v5374
        %7880 = vmatpush.bf16.msra.mxu0 %v5366
        %7881 = vmatpush.bf16.msra.mxu0 %v5358
        %7882 = vmatpush.bf16.msra.mxu0 %v5350
        %7883 = vmatmul.bf16.gmra.mxu0 %v1295
        %v7884 = vpop.f32.mrf.mxu0
        %v7885 = vadd.f32 %v7872, %v7884
        %v7886 = vpop.f32.mrf.mxu0
        %7887 = vdwg.mxu0
        %7888 = vmatpush.bf16.msra.mxu0 %v4447
        %7889 = vmatpush.bf16.msra.mxu0 %v4439
        %7890 = vmatpush.bf16.msra.mxu0 %v4431
        %7891 = vmatpush.bf16.msra.mxu0 %v4423
        %7892 = vmatpush.bf16.msra.mxu0 %v4415
        %7893 = vmatpush.bf16.msra.mxu0 %v4407
        %7894 = vmatpush.bf16.msra.mxu0 %v4399
        %7895 = vmatpush.bf16.msra.mxu0 %v4391
        %7896 = vmatmul.bf16.gmra.mxu0 %v1278
        %v7897 = vpop.f32.mrf.mxu0
        %v7898 = vadd.f32 0.0, %v7897
        %v7899 = vpop.f32.mrf.mxu0
        %7900 = vdwg.mxu0
        %7901 = vmatpush.bf16.msra.mxu0 %v4511
        %7902 = vmatpush.bf16.msra.mxu0 %v4503
        %7903 = vmatpush.bf16.msra.mxu0 %v4495
        %7904 = vmatpush.bf16.msra.mxu0 %v4487
        %7905 = vmatpush.bf16.msra.mxu0 %v4479
        %7906 = vmatpush.bf16.msra.mxu0 %v4471
        %7907 = vmatpush.bf16.msra.mxu0 %v4463
        %7908 = vmatpush.bf16.msra.mxu0 %v4455
        %7909 = vmatmul.bf16.gmra.mxu0 %v1279
        %v7910 = vpop.f32.mrf.mxu0
        %v7911 = vadd.f32 %v7898, %v7910
        %v7912 = vpop.f32.mrf.mxu0
        %7913 = vdwg.mxu0
        %7914 = vmatpush.bf16.msra.mxu0 %v4575
        %7915 = vmatpush.bf16.msra.mxu0 %v4567
        %7916 = vmatpush.bf16.msra.mxu0 %v4559
        %7917 = vmatpush.bf16.msra.mxu0 %v4551
        %7918 = vmatpush.bf16.msra.mxu0 %v4543
        %7919 = vmatpush.bf16.msra.mxu0 %v4535
        %7920 = vmatpush.bf16.msra.mxu0 %v4527
        %7921 = vmatpush.bf16.msra.mxu0 %v4519
        %7922 = vmatmul.bf16.gmra.mxu0 %v1280
        %v7923 = vpop.f32.mrf.mxu0
        %v7924 = vadd.f32 %v7911, %v7923
        %v7925 = vpop.f32.mrf.mxu0
        %7926 = vdwg.mxu0
        %7927 = vmatpush.bf16.msra.mxu0 %v4639
        %7928 = vmatpush.bf16.msra.mxu0 %v4631
        %7929 = vmatpush.bf16.msra.mxu0 %v4623
        %7930 = vmatpush.bf16.msra.mxu0 %v4615
        %7931 = vmatpush.bf16.msra.mxu0 %v4607
        %7932 = vmatpush.bf16.msra.mxu0 %v4599
        %7933 = vmatpush.bf16.msra.mxu0 %v4591
        %7934 = vmatpush.bf16.msra.mxu0 %v4583
        %7935 = vmatmul.bf16.gmra.mxu0 %v1281
        %v7936 = vpop.f32.mrf.mxu0
        %v7937 = vadd.f32 %v7924, %v7936
        %v7938 = vpop.f32.mrf.mxu0
        %7939 = vdwg.mxu0
        %7940 = vmatpush.bf16.msra.mxu0 %v4703
        %7941 = vmatpush.bf16.msra.mxu0 %v4695
        %7942 = vmatpush.bf16.msra.mxu0 %v4687
        %7943 = vmatpush.bf16.msra.mxu0 %v4679
        %7944 = vmatpush.bf16.msra.mxu0 %v4671
        %7945 = vmatpush.bf16.msra.mxu0 %v4663
        %7946 = vmatpush.bf16.msra.mxu0 %v4655
        %7947 = vmatpush.bf16.msra.mxu0 %v4647
        %7948 = vmatmul.bf16.gmra.mxu0 %v1282
        %v7949 = vpop.f32.mrf.mxu0
        %v7950 = vadd.f32 %v7937, %v7949
        %v7951 = vpop.f32.mrf.mxu0
        %7952 = vdwg.mxu0
        %7953 = vmatpush.bf16.msra.mxu0 %v4767
        %7954 = vmatpush.bf16.msra.mxu0 %v4759
        %7955 = vmatpush.bf16.msra.mxu0 %v4751
        %7956 = vmatpush.bf16.msra.mxu0 %v4743
        %7957 = vmatpush.bf16.msra.mxu0 %v4735
        %7958 = vmatpush.bf16.msra.mxu0 %v4727
        %7959 = vmatpush.bf16.msra.mxu0 %v4719
        %7960 = vmatpush.bf16.msra.mxu0 %v4711
        %7961 = vmatmul.bf16.gmra.mxu0 %v1283
        %v7962 = vpop.f32.mrf.mxu0
        %v7963 = vadd.f32 %v7950, %v7962
        %v7964 = vpop.f32.mrf.mxu0
        %7965 = vdwg.mxu0
        %7966 = vmatpush.bf16.msra.mxu0 %v4831
        %7967 = vmatpush.bf16.msra.mxu0 %v4823
        %7968 = vmatpush.bf16.msra.mxu0 %v4815
        %7969 = vmatpush.bf16.msra.mxu0 %v4807
        %7970 = vmatpush.bf16.msra.mxu0 %v4799
        %7971 = vmatpush.bf16.msra.mxu0 %v4791
        %7972 = vmatpush.bf16.msra.mxu0 %v4783
        %7973 = vmatpush.bf16.msra.mxu0 %v4775
        %7974 = vmatmul.bf16.gmra.mxu0 %v1284
        %v7975 = vpop.f32.mrf.mxu0
        %v7976 = vadd.f32 %v7963, %v7975
        %v7977 = vpop.f32.mrf.mxu0
        %7978 = vdwg.mxu0
        %7979 = vmatpush.bf16.msra.mxu0 %v4895
        %7980 = vmatpush.bf16.msra.mxu0 %v4887
        %7981 = vmatpush.bf16.msra.mxu0 %v4879
        %7982 = vmatpush.bf16.msra.mxu0 %v4871
        %7983 = vmatpush.bf16.msra.mxu0 %v4863
        %7984 = vmatpush.bf16.msra.mxu0 %v4855
        %7985 = vmatpush.bf16.msra.mxu0 %v4847
        %7986 = vmatpush.bf16.msra.mxu0 %v4839
        %7987 = vmatmul.bf16.gmra.mxu0 %v1285
        %v7988 = vpop.f32.mrf.mxu0
        %v7989 = vadd.f32 %v7976, %v7988
        %v7990 = vpop.f32.mrf.mxu0
        %7991 = vdwg.mxu0
        %7992 = vmatpush.bf16.msra.mxu0 %v4959
        %7993 = vmatpush.bf16.msra.mxu0 %v4951
        %7994 = vmatpush.bf16.msra.mxu0 %v4943
        %7995 = vmatpush.bf16.msra.mxu0 %v4935
        %7996 = vmatpush.bf16.msra.mxu0 %v4927
        %7997 = vmatpush.bf16.msra.mxu0 %v4919
        %7998 = vmatpush.bf16.msra.mxu0 %v4911
        %7999 = vmatpush.bf16.msra.mxu0 %v4903
        %8000 = vmatmul.bf16.gmra.mxu0 %v1288
        %v8001 = vpop.f32.mrf.mxu0
        %v8002 = vadd.f32 %v7989, %v8001
        %v8003 = vpop.f32.mrf.mxu0
        %8004 = vdwg.mxu0
        %8005 = vmatpush.bf16.msra.mxu0 %v5023
        %8006 = vmatpush.bf16.msra.mxu0 %v5015
        %8007 = vmatpush.bf16.msra.mxu0 %v5007
        %8008 = vmatpush.bf16.msra.mxu0 %v4999
        %8009 = vmatpush.bf16.msra.mxu0 %v4991
        %8010 = vmatpush.bf16.msra.mxu0 %v4983
        %8011 = vmatpush.bf16.msra.mxu0 %v4975
        %8012 = vmatpush.bf16.msra.mxu0 %v4967
        %8013 = vmatmul.bf16.gmra.mxu0 %v1289
        %v8014 = vpop.f32.mrf.mxu0
        %v8015 = vadd.f32 %v8002, %v8014
        %v8016 = vpop.f32.mrf.mxu0
        %8017 = vdwg.mxu0
        %8018 = vmatpush.bf16.msra.mxu0 %v5087
        %8019 = vmatpush.bf16.msra.mxu0 %v5079
        %8020 = vmatpush.bf16.msra.mxu0 %v5071
        %8021 = vmatpush.bf16.msra.mxu0 %v5063
        %8022 = vmatpush.bf16.msra.mxu0 %v5055
        %8023 = vmatpush.bf16.msra.mxu0 %v5047
        %8024 = vmatpush.bf16.msra.mxu0 %v5039
        %8025 = vmatpush.bf16.msra.mxu0 %v5031
        %8026 = vmatmul.bf16.gmra.mxu0 %v1290
        %v8027 = vpop.f32.mrf.mxu0
        %v8028 = vadd.f32 %v8015, %v8027
        %v8029 = vpop.f32.mrf.mxu0
        %8030 = vdwg.mxu0
        %8031 = vmatpush.bf16.msra.mxu0 %v5151
        %8032 = vmatpush.bf16.msra.mxu0 %v5143
        %8033 = vmatpush.bf16.msra.mxu0 %v5135
        %8034 = vmatpush.bf16.msra.mxu0 %v5127
        %8035 = vmatpush.bf16.msra.mxu0 %v5119
        %8036 = vmatpush.bf16.msra.mxu0 %v5111
        %8037 = vmatpush.bf16.msra.mxu0 %v5103
        %8038 = vmatpush.bf16.msra.mxu0 %v5095
        %8039 = vmatmul.bf16.gmra.mxu0 %v1291
        %v8040 = vpop.f32.mrf.mxu0
        %v8041 = vadd.f32 %v8028, %v8040
        %v8042 = vpop.f32.mrf.mxu0
        %8043 = vdwg.mxu0
        %8044 = vmatpush.bf16.msra.mxu0 %v5215
        %8045 = vmatpush.bf16.msra.mxu0 %v5207
        %8046 = vmatpush.bf16.msra.mxu0 %v5199
        %8047 = vmatpush.bf16.msra.mxu0 %v5191
        %8048 = vmatpush.bf16.msra.mxu0 %v5183
        %8049 = vmatpush.bf16.msra.mxu0 %v5175
        %8050 = vmatpush.bf16.msra.mxu0 %v5167
        %8051 = vmatpush.bf16.msra.mxu0 %v5159
        %8052 = vmatmul.bf16.gmra.mxu0 %v1292
        %v8053 = vpop.f32.mrf.mxu0
        %v8054 = vadd.f32 %v8041, %v8053
        %v8055 = vpop.f32.mrf.mxu0
        %8056 = vdwg.mxu0
        %8057 = vmatpush.bf16.msra.mxu0 %v5279
        %8058 = vmatpush.bf16.msra.mxu0 %v5271
        %8059 = vmatpush.bf16.msra.mxu0 %v5263
        %8060 = vmatpush.bf16.msra.mxu0 %v5255
        %8061 = vmatpush.bf16.msra.mxu0 %v5247
        %8062 = vmatpush.bf16.msra.mxu0 %v5239
        %8063 = vmatpush.bf16.msra.mxu0 %v5231
        %8064 = vmatpush.bf16.msra.mxu0 %v5223
        %8065 = vmatmul.bf16.gmra.mxu0 %v1293
        %v8066 = vpop.f32.mrf.mxu0
        %v8067 = vadd.f32 %v8054, %v8066
        %v8068 = vpop.f32.mrf.mxu0
        %8069 = vdwg.mxu0
        %8070 = vmatpush.bf16.msra.mxu0 %v5343
        %8071 = vmatpush.bf16.msra.mxu0 %v5335
        %8072 = vmatpush.bf16.msra.mxu0 %v5327
        %8073 = vmatpush.bf16.msra.mxu0 %v5319
        %8074 = vmatpush.bf16.msra.mxu0 %v5311
        %8075 = vmatpush.bf16.msra.mxu0 %v5303
        %8076 = vmatpush.bf16.msra.mxu0 %v5295
        %8077 = vmatpush.bf16.msra.mxu0 %v5287
        %8078 = vmatmul.bf16.gmra.mxu0 %v1294
        %v8079 = vpop.f32.mrf.mxu0
        %v8080 = vadd.f32 %v8067, %v8079
        %v8081 = vpop.f32.mrf.mxu0
        %8082 = vdwg.mxu0
        %8083 = vmatpush.bf16.msra.mxu0 %v5407
        %8084 = vmatpush.bf16.msra.mxu0 %v5399
        %8085 = vmatpush.bf16.msra.mxu0 %v5391
        %8086 = vmatpush.bf16.msra.mxu0 %v5383
        %8087 = vmatpush.bf16.msra.mxu0 %v5375
        %8088 = vmatpush.bf16.msra.mxu0 %v5367
        %8089 = vmatpush.bf16.msra.mxu0 %v5359
        %8090 = vmatpush.bf16.msra.mxu0 %v5351
        %8091 = vmatmul.bf16.gmra.mxu0 %v1295
        %v8092 = vpop.f32.mrf.mxu0
        %v8093 = vadd.f32 %v8080, %v8092
        %v8094 = vpop.f32.mrf.mxu0
        %8095 = vdwg.mxu0
        %v8104 = vrot.slane %v6845, 6
        %v8105 = vrot.slane %v7053, 4
        %v8106 = vrot.slane %v7261, 2
        %v8107 = vrot.slane %v7677, 6
        %v8108 = vrot.slane %v7885, 4
        %v8109 = vrot.slane %v8093, 2
        %vm8110 = vcmask 1041408
        %v8111 = vsel %vm8110, %v6637, %v8104
        %vm8112 = vcmask 1045508
        %v8113 = vsel %vm8112, %v8105, %v8106
        %vm8114 = vcmask 1043456
        %v8115 = vsel %vm8114, %v8111, %v8113
        %v8116 = vsel %vm8110, %v7469, %v8107
        %v8117 = vsel %vm8112, %v8108, %v8109
        %v8118 = vsel %vm8114, %v8116, %v8117
        %v8121 = vadd.f32 %v245, %v8115
        %v8122 = vadd.f32 %v246, %v8118
        %8123 = vst [vmem:[#allocation2] sm:$0xff] %v8121
        %8124 = vst [vmem:[#allocation2 + $0x8] sm:$0xff] %v8122
        %p8125 = scmp.eq.s32.totalorder %s24, 3
        // Predicated region
        $region49: #{tpu_custom_call.1} parent=31 // pred_check
          %p8126 = pneg %p8125
        $region50: #{tpu_custom_call.1} parent=31 // pred_check_branch
          %8128 = sbr.rel (%p8126) target = $region52
        $region51: #{tpu_custom_call.1} parent=31 // pred_region
          %v8129 = vld [vmem:[#allocation2] sm:$0xff]
          %v8130 = vld [vmem:[#allocation2 + $0x8] sm:$0xff]
          %v8131 = vld [vmem:[#allocation8] sm:$0xff]
          %v8133 = vperm.slane %v8131, 0
          %v8134 = vperm.slane %v8131, 1
          %v8135 = vperm.slane %v8131, 2
          %v8136 = vperm.slane %v8131, 3
          %v8137 = vperm.slane %v8131, 4
          %v8138 = vperm.slane %v8131, 5
          %v8139 = vperm.slane %v8131, 6
          %v8140 = vperm.slane %v8131, 7
          %v8141 = vrot.slane %v8134, 6
          %v8142 = vrot.slane %v8135, 4
          %v8143 = vrot.slane %v8136, 2
          %v8144 = vrot.slane %v8138, 6
          %v8145 = vrot.slane %v8139, 4
          %v8146 = vrot.slane %v8140, 2
          %v8147 = vsel %vm8110, %v8133, %v8141
          %v8148 = vsel %vm8112, %v8142, %v8143
          %v8149 = vsel %vm8114, %v8147, %v8148
          %v8150 = vsel %vm8110, %v8137, %v8144
          %v8151 = vsel %vm8112, %v8145, %v8146
          %v8152 = vsel %vm8114, %v8150, %v8151
          %v8155 = vadd.f32 %v8129, %v8149
          %v8156 = vadd.f32 %v8130, %v8152
          %vm8157 = vcmp.gt.f32.partialorder %v8155, 0.0
          %vm8158 = vcmp.gt.f32.partialorder %v8156, 0.0
          %v8159 = vmul.f32 %v8155, 1.442695
          %v8160 = vpow.pop %v8159
          %v8161 = vmul.f32 %v8156, 1.442695
          %v8162 = vpow.pop %v8161
          %v8163 = vsub.f32 %v8160, 1.0
          %v8164 = vsub.f32 %v8162, 1.0
          %v8165 = vmul.f32 %v8163, 1.6732632
          %v8166 = vmul.f32 %v8164, 1.6732632
          %v8167 = vsel %vm8157, %v8155, %v8165
          %v8168 = vsel %vm8158, %v8156, %v8166
          %v8169 = vmul.f32 %v8167, 1.050701
          %v8170 = vmul.f32 %v8168, 1.050701
          %8173 = vst [vmem:[#allocation1] ss:$4 sm:$0xff] %v8169
          %s8174 = scalar_lea.vmem [#allocation1], 32
          %8175 = vst [vmem:[%s8174] ss:$4 sm:$0xff] %v8170
          %v8176 = vld.sshfl [vmem:[#allocation1] sm:$0xff pattern:$0x73625140]
          %v8177 = vld.sshfl [vmem:[#allocation1 + $0x8] sm:$0xff pattern:$0x73625140]
          %v8178 = vld.sshfl [vmem:[#allocation1 + $0x10] sm:$0xff pattern:$0x73625140]
          %v8179 = vld.sshfl [vmem:[#allocation1 + $0x18] sm:$0xff pattern:$0x73625140]
          %v8180 = vld.sshfl [vmem:[#allocation1 + $0x20] sm:$0xff pattern:$0x73625140]
          %v8181 = vld.sshfl [vmem:[#allocation1 + $0x28] sm:$0xff pattern:$0x73625140]
          %v8182 = vld.sshfl [vmem:[#allocation1 + $0x30] sm:$0xff pattern:$0x73625140]
          %v8183 = vld.sshfl [vmem:[#allocation1 + $0x38] sm:$0xff pattern:$0x73625140]
          %v8192 = vpack.c.bf16 %v8177, %v8176
          %v8193 = vpack.c.bf16 %v8179, %v8178
          %v8194 = vpack.c.bf16 %v8181, %v8180
          %v8195 = vpack.c.bf16 %v8183, %v8182
          %v8200 = vrot.slane %v8192, 3
          %v8201 = vrot.slane %v8193, 6
          %v8202 = vrot.slane %v8193, 1
          %v8203 = vrot.slane %v8194, 4
          %v8204 = vrot.slane %v8194, 7
          %v8205 = vrot.slane %v8195, 2
          %v8206 = vrot.slane %v8195, 5
          %vm8207 = vcmask 1040384
          %v8210 = vsel %vm8207, %v8192, %v8200
          %vm8211 = vcmask 1042434
          %v8214 = vsel %vm8211, %v8201, %v8202
          %v8215 = vsel %vm8110, %v8210, %v8214
          %vm8216 = vcmask 1044484
          %v8219 = vsel %vm8216, %v8203, %v8204
          %vm8220 = vcmask 1046534
          %v8223 = vsel %vm8220, %v8205, %v8206
          %v8224 = vsel %vm8112, %v8219, %v8223
          %v8225 = vsel %vm8114, %v8215, %v8224
          %8227 = vst [vmem:[#allocation9] sm:$0xff] %v8225
        $region52: #{tpu_custom_call.1} parent=31 // pred_fallthru
          _
        // Predicated region
        $region53: #{tpu_custom_call.1} parent=31 // pred_check
          %p8228 = pneg %p124
        $region54: #{tpu_custom_call.1} parent=31 // pred_check_branch
          %8230 = sbr.rel (%p8228) target = $region56
        $region55: #{tpu_custom_call.1} parent=31 // pred_region
          %s8231 = smul.u32 8, %s23
          %8233 = vsyncadd [#allocation5], 0
          %s8234 = scalar_lea.hbm %s3, %s8231
          %s8236 = sshll.u32 [#allocation9], 4
          %s8237 = int_to_ptr.vmem [resolvable:$true] %s8236
          %s8238 = sshll.u32 %s8234, 4
          %s8239 = int_to_ptr.hbm [resolvable:$true] %s8238
          %8241 = dma.vmem_to_hbm [thread:$0]  %s8237, 128, %s8239, [#allocation5]
        $region56: #{tpu_custom_call.1} parent=31 // pred_fallthru
          _
        // Predicated region
        $region57: #{tpu_custom_call.1} parent=31 // pred_check
          %p8242 = pneg %p124
        $region58: #{tpu_custom_call.1} parent=31 // pred_check_branch
          %8244 = sbr.rel (%p8242) target = $region60
        $region59: #{tpu_custom_call.1} parent=31 // pred_region
          %8246 = dma.done [#allocation5], 128
        $region60: #{tpu_custom_call.1} parent=31 // pred_fallthru
          _
      $region32: #{tpu_custom_call.1} parent=5 // pred_fallthru
        _
      %p8247 = scmp.le.s32.totalorder 2, %s14
      // Predicated region
      $region61: #{tpu_custom_call.1} parent=5 // pred_check
        %p8248 = pneg %p8247
      $region62: #{tpu_custom_call.1} parent=5 // pred_check_branch
        %8250 = sbr.rel (%p8248) target = $region64
      $region63: #{tpu_custom_call.1} parent=5 // pred_region
        %s8251 = ssub.s32 %s14, 2
      $region64: #{tpu_custom_call.1} parent=5 // pred_fallthru
        _
    $region6: #{tpu_custom_call.1} parent=1 // loop_footer
      %s18 = sadd.s32 1, %s14
    $region7: #{tpu_custom_call.1} parent=1 // loop_footer_branch
      %13 = sbr.rel target = $region3
    $region8: #{tpu_custom_call.1} parent=1 // loop_exit
      _
    %8252 = vsyncpa [#allocation4], 1
    %s8253 = scalar_lea.sflag [#allocation4], 1
    %8254 = vsyncpa %s8253, 1
    %8255 = vsyncpa [#allocation7], 1
    %s8256 = scalar_lea.sflag [#allocation7], 1
    %8257 = vsyncpa %s8256, 1
    %8258 = vsyncpa [#allocation5], 1
    %s8259 = scalar_lea.sflag [#allocation5], 1
    %8260 = vsyncpa %s8259, 1

</llo_original>
